<compile_context>
chip_gen: v6e
topology: v6e:2x2x1
jax: 0.10.0
libtpu: 0.0.40
codegen_flags: <defaults>
</compile_context>

<pallas_src>
import jax
import jax.numpy as jnp
from jax.experimental import pallas as pl
from jax.experimental.pallas import tpu as pltpu


def _relu_pool_kernel(x_ref, p_ref, o_ref):
    # x_ref: (TB, g*H*W)  f32   — g grouped (n, c) rows per matmul row
    # p_ref: (g*H*W, g*Ho*Wo) f32 — constant block-diagonal pooling matrix
    # o_ref: (TB, g*Ho*Wo) f32  — lane-dense pooled output
    r = jnp.maximum(x_ref[...], 0.0)                         # ReLU on the VPU
    o_ref[...] = jnp.dot(
        r, p_ref[...],
        preferred_element_type=jnp.float32,
        precision=jax.lax.Precision.HIGHEST,                 # exact-ish f32 path
    ).astype(o_ref.dtype)


def _round_up(a, b):
    return (a + b - 1) // b * b


def reshape1_forward(x, pool=4):
    """x: (N, C, H, W) float32, NCHW. Returns (N, C*(H//pool)*(W//pool))."""
    N, C, H, W = x.shape
    assert H % pool == 0 and W % pool == 0, "spatial dims must divide pool"
    Ho, Wo = H // pool, W // pool
    HW, HoWo = H * W, Ho * Wo
    NC = N * C

    # ---- constant base pooling matrix (HW, HoWo): entries 0 or 1/(pool^2) ----
    rr = jnp.arange(HW)
    tgt = (rr // W // pool) * Wo + (rr % W) // pool          # target out column
    pmat = (tgt[:, None] == jnp.arange(HoWo)[None, :]).astype(jnp.float32)
    pmat = pmat * jnp.float32(1.0 / (pool * pool))

    # ---- group g consecutive (n,c) rows so the output last dim >= 128 ----
    g_target = max(1, -(-128 // HoWo))                       # ceil(128/HoWo)
    g = 1
    for cand in range(min(g_target, NC), 0, -1):
        if NC % cand == 0:
            g = cand
            break
    # keep the resident block-diagonal pooling matrix small in VMEM
    while g > 1 and (g * HW) * (g * HoWo) * 4 > (8 << 20):
        cand = g - 1
        while cand > 1 and NC % cand != 0:
            cand -= 1
        g = cand
    # TODO(synk): for very large H*W switch to separable pooling
    # ((W,Wo) matmul then (Ho,H) matmul) instead of a dense block-diagonal P.

    pmat_blk = jnp.kron(jnp.eye(g, dtype=jnp.float32), pmat) if g > 1 else pmat

    NR = NC // g
    GHW, GHoWo = g * HW, g * HoWo
    x2 = x.reshape(NR, GHW)                                  # contiguous view

    # ---- tile the row axis; budget includes the resident pooling matrix ----
    pmat_bytes = GHW * GHoWo * 4
    budget = 24 << 20                                        # v7x-safe footprint
    per_row = 2 * (GHW + GHoWo) * 4                          # double-buffered
    tb = max(8, min(512, ((budget - pmat_bytes) // per_row) // 8 * 8))
    if NR <= 8:
        TB = NR                                              # full-dim block ok
    else:
        half = _round_up(-(-NR // 2), 8)                     # aim for >=2 steps
        TB = max(8, min(tb, half) // 8 * 8)
    grid = -(-NR // TB)                                      # partial tail ok

    vmem_limit = 2 * pmat_bytes + 2 * TB * (GHW + GHoWo) * 4 + (4 << 20)
    vmem_limit = int(min(max(vmem_limit, 16 << 20), 48 << 20))

    out = pl.pallas_call(
        _relu_pool_kernel,
        out_shape=jax.ShapeDtypeStruct((NR, GHoWo), jnp.float32),
        grid_spec=pltpu.PrefetchScalarGridSpec(
            num_scalar_prefetch=0,
            grid=(grid,),
            in_specs=[
                pl.BlockSpec((TB, GHW), lambda i: (i, 0)),
                pl.BlockSpec((GHW, GHoWo), lambda i: (0, 0)),  # stays resident
            ],
            out_specs=pl.BlockSpec((TB, GHoWo), lambda i: (i, 0)),
        ),
        compiler_params=pltpu.CompilerParams(
            dimension_semantics=("parallel",),
            vmem_limit_bytes=vmem_limit),
    )(x2, pmat_blk)

    # Flatten exactly like out.view(out.size(0), -1): glue reshape (same order).
    return out.reshape(N, C * Ho * Wo)


if __name__ == "__main__":
    key = jax.random.PRNGKey(0)
    N, C, H, W = 2, 4, 16, 16
    x = jax.random.normal(key, (N, C, H, W), dtype=jnp.float32)

    out = jax.block_until_ready(reshape1_forward(x))

    # Reference in plain JAX: relu -> 4x4 avg pool -> flatten
    r = jnp.maximum(x, 0.0)
    ref = r.reshape(N, C, H // 4, 4, W // 4, 4).mean(axis=(3, 5)).reshape(N, -1)
    assert out.shape == (N, C * (H // 4) * (W // 4)), out.shape
    assert jnp.allclose(out, ref, atol=1e-5, rtol=1e-5), "mismatch vs reference"

    print("KERNEL_OK")
</pallas_src>

<mosaic_0001>
module attributes {stable_mosaic.version = 11 : i64} {
  func.func @_relu_pool_kernel(%arg0: i32, %arg1: memref<1x2048xf32, #tpu.memory_space<vmem>>, %arg2: memref<2048x128xf32, #tpu.memory_space<vmem>>, %arg3: memref<1x128xf32, #tpu.memory_space<vmem>>) attributes {dimension_semantics = [#tpu.dimension_semantics<parallel>], iteration_bounds = array<i64: 1>, scalar_prefetch = 0 : i64, scratch_operands = 0 : i64, tpu.core_type = #tpu.core_type<tc>, window_params = [{transform_indices = @transform_0, window_bounds = array<i64: 1, 2048>}, {pipeline_mode = #tpu.pipeline_mode<synchronous>, transform_indices = @transform_1, window_bounds = array<i64: 2048, 128>}, {transform_indices = @transform_2, window_bounds = array<i64: 1, 128>}]} {
    %c0 = arith.constant 0 : index
    %c0_0 = arith.constant 0 : index
    %0 = vector.load %arg1[%c0, %c0_0] : memref<1x2048xf32, #tpu.memory_space<vmem>>, vector<1x2048xf32>
    %cst = arith.constant 0.000000e+00 : f32
    %1 = vector.broadcast %cst : f32 to vector<1x2048xf32>
    %2 = arith.maximumf %0, %1 : vector<1x2048xf32>
    %c0_1 = arith.constant 0 : index
    %c0_2 = arith.constant 0 : index
    %3 = vector.load %arg2[%c0_1, %c0_2] : memref<2048x128xf32, #tpu.memory_space<vmem>>, vector<2048x128xf32>
    %cst_3 = arith.constant dense<0.000000e+00> : vector<1x128xf32>
    %4 = tpu.matmul %2, %3, %cst_3 {dimension_numbers = #tpu.dot_dimension_numbers<[1], [0], [0], [1], [0, 0, 1, 1], [], []>, precision = #tpu.contract_precision<fp32>} : vector<1x2048xf32>, vector<2048x128xf32>, vector<1x128xf32> -> vector<1x128xf32>
    %c0_4 = arith.constant 0 : index
    %c0_5 = arith.constant 0 : index
    %5 = vector.load %arg3[%c0_4, %c0_5] : memref<1x128xf32, #tpu.memory_space<vmem>>, vector<1x128xf32>
    tpu.vector_store %arg3[%c0_4, %c0_5], %4 {strides = array<i32>} : memref<1x128xf32, #tpu.memory_space<vmem>>, vector<1x128xf32>,
    return
  }
  func.func @transform_0(%arg0: i32) -> (i32, i32) {
    %c0_i32 = arith.constant 0 : i32
    %c0_i32_0 = arith.constant 0 : i32
    return %arg0, %c0_i32 : i32, i32
  }
  func.func @transform_1(%arg0: i32) -> (i32, i32) {
    %c0_i32 = arith.constant 0 : i32
    %c0_i32_0 = arith.constant 0 : i32
    %c0_i32_1 = arith.constant 0 : i32
    return %c0_i32, %c0_i32_0 : i32, i32
  }
  func.func @transform_2(%arg0: i32) -> (i32, i32) {
    %c0_i32 = arith.constant 0 : i32
    %c0_i32_0 = arith.constant 0 : i32
    return %arg0, %c0_i32 : i32, i32
  }
}

</mosaic_0001>

<llo_original>
// kernel: tpu_custom_call.1
$region0: #{tpu_custom_call.1}
  #allocation0 [shape = 'u32[]', space=smem, size = 0x4, offset = 0x4, fixed_abs, tag = 'smem constant byte address 0x4 - core index']
  #allocation1 [shape = 'u32[144,128]{1,0:T(1,128)}', space=vmem, size = 0x12000, scoped, tag = 'internal scratch']
  %s0 = inlined_call_operand.hbm [shape: f32[1,2048], index: 0, kind: input, shape index: {}]
  %s1 = inlined_call_operand.hbm [shape: f32[2048,128], index: 1, kind: input, shape index: {}]
  %s2 = inlined_call_operand.hbm [shape: f32[1,128], index: 2, kind: output, shape index: {}]
  %s3 = sld [smem:[#allocation0]]
  $region26: #{tpu_custom_call.1} parent=0
    _
  %s5 = ssub.s32 1, %s3
  %s6 = scalar_select 0, %s5, %s3
  $region1: #{tpu_custom_call.1} parent=0
    #allocation2 [shape = 'u8[8192]{0}', space=vmem, size = 0x2000, scoped, tag = 'input window, operand 0, single buffered']
    #allocation3 [shape = 's32[1]{0}', space=sflag, size = 0x4, scoped, tag = 'scoped memory for tpu_custom_call.1']
    #allocation4 [shape = 's32[1]{0}', space=sflag, size = 0x4, scoped, tag = 'scoped memory for tpu_custom_call.1']
    #allocation5 [shape = 'u8[1048576]{0}', space=vmem, size = 0x100000, scoped, tag = 'input window, operand 1, single buffered']
    #allocation6 [shape = 's32[1]{0}', space=sflag, size = 0x4, scoped, tag = 'scoped memory for tpu_custom_call.1']
    #allocation7 [shape = 'u8[512]{0}', space=vmem, size = 0x400, scoped, tag = 'output window, operand 0, single buffered']
    %7 = vsyncpa [#allocation3], 0
    %8 = vsyncpa [#allocation6], 0
    %9 = vsyncpa [#allocation4], 0
    // Predicated region
    $region2: #{tpu_custom_call.1} parent=1 // pred_check
      _
    $region3: #{tpu_custom_call.1} parent=1 // pred_check_branch
      %11 = sbr.rel (0) target = $region5
    $region4: #{tpu_custom_call.1} parent=1 // pred_region
      %s13 = ssub.s32 256, 256
      %14 = vsyncadd [#allocation3], %s13
      %s16 = sshll.u32 [#allocation2], 4
      %s17 = int_to_ptr.vmem [resolvable:$true] %s16
      %19 = dma.hbm_to_vmem [thread:$0]  %s0, 256, %s17, [#allocation3]
    $region5: #{tpu_custom_call.1} parent=1 // pred_fallthru
      _
    // Predicated region
    $region6: #{tpu_custom_call.1} parent=1 // pred_check
      _
    $region7: #{tpu_custom_call.1} parent=1 // pred_check_branch
      %21 = sbr.rel (0) target = $region9
    $region8: #{tpu_custom_call.1} parent=1 // pred_region
      %s23 = ssub.s32 32768, 32768
      %24 = vsyncadd [#allocation6], %s23
      %s25 = sshll.u32 [#allocation5], 4
      %s26 = int_to_ptr.vmem [resolvable:$true] %s25
      %31 = dma.hbm_to_vmem [thread:$0]  %s1, 32768, %s26, [#allocation6], 128, 128, 8
    $region9: #{tpu_custom_call.1} parent=1 // pred_fallthru
      _
    // Predicated region
    $region10: #{tpu_custom_call.1} parent=1 // pred_check
      _
    $region11: #{tpu_custom_call.1} parent=1 // pred_check_branch
      %33 = sbr.rel (0) target = $region13
    $region12: #{tpu_custom_call.1} parent=1 // pred_region
      %34 = dma.done [#allocation3], 256
    $region13: #{tpu_custom_call.1} parent=1 // pred_fallthru
      _
    // Predicated region
    $region14: #{tpu_custom_call.1} parent=1 // pred_check
      _
    $region15: #{tpu_custom_call.1} parent=1 // pred_check_branch
      %36 = sbr.rel (0) target = $region17
    $region16: #{tpu_custom_call.1} parent=1 // pred_region
      %37 = dma.done [#allocation6], 32768
    $region17: #{tpu_custom_call.1} parent=1 // pred_fallthru
      _
    %v38 = vld [vmem:[#allocation2] sm:$0xff]
    %v39 = vld [vmem:[#allocation2 + $0x8] sm:$0xff]
    %v40 = vmax.f32 %v38, 0.0
    %v41 = vmax.f32 %v39, 0.0
    %v42 = vld [vmem:[#allocation5] sm:$0xff]
    %v43 = vld [vmem:[#allocation5 + $0x8] sm:$0xff]
    %v44 = vld [vmem:[#allocation5 + $0x10] sm:$0xff]
    %v45 = vld [vmem:[#allocation5 + $0x18] sm:$0xff]
    %v46 = vld [vmem:[#allocation5 + $0x20] sm:$0xff]
    %v47 = vld [vmem:[#allocation5 + $0x28] sm:$0xff]
    %v48 = vld [vmem:[#allocation5 + $0x30] sm:$0xff]
    %v49 = vld [vmem:[#allocation5 + $0x38] sm:$0xff]
    %v50 = vld [vmem:[#allocation5 + $0x40] sm:$0xff]
    %v51 = vld [vmem:[#allocation5 + $0x48] sm:$0xff]
    %v52 = vld [vmem:[#allocation5 + $0x50] sm:$0xff]
    %v53 = vld [vmem:[#allocation5 + $0x58] sm:$0xff]
    %v54 = vld [vmem:[#allocation5 + $0x60] sm:$0xff]
    %v55 = vld [vmem:[#allocation5 + $0x68] sm:$0xff]
    %v56 = vld [vmem:[#allocation5 + $0x70] sm:$0xff]
    %v57 = vld [vmem:[#allocation5 + $0x78] sm:$0xff]
    %v58 = vld [vmem:[#allocation5 + $0x80] sm:$0xff]
    %v59 = vld [vmem:[#allocation5 + $0x88] sm:$0xff]
    %v60 = vld [vmem:[#allocation5 + $0x90] sm:$0xff]
    %v61 = vld [vmem:[#allocation5 + $0x98] sm:$0xff]
    %v62 = vld [vmem:[#allocation5 + $0xa0] sm:$0xff]
    %v63 = vld [vmem:[#allocation5 + $0xa8] sm:$0xff]
    %v64 = vld [vmem:[#allocation5 + $0xb0] sm:$0xff]
    %v65 = vld [vmem:[#allocation5 + $0xb8] sm:$0xff]
    %v66 = vld [vmem:[#allocation5 + $0xc0] sm:$0xff]
    %v67 = vld [vmem:[#allocation5 + $0xc8] sm:$0xff]
    %v68 = vld [vmem:[#allocation5 + $0xd0] sm:$0xff]
    %v69 = vld [vmem:[#allocation5 + $0xd8] sm:$0xff]
    %v70 = vld [vmem:[#allocation5 + $0xe0] sm:$0xff]
    %v71 = vld [vmem:[#allocation5 + $0xe8] sm:$0xff]
    %v72 = vld [vmem:[#allocation5 + $0xf0] sm:$0xff]
    %v73 = vld [vmem:[#allocation5 + $0xf8] sm:$0xff]
    %v74 = vld [vmem:[#allocation5 + $0x100] sm:$0xff]
    %v75 = vld [vmem:[#allocation5 + $0x108] sm:$0xff]
    %v76 = vld [vmem:[#allocation5 + $0x110] sm:$0xff]
    %v77 = vld [vmem:[#allocation5 + $0x118] sm:$0xff]
    %v78 = vld [vmem:[#allocation5 + $0x120] sm:$0xff]
    %v79 = vld [vmem:[#allocation5 + $0x128] sm:$0xff]
    %v80 = vld [vmem:[#allocation5 + $0x130] sm:$0xff]
    %v81 = vld [vmem:[#allocation5 + $0x138] sm:$0xff]
    %v82 = vld [vmem:[#allocation5 + $0x140] sm:$0xff]
    %v83 = vld [vmem:[#allocation5 + $0x148] sm:$0xff]
    %v84 = vld [vmem:[#allocation5 + $0x150] sm:$0xff]
    %v85 = vld [vmem:[#allocation5 + $0x158] sm:$0xff]
    %v86 = vld [vmem:[#allocation5 + $0x160] sm:$0xff]
    %v87 = vld [vmem:[#allocation5 + $0x168] sm:$0xff]
    %v88 = vld [vmem:[#allocation5 + $0x170] sm:$0xff]
    %v89 = vld [vmem:[#allocation5 + $0x178] sm:$0xff]
    %v90 = vld [vmem:[#allocation5 + $0x180] sm:$0xff]
    %v91 = vld [vmem:[#allocation5 + $0x188] sm:$0xff]
    %v92 = vld [vmem:[#allocation5 + $0x190] sm:$0xff]
    %v93 = vld [vmem:[#allocation5 + $0x198] sm:$0xff]
    %v94 = vld [vmem:[#allocation5 + $0x1a0] sm:$0xff]
    %v95 = vld [vmem:[#allocation5 + $0x1a8] sm:$0xff]
    %v96 = vld [vmem:[#allocation5 + $0x1b0] sm:$0xff]
    %v97 = vld [vmem:[#allocation5 + $0x1b8] sm:$0xff]
    %v98 = vld [vmem:[#allocation5 + $0x1c0] sm:$0xff]
    %v99 = vld [vmem:[#allocation5 + $0x1c8] sm:$0xff]
    %v100 = vld [vmem:[#allocation5 + $0x1d0] sm:$0xff]
    %v101 = vld [vmem:[#allocation5 + $0x1d8] sm:$0xff]
    %v102 = vld [vmem:[#allocation5 + $0x1e0] sm:$0xff]
    %v103 = vld [vmem:[#allocation5 + $0x1e8] sm:$0xff]
    %v104 = vld [vmem:[#allocation5 + $0x1f0] sm:$0xff]
    %v105 = vld [vmem:[#allocation5 + $0x1f8] sm:$0xff]
    %v106 = vld [vmem:[#allocation5 + $0x200] sm:$0xff]
    %v107 = vld [vmem:[#allocation5 + $0x208] sm:$0xff]
    %v108 = vld [vmem:[#allocation5 + $0x210] sm:$0xff]
    %v109 = vld [vmem:[#allocation5 + $0x218] sm:$0xff]
    %v110 = vld [vmem:[#allocation5 + $0x220] sm:$0xff]
    %v111 = vld [vmem:[#allocation5 + $0x228] sm:$0xff]
    %v112 = vld [vmem:[#allocation5 + $0x230] sm:$0xff]
    %v113 = vld [vmem:[#allocation5 + $0x238] sm:$0xff]
    %v114 = vld [vmem:[#allocation5 + $0x240] sm:$0xff]
    %v115 = vld [vmem:[#allocation5 + $0x248] sm:$0xff]
    %v116 = vld [vmem:[#allocation5 + $0x250] sm:$0xff]
    %v117 = vld [vmem:[#allocation5 + $0x258] sm:$0xff]
    %v118 = vld [vmem:[#allocation5 + $0x260] sm:$0xff]
    %v119 = vld [vmem:[#allocation5 + $0x268] sm:$0xff]
    %v120 = vld [vmem:[#allocation5 + $0x270] sm:$0xff]
    %v121 = vld [vmem:[#allocation5 + $0x278] sm:$0xff]
    %v122 = vld [vmem:[#allocation5 + $0x280] sm:$0xff]
    %v123 = vld [vmem:[#allocation5 + $0x288] sm:$0xff]
    %v124 = vld [vmem:[#allocation5 + $0x290] sm:$0xff]
    %v125 = vld [vmem:[#allocation5 + $0x298] sm:$0xff]
    %v126 = vld [vmem:[#allocation5 + $0x2a0] sm:$0xff]
    %v127 = vld [vmem:[#allocation5 + $0x2a8] sm:$0xff]
    %v128 = vld [vmem:[#allocation5 + $0x2b0] sm:$0xff]
    %v129 = vld [vmem:[#allocation5 + $0x2b8] sm:$0xff]
    %v130 = vld [vmem:[#allocation5 + $0x2c0] sm:$0xff]
    %v131 = vld [vmem:[#allocation5 + $0x2c8] sm:$0xff]
    %v132 = vld [vmem:[#allocation5 + $0x2d0] sm:$0xff]
    %v133 = vld [vmem:[#allocation5 + $0x2d8] sm:$0xff]
    %v134 = vld [vmem:[#allocation5 + $0x2e0] sm:$0xff]
    %v135 = vld [vmem:[#allocation5 + $0x2e8] sm:$0xff]
    %v136 = vld [vmem:[#allocation5 + $0x2f0] sm:$0xff]
    %v137 = vld [vmem:[#allocation5 + $0x2f8] sm:$0xff]
    %v138 = vld [vmem:[#allocation5 + $0x300] sm:$0xff]
    %v139 = vld [vmem:[#allocation5 + $0x308] sm:$0xff]
    %v140 = vld [vmem:[#allocation5 + $0x310] sm:$0xff]
    %v141 = vld [vmem:[#allocation5 + $0x318] sm:$0xff]
    %v142 = vld [vmem:[#allocation5 + $0x320] sm:$0xff]
    %v143 = vld [vmem:[#allocation5 + $0x328] sm:$0xff]
    %v144 = vld [vmem:[#allocation5 + $0x330] sm:$0xff]
    %v145 = vld [vmem:[#allocation5 + $0x338] sm:$0xff]
    %v146 = vld [vmem:[#allocation5 + $0x340] sm:$0xff]
    %v147 = vld [vmem:[#allocation5 + $0x348] sm:$0xff]
    %v148 = vld [vmem:[#allocation5 + $0x350] sm:$0xff]
    %v149 = vld [vmem:[#allocation5 + $0x358] sm:$0xff]
    %v150 = vld [vmem:[#allocation5 + $0x360] sm:$0xff]
    %v151 = vld [vmem:[#allocation5 + $0x368] sm:$0xff]
    %v152 = vld [vmem:[#allocation5 + $0x370] sm:$0xff]
    %v153 = vld [vmem:[#allocation5 + $0x378] sm:$0xff]
    %v154 = vld [vmem:[#allocation5 + $0x380] sm:$0xff]
    %v155 = vld [vmem:[#allocation5 + $0x388] sm:$0xff]
    %v156 = vld [vmem:[#allocation5 + $0x390] sm:$0xff]
    %v157 = vld [vmem:[#allocation5 + $0x398] sm:$0xff]
    %v158 = vld [vmem:[#allocation5 + $0x3a0] sm:$0xff]
    %v159 = vld [vmem:[#allocation5 + $0x3a8] sm:$0xff]
    %v160 = vld [vmem:[#allocation5 + $0x3b0] sm:$0xff]
    %v161 = vld [vmem:[#allocation5 + $0x3b8] sm:$0xff]
    %v162 = vld [vmem:[#allocation5 + $0x3c0] sm:$0xff]
    %v163 = vld [vmem:[#allocation5 + $0x3c8] sm:$0xff]
    %v164 = vld [vmem:[#allocation5 + $0x3d0] sm:$0xff]
    %v165 = vld [vmem:[#allocation5 + $0x3d8] sm:$0xff]
    %v166 = vld [vmem:[#allocation5 + $0x3e0] sm:$0xff]
    %v167 = vld [vmem:[#allocation5 + $0x3e8] sm:$0xff]
    %v168 = vld [vmem:[#allocation5 + $0x3f0] sm:$0xff]
    %v169 = vld [vmem:[#allocation5 + $0x3f8] sm:$0xff]
    %v170 = vld [vmem:[#allocation5 + $0x400] sm:$0xff]
    %v171 = vld [vmem:[#allocation5 + $0x408] sm:$0xff]
    %v172 = vld [vmem:[#allocation5 + $0x410] sm:$0xff]
    %v173 = vld [vmem:[#allocation5 + $0x418] sm:$0xff]
    %v174 = vld [vmem:[#allocation5 + $0x420] sm:$0xff]
    %v175 = vld [vmem:[#allocation5 + $0x428] sm:$0xff]
    %v176 = vld [vmem:[#allocation5 + $0x430] sm:$0xff]
    %v177 = vld [vmem:[#allocation5 + $0x438] sm:$0xff]
    %v178 = vld [vmem:[#allocation5 + $0x440] sm:$0xff]
    %v179 = vld [vmem:[#allocation5 + $0x448] sm:$0xff]
    %v180 = vld [vmem:[#allocation5 + $0x450] sm:$0xff]
    %v181 = vld [vmem:[#allocation5 + $0x458] sm:$0xff]
    %v182 = vld [vmem:[#allocation5 + $0x460] sm:$0xff]
    %v183 = vld [vmem:[#allocation5 + $0x468] sm:$0xff]
    %v184 = vld [vmem:[#allocation5 + $0x470] sm:$0xff]
    %v185 = vld [vmem:[#allocation5 + $0x478] sm:$0xff]
    %v186 = vld [vmem:[#allocation5 + $0x480] sm:$0xff]
    %v187 = vld [vmem:[#allocation5 + $0x488] sm:$0xff]
    %v188 = vld [vmem:[#allocation5 + $0x490] sm:$0xff]
    %v189 = vld [vmem:[#allocation5 + $0x498] sm:$0xff]
    %v190 = vld [vmem:[#allocation5 + $0x4a0] sm:$0xff]
    %v191 = vld [vmem:[#allocation5 + $0x4a8] sm:$0xff]
    %v192 = vld [vmem:[#allocation5 + $0x4b0] sm:$0xff]
    %v193 = vld [vmem:[#allocation5 + $0x4b8] sm:$0xff]
    %v194 = vld [vmem:[#allocation5 + $0x4c0] sm:$0xff]
    %v195 = vld [vmem:[#allocation5 + $0x4c8] sm:$0xff]
    %v196 = vld [vmem:[#allocation5 + $0x4d0] sm:$0xff]
    %v197 = vld [vmem:[#allocation5 + $0x4d8] sm:$0xff]
    %v198 = vld [vmem:[#allocation5 + $0x4e0] sm:$0xff]
    %v199 = vld [vmem:[#allocation5 + $0x4e8] sm:$0xff]
    %v200 = vld [vmem:[#allocation5 + $0x4f0] sm:$0xff]
    %v201 = vld [vmem:[#allocation5 + $0x4f8] sm:$0xff]
    %v202 = vld [vmem:[#allocation5 + $0x500] sm:$0xff]
    %v203 = vld [vmem:[#allocation5 + $0x508] sm:$0xff]
    %v204 = vld [vmem:[#allocation5 + $0x510] sm:$0xff]
    %v205 = vld [vmem:[#allocation5 + $0x518] sm:$0xff]
    %v206 = vld [vmem:[#allocation5 + $0x520] sm:$0xff]
    %v207 = vld [vmem:[#allocation5 + $0x528] sm:$0xff]
    %v208 = vld [vmem:[#allocation5 + $0x530] sm:$0xff]
    %v209 = vld [vmem:[#allocation5 + $0x538] sm:$0xff]
    %v210 = vld [vmem:[#allocation5 + $0x540] sm:$0xff]
    %v211 = vld [vmem:[#allocation5 + $0x548] sm:$0xff]
    %v212 = vld [vmem:[#allocation5 + $0x550] sm:$0xff]
    %v213 = vld [vmem:[#allocation5 + $0x558] sm:$0xff]
    %v214 = vld [vmem:[#allocation5 + $0x560] sm:$0xff]
    %v215 = vld [vmem:[#allocation5 + $0x568] sm:$0xff]
    %v216 = vld [vmem:[#allocation5 + $0x570] sm:$0xff]
    %v217 = vld [vmem:[#allocation5 + $0x578] sm:$0xff]
    %v218 = vld [vmem:[#allocation5 + $0x580] sm:$0xff]
    %v219 = vld [vmem:[#allocation5 + $0x588] sm:$0xff]
    %v220 = vld [vmem:[#allocation5 + $0x590] sm:$0xff]
    %v221 = vld [vmem:[#allocation5 + $0x598] sm:$0xff]
    %v222 = vld [vmem:[#allocation5 + $0x5a0] sm:$0xff]
    %v223 = vld [vmem:[#allocation5 + $0x5a8] sm:$0xff]
    %v224 = vld [vmem:[#allocation5 + $0x5b0] sm:$0xff]
    %v225 = vld [vmem:[#allocation5 + $0x5b8] sm:$0xff]
    %v226 = vld [vmem:[#allocation5 + $0x5c0] sm:$0xff]
    %v227 = vld [vmem:[#allocation5 + $0x5c8] sm:$0xff]
    %v228 = vld [vmem:[#allocation5 + $0x5d0] sm:$0xff]
    %v229 = vld [vmem:[#allocation5 + $0x5d8] sm:$0xff]
    %v230 = vld [vmem:[#allocation5 + $0x5e0] sm:$0xff]
    %v231 = vld [vmem:[#allocation5 + $0x5e8] sm:$0xff]
    %v232 = vld [vmem:[#allocation5 + $0x5f0] sm:$0xff]
    %v233 = vld [vmem:[#allocation5 + $0x5f8] sm:$0xff]
    %v234 = vld [vmem:[#allocation5 + $0x600] sm:$0xff]
    %v235 = vld [vmem:[#allocation5 + $0x608] sm:$0xff]
    %v236 = vld [vmem:[#allocation5 + $0x610] sm:$0xff]
    %v237 = vld [vmem:[#allocation5 + $0x618] sm:$0xff]
    %v238 = vld [vmem:[#allocation5 + $0x620] sm:$0xff]
    %v239 = vld [vmem:[#allocation5 + $0x628] sm:$0xff]
    %v240 = vld [vmem:[#allocation5 + $0x630] sm:$0xff]
    %v241 = vld [vmem:[#allocation5 + $0x638] sm:$0xff]
    %v242 = vld [vmem:[#allocation5 + $0x640] sm:$0xff]
    %v243 = vld [vmem:[#allocation5 + $0x648] sm:$0xff]
    %v244 = vld [vmem:[#allocation5 + $0x650] sm:$0xff]
    %v245 = vld [vmem:[#allocation5 + $0x658] sm:$0xff]
    %v246 = vld [vmem:[#allocation5 + $0x660] sm:$0xff]
    %v247 = vld [vmem:[#allocation5 + $0x668] sm:$0xff]
    %v248 = vld [vmem:[#allocation5 + $0x670] sm:$0xff]
    %v249 = vld [vmem:[#allocation5 + $0x678] sm:$0xff]
    %v250 = vld [vmem:[#allocation5 + $0x680] sm:$0xff]
    %v251 = vld [vmem:[#allocation5 + $0x688] sm:$0xff]
    %v252 = vld [vmem:[#allocation5 + $0x690] sm:$0xff]
    %v253 = vld [vmem:[#allocation5 + $0x698] sm:$0xff]
    %v254 = vld [vmem:[#allocation5 + $0x6a0] sm:$0xff]
    %v255 = vld [vmem:[#allocation5 + $0x6a8] sm:$0xff]
    %v256 = vld [vmem:[#allocation5 + $0x6b0] sm:$0xff]
    %v257 = vld [vmem:[#allocation5 + $0x6b8] sm:$0xff]
    %v258 = vld [vmem:[#allocation5 + $0x6c0] sm:$0xff]
    %v259 = vld [vmem:[#allocation5 + $0x6c8] sm:$0xff]
    %v260 = vld [vmem:[#allocation5 + $0x6d0] sm:$0xff]
    %v261 = vld [vmem:[#allocation5 + $0x6d8] sm:$0xff]
    %v262 = vld [vmem:[#allocation5 + $0x6e0] sm:$0xff]
    %v263 = vld [vmem:[#allocation5 + $0x6e8] sm:$0xff]
    %v264 = vld [vmem:[#allocation5 + $0x6f0] sm:$0xff]
    %v265 = vld [vmem:[#allocation5 + $0x6f8] sm:$0xff]
    %v266 = vld [vmem:[#allocation5 + $0x700] sm:$0xff]
    %v267 = vld [vmem:[#allocation5 + $0x708] sm:$0xff]
    %v268 = vld [vmem:[#allocation5 + $0x710] sm:$0xff]
    %v269 = vld [vmem:[#allocation5 + $0x718] sm:$0xff]
    %v270 = vld [vmem:[#allocation5 + $0x720] sm:$0xff]
    %v271 = vld [vmem:[#allocation5 + $0x728] sm:$0xff]
    %v272 = vld [vmem:[#allocation5 + $0x730] sm:$0xff]
    %v273 = vld [vmem:[#allocation5 + $0x738] sm:$0xff]
    %v274 = vld [vmem:[#allocation5 + $0x740] sm:$0xff]
    %v275 = vld [vmem:[#allocation5 + $0x748] sm:$0xff]
    %v276 = vld [vmem:[#allocation5 + $0x750] sm:$0xff]
    %v277 = vld [vmem:[#allocation5 + $0x758] sm:$0xff]
    %v278 = vld [vmem:[#allocation5 + $0x760] sm:$0xff]
    %v279 = vld [vmem:[#allocation5 + $0x768] sm:$0xff]
    %v280 = vld [vmem:[#allocation5 + $0x770] sm:$0xff]
    %v281 = vld [vmem:[#allocation5 + $0x778] sm:$0xff]
    %v282 = vld [vmem:[#allocation5 + $0x780] sm:$0xff]
    %v283 = vld [vmem:[#allocation5 + $0x788] sm:$0xff]
    %v284 = vld [vmem:[#allocation5 + $0x790] sm:$0xff]
    %v285 = vld [vmem:[#allocation5 + $0x798] sm:$0xff]
    %v286 = vld [vmem:[#allocation5 + $0x7a0] sm:$0xff]
    %v287 = vld [vmem:[#allocation5 + $0x7a8] sm:$0xff]
    %v288 = vld [vmem:[#allocation5 + $0x7b0] sm:$0xff]
    %v289 = vld [vmem:[#allocation5 + $0x7b8] sm:$0xff]
    %v290 = vld [vmem:[#allocation5 + $0x7c0] sm:$0xff]
    %v291 = vld [vmem:[#allocation5 + $0x7c8] sm:$0xff]
    %v292 = vld [vmem:[#allocation5 + $0x7d0] sm:$0xff]
    %v293 = vld [vmem:[#allocation5 + $0x7d8] sm:$0xff]
    %v294 = vld [vmem:[#allocation5 + $0x7e0] sm:$0xff]
    %v295 = vld [vmem:[#allocation5 + $0x7e8] sm:$0xff]
    %v296 = vld [vmem:[#allocation5 + $0x7f0] sm:$0xff]
    %v297 = vld [vmem:[#allocation5 + $0x7f8] sm:$0xff]
    %v300 = vlaneseq
    %v301 = vshrl.u32 %v300, 7
    %v302 = vsub.s32 0, %v301
    %v303 = vrot.slane %v40, %v302
    %v304 = vlaneseq
    %v305 = vshrl.u32 %v304, 7
    %v306 = vsub.s32 1, %v305
    %v307 = vrot.slane %v40, %v306
    %v308 = vlaneseq
    %v309 = vshrl.u32 %v308, 7
    %v310 = vsub.s32 2, %v309
    %v311 = vrot.slane %v40, %v310
    %v312 = vlaneseq
    %v313 = vshrl.u32 %v312, 7
    %v314 = vsub.s32 3, %v313
    %v315 = vrot.slane %v40, %v314
    %v316 = vlaneseq
    %v317 = vshrl.u32 %v316, 7
    %v318 = vsub.s32 4, %v317
    %v319 = vrot.slane %v40, %v318
    %v320 = vlaneseq
    %v321 = vshrl.u32 %v320, 7
    %v322 = vsub.s32 5, %v321
    %v323 = vrot.slane %v40, %v322
    %v324 = vlaneseq
    %v325 = vshrl.u32 %v324, 7
    %v326 = vsub.s32 6, %v325
    %v327 = vrot.slane %v40, %v326
    %v328 = vlaneseq
    %v329 = vshrl.u32 %v328, 7
    %v330 = vsub.s32 7, %v329
    %v331 = vrot.slane %v40, %v330
    %v332 = vlaneseq
    %v333 = vshrl.u32 %v332, 7
    %v334 = vsub.s32 0, %v333
    %v335 = vrot.slane %v41, %v334
    %v336 = vlaneseq
    %v337 = vshrl.u32 %v336, 7
    %v338 = vsub.s32 1, %v337
    %v339 = vrot.slane %v41, %v338
    %v340 = vlaneseq
    %v341 = vshrl.u32 %v340, 7
    %v342 = vsub.s32 2, %v341
    %v343 = vrot.slane %v41, %v342
    %v344 = vlaneseq
    %v345 = vshrl.u32 %v344, 7
    %v346 = vsub.s32 3, %v345
    %v347 = vrot.slane %v41, %v346
    %v348 = vlaneseq
    %v349 = vshrl.u32 %v348, 7
    %v350 = vsub.s32 4, %v349
    %v351 = vrot.slane %v41, %v350
    %v352 = vlaneseq
    %v353 = vshrl.u32 %v352, 7
    %v354 = vsub.s32 5, %v353
    %v355 = vrot.slane %v41, %v354
    %v356 = vlaneseq
    %v357 = vshrl.u32 %v356, 7
    %v358 = vsub.s32 6, %v357
    %v359 = vrot.slane %v41, %v358
    %v360 = vlaneseq
    %v361 = vshrl.u32 %v360, 7
    %v362 = vsub.s32 7, %v361
    %v363 = vrot.slane %v41, %v362
    %380 = vmatprep.subr.mxu0 0.0
    %v381 = vand.u32 %v57, 4294901760
    %382 = vmatpush1.msra.mxu0 %v381
    %383 = vmatprep.subr.mxu0 0.0
    %v384 = vand.u32 %v56, 4294901760
    %385 = vmatpush1.msra.mxu0 %v384
    %386 = vmatprep.subr.mxu0 0.0
    %v387 = vand.u32 %v55, 4294901760
    %388 = vmatpush1.msra.mxu0 %v387
    %389 = vmatprep.subr.mxu0 0.0
    %v390 = vand.u32 %v54, 4294901760
    %391 = vmatpush1.msra.mxu0 %v390
    %392 = vmatprep.subr.mxu0 0.0
    %v393 = vand.u32 %v53, 4294901760
    %394 = vmatpush1.msra.mxu0 %v393
    %395 = vmatprep.subr.mxu0 0.0
    %v396 = vand.u32 %v52, 4294901760
    %397 = vmatpush1.msra.mxu0 %v396
    %398 = vmatprep.subr.mxu0 0.0
    %v399 = vand.u32 %v51, 4294901760
    %400 = vmatpush1.msra.mxu0 %v399
    %401 = vmatprep.subr.mxu0 0.0
    %v402 = vand.u32 %v50, 4294901760
    %403 = vmatpush1.msra.mxu0 %v402
    %404 = vmatprep.subr.mxu0 0.0
    %v405 = vand.u32 %v49, 4294901760
    %406 = vmatpush1.msra.mxu0 %v405
    %407 = vmatprep.subr.mxu0 0.0
    %v408 = vand.u32 %v48, 4294901760
    %409 = vmatpush1.msra.mxu0 %v408
    %410 = vmatprep.subr.mxu0 0.0
    %v411 = vand.u32 %v47, 4294901760
    %412 = vmatpush1.msra.mxu0 %v411
    %413 = vmatprep.subr.mxu0 0.0
    %v414 = vand.u32 %v46, 4294901760
    %415 = vmatpush1.msra.mxu0 %v414
    %416 = vmatprep.subr.mxu0 0.0
    %v417 = vand.u32 %v45, 4294901760
    %418 = vmatpush1.msra.mxu0 %v417
    %419 = vmatprep.subr.mxu0 0.0
    %v420 = vand.u32 %v44, 4294901760
    %421 = vmatpush1.msra.mxu0 %v420
    %422 = vmatprep.subr.mxu0 0.0
    %v423 = vand.u32 %v43, 4294901760
    %424 = vmatpush1.msra.mxu0 %v423
    %425 = vmatprep.subr.mxu0 0.0
    %v426 = vand.u32 %v42, 4294901760
    %427 = vmatpush1.msra.mxu0 %v426
    %428 = vmatprep.subr.mxu0 0.0
    %v429 = vand.u32 %v73, 4294901760
    %430 = vmatpush2.msra.mxu0 %v429
    %431 = vmatprep.subr.mxu0 0.0
    %v432 = vand.u32 %v72, 4294901760
    %433 = vmatpush2.msra.mxu0 %v432
    %434 = vmatprep.subr.mxu0 0.0
    %v435 = vand.u32 %v71, 4294901760
    %436 = vmatpush2.msra.mxu0 %v435
    %437 = vmatprep.subr.mxu0 0.0
    %v438 = vand.u32 %v70, 4294901760
    %439 = vmatpush2.msra.mxu0 %v438
    %440 = vmatprep.subr.mxu0 0.0
    %v441 = vand.u32 %v69, 4294901760
    %442 = vmatpush2.msra.mxu0 %v441
    %443 = vmatprep.subr.mxu0 0.0
    %v444 = vand.u32 %v68, 4294901760
    %445 = vmatpush2.msra.mxu0 %v444
    %446 = vmatprep.subr.mxu0 0.0
    %v447 = vand.u32 %v67, 4294901760
    %448 = vmatpush2.msra.mxu0 %v447
    %449 = vmatprep.subr.mxu0 0.0
    %v450 = vand.u32 %v66, 4294901760
    %451 = vmatpush2.msra.mxu0 %v450
    %452 = vmatprep.subr.mxu0 0.0
    %v453 = vand.u32 %v65, 4294901760
    %454 = vmatpush2.msra.mxu0 %v453
    %455 = vmatprep.subr.mxu0 0.0
    %v456 = vand.u32 %v64, 4294901760
    %457 = vmatpush2.msra.mxu0 %v456
    %458 = vmatprep.subr.mxu0 0.0
    %v459 = vand.u32 %v63, 4294901760
    %460 = vmatpush2.msra.mxu0 %v459
    %461 = vmatprep.subr.mxu0 0.0
    %v462 = vand.u32 %v62, 4294901760
    %463 = vmatpush2.msra.mxu0 %v462
    %464 = vmatprep.subr.mxu0 0.0
    %v465 = vand.u32 %v61, 4294901760
    %466 = vmatpush2.msra.mxu0 %v465
    %467 = vmatprep.subr.mxu0 0.0
    %v468 = vand.u32 %v60, 4294901760
    %469 = vmatpush2.msra.mxu0 %v468
    %470 = vmatprep.subr.mxu0 0.0
    %v471 = vand.u32 %v59, 4294901760
    %472 = vmatpush2.msra.mxu0 %v471
    %473 = vmatprep.subr.mxu0 0.0
    %v474 = vand.u32 %v58, 4294901760
    %475 = vmatpush2.msra.mxu0 %v474
    %v476 = vand.u32 %v307, 4294901760
    %v477 = vsub.f32 %v307, %v476
    %v478 = vand.u32 %v477, 4294901760
    %v479 = vsub.f32 %v477, %v478
    %v480 = vand.u32 %v479, 4294901760
    %481 = vmatprep.mubr.f32.mxu0 %v480
    %v482 = vand.u32 %v303, 4294901760
    %v483 = vsub.f32 %v303, %v482
    %v484 = vand.u32 %v483, 4294901760
    %v485 = vsub.f32 %v483, %v484
    %v486 = vand.u32 %v485, 4294901760
    %487 = vmatmul.mubr.f32.gmra.mxu0 %v486
    %v488 = vpop.f32.mrf.mxu0
    %v489 = vadd.f32 0.0, %v488
    %v490 = vpop.f32.mrf.mxu0
    %491 = vdwg.mxu0
    %492 = vmatprep.subr.mxu0 0.0
    %v493 = vand.u32 %v57, 4294901760
    %v494 = vsub.f32 %v57, %v493
    %v495 = vand.u32 %v494, 4294901760
    %v496 = vsub.f32 %v494, %v495
    %v497 = vand.u32 %v496, 4294901760
    %498 = vmatpush1.msra.mxu0 %v497
    %499 = vmatprep.subr.mxu0 0.0
    %v500 = vand.u32 %v56, 4294901760
    %v501 = vsub.f32 %v56, %v500
    %v502 = vand.u32 %v501, 4294901760
    %v503 = vsub.f32 %v501, %v502
    %v504 = vand.u32 %v503, 4294901760
    %505 = vmatpush1.msra.mxu0 %v504
    %506 = vmatprep.subr.mxu0 0.0
    %v507 = vand.u32 %v55, 4294901760
    %v508 = vsub.f32 %v55, %v507
    %v509 = vand.u32 %v508, 4294901760
    %v510 = vsub.f32 %v508, %v509
    %v511 = vand.u32 %v510, 4294901760
    %512 = vmatpush1.msra.mxu0 %v511
    %513 = vmatprep.subr.mxu0 0.0
    %v514 = vand.u32 %v54, 4294901760
    %v515 = vsub.f32 %v54, %v514
    %v516 = vand.u32 %v515, 4294901760
    %v517 = vsub.f32 %v515, %v516
    %v518 = vand.u32 %v517, 4294901760
    %519 = vmatpush1.msra.mxu0 %v518
    %520 = vmatprep.subr.mxu0 0.0
    %v521 = vand.u32 %v53, 4294901760
    %v522 = vsub.f32 %v53, %v521
    %v523 = vand.u32 %v522, 4294901760
    %v524 = vsub.f32 %v522, %v523
    %v525 = vand.u32 %v524, 4294901760
    %526 = vmatpush1.msra.mxu0 %v525
    %527 = vmatprep.subr.mxu0 0.0
    %v528 = vand.u32 %v52, 4294901760
    %v529 = vsub.f32 %v52, %v528
    %v530 = vand.u32 %v529, 4294901760
    %v531 = vsub.f32 %v529, %v530
    %v532 = vand.u32 %v531, 4294901760
    %533 = vmatpush1.msra.mxu0 %v532
    %534 = vmatprep.subr.mxu0 0.0
    %v535 = vand.u32 %v51, 4294901760
    %v536 = vsub.f32 %v51, %v535
    %v537 = vand.u32 %v536, 4294901760
    %v538 = vsub.f32 %v536, %v537
    %v539 = vand.u32 %v538, 4294901760
    %540 = vmatpush1.msra.mxu0 %v539
    %541 = vmatprep.subr.mxu0 0.0
    %v542 = vand.u32 %v50, 4294901760
    %v543 = vsub.f32 %v50, %v542
    %v544 = vand.u32 %v543, 4294901760
    %v545 = vsub.f32 %v543, %v544
    %v546 = vand.u32 %v545, 4294901760
    %547 = vmatpush1.msra.mxu0 %v546
    %548 = vmatprep.subr.mxu0 0.0
    %v549 = vand.u32 %v49, 4294901760
    %v550 = vsub.f32 %v49, %v549
    %v551 = vand.u32 %v550, 4294901760
    %v552 = vsub.f32 %v550, %v551
    %v553 = vand.u32 %v552, 4294901760
    %554 = vmatpush1.msra.mxu0 %v553
    %555 = vmatprep.subr.mxu0 0.0
    %v556 = vand.u32 %v48, 4294901760
    %v557 = vsub.f32 %v48, %v556
    %v558 = vand.u32 %v557, 4294901760
    %v559 = vsub.f32 %v557, %v558
    %v560 = vand.u32 %v559, 4294901760
    %561 = vmatpush1.msra.mxu0 %v560
    %562 = vmatprep.subr.mxu0 0.0
    %v563 = vand.u32 %v47, 4294901760
    %v564 = vsub.f32 %v47, %v563
    %v565 = vand.u32 %v564, 4294901760
    %v566 = vsub.f32 %v564, %v565
    %v567 = vand.u32 %v566, 4294901760
    %568 = vmatpush1.msra.mxu0 %v567
    %569 = vmatprep.subr.mxu0 0.0
    %v570 = vand.u32 %v46, 4294901760
    %v571 = vsub.f32 %v46, %v570
    %v572 = vand.u32 %v571, 4294901760
    %v573 = vsub.f32 %v571, %v572
    %v574 = vand.u32 %v573, 4294901760
    %575 = vmatpush1.msra.mxu0 %v574
    %576 = vmatprep.subr.mxu0 0.0
    %v577 = vand.u32 %v45, 4294901760
    %v578 = vsub.f32 %v45, %v577
    %v579 = vand.u32 %v578, 4294901760
    %v580 = vsub.f32 %v578, %v579
    %v581 = vand.u32 %v580, 4294901760
    %582 = vmatpush1.msra.mxu0 %v581
    %583 = vmatprep.subr.mxu0 0.0
    %v584 = vand.u32 %v44, 4294901760
    %v585 = vsub.f32 %v44, %v584
    %v586 = vand.u32 %v585, 4294901760
    %v587 = vsub.f32 %v585, %v586
    %v588 = vand.u32 %v587, 4294901760
    %589 = vmatpush1.msra.mxu0 %v588
    %590 = vmatprep.subr.mxu0 0.0
    %v591 = vand.u32 %v43, 4294901760
    %v592 = vsub.f32 %v43, %v591
    %v593 = vand.u32 %v592, 4294901760
    %v594 = vsub.f32 %v592, %v593
    %v595 = vand.u32 %v594, 4294901760
    %596 = vmatpush1.msra.mxu0 %v595
    %597 = vmatprep.subr.mxu0 0.0
    %v598 = vand.u32 %v42, 4294901760
    %v599 = vsub.f32 %v42, %v598
    %v600 = vand.u32 %v599, 4294901760
    %v601 = vsub.f32 %v599, %v600
    %v602 = vand.u32 %v601, 4294901760
    %603 = vmatpush1.msra.mxu0 %v602
    %604 = vmatprep.subr.mxu0 0.0
    %v605 = vand.u32 %v73, 4294901760
    %v606 = vsub.f32 %v73, %v605
    %v607 = vand.u32 %v606, 4294901760
    %v608 = vsub.f32 %v606, %v607
    %v609 = vand.u32 %v608, 4294901760
    %610 = vmatpush2.msra.mxu0 %v609
    %611 = vmatprep.subr.mxu0 0.0
    %v612 = vand.u32 %v72, 4294901760
    %v613 = vsub.f32 %v72, %v612
    %v614 = vand.u32 %v613, 4294901760
    %v615 = vsub.f32 %v613, %v614
    %v616 = vand.u32 %v615, 4294901760
    %617 = vmatpush2.msra.mxu0 %v616
    %618 = vmatprep.subr.mxu0 0.0
    %v619 = vand.u32 %v71, 4294901760
    %v620 = vsub.f32 %v71, %v619
    %v621 = vand.u32 %v620, 4294901760
    %v622 = vsub.f32 %v620, %v621
    %v623 = vand.u32 %v622, 4294901760
    %624 = vmatpush2.msra.mxu0 %v623
    %625 = vmatprep.subr.mxu0 0.0
    %v626 = vand.u32 %v70, 4294901760
    %v627 = vsub.f32 %v70, %v626
    %v628 = vand.u32 %v627, 4294901760
    %v629 = vsub.f32 %v627, %v628
    %v630 = vand.u32 %v629, 4294901760
    %631 = vmatpush2.msra.mxu0 %v630
    %632 = vmatprep.subr.mxu0 0.0
    %v633 = vand.u32 %v69, 4294901760
    %v634 = vsub.f32 %v69, %v633
    %v635 = vand.u32 %v634, 4294901760
    %v636 = vsub.f32 %v634, %v635
    %v637 = vand.u32 %v636, 4294901760
    %638 = vmatpush2.msra.mxu0 %v637
    %639 = vmatprep.subr.mxu0 0.0
    %v640 = vand.u32 %v68, 4294901760
    %v641 = vsub.f32 %v68, %v640
    %v642 = vand.u32 %v641, 4294901760
    %v643 = vsub.f32 %v641, %v642
    %v644 = vand.u32 %v643, 4294901760
    %645 = vmatpush2.msra.mxu0 %v644
    %646 = vmatprep.subr.mxu0 0.0
    %v647 = vand.u32 %v67, 4294901760
    %v648 = vsub.f32 %v67, %v647
    %v649 = vand.u32 %v648, 4294901760
    %v650 = vsub.f32 %v648, %v649
    %v651 = vand.u32 %v650, 4294901760
    %652 = vmatpush2.msra.mxu0 %v651
    %653 = vmatprep.subr.mxu0 0.0
    %v654 = vand.u32 %v66, 4294901760
    %v655 = vsub.f32 %v66, %v654
    %v656 = vand.u32 %v655, 4294901760
    %v657 = vsub.f32 %v655, %v656
    %v658 = vand.u32 %v657, 4294901760
    %659 = vmatpush2.msra.mxu0 %v658
    %660 = vmatprep.subr.mxu0 0.0
    %v661 = vand.u32 %v65, 4294901760
    %v662 = vsub.f32 %v65, %v661
    %v663 = vand.u32 %v662, 4294901760
    %v664 = vsub.f32 %v662, %v663
    %v665 = vand.u32 %v664, 4294901760
    %666 = vmatpush2.msra.mxu0 %v665
    %667 = vmatprep.subr.mxu0 0.0
    %v668 = vand.u32 %v64, 4294901760
    %v669 = vsub.f32 %v64, %v668
    %v670 = vand.u32 %v669, 4294901760
    %v671 = vsub.f32 %v669, %v670
    %v672 = vand.u32 %v671, 4294901760
    %673 = vmatpush2.msra.mxu0 %v672
    %674 = vmatprep.subr.mxu0 0.0
    %v675 = vand.u32 %v63, 4294901760
    %v676 = vsub.f32 %v63, %v675
    %v677 = vand.u32 %v676, 4294901760
    %v678 = vsub.f32 %v676, %v677
    %v679 = vand.u32 %v678, 4294901760
    %680 = vmatpush2.msra.mxu0 %v679
    %681 = vmatprep.subr.mxu0 0.0
    %v682 = vand.u32 %v62, 4294901760
    %v683 = vsub.f32 %v62, %v682
    %v684 = vand.u32 %v683, 4294901760
    %v685 = vsub.f32 %v683, %v684
    %v686 = vand.u32 %v685, 4294901760
    %687 = vmatpush2.msra.mxu0 %v686
    %688 = vmatprep.subr.mxu0 0.0
    %v689 = vand.u32 %v61, 4294901760
    %v690 = vsub.f32 %v61, %v689
    %v691 = vand.u32 %v690, 4294901760
    %v692 = vsub.f32 %v690, %v691
    %v693 = vand.u32 %v692, 4294901760
    %694 = vmatpush2.msra.mxu0 %v693
    %695 = vmatprep.subr.mxu0 0.0
    %v696 = vand.u32 %v60, 4294901760
    %v697 = vsub.f32 %v60, %v696
    %v698 = vand.u32 %v697, 4294901760
    %v699 = vsub.f32 %v697, %v698
    %v700 = vand.u32 %v699, 4294901760
    %701 = vmatpush2.msra.mxu0 %v700
    %702 = vmatprep.subr.mxu0 0.0
    %v703 = vand.u32 %v59, 4294901760
    %v704 = vsub.f32 %v59, %v703
    %v705 = vand.u32 %v704, 4294901760
    %v706 = vsub.f32 %v704, %v705
    %v707 = vand.u32 %v706, 4294901760
    %708 = vmatpush2.msra.mxu0 %v707
    %709 = vmatprep.subr.mxu0 0.0
    %v710 = vand.u32 %v58, 4294901760
    %v711 = vsub.f32 %v58, %v710
    %v712 = vand.u32 %v711, 4294901760
    %v713 = vsub.f32 %v711, %v712
    %v714 = vand.u32 %v713, 4294901760
    %715 = vmatpush2.msra.mxu0 %v714
    %v716 = vand.u32 %v307, 4294901760
    %717 = vmatprep.mubr.f32.mxu0 %v716
    %v718 = vand.u32 %v303, 4294901760
    %719 = vmatmul.mubr.f32.gmra.mxu0 %v718
    %v720 = vpop.f32.mrf.mxu0
    %v721 = vadd.f32 %v489, %v720
    %v722 = vpop.f32.mrf.mxu0
    %723 = vdwg.mxu0
    %724 = vmatprep.subr.mxu0 0.0
    %v725 = vand.u32 %v57, 4294901760
    %v726 = vsub.f32 %v57, %v725
    %727 = vmatpush1.msra.mxu0 %v726
    %728 = vmatprep.subr.mxu0 0.0
    %v729 = vand.u32 %v56, 4294901760
    %v730 = vsub.f32 %v56, %v729
    %731 = vmatpush1.msra.mxu0 %v730
    %732 = vmatprep.subr.mxu0 0.0
    %v733 = vand.u32 %v55, 4294901760
    %v734 = vsub.f32 %v55, %v733
    %735 = vmatpush1.msra.mxu0 %v734
    %736 = vmatprep.subr.mxu0 0.0
    %v737 = vand.u32 %v54, 4294901760
    %v738 = vsub.f32 %v54, %v737
    %739 = vmatpush1.msra.mxu0 %v738
    %740 = vmatprep.subr.mxu0 0.0
    %v741 = vand.u32 %v53, 4294901760
    %v742 = vsub.f32 %v53, %v741
    %743 = vmatpush1.msra.mxu0 %v742
    %744 = vmatprep.subr.mxu0 0.0
    %v745 = vand.u32 %v52, 4294901760
    %v746 = vsub.f32 %v52, %v745
    %747 = vmatpush1.msra.mxu0 %v746
    %748 = vmatprep.subr.mxu0 0.0
    %v749 = vand.u32 %v51, 4294901760
    %v750 = vsub.f32 %v51, %v749
    %751 = vmatpush1.msra.mxu0 %v750
    %752 = vmatprep.subr.mxu0 0.0
    %v753 = vand.u32 %v50, 4294901760
    %v754 = vsub.f32 %v50, %v753
    %755 = vmatpush1.msra.mxu0 %v754
    %756 = vmatprep.subr.mxu0 0.0
    %v757 = vand.u32 %v49, 4294901760
    %v758 = vsub.f32 %v49, %v757
    %759 = vmatpush1.msra.mxu0 %v758
    %760 = vmatprep.subr.mxu0 0.0
    %v761 = vand.u32 %v48, 4294901760
    %v762 = vsub.f32 %v48, %v761
    %763 = vmatpush1.msra.mxu0 %v762
    %764 = vmatprep.subr.mxu0 0.0
    %v765 = vand.u32 %v47, 4294901760
    %v766 = vsub.f32 %v47, %v765
    %767 = vmatpush1.msra.mxu0 %v766
    %768 = vmatprep.subr.mxu0 0.0
    %v769 = vand.u32 %v46, 4294901760
    %v770 = vsub.f32 %v46, %v769
    %771 = vmatpush1.msra.mxu0 %v770
    %772 = vmatprep.subr.mxu0 0.0
    %v773 = vand.u32 %v45, 4294901760
    %v774 = vsub.f32 %v45, %v773
    %775 = vmatpush1.msra.mxu0 %v774
    %776 = vmatprep.subr.mxu0 0.0
    %v777 = vand.u32 %v44, 4294901760
    %v778 = vsub.f32 %v44, %v777
    %779 = vmatpush1.msra.mxu0 %v778
    %780 = vmatprep.subr.mxu0 0.0
    %v781 = vand.u32 %v43, 4294901760
    %v782 = vsub.f32 %v43, %v781
    %783 = vmatpush1.msra.mxu0 %v782
    %784 = vmatprep.subr.mxu0 0.0
    %v785 = vand.u32 %v42, 4294901760
    %v786 = vsub.f32 %v42, %v785
    %787 = vmatpush1.msra.mxu0 %v786
    %788 = vmatprep.subr.mxu0 0.0
    %v789 = vand.u32 %v73, 4294901760
    %v790 = vsub.f32 %v73, %v789
    %791 = vmatpush2.msra.mxu0 %v790
    %792 = vmatprep.subr.mxu0 0.0
    %v793 = vand.u32 %v72, 4294901760
    %v794 = vsub.f32 %v72, %v793
    %795 = vmatpush2.msra.mxu0 %v794
    %796 = vmatprep.subr.mxu0 0.0
    %v797 = vand.u32 %v71, 4294901760
    %v798 = vsub.f32 %v71, %v797
    %799 = vmatpush2.msra.mxu0 %v798
    %800 = vmatprep.subr.mxu0 0.0
    %v801 = vand.u32 %v70, 4294901760
    %v802 = vsub.f32 %v70, %v801
    %803 = vmatpush2.msra.mxu0 %v802
    %804 = vmatprep.subr.mxu0 0.0
    %v805 = vand.u32 %v69, 4294901760
    %v806 = vsub.f32 %v69, %v805
    %807 = vmatpush2.msra.mxu0 %v806
    %808 = vmatprep.subr.mxu0 0.0
    %v809 = vand.u32 %v68, 4294901760
    %v810 = vsub.f32 %v68, %v809
    %811 = vmatpush2.msra.mxu0 %v810
    %812 = vmatprep.subr.mxu0 0.0
    %v813 = vand.u32 %v67, 4294901760
    %v814 = vsub.f32 %v67, %v813
    %815 = vmatpush2.msra.mxu0 %v814
    %816 = vmatprep.subr.mxu0 0.0
    %v817 = vand.u32 %v66, 4294901760
    %v818 = vsub.f32 %v66, %v817
    %819 = vmatpush2.msra.mxu0 %v818
    %820 = vmatprep.subr.mxu0 0.0
    %v821 = vand.u32 %v65, 4294901760
    %v822 = vsub.f32 %v65, %v821
    %823 = vmatpush2.msra.mxu0 %v822
    %824 = vmatprep.subr.mxu0 0.0
    %v825 = vand.u32 %v64, 4294901760
    %v826 = vsub.f32 %v64, %v825
    %827 = vmatpush2.msra.mxu0 %v826
    %828 = vmatprep.subr.mxu0 0.0
    %v829 = vand.u32 %v63, 4294901760
    %v830 = vsub.f32 %v63, %v829
    %831 = vmatpush2.msra.mxu0 %v830
    %832 = vmatprep.subr.mxu0 0.0
    %v833 = vand.u32 %v62, 4294901760
    %v834 = vsub.f32 %v62, %v833
    %835 = vmatpush2.msra.mxu0 %v834
    %836 = vmatprep.subr.mxu0 0.0
    %v837 = vand.u32 %v61, 4294901760
    %v838 = vsub.f32 %v61, %v837
    %839 = vmatpush2.msra.mxu0 %v838
    %840 = vmatprep.subr.mxu0 0.0
    %v841 = vand.u32 %v60, 4294901760
    %v842 = vsub.f32 %v60, %v841
    %843 = vmatpush2.msra.mxu0 %v842
    %844 = vmatprep.subr.mxu0 0.0
    %v845 = vand.u32 %v59, 4294901760
    %v846 = vsub.f32 %v59, %v845
    %847 = vmatpush2.msra.mxu0 %v846
    %848 = vmatprep.subr.mxu0 0.0
    %v849 = vand.u32 %v58, 4294901760
    %v850 = vsub.f32 %v58, %v849
    %851 = vmatpush2.msra.mxu0 %v850
    %v852 = vand.u32 %v307, 4294901760
    %v853 = vsub.f32 %v307, %v852
    %854 = vmatprep.mubr.f32.mxu0 %v853
    %v855 = vand.u32 %v303, 4294901760
    %v856 = vsub.f32 %v303, %v855
    %857 = vmatmul.mubr.f32.gmra.mxu0 %v856
    %v858 = vpop.f32.mrf.mxu0
    %v859 = vadd.f32 %v721, %v858
    %v860 = vpop.f32.mrf.mxu0
    %861 = vdwg.mxu0
    %862 = vmatprep.subr.mxu0 0.0
    %v863 = vand.u32 %v57, 4294901760
    %864 = vmatpush1.msra.mxu0 %v863
    %865 = vmatprep.subr.mxu0 0.0
    %v866 = vand.u32 %v56, 4294901760
    %867 = vmatpush1.msra.mxu0 %v866
    %868 = vmatprep.subr.mxu0 0.0
    %v869 = vand.u32 %v55, 4294901760
    %870 = vmatpush1.msra.mxu0 %v869
    %871 = vmatprep.subr.mxu0 0.0
    %v872 = vand.u32 %v54, 4294901760
    %873 = vmatpush1.msra.mxu0 %v872
    %874 = vmatprep.subr.mxu0 0.0
    %v875 = vand.u32 %v53, 4294901760
    %876 = vmatpush1.msra.mxu0 %v875
    %877 = vmatprep.subr.mxu0 0.0
    %v878 = vand.u32 %v52, 4294901760
    %879 = vmatpush1.msra.mxu0 %v878
    %880 = vmatprep.subr.mxu0 0.0
    %v881 = vand.u32 %v51, 4294901760
    %882 = vmatpush1.msra.mxu0 %v881
    %883 = vmatprep.subr.mxu0 0.0
    %v884 = vand.u32 %v50, 4294901760
    %885 = vmatpush1.msra.mxu0 %v884
    %886 = vmatprep.subr.mxu0 0.0
    %v887 = vand.u32 %v49, 4294901760
    %888 = vmatpush1.msra.mxu0 %v887
    %889 = vmatprep.subr.mxu0 0.0
    %v890 = vand.u32 %v48, 4294901760
    %891 = vmatpush1.msra.mxu0 %v890
    %892 = vmatprep.subr.mxu0 0.0
    %v893 = vand.u32 %v47, 4294901760
    %894 = vmatpush1.msra.mxu0 %v893
    %895 = vmatprep.subr.mxu0 0.0
    %v896 = vand.u32 %v46, 4294901760
    %897 = vmatpush1.msra.mxu0 %v896
    %898 = vmatprep.subr.mxu0 0.0
    %v899 = vand.u32 %v45, 4294901760
    %900 = vmatpush1.msra.mxu0 %v899
    %901 = vmatprep.subr.mxu0 0.0
    %v902 = vand.u32 %v44, 4294901760
    %903 = vmatpush1.msra.mxu0 %v902
    %904 = vmatprep.subr.mxu0 0.0
    %v905 = vand.u32 %v43, 4294901760
    %906 = vmatpush1.msra.mxu0 %v905
    %907 = vmatprep.subr.mxu0 0.0
    %v908 = vand.u32 %v42, 4294901760
    %909 = vmatpush1.msra.mxu0 %v908
    %910 = vmatprep.subr.mxu0 0.0
    %v911 = vand.u32 %v73, 4294901760
    %912 = vmatpush2.msra.mxu0 %v911
    %913 = vmatprep.subr.mxu0 0.0
    %v914 = vand.u32 %v72, 4294901760
    %915 = vmatpush2.msra.mxu0 %v914
    %916 = vmatprep.subr.mxu0 0.0
    %v917 = vand.u32 %v71, 4294901760
    %918 = vmatpush2.msra.mxu0 %v917
    %919 = vmatprep.subr.mxu0 0.0
    %v920 = vand.u32 %v70, 4294901760
    %921 = vmatpush2.msra.mxu0 %v920
    %922 = vmatprep.subr.mxu0 0.0
    %v923 = vand.u32 %v69, 4294901760
    %924 = vmatpush2.msra.mxu0 %v923
    %925 = vmatprep.subr.mxu0 0.0
    %v926 = vand.u32 %v68, 4294901760
    %927 = vmatpush2.msra.mxu0 %v926
    %928 = vmatprep.subr.mxu0 0.0
    %v929 = vand.u32 %v67, 4294901760
    %930 = vmatpush2.msra.mxu0 %v929
    %931 = vmatprep.subr.mxu0 0.0
    %v932 = vand.u32 %v66, 4294901760
    %933 = vmatpush2.msra.mxu0 %v932
    %934 = vmatprep.subr.mxu0 0.0
    %v935 = vand.u32 %v65, 4294901760
    %936 = vmatpush2.msra.mxu0 %v935
    %937 = vmatprep.subr.mxu0 0.0
    %v938 = vand.u32 %v64, 4294901760
    %939 = vmatpush2.msra.mxu0 %v938
    %940 = vmatprep.subr.mxu0 0.0
    %v941 = vand.u32 %v63, 4294901760
    %942 = vmatpush2.msra.mxu0 %v941
    %943 = vmatprep.subr.mxu0 0.0
    %v944 = vand.u32 %v62, 4294901760
    %945 = vmatpush2.msra.mxu0 %v944
    %946 = vmatprep.subr.mxu0 0.0
    %v947 = vand.u32 %v61, 4294901760
    %948 = vmatpush2.msra.mxu0 %v947
    %949 = vmatprep.subr.mxu0 0.0
    %v950 = vand.u32 %v60, 4294901760
    %951 = vmatpush2.msra.mxu0 %v950
    %952 = vmatprep.subr.mxu0 0.0
    %v953 = vand.u32 %v59, 4294901760
    %954 = vmatpush2.msra.mxu0 %v953
    %955 = vmatprep.subr.mxu0 0.0
    %v956 = vand.u32 %v58, 4294901760
    %957 = vmatpush2.msra.mxu0 %v956
    %v958 = vand.u32 %v307, 4294901760
    %v959 = vsub.f32 %v307, %v958
    %v960 = vand.u32 %v959, 4294901760
    %961 = vmatprep.mubr.f32.mxu0 %v960
    %v962 = vand.u32 %v303, 4294901760
    %v963 = vsub.f32 %v303, %v962
    %v964 = vand.u32 %v963, 4294901760
    %965 = vmatmul.mubr.f32.gmra.mxu0 %v964
    %v966 = vpop.f32.mrf.mxu0
    %v967 = vadd.f32 %v859, %v966
    %v968 = vpop.f32.mrf.mxu0
    %969 = vdwg.mxu0
    %970 = vmatprep.subr.mxu0 0.0
    %v971 = vand.u32 %v57, 4294901760
    %v972 = vsub.f32 %v57, %v971
    %v973 = vand.u32 %v972, 4294901760
    %974 = vmatpush1.msra.mxu0 %v973
    %975 = vmatprep.subr.mxu0 0.0
    %v976 = vand.u32 %v56, 4294901760
    %v977 = vsub.f32 %v56, %v976
    %v978 = vand.u32 %v977, 4294901760
    %979 = vmatpush1.msra.mxu0 %v978
    %980 = vmatprep.subr.mxu0 0.0
    %v981 = vand.u32 %v55, 4294901760
    %v982 = vsub.f32 %v55, %v981
    %v983 = vand.u32 %v982, 4294901760
    %984 = vmatpush1.msra.mxu0 %v983
    %985 = vmatprep.subr.mxu0 0.0
    %v986 = vand.u32 %v54, 4294901760
    %v987 = vsub.f32 %v54, %v986
    %v988 = vand.u32 %v987, 4294901760
    %989 = vmatpush1.msra.mxu0 %v988
    %990 = vmatprep.subr.mxu0 0.0
    %v991 = vand.u32 %v53, 4294901760
    %v992 = vsub.f32 %v53, %v991
    %v993 = vand.u32 %v992, 4294901760
    %994 = vmatpush1.msra.mxu0 %v993
    %995 = vmatprep.subr.mxu0 0.0
    %v996 = vand.u32 %v52, 4294901760
    %v997 = vsub.f32 %v52, %v996
    %v998 = vand.u32 %v997, 4294901760
    %999 = vmatpush1.msra.mxu0 %v998
    %1000 = vmatprep.subr.mxu0 0.0
    %v1001 = vand.u32 %v51, 4294901760
    %v1002 = vsub.f32 %v51, %v1001
    %v1003 = vand.u32 %v1002, 4294901760
    %1004 = vmatpush1.msra.mxu0 %v1003
    %1005 = vmatprep.subr.mxu0 0.0
    %v1006 = vand.u32 %v50, 4294901760
    %v1007 = vsub.f32 %v50, %v1006
    %v1008 = vand.u32 %v1007, 4294901760
    %1009 = vmatpush1.msra.mxu0 %v1008
    %1010 = vmatprep.subr.mxu0 0.0
    %v1011 = vand.u32 %v49, 4294901760
    %v1012 = vsub.f32 %v49, %v1011
    %v1013 = vand.u32 %v1012, 4294901760
    %1014 = vmatpush1.msra.mxu0 %v1013
    %1015 = vmatprep.subr.mxu0 0.0
    %v1016 = vand.u32 %v48, 4294901760
    %v1017 = vsub.f32 %v48, %v1016
    %v1018 = vand.u32 %v1017, 4294901760
    %1019 = vmatpush1.msra.mxu0 %v1018
    %1020 = vmatprep.subr.mxu0 0.0
    %v1021 = vand.u32 %v47, 4294901760
    %v1022 = vsub.f32 %v47, %v1021
    %v1023 = vand.u32 %v1022, 4294901760
    %1024 = vmatpush1.msra.mxu0 %v1023
    %1025 = vmatprep.subr.mxu0 0.0
    %v1026 = vand.u32 %v46, 4294901760
    %v1027 = vsub.f32 %v46, %v1026
    %v1028 = vand.u32 %v1027, 4294901760
    %1029 = vmatpush1.msra.mxu0 %v1028
    %1030 = vmatprep.subr.mxu0 0.0
    %v1031 = vand.u32 %v45, 4294901760
    %v1032 = vsub.f32 %v45, %v1031
    %v1033 = vand.u32 %v1032, 4294901760
    %1034 = vmatpush1.msra.mxu0 %v1033
    %1035 = vmatprep.subr.mxu0 0.0
    %v1036 = vand.u32 %v44, 4294901760
    %v1037 = vsub.f32 %v44, %v1036
    %v1038 = vand.u32 %v1037, 4294901760
    %1039 = vmatpush1.msra.mxu0 %v1038
    %1040 = vmatprep.subr.mxu0 0.0
    %v1041 = vand.u32 %v43, 4294901760
    %v1042 = vsub.f32 %v43, %v1041
    %v1043 = vand.u32 %v1042, 4294901760
    %1044 = vmatpush1.msra.mxu0 %v1043
    %1045 = vmatprep.subr.mxu0 0.0
    %v1046 = vand.u32 %v42, 4294901760
    %v1047 = vsub.f32 %v42, %v1046
    %v1048 = vand.u32 %v1047, 4294901760
    %1049 = vmatpush1.msra.mxu0 %v1048
    %1050 = vmatprep.subr.mxu0 0.0
    %v1051 = vand.u32 %v73, 4294901760
    %v1052 = vsub.f32 %v73, %v1051
    %v1053 = vand.u32 %v1052, 4294901760
    %1054 = vmatpush2.msra.mxu0 %v1053
    %1055 = vmatprep.subr.mxu0 0.0
    %v1056 = vand.u32 %v72, 4294901760
    %v1057 = vsub.f32 %v72, %v1056
    %v1058 = vand.u32 %v1057, 4294901760
    %1059 = vmatpush2.msra.mxu0 %v1058
    %1060 = vmatprep.subr.mxu0 0.0
    %v1061 = vand.u32 %v71, 4294901760
    %v1062 = vsub.f32 %v71, %v1061
    %v1063 = vand.u32 %v1062, 4294901760
    %1064 = vmatpush2.msra.mxu0 %v1063
    %1065 = vmatprep.subr.mxu0 0.0
    %v1066 = vand.u32 %v70, 4294901760
    %v1067 = vsub.f32 %v70, %v1066
    %v1068 = vand.u32 %v1067, 4294901760
    %1069 = vmatpush2.msra.mxu0 %v1068
    %1070 = vmatprep.subr.mxu0 0.0
    %v1071 = vand.u32 %v69, 4294901760
    %v1072 = vsub.f32 %v69, %v1071
    %v1073 = vand.u32 %v1072, 4294901760
    %1074 = vmatpush2.msra.mxu0 %v1073
    %1075 = vmatprep.subr.mxu0 0.0
    %v1076 = vand.u32 %v68, 4294901760
    %v1077 = vsub.f32 %v68, %v1076
    %v1078 = vand.u32 %v1077, 4294901760
    %1079 = vmatpush2.msra.mxu0 %v1078
    %1080 = vmatprep.subr.mxu0 0.0
    %v1081 = vand.u32 %v67, 4294901760
    %v1082 = vsub.f32 %v67, %v1081
    %v1083 = vand.u32 %v1082, 4294901760
    %1084 = vmatpush2.msra.mxu0 %v1083
    %1085 = vmatprep.subr.mxu0 0.0
    %v1086 = vand.u32 %v66, 4294901760
    %v1087 = vsub.f32 %v66, %v1086
    %v1088 = vand.u32 %v1087, 4294901760
    %1089 = vmatpush2.msra.mxu0 %v1088
    %1090 = vmatprep.subr.mxu0 0.0
    %v1091 = vand.u32 %v65, 4294901760
    %v1092 = vsub.f32 %v65, %v1091
    %v1093 = vand.u32 %v1092, 4294901760
    %1094 = vmatpush2.msra.mxu0 %v1093
    %1095 = vmatprep.subr.mxu0 0.0
    %v1096 = vand.u32 %v64, 4294901760
    %v1097 = vsub.f32 %v64, %v1096
    %v1098 = vand.u32 %v1097, 4294901760
    %1099 = vmatpush2.msra.mxu0 %v1098
    %1100 = vmatprep.subr.mxu0 0.0
    %v1101 = vand.u32 %v63, 4294901760
    %v1102 = vsub.f32 %v63, %v1101
    %v1103 = vand.u32 %v1102, 4294901760
    %1104 = vmatpush2.msra.mxu0 %v1103
    %1105 = vmatprep.subr.mxu0 0.0
    %v1106 = vand.u32 %v62, 4294901760
    %v1107 = vsub.f32 %v62, %v1106
    %v1108 = vand.u32 %v1107, 4294901760
    %1109 = vmatpush2.msra.mxu0 %v1108
    %1110 = vmatprep.subr.mxu0 0.0
    %v1111 = vand.u32 %v61, 4294901760
    %v1112 = vsub.f32 %v61, %v1111
    %v1113 = vand.u32 %v1112, 4294901760
    %1114 = vmatpush2.msra.mxu0 %v1113
    %1115 = vmatprep.subr.mxu0 0.0
    %v1116 = vand.u32 %v60, 4294901760
    %v1117 = vsub.f32 %v60, %v1116
    %v1118 = vand.u32 %v1117, 4294901760
    %1119 = vmatpush2.msra.mxu0 %v1118
    %1120 = vmatprep.subr.mxu0 0.0
    %v1121 = vand.u32 %v59, 4294901760
    %v1122 = vsub.f32 %v59, %v1121
    %v1123 = vand.u32 %v1122, 4294901760
    %1124 = vmatpush2.msra.mxu0 %v1123
    %1125 = vmatprep.subr.mxu0 0.0
    %v1126 = vand.u32 %v58, 4294901760
    %v1127 = vsub.f32 %v58, %v1126
    %v1128 = vand.u32 %v1127, 4294901760
    %1129 = vmatpush2.msra.mxu0 %v1128
    %v1130 = vand.u32 %v307, 4294901760
    %1131 = vmatprep.mubr.f32.mxu0 %v1130
    %v1132 = vand.u32 %v303, 4294901760
    %1133 = vmatmul.mubr.f32.gmra.mxu0 %v1132
    %v1134 = vpop.f32.mrf.mxu0
    %v1135 = vadd.f32 %v967, %v1134
    %v1136 = vpop.f32.mrf.mxu0
    %1137 = vdwg.mxu0
    %1138 = vmatprep.subr.mxu0 0.0
    %v1139 = vand.u32 %v57, 4294901760
    %1140 = vmatpush1.msra.mxu0 %v1139
    %1141 = vmatprep.subr.mxu0 0.0
    %v1142 = vand.u32 %v56, 4294901760
    %1143 = vmatpush1.msra.mxu0 %v1142
    %1144 = vmatprep.subr.mxu0 0.0
    %v1145 = vand.u32 %v55, 4294901760
    %1146 = vmatpush1.msra.mxu0 %v1145
    %1147 = vmatprep.subr.mxu0 0.0
    %v1148 = vand.u32 %v54, 4294901760
    %1149 = vmatpush1.msra.mxu0 %v1148
    %1150 = vmatprep.subr.mxu0 0.0
    %v1151 = vand.u32 %v53, 4294901760
    %1152 = vmatpush1.msra.mxu0 %v1151
    %1153 = vmatprep.subr.mxu0 0.0
    %v1154 = vand.u32 %v52, 4294901760
    %1155 = vmatpush1.msra.mxu0 %v1154
    %1156 = vmatprep.subr.mxu0 0.0
    %v1157 = vand.u32 %v51, 4294901760
    %1158 = vmatpush1.msra.mxu0 %v1157
    %1159 = vmatprep.subr.mxu0 0.0
    %v1160 = vand.u32 %v50, 4294901760
    %1161 = vmatpush1.msra.mxu0 %v1160
    %1162 = vmatprep.subr.mxu0 0.0
    %v1163 = vand.u32 %v49, 4294901760
    %1164 = vmatpush1.msra.mxu0 %v1163
    %1165 = vmatprep.subr.mxu0 0.0
    %v1166 = vand.u32 %v48, 4294901760
    %1167 = vmatpush1.msra.mxu0 %v1166
    %1168 = vmatprep.subr.mxu0 0.0
    %v1169 = vand.u32 %v47, 4294901760
    %1170 = vmatpush1.msra.mxu0 %v1169
    %1171 = vmatprep.subr.mxu0 0.0
    %v1172 = vand.u32 %v46, 4294901760
    %1173 = vmatpush1.msra.mxu0 %v1172
    %1174 = vmatprep.subr.mxu0 0.0
    %v1175 = vand.u32 %v45, 4294901760
    %1176 = vmatpush1.msra.mxu0 %v1175
    %1177 = vmatprep.subr.mxu0 0.0
    %v1178 = vand.u32 %v44, 4294901760
    %1179 = vmatpush1.msra.mxu0 %v1178
    %1180 = vmatprep.subr.mxu0 0.0
    %v1181 = vand.u32 %v43, 4294901760
    %1182 = vmatpush1.msra.mxu0 %v1181
    %1183 = vmatprep.subr.mxu0 0.0
    %v1184 = vand.u32 %v42, 4294901760
    %1185 = vmatpush1.msra.mxu0 %v1184
    %1186 = vmatprep.subr.mxu0 0.0
    %v1187 = vand.u32 %v73, 4294901760
    %1188 = vmatpush2.msra.mxu0 %v1187
    %1189 = vmatprep.subr.mxu0 0.0
    %v1190 = vand.u32 %v72, 4294901760
    %1191 = vmatpush2.msra.mxu0 %v1190
    %1192 = vmatprep.subr.mxu0 0.0
    %v1193 = vand.u32 %v71, 4294901760
    %1194 = vmatpush2.msra.mxu0 %v1193
    %1195 = vmatprep.subr.mxu0 0.0
    %v1196 = vand.u32 %v70, 4294901760
    %1197 = vmatpush2.msra.mxu0 %v1196
    %1198 = vmatprep.subr.mxu0 0.0
    %v1199 = vand.u32 %v69, 4294901760
    %1200 = vmatpush2.msra.mxu0 %v1199
    %1201 = vmatprep.subr.mxu0 0.0
    %v1202 = vand.u32 %v68, 4294901760
    %1203 = vmatpush2.msra.mxu0 %v1202
    %1204 = vmatprep.subr.mxu0 0.0
    %v1205 = vand.u32 %v67, 4294901760
    %1206 = vmatpush2.msra.mxu0 %v1205
    %1207 = vmatprep.subr.mxu0 0.0
    %v1208 = vand.u32 %v66, 4294901760
    %1209 = vmatpush2.msra.mxu0 %v1208
    %1210 = vmatprep.subr.mxu0 0.0
    %v1211 = vand.u32 %v65, 4294901760
    %1212 = vmatpush2.msra.mxu0 %v1211
    %1213 = vmatprep.subr.mxu0 0.0
    %v1214 = vand.u32 %v64, 4294901760
    %1215 = vmatpush2.msra.mxu0 %v1214
    %1216 = vmatprep.subr.mxu0 0.0
    %v1217 = vand.u32 %v63, 4294901760
    %1218 = vmatpush2.msra.mxu0 %v1217
    %1219 = vmatprep.subr.mxu0 0.0
    %v1220 = vand.u32 %v62, 4294901760
    %1221 = vmatpush2.msra.mxu0 %v1220
    %1222 = vmatprep.subr.mxu0 0.0
    %v1223 = vand.u32 %v61, 4294901760
    %1224 = vmatpush2.msra.mxu0 %v1223
    %1225 = vmatprep.subr.mxu0 0.0
    %v1226 = vand.u32 %v60, 4294901760
    %1227 = vmatpush2.msra.mxu0 %v1226
    %1228 = vmatprep.subr.mxu0 0.0
    %v1229 = vand.u32 %v59, 4294901760
    %1230 = vmatpush2.msra.mxu0 %v1229
    %1231 = vmatprep.subr.mxu0 0.0
    %v1232 = vand.u32 %v58, 4294901760
    %1233 = vmatpush2.msra.mxu0 %v1232
    %v1234 = vand.u32 %v307, 4294901760
    %1235 = vmatprep.mubr.f32.mxu0 %v1234
    %v1236 = vand.u32 %v303, 4294901760
    %1237 = vmatmul.mubr.f32.gmra.mxu0 %v1236
    %v1238 = vpop.f32.mrf.mxu0
    %v1239 = vadd.f32 %v1135, %v1238
    %v1240 = vpop.f32.mrf.mxu0
    %1241 = vdwg.mxu0
    %1242 = vmatprep.subr.mxu0 0.0
    %v1243 = vand.u32 %v89, 4294901760
    %1244 = vmatpush1.msra.mxu0 %v1243
    %1245 = vmatprep.subr.mxu0 0.0
    %v1246 = vand.u32 %v88, 4294901760
    %1247 = vmatpush1.msra.mxu0 %v1246
    %1248 = vmatprep.subr.mxu0 0.0
    %v1249 = vand.u32 %v87, 4294901760
    %1250 = vmatpush1.msra.mxu0 %v1249
    %1251 = vmatprep.subr.mxu0 0.0
    %v1252 = vand.u32 %v86, 4294901760
    %1253 = vmatpush1.msra.mxu0 %v1252
    %1254 = vmatprep.subr.mxu0 0.0
    %v1255 = vand.u32 %v85, 4294901760
    %1256 = vmatpush1.msra.mxu0 %v1255
    %1257 = vmatprep.subr.mxu0 0.0
    %v1258 = vand.u32 %v84, 4294901760
    %1259 = vmatpush1.msra.mxu0 %v1258
    %1260 = vmatprep.subr.mxu0 0.0
    %v1261 = vand.u32 %v83, 4294901760
    %1262 = vmatpush1.msra.mxu0 %v1261
    %1263 = vmatprep.subr.mxu0 0.0
    %v1264 = vand.u32 %v82, 4294901760
    %1265 = vmatpush1.msra.mxu0 %v1264
    %1266 = vmatprep.subr.mxu0 0.0
    %v1267 = vand.u32 %v81, 4294901760
    %1268 = vmatpush1.msra.mxu0 %v1267
    %1269 = vmatprep.subr.mxu0 0.0
    %v1270 = vand.u32 %v80, 4294901760
    %1271 = vmatpush1.msra.mxu0 %v1270
    %1272 = vmatprep.subr.mxu0 0.0
    %v1273 = vand.u32 %v79, 4294901760
    %1274 = vmatpush1.msra.mxu0 %v1273
    %1275 = vmatprep.subr.mxu0 0.0
    %v1276 = vand.u32 %v78, 4294901760
    %1277 = vmatpush1.msra.mxu0 %v1276
    %1278 = vmatprep.subr.mxu0 0.0
    %v1279 = vand.u32 %v77, 4294901760
    %1280 = vmatpush1.msra.mxu0 %v1279
    %1281 = vmatprep.subr.mxu0 0.0
    %v1282 = vand.u32 %v76, 4294901760
    %1283 = vmatpush1.msra.mxu0 %v1282
    %1284 = vmatprep.subr.mxu0 0.0
    %v1285 = vand.u32 %v75, 4294901760
    %1286 = vmatpush1.msra.mxu0 %v1285
    %1287 = vmatprep.subr.mxu0 0.0
    %v1288 = vand.u32 %v74, 4294901760
    %1289 = vmatpush1.msra.mxu0 %v1288
    %1290 = vmatprep.subr.mxu0 0.0
    %v1291 = vand.u32 %v105, 4294901760
    %1292 = vmatpush2.msra.mxu0 %v1291
    %1293 = vmatprep.subr.mxu0 0.0
    %v1294 = vand.u32 %v104, 4294901760
    %1295 = vmatpush2.msra.mxu0 %v1294
    %1296 = vmatprep.subr.mxu0 0.0
    %v1297 = vand.u32 %v103, 4294901760
    %1298 = vmatpush2.msra.mxu0 %v1297
    %1299 = vmatprep.subr.mxu0 0.0
    %v1300 = vand.u32 %v102, 4294901760
    %1301 = vmatpush2.msra.mxu0 %v1300
    %1302 = vmatprep.subr.mxu0 0.0
    %v1303 = vand.u32 %v101, 4294901760
    %1304 = vmatpush2.msra.mxu0 %v1303
    %1305 = vmatprep.subr.mxu0 0.0
    %v1306 = vand.u32 %v100, 4294901760
    %1307 = vmatpush2.msra.mxu0 %v1306
    %1308 = vmatprep.subr.mxu0 0.0
    %v1309 = vand.u32 %v99, 4294901760
    %1310 = vmatpush2.msra.mxu0 %v1309
    %1311 = vmatprep.subr.mxu0 0.0
    %v1312 = vand.u32 %v98, 4294901760
    %1313 = vmatpush2.msra.mxu0 %v1312
    %1314 = vmatprep.subr.mxu0 0.0
    %v1315 = vand.u32 %v97, 4294901760
    %1316 = vmatpush2.msra.mxu0 %v1315
    %1317 = vmatprep.subr.mxu0 0.0
    %v1318 = vand.u32 %v96, 4294901760
    %1319 = vmatpush2.msra.mxu0 %v1318
    %1320 = vmatprep.subr.mxu0 0.0
    %v1321 = vand.u32 %v95, 4294901760
    %1322 = vmatpush2.msra.mxu0 %v1321
    %1323 = vmatprep.subr.mxu0 0.0
    %v1324 = vand.u32 %v94, 4294901760
    %1325 = vmatpush2.msra.mxu0 %v1324
    %1326 = vmatprep.subr.mxu0 0.0
    %v1327 = vand.u32 %v93, 4294901760
    %1328 = vmatpush2.msra.mxu0 %v1327
    %1329 = vmatprep.subr.mxu0 0.0
    %v1330 = vand.u32 %v92, 4294901760
    %1331 = vmatpush2.msra.mxu0 %v1330
    %1332 = vmatprep.subr.mxu0 0.0
    %v1333 = vand.u32 %v91, 4294901760
    %1334 = vmatpush2.msra.mxu0 %v1333
    %1335 = vmatprep.subr.mxu0 0.0
    %v1336 = vand.u32 %v90, 4294901760
    %1337 = vmatpush2.msra.mxu0 %v1336
    %v1338 = vand.u32 %v315, 4294901760
    %v1339 = vsub.f32 %v315, %v1338
    %v1340 = vand.u32 %v1339, 4294901760
    %v1341 = vsub.f32 %v1339, %v1340
    %v1342 = vand.u32 %v1341, 4294901760
    %1343 = vmatprep.mubr.f32.mxu0 %v1342
    %v1344 = vand.u32 %v311, 4294901760
    %v1345 = vsub.f32 %v311, %v1344
    %v1346 = vand.u32 %v1345, 4294901760
    %v1347 = vsub.f32 %v1345, %v1346
    %v1348 = vand.u32 %v1347, 4294901760
    %1349 = vmatmul.mubr.f32.gmra.mxu0 %v1348
    %v1350 = vpop.f32.mrf.mxu0
    %v1351 = vadd.f32 %v1239, %v1350
    %v1352 = vpop.f32.mrf.mxu0
    %1353 = vdwg.mxu0
    %1354 = vmatprep.subr.mxu0 0.0
    %v1355 = vand.u32 %v89, 4294901760
    %v1356 = vsub.f32 %v89, %v1355
    %v1357 = vand.u32 %v1356, 4294901760
    %v1358 = vsub.f32 %v1356, %v1357
    %v1359 = vand.u32 %v1358, 4294901760
    %1360 = vmatpush1.msra.mxu0 %v1359
    %1361 = vmatprep.subr.mxu0 0.0
    %v1362 = vand.u32 %v88, 4294901760
    %v1363 = vsub.f32 %v88, %v1362
    %v1364 = vand.u32 %v1363, 4294901760
    %v1365 = vsub.f32 %v1363, %v1364
    %v1366 = vand.u32 %v1365, 4294901760
    %1367 = vmatpush1.msra.mxu0 %v1366
    %1368 = vmatprep.subr.mxu0 0.0
    %v1369 = vand.u32 %v87, 4294901760
    %v1370 = vsub.f32 %v87, %v1369
    %v1371 = vand.u32 %v1370, 4294901760
    %v1372 = vsub.f32 %v1370, %v1371
    %v1373 = vand.u32 %v1372, 4294901760
    %1374 = vmatpush1.msra.mxu0 %v1373
    %1375 = vmatprep.subr.mxu0 0.0
    %v1376 = vand.u32 %v86, 4294901760
    %v1377 = vsub.f32 %v86, %v1376
    %v1378 = vand.u32 %v1377, 4294901760
    %v1379 = vsub.f32 %v1377, %v1378
    %v1380 = vand.u32 %v1379, 4294901760
    %1381 = vmatpush1.msra.mxu0 %v1380
    %1382 = vmatprep.subr.mxu0 0.0
    %v1383 = vand.u32 %v85, 4294901760
    %v1384 = vsub.f32 %v85, %v1383
    %v1385 = vand.u32 %v1384, 4294901760
    %v1386 = vsub.f32 %v1384, %v1385
    %v1387 = vand.u32 %v1386, 4294901760
    %1388 = vmatpush1.msra.mxu0 %v1387
    %1389 = vmatprep.subr.mxu0 0.0
    %v1390 = vand.u32 %v84, 4294901760
    %v1391 = vsub.f32 %v84, %v1390
    %v1392 = vand.u32 %v1391, 4294901760
    %v1393 = vsub.f32 %v1391, %v1392
    %v1394 = vand.u32 %v1393, 4294901760
    %1395 = vmatpush1.msra.mxu0 %v1394
    %1396 = vmatprep.subr.mxu0 0.0
    %v1397 = vand.u32 %v83, 4294901760
    %v1398 = vsub.f32 %v83, %v1397
    %v1399 = vand.u32 %v1398, 4294901760
    %v1400 = vsub.f32 %v1398, %v1399
    %v1401 = vand.u32 %v1400, 4294901760
    %1402 = vmatpush1.msra.mxu0 %v1401
    %1403 = vmatprep.subr.mxu0 0.0
    %v1404 = vand.u32 %v82, 4294901760
    %v1405 = vsub.f32 %v82, %v1404
    %v1406 = vand.u32 %v1405, 4294901760
    %v1407 = vsub.f32 %v1405, %v1406
    %v1408 = vand.u32 %v1407, 4294901760
    %1409 = vmatpush1.msra.mxu0 %v1408
    %1410 = vmatprep.subr.mxu0 0.0
    %v1411 = vand.u32 %v81, 4294901760
    %v1412 = vsub.f32 %v81, %v1411
    %v1413 = vand.u32 %v1412, 4294901760
    %v1414 = vsub.f32 %v1412, %v1413
    %v1415 = vand.u32 %v1414, 4294901760
    %1416 = vmatpush1.msra.mxu0 %v1415
    %1417 = vmatprep.subr.mxu0 0.0
    %v1418 = vand.u32 %v80, 4294901760
    %v1419 = vsub.f32 %v80, %v1418
    %v1420 = vand.u32 %v1419, 4294901760
    %v1421 = vsub.f32 %v1419, %v1420
    %v1422 = vand.u32 %v1421, 4294901760
    %1423 = vmatpush1.msra.mxu0 %v1422
    %1424 = vmatprep.subr.mxu0 0.0
    %v1425 = vand.u32 %v79, 4294901760
    %v1426 = vsub.f32 %v79, %v1425
    %v1427 = vand.u32 %v1426, 4294901760
    %v1428 = vsub.f32 %v1426, %v1427
    %v1429 = vand.u32 %v1428, 4294901760
    %1430 = vmatpush1.msra.mxu0 %v1429
    %1431 = vmatprep.subr.mxu0 0.0
    %v1432 = vand.u32 %v78, 4294901760
    %v1433 = vsub.f32 %v78, %v1432
    %v1434 = vand.u32 %v1433, 4294901760
    %v1435 = vsub.f32 %v1433, %v1434
    %v1436 = vand.u32 %v1435, 4294901760
    %1437 = vmatpush1.msra.mxu0 %v1436
    %1438 = vmatprep.subr.mxu0 0.0
    %v1439 = vand.u32 %v77, 4294901760
    %v1440 = vsub.f32 %v77, %v1439
    %v1441 = vand.u32 %v1440, 4294901760
    %v1442 = vsub.f32 %v1440, %v1441
    %v1443 = vand.u32 %v1442, 4294901760
    %1444 = vmatpush1.msra.mxu0 %v1443
    %1445 = vmatprep.subr.mxu0 0.0
    %v1446 = vand.u32 %v76, 4294901760
    %v1447 = vsub.f32 %v76, %v1446
    %v1448 = vand.u32 %v1447, 4294901760
    %v1449 = vsub.f32 %v1447, %v1448
    %v1450 = vand.u32 %v1449, 4294901760
    %1451 = vmatpush1.msra.mxu0 %v1450
    %1452 = vmatprep.subr.mxu0 0.0
    %v1453 = vand.u32 %v75, 4294901760
    %v1454 = vsub.f32 %v75, %v1453
    %v1455 = vand.u32 %v1454, 4294901760
    %v1456 = vsub.f32 %v1454, %v1455
    %v1457 = vand.u32 %v1456, 4294901760
    %1458 = vmatpush1.msra.mxu0 %v1457
    %1459 = vmatprep.subr.mxu0 0.0
    %v1460 = vand.u32 %v74, 4294901760
    %v1461 = vsub.f32 %v74, %v1460
    %v1462 = vand.u32 %v1461, 4294901760
    %v1463 = vsub.f32 %v1461, %v1462
    %v1464 = vand.u32 %v1463, 4294901760
    %1465 = vmatpush1.msra.mxu0 %v1464
    %1466 = vmatprep.subr.mxu0 0.0
    %v1467 = vand.u32 %v105, 4294901760
    %v1468 = vsub.f32 %v105, %v1467
    %v1469 = vand.u32 %v1468, 4294901760
    %v1470 = vsub.f32 %v1468, %v1469
    %v1471 = vand.u32 %v1470, 4294901760
    %1472 = vmatpush2.msra.mxu0 %v1471
    %1473 = vmatprep.subr.mxu0 0.0
    %v1474 = vand.u32 %v104, 4294901760
    %v1475 = vsub.f32 %v104, %v1474
    %v1476 = vand.u32 %v1475, 4294901760
    %v1477 = vsub.f32 %v1475, %v1476
    %v1478 = vand.u32 %v1477, 4294901760
    %1479 = vmatpush2.msra.mxu0 %v1478
    %1480 = vmatprep.subr.mxu0 0.0
    %v1481 = vand.u32 %v103, 4294901760
    %v1482 = vsub.f32 %v103, %v1481
    %v1483 = vand.u32 %v1482, 4294901760
    %v1484 = vsub.f32 %v1482, %v1483
    %v1485 = vand.u32 %v1484, 4294901760
    %1486 = vmatpush2.msra.mxu0 %v1485
    %1487 = vmatprep.subr.mxu0 0.0
    %v1488 = vand.u32 %v102, 4294901760
    %v1489 = vsub.f32 %v102, %v1488
    %v1490 = vand.u32 %v1489, 4294901760
    %v1491 = vsub.f32 %v1489, %v1490
    %v1492 = vand.u32 %v1491, 4294901760
    %1493 = vmatpush2.msra.mxu0 %v1492
    %1494 = vmatprep.subr.mxu0 0.0
    %v1495 = vand.u32 %v101, 4294901760
    %v1496 = vsub.f32 %v101, %v1495
    %v1497 = vand.u32 %v1496, 4294901760
    %v1498 = vsub.f32 %v1496, %v1497
    %v1499 = vand.u32 %v1498, 4294901760
    %1500 = vmatpush2.msra.mxu0 %v1499
    %1501 = vmatprep.subr.mxu0 0.0
    %v1502 = vand.u32 %v100, 4294901760
    %v1503 = vsub.f32 %v100, %v1502
    %v1504 = vand.u32 %v1503, 4294901760
    %v1505 = vsub.f32 %v1503, %v1504
    %v1506 = vand.u32 %v1505, 4294901760
    %1507 = vmatpush2.msra.mxu0 %v1506
    %1508 = vmatprep.subr.mxu0 0.0
    %v1509 = vand.u32 %v99, 4294901760
    %v1510 = vsub.f32 %v99, %v1509
    %v1511 = vand.u32 %v1510, 4294901760
    %v1512 = vsub.f32 %v1510, %v1511
    %v1513 = vand.u32 %v1512, 4294901760
    %1514 = vmatpush2.msra.mxu0 %v1513
    %1515 = vmatprep.subr.mxu0 0.0
    %v1516 = vand.u32 %v98, 4294901760
    %v1517 = vsub.f32 %v98, %v1516
    %v1518 = vand.u32 %v1517, 4294901760
    %v1519 = vsub.f32 %v1517, %v1518
    %v1520 = vand.u32 %v1519, 4294901760
    %1521 = vmatpush2.msra.mxu0 %v1520
    %1522 = vmatprep.subr.mxu0 0.0
    %v1523 = vand.u32 %v97, 4294901760
    %v1524 = vsub.f32 %v97, %v1523
    %v1525 = vand.u32 %v1524, 4294901760
    %v1526 = vsub.f32 %v1524, %v1525
    %v1527 = vand.u32 %v1526, 4294901760
    %1528 = vmatpush2.msra.mxu0 %v1527
    %1529 = vmatprep.subr.mxu0 0.0
    %v1530 = vand.u32 %v96, 4294901760
    %v1531 = vsub.f32 %v96, %v1530
    %v1532 = vand.u32 %v1531, 4294901760
    %v1533 = vsub.f32 %v1531, %v1532
    %v1534 = vand.u32 %v1533, 4294901760
    %1535 = vmatpush2.msra.mxu0 %v1534
    %1536 = vmatprep.subr.mxu0 0.0
    %v1537 = vand.u32 %v95, 4294901760
    %v1538 = vsub.f32 %v95, %v1537
    %v1539 = vand.u32 %v1538, 4294901760
    %v1540 = vsub.f32 %v1538, %v1539
    %v1541 = vand.u32 %v1540, 4294901760
    %1542 = vmatpush2.msra.mxu0 %v1541
    %1543 = vmatprep.subr.mxu0 0.0
    %v1544 = vand.u32 %v94, 4294901760
    %v1545 = vsub.f32 %v94, %v1544
    %v1546 = vand.u32 %v1545, 4294901760
    %v1547 = vsub.f32 %v1545, %v1546
    %v1548 = vand.u32 %v1547, 4294901760
    %1549 = vmatpush2.msra.mxu0 %v1548
    %1550 = vmatprep.subr.mxu0 0.0
    %v1551 = vand.u32 %v93, 4294901760
    %v1552 = vsub.f32 %v93, %v1551
    %v1553 = vand.u32 %v1552, 4294901760
    %v1554 = vsub.f32 %v1552, %v1553
    %v1555 = vand.u32 %v1554, 4294901760
    %1556 = vmatpush2.msra.mxu0 %v1555
    %1557 = vmatprep.subr.mxu0 0.0
    %v1558 = vand.u32 %v92, 4294901760
    %v1559 = vsub.f32 %v92, %v1558
    %v1560 = vand.u32 %v1559, 4294901760
    %v1561 = vsub.f32 %v1559, %v1560
    %v1562 = vand.u32 %v1561, 4294901760
    %1563 = vmatpush2.msra.mxu0 %v1562
    %1564 = vmatprep.subr.mxu0 0.0
    %v1565 = vand.u32 %v91, 4294901760
    %v1566 = vsub.f32 %v91, %v1565
    %v1567 = vand.u32 %v1566, 4294901760
    %v1568 = vsub.f32 %v1566, %v1567
    %v1569 = vand.u32 %v1568, 4294901760
    %1570 = vmatpush2.msra.mxu0 %v1569
    %1571 = vmatprep.subr.mxu0 0.0
    %v1572 = vand.u32 %v90, 4294901760
    %v1573 = vsub.f32 %v90, %v1572
    %v1574 = vand.u32 %v1573, 4294901760
    %v1575 = vsub.f32 %v1573, %v1574
    %v1576 = vand.u32 %v1575, 4294901760
    %1577 = vmatpush2.msra.mxu0 %v1576
    %v1578 = vand.u32 %v315, 4294901760
    %1579 = vmatprep.mubr.f32.mxu0 %v1578
    %v1580 = vand.u32 %v311, 4294901760
    %1581 = vmatmul.mubr.f32.gmra.mxu0 %v1580
    %v1582 = vpop.f32.mrf.mxu0
    %v1583 = vadd.f32 %v1351, %v1582
    %v1584 = vpop.f32.mrf.mxu0
    %1585 = vdwg.mxu0
    %1586 = vmatprep.subr.mxu0 0.0
    %v1587 = vand.u32 %v89, 4294901760
    %v1588 = vsub.f32 %v89, %v1587
    %1589 = vmatpush1.msra.mxu0 %v1588
    %1590 = vmatprep.subr.mxu0 0.0
    %v1591 = vand.u32 %v88, 4294901760
    %v1592 = vsub.f32 %v88, %v1591
    %1593 = vmatpush1.msra.mxu0 %v1592
    %1594 = vmatprep.subr.mxu0 0.0
    %v1595 = vand.u32 %v87, 4294901760
    %v1596 = vsub.f32 %v87, %v1595
    %1597 = vmatpush1.msra.mxu0 %v1596
    %1598 = vmatprep.subr.mxu0 0.0
    %v1599 = vand.u32 %v86, 4294901760
    %v1600 = vsub.f32 %v86, %v1599
    %1601 = vmatpush1.msra.mxu0 %v1600
    %1602 = vmatprep.subr.mxu0 0.0
    %v1603 = vand.u32 %v85, 4294901760
    %v1604 = vsub.f32 %v85, %v1603
    %1605 = vmatpush1.msra.mxu0 %v1604
    %1606 = vmatprep.subr.mxu0 0.0
    %v1607 = vand.u32 %v84, 4294901760
    %v1608 = vsub.f32 %v84, %v1607
    %1609 = vmatpush1.msra.mxu0 %v1608
    %1610 = vmatprep.subr.mxu0 0.0
    %v1611 = vand.u32 %v83, 4294901760
    %v1612 = vsub.f32 %v83, %v1611
    %1613 = vmatpush1.msra.mxu0 %v1612
    %1614 = vmatprep.subr.mxu0 0.0
    %v1615 = vand.u32 %v82, 4294901760
    %v1616 = vsub.f32 %v82, %v1615
    %1617 = vmatpush1.msra.mxu0 %v1616
    %1618 = vmatprep.subr.mxu0 0.0
    %v1619 = vand.u32 %v81, 4294901760
    %v1620 = vsub.f32 %v81, %v1619
    %1621 = vmatpush1.msra.mxu0 %v1620
    %1622 = vmatprep.subr.mxu0 0.0
    %v1623 = vand.u32 %v80, 4294901760
    %v1624 = vsub.f32 %v80, %v1623
    %1625 = vmatpush1.msra.mxu0 %v1624
    %1626 = vmatprep.subr.mxu0 0.0
    %v1627 = vand.u32 %v79, 4294901760
    %v1628 = vsub.f32 %v79, %v1627
    %1629 = vmatpush1.msra.mxu0 %v1628
    %1630 = vmatprep.subr.mxu0 0.0
    %v1631 = vand.u32 %v78, 4294901760
    %v1632 = vsub.f32 %v78, %v1631
    %1633 = vmatpush1.msra.mxu0 %v1632
    %1634 = vmatprep.subr.mxu0 0.0
    %v1635 = vand.u32 %v77, 4294901760
    %v1636 = vsub.f32 %v77, %v1635
    %1637 = vmatpush1.msra.mxu0 %v1636
    %1638 = vmatprep.subr.mxu0 0.0
    %v1639 = vand.u32 %v76, 4294901760
    %v1640 = vsub.f32 %v76, %v1639
    %1641 = vmatpush1.msra.mxu0 %v1640
    %1642 = vmatprep.subr.mxu0 0.0
    %v1643 = vand.u32 %v75, 4294901760
    %v1644 = vsub.f32 %v75, %v1643
    %1645 = vmatpush1.msra.mxu0 %v1644
    %1646 = vmatprep.subr.mxu0 0.0
    %v1647 = vand.u32 %v74, 4294901760
    %v1648 = vsub.f32 %v74, %v1647
    %1649 = vmatpush1.msra.mxu0 %v1648
    %1650 = vmatprep.subr.mxu0 0.0
    %v1651 = vand.u32 %v105, 4294901760
    %v1652 = vsub.f32 %v105, %v1651
    %1653 = vmatpush2.msra.mxu0 %v1652
    %1654 = vmatprep.subr.mxu0 0.0
    %v1655 = vand.u32 %v104, 4294901760
    %v1656 = vsub.f32 %v104, %v1655
    %1657 = vmatpush2.msra.mxu0 %v1656
    %1658 = vmatprep.subr.mxu0 0.0
    %v1659 = vand.u32 %v103, 4294901760
    %v1660 = vsub.f32 %v103, %v1659
    %1661 = vmatpush2.msra.mxu0 %v1660
    %1662 = vmatprep.subr.mxu0 0.0
    %v1663 = vand.u32 %v102, 4294901760
    %v1664 = vsub.f32 %v102, %v1663
    %1665 = vmatpush2.msra.mxu0 %v1664
    %1666 = vmatprep.subr.mxu0 0.0
    %v1667 = vand.u32 %v101, 4294901760
    %v1668 = vsub.f32 %v101, %v1667
    %1669 = vmatpush2.msra.mxu0 %v1668
    %1670 = vmatprep.subr.mxu0 0.0
    %v1671 = vand.u32 %v100, 4294901760
    %v1672 = vsub.f32 %v100, %v1671
    %1673 = vmatpush2.msra.mxu0 %v1672
    %1674 = vmatprep.subr.mxu0 0.0
    %v1675 = vand.u32 %v99, 4294901760
    %v1676 = vsub.f32 %v99, %v1675
    %1677 = vmatpush2.msra.mxu0 %v1676
    %1678 = vmatprep.subr.mxu0 0.0
    %v1679 = vand.u32 %v98, 4294901760
    %v1680 = vsub.f32 %v98, %v1679
    %1681 = vmatpush2.msra.mxu0 %v1680
    %1682 = vmatprep.subr.mxu0 0.0
    %v1683 = vand.u32 %v97, 4294901760
    %v1684 = vsub.f32 %v97, %v1683
    %1685 = vmatpush2.msra.mxu0 %v1684
    %1686 = vmatprep.subr.mxu0 0.0
    %v1687 = vand.u32 %v96, 4294901760
    %v1688 = vsub.f32 %v96, %v1687
    %1689 = vmatpush2.msra.mxu0 %v1688
    %1690 = vmatprep.subr.mxu0 0.0
    %v1691 = vand.u32 %v95, 4294901760
    %v1692 = vsub.f32 %v95, %v1691
    %1693 = vmatpush2.msra.mxu0 %v1692
    %1694 = vmatprep.subr.mxu0 0.0
    %v1695 = vand.u32 %v94, 4294901760
    %v1696 = vsub.f32 %v94, %v1695
    %1697 = vmatpush2.msra.mxu0 %v1696
    %1698 = vmatprep.subr.mxu0 0.0
    %v1699 = vand.u32 %v93, 4294901760
    %v1700 = vsub.f32 %v93, %v1699
    %1701 = vmatpush2.msra.mxu0 %v1700
    %1702 = vmatprep.subr.mxu0 0.0
    %v1703 = vand.u32 %v92, 4294901760
    %v1704 = vsub.f32 %v92, %v1703
    %1705 = vmatpush2.msra.mxu0 %v1704
    %1706 = vmatprep.subr.mxu0 0.0
    %v1707 = vand.u32 %v91, 4294901760
    %v1708 = vsub.f32 %v91, %v1707
    %1709 = vmatpush2.msra.mxu0 %v1708
    %1710 = vmatprep.subr.mxu0 0.0
    %v1711 = vand.u32 %v90, 4294901760
    %v1712 = vsub.f32 %v90, %v1711
    %1713 = vmatpush2.msra.mxu0 %v1712
    %v1714 = vand.u32 %v315, 4294901760
    %v1715 = vsub.f32 %v315, %v1714
    %1716 = vmatprep.mubr.f32.mxu0 %v1715
    %v1717 = vand.u32 %v311, 4294901760
    %v1718 = vsub.f32 %v311, %v1717
    %1719 = vmatmul.mubr.f32.gmra.mxu0 %v1718
    %v1720 = vpop.f32.mrf.mxu0
    %v1721 = vadd.f32 %v1583, %v1720
    %v1722 = vpop.f32.mrf.mxu0
    %1723 = vdwg.mxu0
    %1724 = vmatprep.subr.mxu0 0.0
    %v1725 = vand.u32 %v89, 4294901760
    %1726 = vmatpush1.msra.mxu0 %v1725
    %1727 = vmatprep.subr.mxu0 0.0
    %v1728 = vand.u32 %v88, 4294901760
    %1729 = vmatpush1.msra.mxu0 %v1728
    %1730 = vmatprep.subr.mxu0 0.0
    %v1731 = vand.u32 %v87, 4294901760
    %1732 = vmatpush1.msra.mxu0 %v1731
    %1733 = vmatprep.subr.mxu0 0.0
    %v1734 = vand.u32 %v86, 4294901760
    %1735 = vmatpush1.msra.mxu0 %v1734
    %1736 = vmatprep.subr.mxu0 0.0
    %v1737 = vand.u32 %v85, 4294901760
    %1738 = vmatpush1.msra.mxu0 %v1737
    %1739 = vmatprep.subr.mxu0 0.0
    %v1740 = vand.u32 %v84, 4294901760
    %1741 = vmatpush1.msra.mxu0 %v1740
    %1742 = vmatprep.subr.mxu0 0.0
    %v1743 = vand.u32 %v83, 4294901760
    %1744 = vmatpush1.msra.mxu0 %v1743
    %1745 = vmatprep.subr.mxu0 0.0
    %v1746 = vand.u32 %v82, 4294901760
    %1747 = vmatpush1.msra.mxu0 %v1746
    %1748 = vmatprep.subr.mxu0 0.0
    %v1749 = vand.u32 %v81, 4294901760
    %1750 = vmatpush1.msra.mxu0 %v1749
    %1751 = vmatprep.subr.mxu0 0.0
    %v1752 = vand.u32 %v80, 4294901760
    %1753 = vmatpush1.msra.mxu0 %v1752
    %1754 = vmatprep.subr.mxu0 0.0
    %v1755 = vand.u32 %v79, 4294901760
    %1756 = vmatpush1.msra.mxu0 %v1755
    %1757 = vmatprep.subr.mxu0 0.0
    %v1758 = vand.u32 %v78, 4294901760
    %1759 = vmatpush1.msra.mxu0 %v1758
    %1760 = vmatprep.subr.mxu0 0.0
    %v1761 = vand.u32 %v77, 4294901760
    %1762 = vmatpush1.msra.mxu0 %v1761
    %1763 = vmatprep.subr.mxu0 0.0
    %v1764 = vand.u32 %v76, 4294901760
    %1765 = vmatpush1.msra.mxu0 %v1764
    %1766 = vmatprep.subr.mxu0 0.0
    %v1767 = vand.u32 %v75, 4294901760
    %1768 = vmatpush1.msra.mxu0 %v1767
    %1769 = vmatprep.subr.mxu0 0.0
    %v1770 = vand.u32 %v74, 4294901760
    %1771 = vmatpush1.msra.mxu0 %v1770
    %1772 = vmatprep.subr.mxu0 0.0
    %v1773 = vand.u32 %v105, 4294901760
    %1774 = vmatpush2.msra.mxu0 %v1773
    %1775 = vmatprep.subr.mxu0 0.0
    %v1776 = vand.u32 %v104, 4294901760
    %1777 = vmatpush2.msra.mxu0 %v1776
    %1778 = vmatprep.subr.mxu0 0.0
    %v1779 = vand.u32 %v103, 4294901760
    %1780 = vmatpush2.msra.mxu0 %v1779
    %1781 = vmatprep.subr.mxu0 0.0
    %v1782 = vand.u32 %v102, 4294901760
    %1783 = vmatpush2.msra.mxu0 %v1782
    %1784 = vmatprep.subr.mxu0 0.0
    %v1785 = vand.u32 %v101, 4294901760
    %1786 = vmatpush2.msra.mxu0 %v1785
    %1787 = vmatprep.subr.mxu0 0.0
    %v1788 = vand.u32 %v100, 4294901760
    %1789 = vmatpush2.msra.mxu0 %v1788
    %1790 = vmatprep.subr.mxu0 0.0
    %v1791 = vand.u32 %v99, 4294901760
    %1792 = vmatpush2.msra.mxu0 %v1791
    %1793 = vmatprep.subr.mxu0 0.0
    %v1794 = vand.u32 %v98, 4294901760
    %1795 = vmatpush2.msra.mxu0 %v1794
    %1796 = vmatprep.subr.mxu0 0.0
    %v1797 = vand.u32 %v97, 4294901760
    %1798 = vmatpush2.msra.mxu0 %v1797
    %1799 = vmatprep.subr.mxu0 0.0
    %v1800 = vand.u32 %v96, 4294901760
    %1801 = vmatpush2.msra.mxu0 %v1800
    %1802 = vmatprep.subr.mxu0 0.0
    %v1803 = vand.u32 %v95, 4294901760
    %1804 = vmatpush2.msra.mxu0 %v1803
    %1805 = vmatprep.subr.mxu0 0.0
    %v1806 = vand.u32 %v94, 4294901760
    %1807 = vmatpush2.msra.mxu0 %v1806
    %1808 = vmatprep.subr.mxu0 0.0
    %v1809 = vand.u32 %v93, 4294901760
    %1810 = vmatpush2.msra.mxu0 %v1809
    %1811 = vmatprep.subr.mxu0 0.0
    %v1812 = vand.u32 %v92, 4294901760
    %1813 = vmatpush2.msra.mxu0 %v1812
    %1814 = vmatprep.subr.mxu0 0.0
    %v1815 = vand.u32 %v91, 4294901760
    %1816 = vmatpush2.msra.mxu0 %v1815
    %1817 = vmatprep.subr.mxu0 0.0
    %v1818 = vand.u32 %v90, 4294901760
    %1819 = vmatpush2.msra.mxu0 %v1818
    %v1820 = vand.u32 %v315, 4294901760
    %v1821 = vsub.f32 %v315, %v1820
    %v1822 = vand.u32 %v1821, 4294901760
    %1823 = vmatprep.mubr.f32.mxu0 %v1822
    %v1824 = vand.u32 %v311, 4294901760
    %v1825 = vsub.f32 %v311, %v1824
    %v1826 = vand.u32 %v1825, 4294901760
    %1827 = vmatmul.mubr.f32.gmra.mxu0 %v1826
    %v1828 = vpop.f32.mrf.mxu0
    %v1829 = vadd.f32 %v1721, %v1828
    %v1830 = vpop.f32.mrf.mxu0
    %1831 = vdwg.mxu0
    %1832 = vmatprep.subr.mxu0 0.0
    %v1833 = vand.u32 %v89, 4294901760
    %v1834 = vsub.f32 %v89, %v1833
    %v1835 = vand.u32 %v1834, 4294901760
    %1836 = vmatpush1.msra.mxu0 %v1835
    %1837 = vmatprep.subr.mxu0 0.0
    %v1838 = vand.u32 %v88, 4294901760
    %v1839 = vsub.f32 %v88, %v1838
    %v1840 = vand.u32 %v1839, 4294901760
    %1841 = vmatpush1.msra.mxu0 %v1840
    %1842 = vmatprep.subr.mxu0 0.0
    %v1843 = vand.u32 %v87, 4294901760
    %v1844 = vsub.f32 %v87, %v1843
    %v1845 = vand.u32 %v1844, 4294901760
    %1846 = vmatpush1.msra.mxu0 %v1845
    %1847 = vmatprep.subr.mxu0 0.0
    %v1848 = vand.u32 %v86, 4294901760
    %v1849 = vsub.f32 %v86, %v1848
    %v1850 = vand.u32 %v1849, 4294901760
    %1851 = vmatpush1.msra.mxu0 %v1850
    %1852 = vmatprep.subr.mxu0 0.0
    %v1853 = vand.u32 %v85, 4294901760
    %v1854 = vsub.f32 %v85, %v1853
    %v1855 = vand.u32 %v1854, 4294901760
    %1856 = vmatpush1.msra.mxu0 %v1855
    %1857 = vmatprep.subr.mxu0 0.0
    %v1858 = vand.u32 %v84, 4294901760
    %v1859 = vsub.f32 %v84, %v1858
    %v1860 = vand.u32 %v1859, 4294901760
    %1861 = vmatpush1.msra.mxu0 %v1860
    %1862 = vmatprep.subr.mxu0 0.0
    %v1863 = vand.u32 %v83, 4294901760
    %v1864 = vsub.f32 %v83, %v1863
    %v1865 = vand.u32 %v1864, 4294901760
    %1866 = vmatpush1.msra.mxu0 %v1865
    %1867 = vmatprep.subr.mxu0 0.0
    %v1868 = vand.u32 %v82, 4294901760
    %v1869 = vsub.f32 %v82, %v1868
    %v1870 = vand.u32 %v1869, 4294901760
    %1871 = vmatpush1.msra.mxu0 %v1870
    %1872 = vmatprep.subr.mxu0 0.0
    %v1873 = vand.u32 %v81, 4294901760
    %v1874 = vsub.f32 %v81, %v1873
    %v1875 = vand.u32 %v1874, 4294901760
    %1876 = vmatpush1.msra.mxu0 %v1875
    %1877 = vmatprep.subr.mxu0 0.0
    %v1878 = vand.u32 %v80, 4294901760
    %v1879 = vsub.f32 %v80, %v1878
    %v1880 = vand.u32 %v1879, 4294901760
    %1881 = vmatpush1.msra.mxu0 %v1880
    %1882 = vmatprep.subr.mxu0 0.0
    %v1883 = vand.u32 %v79, 4294901760
    %v1884 = vsub.f32 %v79, %v1883
    %v1885 = vand.u32 %v1884, 4294901760
    %1886 = vmatpush1.msra.mxu0 %v1885
    %1887 = vmatprep.subr.mxu0 0.0
    %v1888 = vand.u32 %v78, 4294901760
    %v1889 = vsub.f32 %v78, %v1888
    %v1890 = vand.u32 %v1889, 4294901760
    %1891 = vmatpush1.msra.mxu0 %v1890
    %1892 = vmatprep.subr.mxu0 0.0
    %v1893 = vand.u32 %v77, 4294901760
    %v1894 = vsub.f32 %v77, %v1893
    %v1895 = vand.u32 %v1894, 4294901760
    %1896 = vmatpush1.msra.mxu0 %v1895
    %1897 = vmatprep.subr.mxu0 0.0
    %v1898 = vand.u32 %v76, 4294901760
    %v1899 = vsub.f32 %v76, %v1898
    %v1900 = vand.u32 %v1899, 4294901760
    %1901 = vmatpush1.msra.mxu0 %v1900
    %1902 = vmatprep.subr.mxu0 0.0
    %v1903 = vand.u32 %v75, 4294901760
    %v1904 = vsub.f32 %v75, %v1903
    %v1905 = vand.u32 %v1904, 4294901760
    %1906 = vmatpush1.msra.mxu0 %v1905
    %1907 = vmatprep.subr.mxu0 0.0
    %v1908 = vand.u32 %v74, 4294901760
    %v1909 = vsub.f32 %v74, %v1908
    %v1910 = vand.u32 %v1909, 4294901760
    %1911 = vmatpush1.msra.mxu0 %v1910
    %1912 = vmatprep.subr.mxu0 0.0
    %v1913 = vand.u32 %v105, 4294901760
    %v1914 = vsub.f32 %v105, %v1913
    %v1915 = vand.u32 %v1914, 4294901760
    %1916 = vmatpush2.msra.mxu0 %v1915
    %1917 = vmatprep.subr.mxu0 0.0
    %v1918 = vand.u32 %v104, 4294901760
    %v1919 = vsub.f32 %v104, %v1918
    %v1920 = vand.u32 %v1919, 4294901760
    %1921 = vmatpush2.msra.mxu0 %v1920
    %1922 = vmatprep.subr.mxu0 0.0
    %v1923 = vand.u32 %v103, 4294901760
    %v1924 = vsub.f32 %v103, %v1923
    %v1925 = vand.u32 %v1924, 4294901760
    %1926 = vmatpush2.msra.mxu0 %v1925
    %1927 = vmatprep.subr.mxu0 0.0
    %v1928 = vand.u32 %v102, 4294901760
    %v1929 = vsub.f32 %v102, %v1928
    %v1930 = vand.u32 %v1929, 4294901760
    %1931 = vmatpush2.msra.mxu0 %v1930
    %1932 = vmatprep.subr.mxu0 0.0
    %v1933 = vand.u32 %v101, 4294901760
    %v1934 = vsub.f32 %v101, %v1933
    %v1935 = vand.u32 %v1934, 4294901760
    %1936 = vmatpush2.msra.mxu0 %v1935
    %1937 = vmatprep.subr.mxu0 0.0
    %v1938 = vand.u32 %v100, 4294901760
    %v1939 = vsub.f32 %v100, %v1938
    %v1940 = vand.u32 %v1939, 4294901760
    %1941 = vmatpush2.msra.mxu0 %v1940
    %1942 = vmatprep.subr.mxu0 0.0
    %v1943 = vand.u32 %v99, 4294901760
    %v1944 = vsub.f32 %v99, %v1943
    %v1945 = vand.u32 %v1944, 4294901760
    %1946 = vmatpush2.msra.mxu0 %v1945
    %1947 = vmatprep.subr.mxu0 0.0
    %v1948 = vand.u32 %v98, 4294901760
    %v1949 = vsub.f32 %v98, %v1948
    %v1950 = vand.u32 %v1949, 4294901760
    %1951 = vmatpush2.msra.mxu0 %v1950
    %1952 = vmatprep.subr.mxu0 0.0
    %v1953 = vand.u32 %v97, 4294901760
    %v1954 = vsub.f32 %v97, %v1953
    %v1955 = vand.u32 %v1954, 4294901760
    %1956 = vmatpush2.msra.mxu0 %v1955
    %1957 = vmatprep.subr.mxu0 0.0
    %v1958 = vand.u32 %v96, 4294901760
    %v1959 = vsub.f32 %v96, %v1958
    %v1960 = vand.u32 %v1959, 4294901760
    %1961 = vmatpush2.msra.mxu0 %v1960
    %1962 = vmatprep.subr.mxu0 0.0
    %v1963 = vand.u32 %v95, 4294901760
    %v1964 = vsub.f32 %v95, %v1963
    %v1965 = vand.u32 %v1964, 4294901760
    %1966 = vmatpush2.msra.mxu0 %v1965
    %1967 = vmatprep.subr.mxu0 0.0
    %v1968 = vand.u32 %v94, 4294901760
    %v1969 = vsub.f32 %v94, %v1968
    %v1970 = vand.u32 %v1969, 4294901760
    %1971 = vmatpush2.msra.mxu0 %v1970
    %1972 = vmatprep.subr.mxu0 0.0
    %v1973 = vand.u32 %v93, 4294901760
    %v1974 = vsub.f32 %v93, %v1973
    %v1975 = vand.u32 %v1974, 4294901760
    %1976 = vmatpush2.msra.mxu0 %v1975
    %1977 = vmatprep.subr.mxu0 0.0
    %v1978 = vand.u32 %v92, 4294901760
    %v1979 = vsub.f32 %v92, %v1978
    %v1980 = vand.u32 %v1979, 4294901760
    %1981 = vmatpush2.msra.mxu0 %v1980
    %1982 = vmatprep.subr.mxu0 0.0
    %v1983 = vand.u32 %v91, 4294901760
    %v1984 = vsub.f32 %v91, %v1983
    %v1985 = vand.u32 %v1984, 4294901760
    %1986 = vmatpush2.msra.mxu0 %v1985
    %1987 = vmatprep.subr.mxu0 0.0
    %v1988 = vand.u32 %v90, 4294901760
    %v1989 = vsub.f32 %v90, %v1988
    %v1990 = vand.u32 %v1989, 4294901760
    %1991 = vmatpush2.msra.mxu0 %v1990
    %v1992 = vand.u32 %v315, 4294901760
    %1993 = vmatprep.mubr.f32.mxu0 %v1992
    %v1994 = vand.u32 %v311, 4294901760
    %1995 = vmatmul.mubr.f32.gmra.mxu0 %v1994
    %v1996 = vpop.f32.mrf.mxu0
    %v1997 = vadd.f32 %v1829, %v1996
    %v1998 = vpop.f32.mrf.mxu0
    %1999 = vdwg.mxu0
    %2000 = vmatprep.subr.mxu0 0.0
    %v2001 = vand.u32 %v89, 4294901760
    %2002 = vmatpush1.msra.mxu0 %v2001
    %2003 = vmatprep.subr.mxu0 0.0
    %v2004 = vand.u32 %v88, 4294901760
    %2005 = vmatpush1.msra.mxu0 %v2004
    %2006 = vmatprep.subr.mxu0 0.0
    %v2007 = vand.u32 %v87, 4294901760
    %2008 = vmatpush1.msra.mxu0 %v2007
    %2009 = vmatprep.subr.mxu0 0.0
    %v2010 = vand.u32 %v86, 4294901760
    %2011 = vmatpush1.msra.mxu0 %v2010
    %2012 = vmatprep.subr.mxu0 0.0
    %v2013 = vand.u32 %v85, 4294901760
    %2014 = vmatpush1.msra.mxu0 %v2013
    %2015 = vmatprep.subr.mxu0 0.0
    %v2016 = vand.u32 %v84, 4294901760
    %2017 = vmatpush1.msra.mxu0 %v2016
    %2018 = vmatprep.subr.mxu0 0.0
    %v2019 = vand.u32 %v83, 4294901760
    %2020 = vmatpush1.msra.mxu0 %v2019
    %2021 = vmatprep.subr.mxu0 0.0
    %v2022 = vand.u32 %v82, 4294901760
    %2023 = vmatpush1.msra.mxu0 %v2022
    %2024 = vmatprep.subr.mxu0 0.0
    %v2025 = vand.u32 %v81, 4294901760
    %2026 = vmatpush1.msra.mxu0 %v2025
    %2027 = vmatprep.subr.mxu0 0.0
    %v2028 = vand.u32 %v80, 4294901760
    %2029 = vmatpush1.msra.mxu0 %v2028
    %2030 = vmatprep.subr.mxu0 0.0
    %v2031 = vand.u32 %v79, 4294901760
    %2032 = vmatpush1.msra.mxu0 %v2031
    %2033 = vmatprep.subr.mxu0 0.0
    %v2034 = vand.u32 %v78, 4294901760
    %2035 = vmatpush1.msra.mxu0 %v2034
    %2036 = vmatprep.subr.mxu0 0.0
    %v2037 = vand.u32 %v77, 4294901760
    %2038 = vmatpush1.msra.mxu0 %v2037
    %2039 = vmatprep.subr.mxu0 0.0
    %v2040 = vand.u32 %v76, 4294901760
    %2041 = vmatpush1.msra.mxu0 %v2040
    %2042 = vmatprep.subr.mxu0 0.0
    %v2043 = vand.u32 %v75, 4294901760
    %2044 = vmatpush1.msra.mxu0 %v2043
    %2045 = vmatprep.subr.mxu0 0.0
    %v2046 = vand.u32 %v74, 4294901760
    %2047 = vmatpush1.msra.mxu0 %v2046
    %2048 = vmatprep.subr.mxu0 0.0
    %v2049 = vand.u32 %v105, 4294901760
    %2050 = vmatpush2.msra.mxu0 %v2049
    %2051 = vmatprep.subr.mxu0 0.0
    %v2052 = vand.u32 %v104, 4294901760
    %2053 = vmatpush2.msra.mxu0 %v2052
    %2054 = vmatprep.subr.mxu0 0.0
    %v2055 = vand.u32 %v103, 4294901760
    %2056 = vmatpush2.msra.mxu0 %v2055
    %2057 = vmatprep.subr.mxu0 0.0
    %v2058 = vand.u32 %v102, 4294901760
    %2059 = vmatpush2.msra.mxu0 %v2058
    %2060 = vmatprep.subr.mxu0 0.0
    %v2061 = vand.u32 %v101, 4294901760
    %2062 = vmatpush2.msra.mxu0 %v2061
    %2063 = vmatprep.subr.mxu0 0.0
    %v2064 = vand.u32 %v100, 4294901760
    %2065 = vmatpush2.msra.mxu0 %v2064
    %2066 = vmatprep.subr.mxu0 0.0
    %v2067 = vand.u32 %v99, 4294901760
    %2068 = vmatpush2.msra.mxu0 %v2067
    %2069 = vmatprep.subr.mxu0 0.0
    %v2070 = vand.u32 %v98, 4294901760
    %2071 = vmatpush2.msra.mxu0 %v2070
    %2072 = vmatprep.subr.mxu0 0.0
    %v2073 = vand.u32 %v97, 4294901760
    %2074 = vmatpush2.msra.mxu0 %v2073
    %2075 = vmatprep.subr.mxu0 0.0
    %v2076 = vand.u32 %v96, 4294901760
    %2077 = vmatpush2.msra.mxu0 %v2076
    %2078 = vmatprep.subr.mxu0 0.0
    %v2079 = vand.u32 %v95, 4294901760
    %2080 = vmatpush2.msra.mxu0 %v2079
    %2081 = vmatprep.subr.mxu0 0.0
    %v2082 = vand.u32 %v94, 4294901760
    %2083 = vmatpush2.msra.mxu0 %v2082
    %2084 = vmatprep.subr.mxu0 0.0
    %v2085 = vand.u32 %v93, 4294901760
    %2086 = vmatpush2.msra.mxu0 %v2085
    %2087 = vmatprep.subr.mxu0 0.0
    %v2088 = vand.u32 %v92, 4294901760
    %2089 = vmatpush2.msra.mxu0 %v2088
    %2090 = vmatprep.subr.mxu0 0.0
    %v2091 = vand.u32 %v91, 4294901760
    %2092 = vmatpush2.msra.mxu0 %v2091
    %2093 = vmatprep.subr.mxu0 0.0
    %v2094 = vand.u32 %v90, 4294901760
    %2095 = vmatpush2.msra.mxu0 %v2094
    %v2096 = vand.u32 %v315, 4294901760
    %2097 = vmatprep.mubr.f32.mxu0 %v2096
    %v2098 = vand.u32 %v311, 4294901760
    %2099 = vmatmul.mubr.f32.gmra.mxu0 %v2098
    %v2100 = vpop.f32.mrf.mxu0
    %v2101 = vadd.f32 %v1997, %v2100
    %v2102 = vpop.f32.mrf.mxu0
    %2103 = vdwg.mxu0
    %2104 = vmatprep.subr.mxu0 0.0
    %v2105 = vand.u32 %v121, 4294901760
    %2106 = vmatpush1.msra.mxu0 %v2105
    %2107 = vmatprep.subr.mxu0 0.0
    %v2108 = vand.u32 %v120, 4294901760
    %2109 = vmatpush1.msra.mxu0 %v2108
    %2110 = vmatprep.subr.mxu0 0.0
    %v2111 = vand.u32 %v119, 4294901760
    %2112 = vmatpush1.msra.mxu0 %v2111
    %2113 = vmatprep.subr.mxu0 0.0
    %v2114 = vand.u32 %v118, 4294901760
    %2115 = vmatpush1.msra.mxu0 %v2114
    %2116 = vmatprep.subr.mxu0 0.0
    %v2117 = vand.u32 %v117, 4294901760
    %2118 = vmatpush1.msra.mxu0 %v2117
    %2119 = vmatprep.subr.mxu0 0.0
    %v2120 = vand.u32 %v116, 4294901760
    %2121 = vmatpush1.msra.mxu0 %v2120
    %2122 = vmatprep.subr.mxu0 0.0
    %v2123 = vand.u32 %v115, 4294901760
    %2124 = vmatpush1.msra.mxu0 %v2123
    %2125 = vmatprep.subr.mxu0 0.0
    %v2126 = vand.u32 %v114, 4294901760
    %2127 = vmatpush1.msra.mxu0 %v2126
    %2128 = vmatprep.subr.mxu0 0.0
    %v2129 = vand.u32 %v113, 4294901760
    %2130 = vmatpush1.msra.mxu0 %v2129
    %2131 = vmatprep.subr.mxu0 0.0
    %v2132 = vand.u32 %v112, 4294901760
    %2133 = vmatpush1.msra.mxu0 %v2132
    %2134 = vmatprep.subr.mxu0 0.0
    %v2135 = vand.u32 %v111, 4294901760
    %2136 = vmatpush1.msra.mxu0 %v2135
    %2137 = vmatprep.subr.mxu0 0.0
    %v2138 = vand.u32 %v110, 4294901760
    %2139 = vmatpush1.msra.mxu0 %v2138
    %2140 = vmatprep.subr.mxu0 0.0
    %v2141 = vand.u32 %v109, 4294901760
    %2142 = vmatpush1.msra.mxu0 %v2141
    %2143 = vmatprep.subr.mxu0 0.0
    %v2144 = vand.u32 %v108, 4294901760
    %2145 = vmatpush1.msra.mxu0 %v2144
    %2146 = vmatprep.subr.mxu0 0.0
    %v2147 = vand.u32 %v107, 4294901760
    %2148 = vmatpush1.msra.mxu0 %v2147
    %2149 = vmatprep.subr.mxu0 0.0
    %v2150 = vand.u32 %v106, 4294901760
    %2151 = vmatpush1.msra.mxu0 %v2150
    %2152 = vmatprep.subr.mxu0 0.0
    %v2153 = vand.u32 %v137, 4294901760
    %2154 = vmatpush2.msra.mxu0 %v2153
    %2155 = vmatprep.subr.mxu0 0.0
    %v2156 = vand.u32 %v136, 4294901760
    %2157 = vmatpush2.msra.mxu0 %v2156
    %2158 = vmatprep.subr.mxu0 0.0
    %v2159 = vand.u32 %v135, 4294901760
    %2160 = vmatpush2.msra.mxu0 %v2159
    %2161 = vmatprep.subr.mxu0 0.0
    %v2162 = vand.u32 %v134, 4294901760
    %2163 = vmatpush2.msra.mxu0 %v2162
    %2164 = vmatprep.subr.mxu0 0.0
    %v2165 = vand.u32 %v133, 4294901760
    %2166 = vmatpush2.msra.mxu0 %v2165
    %2167 = vmatprep.subr.mxu0 0.0
    %v2168 = vand.u32 %v132, 4294901760
    %2169 = vmatpush2.msra.mxu0 %v2168
    %2170 = vmatprep.subr.mxu0 0.0
    %v2171 = vand.u32 %v131, 4294901760
    %2172 = vmatpush2.msra.mxu0 %v2171
    %2173 = vmatprep.subr.mxu0 0.0
    %v2174 = vand.u32 %v130, 4294901760
    %2175 = vmatpush2.msra.mxu0 %v2174
    %2176 = vmatprep.subr.mxu0 0.0
    %v2177 = vand.u32 %v129, 4294901760
    %2178 = vmatpush2.msra.mxu0 %v2177
    %2179 = vmatprep.subr.mxu0 0.0
    %v2180 = vand.u32 %v128, 4294901760
    %2181 = vmatpush2.msra.mxu0 %v2180
    %2182 = vmatprep.subr.mxu0 0.0
    %v2183 = vand.u32 %v127, 4294901760
    %2184 = vmatpush2.msra.mxu0 %v2183
    %2185 = vmatprep.subr.mxu0 0.0
    %v2186 = vand.u32 %v126, 4294901760
    %2187 = vmatpush2.msra.mxu0 %v2186
    %2188 = vmatprep.subr.mxu0 0.0
    %v2189 = vand.u32 %v125, 4294901760
    %2190 = vmatpush2.msra.mxu0 %v2189
    %2191 = vmatprep.subr.mxu0 0.0
    %v2192 = vand.u32 %v124, 4294901760
    %2193 = vmatpush2.msra.mxu0 %v2192
    %2194 = vmatprep.subr.mxu0 0.0
    %v2195 = vand.u32 %v123, 4294901760
    %2196 = vmatpush2.msra.mxu0 %v2195
    %2197 = vmatprep.subr.mxu0 0.0
    %v2198 = vand.u32 %v122, 4294901760
    %2199 = vmatpush2.msra.mxu0 %v2198
    %v2200 = vand.u32 %v323, 4294901760
    %v2201 = vsub.f32 %v323, %v2200
    %v2202 = vand.u32 %v2201, 4294901760
    %v2203 = vsub.f32 %v2201, %v2202
    %v2204 = vand.u32 %v2203, 4294901760
    %2205 = vmatprep.mubr.f32.mxu0 %v2204
    %v2206 = vand.u32 %v319, 4294901760
    %v2207 = vsub.f32 %v319, %v2206
    %v2208 = vand.u32 %v2207, 4294901760
    %v2209 = vsub.f32 %v2207, %v2208
    %v2210 = vand.u32 %v2209, 4294901760
    %2211 = vmatmul.mubr.f32.gmra.mxu0 %v2210
    %v2212 = vpop.f32.mrf.mxu0
    %v2213 = vadd.f32 %v2101, %v2212
    %v2214 = vpop.f32.mrf.mxu0
    %2215 = vdwg.mxu0
    %2216 = vmatprep.subr.mxu0 0.0
    %v2217 = vand.u32 %v121, 4294901760
    %v2218 = vsub.f32 %v121, %v2217
    %v2219 = vand.u32 %v2218, 4294901760
    %v2220 = vsub.f32 %v2218, %v2219
    %v2221 = vand.u32 %v2220, 4294901760
    %2222 = vmatpush1.msra.mxu0 %v2221
    %2223 = vmatprep.subr.mxu0 0.0
    %v2224 = vand.u32 %v120, 4294901760
    %v2225 = vsub.f32 %v120, %v2224
    %v2226 = vand.u32 %v2225, 4294901760
    %v2227 = vsub.f32 %v2225, %v2226
    %v2228 = vand.u32 %v2227, 4294901760
    %2229 = vmatpush1.msra.mxu0 %v2228
    %2230 = vmatprep.subr.mxu0 0.0
    %v2231 = vand.u32 %v119, 4294901760
    %v2232 = vsub.f32 %v119, %v2231
    %v2233 = vand.u32 %v2232, 4294901760
    %v2234 = vsub.f32 %v2232, %v2233
    %v2235 = vand.u32 %v2234, 4294901760
    %2236 = vmatpush1.msra.mxu0 %v2235
    %2237 = vmatprep.subr.mxu0 0.0
    %v2238 = vand.u32 %v118, 4294901760
    %v2239 = vsub.f32 %v118, %v2238
    %v2240 = vand.u32 %v2239, 4294901760
    %v2241 = vsub.f32 %v2239, %v2240
    %v2242 = vand.u32 %v2241, 4294901760
    %2243 = vmatpush1.msra.mxu0 %v2242
    %2244 = vmatprep.subr.mxu0 0.0
    %v2245 = vand.u32 %v117, 4294901760
    %v2246 = vsub.f32 %v117, %v2245
    %v2247 = vand.u32 %v2246, 4294901760
    %v2248 = vsub.f32 %v2246, %v2247
    %v2249 = vand.u32 %v2248, 4294901760
    %2250 = vmatpush1.msra.mxu0 %v2249
    %2251 = vmatprep.subr.mxu0 0.0
    %v2252 = vand.u32 %v116, 4294901760
    %v2253 = vsub.f32 %v116, %v2252
    %v2254 = vand.u32 %v2253, 4294901760
    %v2255 = vsub.f32 %v2253, %v2254
    %v2256 = vand.u32 %v2255, 4294901760
    %2257 = vmatpush1.msra.mxu0 %v2256
    %2258 = vmatprep.subr.mxu0 0.0
    %v2259 = vand.u32 %v115, 4294901760
    %v2260 = vsub.f32 %v115, %v2259
    %v2261 = vand.u32 %v2260, 4294901760
    %v2262 = vsub.f32 %v2260, %v2261
    %v2263 = vand.u32 %v2262, 4294901760
    %2264 = vmatpush1.msra.mxu0 %v2263
    %2265 = vmatprep.subr.mxu0 0.0
    %v2266 = vand.u32 %v114, 4294901760
    %v2267 = vsub.f32 %v114, %v2266
    %v2268 = vand.u32 %v2267, 4294901760
    %v2269 = vsub.f32 %v2267, %v2268
    %v2270 = vand.u32 %v2269, 4294901760
    %2271 = vmatpush1.msra.mxu0 %v2270
    %2272 = vmatprep.subr.mxu0 0.0
    %v2273 = vand.u32 %v113, 4294901760
    %v2274 = vsub.f32 %v113, %v2273
    %v2275 = vand.u32 %v2274, 4294901760
    %v2276 = vsub.f32 %v2274, %v2275
    %v2277 = vand.u32 %v2276, 4294901760
    %2278 = vmatpush1.msra.mxu0 %v2277
    %2279 = vmatprep.subr.mxu0 0.0
    %v2280 = vand.u32 %v112, 4294901760
    %v2281 = vsub.f32 %v112, %v2280
    %v2282 = vand.u32 %v2281, 4294901760
    %v2283 = vsub.f32 %v2281, %v2282
    %v2284 = vand.u32 %v2283, 4294901760
    %2285 = vmatpush1.msra.mxu0 %v2284
    %2286 = vmatprep.subr.mxu0 0.0
    %v2287 = vand.u32 %v111, 4294901760
    %v2288 = vsub.f32 %v111, %v2287
    %v2289 = vand.u32 %v2288, 4294901760
    %v2290 = vsub.f32 %v2288, %v2289
    %v2291 = vand.u32 %v2290, 4294901760
    %2292 = vmatpush1.msra.mxu0 %v2291
    %2293 = vmatprep.subr.mxu0 0.0
    %v2294 = vand.u32 %v110, 4294901760
    %v2295 = vsub.f32 %v110, %v2294
    %v2296 = vand.u32 %v2295, 4294901760
    %v2297 = vsub.f32 %v2295, %v2296
    %v2298 = vand.u32 %v2297, 4294901760
    %2299 = vmatpush1.msra.mxu0 %v2298
    %2300 = vmatprep.subr.mxu0 0.0
    %v2301 = vand.u32 %v109, 4294901760
    %v2302 = vsub.f32 %v109, %v2301
    %v2303 = vand.u32 %v2302, 4294901760
    %v2304 = vsub.f32 %v2302, %v2303
    %v2305 = vand.u32 %v2304, 4294901760
    %2306 = vmatpush1.msra.mxu0 %v2305
    %2307 = vmatprep.subr.mxu0 0.0
    %v2308 = vand.u32 %v108, 4294901760
    %v2309 = vsub.f32 %v108, %v2308
    %v2310 = vand.u32 %v2309, 4294901760
    %v2311 = vsub.f32 %v2309, %v2310
    %v2312 = vand.u32 %v2311, 4294901760
    %2313 = vmatpush1.msra.mxu0 %v2312
    %2314 = vmatprep.subr.mxu0 0.0
    %v2315 = vand.u32 %v107, 4294901760
    %v2316 = vsub.f32 %v107, %v2315
    %v2317 = vand.u32 %v2316, 4294901760
    %v2318 = vsub.f32 %v2316, %v2317
    %v2319 = vand.u32 %v2318, 4294901760
    %2320 = vmatpush1.msra.mxu0 %v2319
    %2321 = vmatprep.subr.mxu0 0.0
    %v2322 = vand.u32 %v106, 4294901760
    %v2323 = vsub.f32 %v106, %v2322
    %v2324 = vand.u32 %v2323, 4294901760
    %v2325 = vsub.f32 %v2323, %v2324
    %v2326 = vand.u32 %v2325, 4294901760
    %2327 = vmatpush1.msra.mxu0 %v2326
    %2328 = vmatprep.subr.mxu0 0.0
    %v2329 = vand.u32 %v137, 4294901760
    %v2330 = vsub.f32 %v137, %v2329
    %v2331 = vand.u32 %v2330, 4294901760
    %v2332 = vsub.f32 %v2330, %v2331
    %v2333 = vand.u32 %v2332, 4294901760
    %2334 = vmatpush2.msra.mxu0 %v2333
    %2335 = vmatprep.subr.mxu0 0.0
    %v2336 = vand.u32 %v136, 4294901760
    %v2337 = vsub.f32 %v136, %v2336
    %v2338 = vand.u32 %v2337, 4294901760
    %v2339 = vsub.f32 %v2337, %v2338
    %v2340 = vand.u32 %v2339, 4294901760
    %2341 = vmatpush2.msra.mxu0 %v2340
    %2342 = vmatprep.subr.mxu0 0.0
    %v2343 = vand.u32 %v135, 4294901760
    %v2344 = vsub.f32 %v135, %v2343
    %v2345 = vand.u32 %v2344, 4294901760
    %v2346 = vsub.f32 %v2344, %v2345
    %v2347 = vand.u32 %v2346, 4294901760
    %2348 = vmatpush2.msra.mxu0 %v2347
    %2349 = vmatprep.subr.mxu0 0.0
    %v2350 = vand.u32 %v134, 4294901760
    %v2351 = vsub.f32 %v134, %v2350
    %v2352 = vand.u32 %v2351, 4294901760
    %v2353 = vsub.f32 %v2351, %v2352
    %v2354 = vand.u32 %v2353, 4294901760
    %2355 = vmatpush2.msra.mxu0 %v2354
    %2356 = vmatprep.subr.mxu0 0.0
    %v2357 = vand.u32 %v133, 4294901760
    %v2358 = vsub.f32 %v133, %v2357
    %v2359 = vand.u32 %v2358, 4294901760
    %v2360 = vsub.f32 %v2358, %v2359
    %v2361 = vand.u32 %v2360, 4294901760
    %2362 = vmatpush2.msra.mxu0 %v2361
    %2363 = vmatprep.subr.mxu0 0.0
    %v2364 = vand.u32 %v132, 4294901760
    %v2365 = vsub.f32 %v132, %v2364
    %v2366 = vand.u32 %v2365, 4294901760
    %v2367 = vsub.f32 %v2365, %v2366
    %v2368 = vand.u32 %v2367, 4294901760
    %2369 = vmatpush2.msra.mxu0 %v2368
    %2370 = vmatprep.subr.mxu0 0.0
    %v2371 = vand.u32 %v131, 4294901760
    %v2372 = vsub.f32 %v131, %v2371
    %v2373 = vand.u32 %v2372, 4294901760
    %v2374 = vsub.f32 %v2372, %v2373
    %v2375 = vand.u32 %v2374, 4294901760
    %2376 = vmatpush2.msra.mxu0 %v2375
    %2377 = vmatprep.subr.mxu0 0.0
    %v2378 = vand.u32 %v130, 4294901760
    %v2379 = vsub.f32 %v130, %v2378
    %v2380 = vand.u32 %v2379, 4294901760
    %v2381 = vsub.f32 %v2379, %v2380
    %v2382 = vand.u32 %v2381, 4294901760
    %2383 = vmatpush2.msra.mxu0 %v2382
    %2384 = vmatprep.subr.mxu0 0.0
    %v2385 = vand.u32 %v129, 4294901760
    %v2386 = vsub.f32 %v129, %v2385
    %v2387 = vand.u32 %v2386, 4294901760
    %v2388 = vsub.f32 %v2386, %v2387
    %v2389 = vand.u32 %v2388, 4294901760
    %2390 = vmatpush2.msra.mxu0 %v2389
    %2391 = vmatprep.subr.mxu0 0.0
    %v2392 = vand.u32 %v128, 4294901760
    %v2393 = vsub.f32 %v128, %v2392
    %v2394 = vand.u32 %v2393, 4294901760
    %v2395 = vsub.f32 %v2393, %v2394
    %v2396 = vand.u32 %v2395, 4294901760
    %2397 = vmatpush2.msra.mxu0 %v2396
    %2398 = vmatprep.subr.mxu0 0.0
    %v2399 = vand.u32 %v127, 4294901760
    %v2400 = vsub.f32 %v127, %v2399
    %v2401 = vand.u32 %v2400, 4294901760
    %v2402 = vsub.f32 %v2400, %v2401
    %v2403 = vand.u32 %v2402, 4294901760
    %2404 = vmatpush2.msra.mxu0 %v2403
    %2405 = vmatprep.subr.mxu0 0.0
    %v2406 = vand.u32 %v126, 4294901760
    %v2407 = vsub.f32 %v126, %v2406
    %v2408 = vand.u32 %v2407, 4294901760
    %v2409 = vsub.f32 %v2407, %v2408
    %v2410 = vand.u32 %v2409, 4294901760
    %2411 = vmatpush2.msra.mxu0 %v2410
    %2412 = vmatprep.subr.mxu0 0.0
    %v2413 = vand.u32 %v125, 4294901760
    %v2414 = vsub.f32 %v125, %v2413
    %v2415 = vand.u32 %v2414, 4294901760
    %v2416 = vsub.f32 %v2414, %v2415
    %v2417 = vand.u32 %v2416, 4294901760
    %2418 = vmatpush2.msra.mxu0 %v2417
    %2419 = vmatprep.subr.mxu0 0.0
    %v2420 = vand.u32 %v124, 4294901760
    %v2421 = vsub.f32 %v124, %v2420
    %v2422 = vand.u32 %v2421, 4294901760
    %v2423 = vsub.f32 %v2421, %v2422
    %v2424 = vand.u32 %v2423, 4294901760
    %2425 = vmatpush2.msra.mxu0 %v2424
    %2426 = vmatprep.subr.mxu0 0.0
    %v2427 = vand.u32 %v123, 4294901760
    %v2428 = vsub.f32 %v123, %v2427
    %v2429 = vand.u32 %v2428, 4294901760
    %v2430 = vsub.f32 %v2428, %v2429
    %v2431 = vand.u32 %v2430, 4294901760
    %2432 = vmatpush2.msra.mxu0 %v2431
    %2433 = vmatprep.subr.mxu0 0.0
    %v2434 = vand.u32 %v122, 4294901760
    %v2435 = vsub.f32 %v122, %v2434
    %v2436 = vand.u32 %v2435, 4294901760
    %v2437 = vsub.f32 %v2435, %v2436
    %v2438 = vand.u32 %v2437, 4294901760
    %2439 = vmatpush2.msra.mxu0 %v2438
    %v2440 = vand.u32 %v323, 4294901760
    %2441 = vmatprep.mubr.f32.mxu0 %v2440
    %v2442 = vand.u32 %v319, 4294901760
    %2443 = vmatmul.mubr.f32.gmra.mxu0 %v2442
    %v2444 = vpop.f32.mrf.mxu0
    %v2445 = vadd.f32 %v2213, %v2444
    %v2446 = vpop.f32.mrf.mxu0
    %2447 = vdwg.mxu0
    %2448 = vmatprep.subr.mxu0 0.0
    %v2449 = vand.u32 %v121, 4294901760
    %v2450 = vsub.f32 %v121, %v2449
    %2451 = vmatpush1.msra.mxu0 %v2450
    %2452 = vmatprep.subr.mxu0 0.0
    %v2453 = vand.u32 %v120, 4294901760
    %v2454 = vsub.f32 %v120, %v2453
    %2455 = vmatpush1.msra.mxu0 %v2454
    %2456 = vmatprep.subr.mxu0 0.0
    %v2457 = vand.u32 %v119, 4294901760
    %v2458 = vsub.f32 %v119, %v2457
    %2459 = vmatpush1.msra.mxu0 %v2458
    %2460 = vmatprep.subr.mxu0 0.0
    %v2461 = vand.u32 %v118, 4294901760
    %v2462 = vsub.f32 %v118, %v2461
    %2463 = vmatpush1.msra.mxu0 %v2462
    %2464 = vmatprep.subr.mxu0 0.0
    %v2465 = vand.u32 %v117, 4294901760
    %v2466 = vsub.f32 %v117, %v2465
    %2467 = vmatpush1.msra.mxu0 %v2466
    %2468 = vmatprep.subr.mxu0 0.0
    %v2469 = vand.u32 %v116, 4294901760
    %v2470 = vsub.f32 %v116, %v2469
    %2471 = vmatpush1.msra.mxu0 %v2470
    %2472 = vmatprep.subr.mxu0 0.0
    %v2473 = vand.u32 %v115, 4294901760
    %v2474 = vsub.f32 %v115, %v2473
    %2475 = vmatpush1.msra.mxu0 %v2474
    %2476 = vmatprep.subr.mxu0 0.0
    %v2477 = vand.u32 %v114, 4294901760
    %v2478 = vsub.f32 %v114, %v2477
    %2479 = vmatpush1.msra.mxu0 %v2478
    %2480 = vmatprep.subr.mxu0 0.0
    %v2481 = vand.u32 %v113, 4294901760
    %v2482 = vsub.f32 %v113, %v2481
    %2483 = vmatpush1.msra.mxu0 %v2482
    %2484 = vmatprep.subr.mxu0 0.0
    %v2485 = vand.u32 %v112, 4294901760
    %v2486 = vsub.f32 %v112, %v2485
    %2487 = vmatpush1.msra.mxu0 %v2486
    %2488 = vmatprep.subr.mxu0 0.0
    %v2489 = vand.u32 %v111, 4294901760
    %v2490 = vsub.f32 %v111, %v2489
    %2491 = vmatpush1.msra.mxu0 %v2490
    %2492 = vmatprep.subr.mxu0 0.0
    %v2493 = vand.u32 %v110, 4294901760
    %v2494 = vsub.f32 %v110, %v2493
    %2495 = vmatpush1.msra.mxu0 %v2494
    %2496 = vmatprep.subr.mxu0 0.0
    %v2497 = vand.u32 %v109, 4294901760
    %v2498 = vsub.f32 %v109, %v2497
    %2499 = vmatpush1.msra.mxu0 %v2498
    %2500 = vmatprep.subr.mxu0 0.0
    %v2501 = vand.u32 %v108, 4294901760
    %v2502 = vsub.f32 %v108, %v2501
    %2503 = vmatpush1.msra.mxu0 %v2502
    %2504 = vmatprep.subr.mxu0 0.0
    %v2505 = vand.u32 %v107, 4294901760
    %v2506 = vsub.f32 %v107, %v2505
    %2507 = vmatpush1.msra.mxu0 %v2506
    %2508 = vmatprep.subr.mxu0 0.0
    %v2509 = vand.u32 %v106, 4294901760
    %v2510 = vsub.f32 %v106, %v2509
    %2511 = vmatpush1.msra.mxu0 %v2510
    %2512 = vmatprep.subr.mxu0 0.0
    %v2513 = vand.u32 %v137, 4294901760
    %v2514 = vsub.f32 %v137, %v2513
    %2515 = vmatpush2.msra.mxu0 %v2514
    %2516 = vmatprep.subr.mxu0 0.0
    %v2517 = vand.u32 %v136, 4294901760
    %v2518 = vsub.f32 %v136, %v2517
    %2519 = vmatpush2.msra.mxu0 %v2518
    %2520 = vmatprep.subr.mxu0 0.0
    %v2521 = vand.u32 %v135, 4294901760
    %v2522 = vsub.f32 %v135, %v2521
    %2523 = vmatpush2.msra.mxu0 %v2522
    %2524 = vmatprep.subr.mxu0 0.0
    %v2525 = vand.u32 %v134, 4294901760
    %v2526 = vsub.f32 %v134, %v2525
    %2527 = vmatpush2.msra.mxu0 %v2526
    %2528 = vmatprep.subr.mxu0 0.0
    %v2529 = vand.u32 %v133, 4294901760
    %v2530 = vsub.f32 %v133, %v2529
    %2531 = vmatpush2.msra.mxu0 %v2530
    %2532 = vmatprep.subr.mxu0 0.0
    %v2533 = vand.u32 %v132, 4294901760
    %v2534 = vsub.f32 %v132, %v2533
    %2535 = vmatpush2.msra.mxu0 %v2534
    %2536 = vmatprep.subr.mxu0 0.0
    %v2537 = vand.u32 %v131, 4294901760
    %v2538 = vsub.f32 %v131, %v2537
    %2539 = vmatpush2.msra.mxu0 %v2538
    %2540 = vmatprep.subr.mxu0 0.0
    %v2541 = vand.u32 %v130, 4294901760
    %v2542 = vsub.f32 %v130, %v2541
    %2543 = vmatpush2.msra.mxu0 %v2542
    %2544 = vmatprep.subr.mxu0 0.0
    %v2545 = vand.u32 %v129, 4294901760
    %v2546 = vsub.f32 %v129, %v2545
    %2547 = vmatpush2.msra.mxu0 %v2546
    %2548 = vmatprep.subr.mxu0 0.0
    %v2549 = vand.u32 %v128, 4294901760
    %v2550 = vsub.f32 %v128, %v2549
    %2551 = vmatpush2.msra.mxu0 %v2550
    %2552 = vmatprep.subr.mxu0 0.0
    %v2553 = vand.u32 %v127, 4294901760
    %v2554 = vsub.f32 %v127, %v2553
    %2555 = vmatpush2.msra.mxu0 %v2554
    %2556 = vmatprep.subr.mxu0 0.0
    %v2557 = vand.u32 %v126, 4294901760
    %v2558 = vsub.f32 %v126, %v2557
    %2559 = vmatpush2.msra.mxu0 %v2558
    %2560 = vmatprep.subr.mxu0 0.0
    %v2561 = vand.u32 %v125, 4294901760
    %v2562 = vsub.f32 %v125, %v2561
    %2563 = vmatpush2.msra.mxu0 %v2562
    %2564 = vmatprep.subr.mxu0 0.0
    %v2565 = vand.u32 %v124, 4294901760
    %v2566 = vsub.f32 %v124, %v2565
    %2567 = vmatpush2.msra.mxu0 %v2566
    %2568 = vmatprep.subr.mxu0 0.0
    %v2569 = vand.u32 %v123, 4294901760
    %v2570 = vsub.f32 %v123, %v2569
    %2571 = vmatpush2.msra.mxu0 %v2570
    %2572 = vmatprep.subr.mxu0 0.0
    %v2573 = vand.u32 %v122, 4294901760
    %v2574 = vsub.f32 %v122, %v2573
    %2575 = vmatpush2.msra.mxu0 %v2574
    %v2576 = vand.u32 %v323, 4294901760
    %v2577 = vsub.f32 %v323, %v2576
    %2578 = vmatprep.mubr.f32.mxu0 %v2577
    %v2579 = vand.u32 %v319, 4294901760
    %v2580 = vsub.f32 %v319, %v2579
    %2581 = vmatmul.mubr.f32.gmra.mxu0 %v2580
    %v2582 = vpop.f32.mrf.mxu0
    %v2583 = vadd.f32 %v2445, %v2582
    %v2584 = vpop.f32.mrf.mxu0
    %2585 = vdwg.mxu0
    %2586 = vmatprep.subr.mxu0 0.0
    %v2587 = vand.u32 %v121, 4294901760
    %2588 = vmatpush1.msra.mxu0 %v2587
    %2589 = vmatprep.subr.mxu0 0.0
    %v2590 = vand.u32 %v120, 4294901760
    %2591 = vmatpush1.msra.mxu0 %v2590
    %2592 = vmatprep.subr.mxu0 0.0
    %v2593 = vand.u32 %v119, 4294901760
    %2594 = vmatpush1.msra.mxu0 %v2593
    %2595 = vmatprep.subr.mxu0 0.0
    %v2596 = vand.u32 %v118, 4294901760
    %2597 = vmatpush1.msra.mxu0 %v2596
    %2598 = vmatprep.subr.mxu0 0.0
    %v2599 = vand.u32 %v117, 4294901760
    %2600 = vmatpush1.msra.mxu0 %v2599
    %2601 = vmatprep.subr.mxu0 0.0
    %v2602 = vand.u32 %v116, 4294901760
    %2603 = vmatpush1.msra.mxu0 %v2602
    %2604 = vmatprep.subr.mxu0 0.0
    %v2605 = vand.u32 %v115, 4294901760
    %2606 = vmatpush1.msra.mxu0 %v2605
    %2607 = vmatprep.subr.mxu0 0.0
    %v2608 = vand.u32 %v114, 4294901760
    %2609 = vmatpush1.msra.mxu0 %v2608
    %2610 = vmatprep.subr.mxu0 0.0
    %v2611 = vand.u32 %v113, 4294901760
    %2612 = vmatpush1.msra.mxu0 %v2611
    %2613 = vmatprep.subr.mxu0 0.0
    %v2614 = vand.u32 %v112, 4294901760
    %2615 = vmatpush1.msra.mxu0 %v2614
    %2616 = vmatprep.subr.mxu0 0.0
    %v2617 = vand.u32 %v111, 4294901760
    %2618 = vmatpush1.msra.mxu0 %v2617
    %2619 = vmatprep.subr.mxu0 0.0
    %v2620 = vand.u32 %v110, 4294901760
    %2621 = vmatpush1.msra.mxu0 %v2620
    %2622 = vmatprep.subr.mxu0 0.0
    %v2623 = vand.u32 %v109, 4294901760
    %2624 = vmatpush1.msra.mxu0 %v2623
    %2625 = vmatprep.subr.mxu0 0.0
    %v2626 = vand.u32 %v108, 4294901760
    %2627 = vmatpush1.msra.mxu0 %v2626
    %2628 = vmatprep.subr.mxu0 0.0
    %v2629 = vand.u32 %v107, 4294901760
    %2630 = vmatpush1.msra.mxu0 %v2629
    %2631 = vmatprep.subr.mxu0 0.0
    %v2632 = vand.u32 %v106, 4294901760
    %2633 = vmatpush1.msra.mxu0 %v2632
    %2634 = vmatprep.subr.mxu0 0.0
    %v2635 = vand.u32 %v137, 4294901760
    %2636 = vmatpush2.msra.mxu0 %v2635
    %2637 = vmatprep.subr.mxu0 0.0
    %v2638 = vand.u32 %v136, 4294901760
    %2639 = vmatpush2.msra.mxu0 %v2638
    %2640 = vmatprep.subr.mxu0 0.0
    %v2641 = vand.u32 %v135, 4294901760
    %2642 = vmatpush2.msra.mxu0 %v2641
    %2643 = vmatprep.subr.mxu0 0.0
    %v2644 = vand.u32 %v134, 4294901760
    %2645 = vmatpush2.msra.mxu0 %v2644
    %2646 = vmatprep.subr.mxu0 0.0
    %v2647 = vand.u32 %v133, 4294901760
    %2648 = vmatpush2.msra.mxu0 %v2647
    %2649 = vmatprep.subr.mxu0 0.0
    %v2650 = vand.u32 %v132, 4294901760
    %2651 = vmatpush2.msra.mxu0 %v2650
    %2652 = vmatprep.subr.mxu0 0.0
    %v2653 = vand.u32 %v131, 4294901760
    %2654 = vmatpush2.msra.mxu0 %v2653
    %2655 = vmatprep.subr.mxu0 0.0
    %v2656 = vand.u32 %v130, 4294901760
    %2657 = vmatpush2.msra.mxu0 %v2656
    %2658 = vmatprep.subr.mxu0 0.0
    %v2659 = vand.u32 %v129, 4294901760
    %2660 = vmatpush2.msra.mxu0 %v2659
    %2661 = vmatprep.subr.mxu0 0.0
    %v2662 = vand.u32 %v128, 4294901760
    %2663 = vmatpush2.msra.mxu0 %v2662
    %2664 = vmatprep.subr.mxu0 0.0
    %v2665 = vand.u32 %v127, 4294901760
    %2666 = vmatpush2.msra.mxu0 %v2665
    %2667 = vmatprep.subr.mxu0 0.0
    %v2668 = vand.u32 %v126, 4294901760
    %2669 = vmatpush2.msra.mxu0 %v2668
    %2670 = vmatprep.subr.mxu0 0.0
    %v2671 = vand.u32 %v125, 4294901760
    %2672 = vmatpush2.msra.mxu0 %v2671
    %2673 = vmatprep.subr.mxu0 0.0
    %v2674 = vand.u32 %v124, 4294901760
    %2675 = vmatpush2.msra.mxu0 %v2674
    %2676 = vmatprep.subr.mxu0 0.0
    %v2677 = vand.u32 %v123, 4294901760
    %2678 = vmatpush2.msra.mxu0 %v2677
    %2679 = vmatprep.subr.mxu0 0.0
    %v2680 = vand.u32 %v122, 4294901760
    %2681 = vmatpush2.msra.mxu0 %v2680
    %v2682 = vand.u32 %v323, 4294901760
    %v2683 = vsub.f32 %v323, %v2682
    %v2684 = vand.u32 %v2683, 4294901760
    %2685 = vmatprep.mubr.f32.mxu0 %v2684
    %v2686 = vand.u32 %v319, 4294901760
    %v2687 = vsub.f32 %v319, %v2686
    %v2688 = vand.u32 %v2687, 4294901760
    %2689 = vmatmul.mubr.f32.gmra.mxu0 %v2688
    %v2690 = vpop.f32.mrf.mxu0
    %v2691 = vadd.f32 %v2583, %v2690
    %v2692 = vpop.f32.mrf.mxu0
    %2693 = vdwg.mxu0
    %2694 = vmatprep.subr.mxu0 0.0
    %v2695 = vand.u32 %v121, 4294901760
    %v2696 = vsub.f32 %v121, %v2695
    %v2697 = vand.u32 %v2696, 4294901760
    %2698 = vmatpush1.msra.mxu0 %v2697
    %2699 = vmatprep.subr.mxu0 0.0
    %v2700 = vand.u32 %v120, 4294901760
    %v2701 = vsub.f32 %v120, %v2700
    %v2702 = vand.u32 %v2701, 4294901760
    %2703 = vmatpush1.msra.mxu0 %v2702
    %2704 = vmatprep.subr.mxu0 0.0
    %v2705 = vand.u32 %v119, 4294901760
    %v2706 = vsub.f32 %v119, %v2705
    %v2707 = vand.u32 %v2706, 4294901760
    %2708 = vmatpush1.msra.mxu0 %v2707
    %2709 = vmatprep.subr.mxu0 0.0
    %v2710 = vand.u32 %v118, 4294901760
    %v2711 = vsub.f32 %v118, %v2710
    %v2712 = vand.u32 %v2711, 4294901760
    %2713 = vmatpush1.msra.mxu0 %v2712
    %2714 = vmatprep.subr.mxu0 0.0
    %v2715 = vand.u32 %v117, 4294901760
    %v2716 = vsub.f32 %v117, %v2715
    %v2717 = vand.u32 %v2716, 4294901760
    %2718 = vmatpush1.msra.mxu0 %v2717
    %2719 = vmatprep.subr.mxu0 0.0
    %v2720 = vand.u32 %v116, 4294901760
    %v2721 = vsub.f32 %v116, %v2720
    %v2722 = vand.u32 %v2721, 4294901760
    %2723 = vmatpush1.msra.mxu0 %v2722
    %2724 = vmatprep.subr.mxu0 0.0
    %v2725 = vand.u32 %v115, 4294901760
    %v2726 = vsub.f32 %v115, %v2725
    %v2727 = vand.u32 %v2726, 4294901760
    %2728 = vmatpush1.msra.mxu0 %v2727
    %2729 = vmatprep.subr.mxu0 0.0
    %v2730 = vand.u32 %v114, 4294901760
    %v2731 = vsub.f32 %v114, %v2730
    %v2732 = vand.u32 %v2731, 4294901760
    %2733 = vmatpush1.msra.mxu0 %v2732
    %2734 = vmatprep.subr.mxu0 0.0
    %v2735 = vand.u32 %v113, 4294901760
    %v2736 = vsub.f32 %v113, %v2735
    %v2737 = vand.u32 %v2736, 4294901760
    %2738 = vmatpush1.msra.mxu0 %v2737
    %2739 = vmatprep.subr.mxu0 0.0
    %v2740 = vand.u32 %v112, 4294901760
    %v2741 = vsub.f32 %v112, %v2740
    %v2742 = vand.u32 %v2741, 4294901760
    %2743 = vmatpush1.msra.mxu0 %v2742
    %2744 = vmatprep.subr.mxu0 0.0
    %v2745 = vand.u32 %v111, 4294901760
    %v2746 = vsub.f32 %v111, %v2745
    %v2747 = vand.u32 %v2746, 4294901760
    %2748 = vmatpush1.msra.mxu0 %v2747
    %2749 = vmatprep.subr.mxu0 0.0
    %v2750 = vand.u32 %v110, 4294901760
    %v2751 = vsub.f32 %v110, %v2750
    %v2752 = vand.u32 %v2751, 4294901760
    %2753 = vmatpush1.msra.mxu0 %v2752
    %2754 = vmatprep.subr.mxu0 0.0
    %v2755 = vand.u32 %v109, 4294901760
    %v2756 = vsub.f32 %v109, %v2755
    %v2757 = vand.u32 %v2756, 4294901760
    %2758 = vmatpush1.msra.mxu0 %v2757
    %2759 = vmatprep.subr.mxu0 0.0
    %v2760 = vand.u32 %v108, 4294901760
    %v2761 = vsub.f32 %v108, %v2760
    %v2762 = vand.u32 %v2761, 4294901760
    %2763 = vmatpush1.msra.mxu0 %v2762
    %2764 = vmatprep.subr.mxu0 0.0
    %v2765 = vand.u32 %v107, 4294901760
    %v2766 = vsub.f32 %v107, %v2765
    %v2767 = vand.u32 %v2766, 4294901760
    %2768 = vmatpush1.msra.mxu0 %v2767
    %2769 = vmatprep.subr.mxu0 0.0
    %v2770 = vand.u32 %v106, 4294901760
    %v2771 = vsub.f32 %v106, %v2770
    %v2772 = vand.u32 %v2771, 4294901760
    %2773 = vmatpush1.msra.mxu0 %v2772
    %2774 = vmatprep.subr.mxu0 0.0
    %v2775 = vand.u32 %v137, 4294901760
    %v2776 = vsub.f32 %v137, %v2775
    %v2777 = vand.u32 %v2776, 4294901760
    %2778 = vmatpush2.msra.mxu0 %v2777
    %2779 = vmatprep.subr.mxu0 0.0
    %v2780 = vand.u32 %v136, 4294901760
    %v2781 = vsub.f32 %v136, %v2780
    %v2782 = vand.u32 %v2781, 4294901760
    %2783 = vmatpush2.msra.mxu0 %v2782
    %2784 = vmatprep.subr.mxu0 0.0
    %v2785 = vand.u32 %v135, 4294901760
    %v2786 = vsub.f32 %v135, %v2785
    %v2787 = vand.u32 %v2786, 4294901760
    %2788 = vmatpush2.msra.mxu0 %v2787
    %2789 = vmatprep.subr.mxu0 0.0
    %v2790 = vand.u32 %v134, 4294901760
    %v2791 = vsub.f32 %v134, %v2790
    %v2792 = vand.u32 %v2791, 4294901760
    %2793 = vmatpush2.msra.mxu0 %v2792
    %2794 = vmatprep.subr.mxu0 0.0
    %v2795 = vand.u32 %v133, 4294901760
    %v2796 = vsub.f32 %v133, %v2795
    %v2797 = vand.u32 %v2796, 4294901760
    %2798 = vmatpush2.msra.mxu0 %v2797
    %2799 = vmatprep.subr.mxu0 0.0
    %v2800 = vand.u32 %v132, 4294901760
    %v2801 = vsub.f32 %v132, %v2800
    %v2802 = vand.u32 %v2801, 4294901760
    %2803 = vmatpush2.msra.mxu0 %v2802
    %2804 = vmatprep.subr.mxu0 0.0
    %v2805 = vand.u32 %v131, 4294901760
    %v2806 = vsub.f32 %v131, %v2805
    %v2807 = vand.u32 %v2806, 4294901760
    %2808 = vmatpush2.msra.mxu0 %v2807
    %2809 = vmatprep.subr.mxu0 0.0
    %v2810 = vand.u32 %v130, 4294901760
    %v2811 = vsub.f32 %v130, %v2810
    %v2812 = vand.u32 %v2811, 4294901760
    %2813 = vmatpush2.msra.mxu0 %v2812
    %2814 = vmatprep.subr.mxu0 0.0
    %v2815 = vand.u32 %v129, 4294901760
    %v2816 = vsub.f32 %v129, %v2815
    %v2817 = vand.u32 %v2816, 4294901760
    %2818 = vmatpush2.msra.mxu0 %v2817
    %2819 = vmatprep.subr.mxu0 0.0
    %v2820 = vand.u32 %v128, 4294901760
    %v2821 = vsub.f32 %v128, %v2820
    %v2822 = vand.u32 %v2821, 4294901760
    %2823 = vmatpush2.msra.mxu0 %v2822
    %2824 = vmatprep.subr.mxu0 0.0
    %v2825 = vand.u32 %v127, 4294901760
    %v2826 = vsub.f32 %v127, %v2825
    %v2827 = vand.u32 %v2826, 4294901760
    %2828 = vmatpush2.msra.mxu0 %v2827
    %2829 = vmatprep.subr.mxu0 0.0
    %v2830 = vand.u32 %v126, 4294901760
    %v2831 = vsub.f32 %v126, %v2830
    %v2832 = vand.u32 %v2831, 4294901760
    %2833 = vmatpush2.msra.mxu0 %v2832
    %2834 = vmatprep.subr.mxu0 0.0
    %v2835 = vand.u32 %v125, 4294901760
    %v2836 = vsub.f32 %v125, %v2835
    %v2837 = vand.u32 %v2836, 4294901760
    %2838 = vmatpush2.msra.mxu0 %v2837
    %2839 = vmatprep.subr.mxu0 0.0
    %v2840 = vand.u32 %v124, 4294901760
    %v2841 = vsub.f32 %v124, %v2840
    %v2842 = vand.u32 %v2841, 4294901760
    %2843 = vmatpush2.msra.mxu0 %v2842
    %2844 = vmatprep.subr.mxu0 0.0
    %v2845 = vand.u32 %v123, 4294901760
    %v2846 = vsub.f32 %v123, %v2845
    %v2847 = vand.u32 %v2846, 4294901760
    %2848 = vmatpush2.msra.mxu0 %v2847
    %2849 = vmatprep.subr.mxu0 0.0
    %v2850 = vand.u32 %v122, 4294901760
    %v2851 = vsub.f32 %v122, %v2850
    %v2852 = vand.u32 %v2851, 4294901760
    %2853 = vmatpush2.msra.mxu0 %v2852
    %v2854 = vand.u32 %v323, 4294901760
    %2855 = vmatprep.mubr.f32.mxu0 %v2854
    %v2856 = vand.u32 %v319, 4294901760
    %2857 = vmatmul.mubr.f32.gmra.mxu0 %v2856
    %v2858 = vpop.f32.mrf.mxu0
    %v2859 = vadd.f32 %v2691, %v2858
    %v2860 = vpop.f32.mrf.mxu0
    %2861 = vdwg.mxu0
    %2862 = vmatprep.subr.mxu0 0.0
    %v2863 = vand.u32 %v121, 4294901760
    %2864 = vmatpush1.msra.mxu0 %v2863
    %2865 = vmatprep.subr.mxu0 0.0
    %v2866 = vand.u32 %v120, 4294901760
    %2867 = vmatpush1.msra.mxu0 %v2866
    %2868 = vmatprep.subr.mxu0 0.0
    %v2869 = vand.u32 %v119, 4294901760
    %2870 = vmatpush1.msra.mxu0 %v2869
    %2871 = vmatprep.subr.mxu0 0.0
    %v2872 = vand.u32 %v118, 4294901760
    %2873 = vmatpush1.msra.mxu0 %v2872
    %2874 = vmatprep.subr.mxu0 0.0
    %v2875 = vand.u32 %v117, 4294901760
    %2876 = vmatpush1.msra.mxu0 %v2875
    %2877 = vmatprep.subr.mxu0 0.0
    %v2878 = vand.u32 %v116, 4294901760
    %2879 = vmatpush1.msra.mxu0 %v2878
    %2880 = vmatprep.subr.mxu0 0.0
    %v2881 = vand.u32 %v115, 4294901760
    %2882 = vmatpush1.msra.mxu0 %v2881
    %2883 = vmatprep.subr.mxu0 0.0
    %v2884 = vand.u32 %v114, 4294901760
    %2885 = vmatpush1.msra.mxu0 %v2884
    %2886 = vmatprep.subr.mxu0 0.0
    %v2887 = vand.u32 %v113, 4294901760
    %2888 = vmatpush1.msra.mxu0 %v2887
    %2889 = vmatprep.subr.mxu0 0.0
    %v2890 = vand.u32 %v112, 4294901760
    %2891 = vmatpush1.msra.mxu0 %v2890
    %2892 = vmatprep.subr.mxu0 0.0
    %v2893 = vand.u32 %v111, 4294901760
    %2894 = vmatpush1.msra.mxu0 %v2893
    %2895 = vmatprep.subr.mxu0 0.0
    %v2896 = vand.u32 %v110, 4294901760
    %2897 = vmatpush1.msra.mxu0 %v2896
    %2898 = vmatprep.subr.mxu0 0.0
    %v2899 = vand.u32 %v109, 4294901760
    %2900 = vmatpush1.msra.mxu0 %v2899
    %2901 = vmatprep.subr.mxu0 0.0
    %v2902 = vand.u32 %v108, 4294901760
    %2903 = vmatpush1.msra.mxu0 %v2902
    %2904 = vmatprep.subr.mxu0 0.0
    %v2905 = vand.u32 %v107, 4294901760
    %2906 = vmatpush1.msra.mxu0 %v2905
    %2907 = vmatprep.subr.mxu0 0.0
    %v2908 = vand.u32 %v106, 4294901760
    %2909 = vmatpush1.msra.mxu0 %v2908
    %2910 = vmatprep.subr.mxu0 0.0
    %v2911 = vand.u32 %v137, 4294901760
    %2912 = vmatpush2.msra.mxu0 %v2911
    %2913 = vmatprep.subr.mxu0 0.0
    %v2914 = vand.u32 %v136, 4294901760
    %2915 = vmatpush2.msra.mxu0 %v2914
    %2916 = vmatprep.subr.mxu0 0.0
    %v2917 = vand.u32 %v135, 4294901760
    %2918 = vmatpush2.msra.mxu0 %v2917
    %2919 = vmatprep.subr.mxu0 0.0
    %v2920 = vand.u32 %v134, 4294901760
    %2921 = vmatpush2.msra.mxu0 %v2920
    %2922 = vmatprep.subr.mxu0 0.0
    %v2923 = vand.u32 %v133, 4294901760
    %2924 = vmatpush2.msra.mxu0 %v2923
    %2925 = vmatprep.subr.mxu0 0.0
    %v2926 = vand.u32 %v132, 4294901760
    %2927 = vmatpush2.msra.mxu0 %v2926
    %2928 = vmatprep.subr.mxu0 0.0
    %v2929 = vand.u32 %v131, 4294901760
    %2930 = vmatpush2.msra.mxu0 %v2929
    %2931 = vmatprep.subr.mxu0 0.0
    %v2932 = vand.u32 %v130, 4294901760
    %2933 = vmatpush2.msra.mxu0 %v2932
    %2934 = vmatprep.subr.mxu0 0.0
    %v2935 = vand.u32 %v129, 4294901760
    %2936 = vmatpush2.msra.mxu0 %v2935
    %2937 = vmatprep.subr.mxu0 0.0
    %v2938 = vand.u32 %v128, 4294901760
    %2939 = vmatpush2.msra.mxu0 %v2938
    %2940 = vmatprep.subr.mxu0 0.0
    %v2941 = vand.u32 %v127, 4294901760
    %2942 = vmatpush2.msra.mxu0 %v2941
    %2943 = vmatprep.subr.mxu0 0.0
    %v2944 = vand.u32 %v126, 4294901760
    %2945 = vmatpush2.msra.mxu0 %v2944
    %2946 = vmatprep.subr.mxu0 0.0
    %v2947 = vand.u32 %v125, 4294901760
    %2948 = vmatpush2.msra.mxu0 %v2947
    %2949 = vmatprep.subr.mxu0 0.0
    %v2950 = vand.u32 %v124, 4294901760
    %2951 = vmatpush2.msra.mxu0 %v2950
    %2952 = vmatprep.subr.mxu0 0.0
    %v2953 = vand.u32 %v123, 4294901760
    %2954 = vmatpush2.msra.mxu0 %v2953
    %2955 = vmatprep.subr.mxu0 0.0
    %v2956 = vand.u32 %v122, 4294901760
    %2957 = vmatpush2.msra.mxu0 %v2956
    %v2958 = vand.u32 %v323, 4294901760
    %2959 = vmatprep.mubr.f32.mxu0 %v2958
    %v2960 = vand.u32 %v319, 4294901760
    %2961 = vmatmul.mubr.f32.gmra.mxu0 %v2960
    %v2962 = vpop.f32.mrf.mxu0
    %v2963 = vadd.f32 %v2859, %v2962
    %v2964 = vpop.f32.mrf.mxu0
    %2965 = vdwg.mxu0
    %2966 = vmatprep.subr.mxu0 0.0
    %v2967 = vand.u32 %v153, 4294901760
    %2968 = vmatpush1.msra.mxu0 %v2967
    %2969 = vmatprep.subr.mxu0 0.0
    %v2970 = vand.u32 %v152, 4294901760
    %2971 = vmatpush1.msra.mxu0 %v2970
    %2972 = vmatprep.subr.mxu0 0.0
    %v2973 = vand.u32 %v151, 4294901760
    %2974 = vmatpush1.msra.mxu0 %v2973
    %2975 = vmatprep.subr.mxu0 0.0
    %v2976 = vand.u32 %v150, 4294901760
    %2977 = vmatpush1.msra.mxu0 %v2976
    %2978 = vmatprep.subr.mxu0 0.0
    %v2979 = vand.u32 %v149, 4294901760
    %2980 = vmatpush1.msra.mxu0 %v2979
    %2981 = vmatprep.subr.mxu0 0.0
    %v2982 = vand.u32 %v148, 4294901760
    %2983 = vmatpush1.msra.mxu0 %v2982
    %2984 = vmatprep.subr.mxu0 0.0
    %v2985 = vand.u32 %v147, 4294901760
    %2986 = vmatpush1.msra.mxu0 %v2985
    %2987 = vmatprep.subr.mxu0 0.0
    %v2988 = vand.u32 %v146, 4294901760
    %2989 = vmatpush1.msra.mxu0 %v2988
    %2990 = vmatprep.subr.mxu0 0.0
    %v2991 = vand.u32 %v145, 4294901760
    %2992 = vmatpush1.msra.mxu0 %v2991
    %2993 = vmatprep.subr.mxu0 0.0
    %v2994 = vand.u32 %v144, 4294901760
    %2995 = vmatpush1.msra.mxu0 %v2994
    %2996 = vmatprep.subr.mxu0 0.0
    %v2997 = vand.u32 %v143, 4294901760
    %2998 = vmatpush1.msra.mxu0 %v2997
    %2999 = vmatprep.subr.mxu0 0.0
    %v3000 = vand.u32 %v142, 4294901760
    %3001 = vmatpush1.msra.mxu0 %v3000
    %3002 = vmatprep.subr.mxu0 0.0
    %v3003 = vand.u32 %v141, 4294901760
    %3004 = vmatpush1.msra.mxu0 %v3003
    %3005 = vmatprep.subr.mxu0 0.0
    %v3006 = vand.u32 %v140, 4294901760
    %3007 = vmatpush1.msra.mxu0 %v3006
    %3008 = vmatprep.subr.mxu0 0.0
    %v3009 = vand.u32 %v139, 4294901760
    %3010 = vmatpush1.msra.mxu0 %v3009
    %3011 = vmatprep.subr.mxu0 0.0
    %v3012 = vand.u32 %v138, 4294901760
    %3013 = vmatpush1.msra.mxu0 %v3012
    %3014 = vmatprep.subr.mxu0 0.0
    %v3015 = vand.u32 %v169, 4294901760
    %3016 = vmatpush2.msra.mxu0 %v3015
    %3017 = vmatprep.subr.mxu0 0.0
    %v3018 = vand.u32 %v168, 4294901760
    %3019 = vmatpush2.msra.mxu0 %v3018
    %3020 = vmatprep.subr.mxu0 0.0
    %v3021 = vand.u32 %v167, 4294901760
    %3022 = vmatpush2.msra.mxu0 %v3021
    %3023 = vmatprep.subr.mxu0 0.0
    %v3024 = vand.u32 %v166, 4294901760
    %3025 = vmatpush2.msra.mxu0 %v3024
    %3026 = vmatprep.subr.mxu0 0.0
    %v3027 = vand.u32 %v165, 4294901760
    %3028 = vmatpush2.msra.mxu0 %v3027
    %3029 = vmatprep.subr.mxu0 0.0
    %v3030 = vand.u32 %v164, 4294901760
    %3031 = vmatpush2.msra.mxu0 %v3030
    %3032 = vmatprep.subr.mxu0 0.0
    %v3033 = vand.u32 %v163, 4294901760
    %3034 = vmatpush2.msra.mxu0 %v3033
    %3035 = vmatprep.subr.mxu0 0.0
    %v3036 = vand.u32 %v162, 4294901760
    %3037 = vmatpush2.msra.mxu0 %v3036
    %3038 = vmatprep.subr.mxu0 0.0
    %v3039 = vand.u32 %v161, 4294901760
    %3040 = vmatpush2.msra.mxu0 %v3039
    %3041 = vmatprep.subr.mxu0 0.0
    %v3042 = vand.u32 %v160, 4294901760
    %3043 = vmatpush2.msra.mxu0 %v3042
    %3044 = vmatprep.subr.mxu0 0.0
    %v3045 = vand.u32 %v159, 4294901760
    %3046 = vmatpush2.msra.mxu0 %v3045
    %3047 = vmatprep.subr.mxu0 0.0
    %v3048 = vand.u32 %v158, 4294901760
    %3049 = vmatpush2.msra.mxu0 %v3048
    %3050 = vmatprep.subr.mxu0 0.0
    %v3051 = vand.u32 %v157, 4294901760
    %3052 = vmatpush2.msra.mxu0 %v3051
    %3053 = vmatprep.subr.mxu0 0.0
    %v3054 = vand.u32 %v156, 4294901760
    %3055 = vmatpush2.msra.mxu0 %v3054
    %3056 = vmatprep.subr.mxu0 0.0
    %v3057 = vand.u32 %v155, 4294901760
    %3058 = vmatpush2.msra.mxu0 %v3057
    %3059 = vmatprep.subr.mxu0 0.0
    %v3060 = vand.u32 %v154, 4294901760
    %3061 = vmatpush2.msra.mxu0 %v3060
    %v3062 = vand.u32 %v331, 4294901760
    %v3063 = vsub.f32 %v331, %v3062
    %v3064 = vand.u32 %v3063, 4294901760
    %v3065 = vsub.f32 %v3063, %v3064
    %v3066 = vand.u32 %v3065, 4294901760
    %3067 = vmatprep.mubr.f32.mxu0 %v3066
    %v3068 = vand.u32 %v327, 4294901760
    %v3069 = vsub.f32 %v327, %v3068
    %v3070 = vand.u32 %v3069, 4294901760
    %v3071 = vsub.f32 %v3069, %v3070
    %v3072 = vand.u32 %v3071, 4294901760
    %3073 = vmatmul.mubr.f32.gmra.mxu0 %v3072
    %v3074 = vpop.f32.mrf.mxu0
    %v3075 = vadd.f32 %v2963, %v3074
    %v3076 = vpop.f32.mrf.mxu0
    %3077 = vdwg.mxu0
    %3078 = vmatprep.subr.mxu0 0.0
    %v3079 = vand.u32 %v153, 4294901760
    %v3080 = vsub.f32 %v153, %v3079
    %v3081 = vand.u32 %v3080, 4294901760
    %v3082 = vsub.f32 %v3080, %v3081
    %v3083 = vand.u32 %v3082, 4294901760
    %3084 = vmatpush1.msra.mxu0 %v3083
    %3085 = vmatprep.subr.mxu0 0.0
    %v3086 = vand.u32 %v152, 4294901760
    %v3087 = vsub.f32 %v152, %v3086
    %v3088 = vand.u32 %v3087, 4294901760
    %v3089 = vsub.f32 %v3087, %v3088
    %v3090 = vand.u32 %v3089, 4294901760
    %3091 = vmatpush1.msra.mxu0 %v3090
    %3092 = vmatprep.subr.mxu0 0.0
    %v3093 = vand.u32 %v151, 4294901760
    %v3094 = vsub.f32 %v151, %v3093
    %v3095 = vand.u32 %v3094, 4294901760
    %v3096 = vsub.f32 %v3094, %v3095
    %v3097 = vand.u32 %v3096, 4294901760
    %3098 = vmatpush1.msra.mxu0 %v3097
    %3099 = vmatprep.subr.mxu0 0.0
    %v3100 = vand.u32 %v150, 4294901760
    %v3101 = vsub.f32 %v150, %v3100
    %v3102 = vand.u32 %v3101, 4294901760
    %v3103 = vsub.f32 %v3101, %v3102
    %v3104 = vand.u32 %v3103, 4294901760
    %3105 = vmatpush1.msra.mxu0 %v3104
    %3106 = vmatprep.subr.mxu0 0.0
    %v3107 = vand.u32 %v149, 4294901760
    %v3108 = vsub.f32 %v149, %v3107
    %v3109 = vand.u32 %v3108, 4294901760
    %v3110 = vsub.f32 %v3108, %v3109
    %v3111 = vand.u32 %v3110, 4294901760
    %3112 = vmatpush1.msra.mxu0 %v3111
    %3113 = vmatprep.subr.mxu0 0.0
    %v3114 = vand.u32 %v148, 4294901760
    %v3115 = vsub.f32 %v148, %v3114
    %v3116 = vand.u32 %v3115, 4294901760
    %v3117 = vsub.f32 %v3115, %v3116
    %v3118 = vand.u32 %v3117, 4294901760
    %3119 = vmatpush1.msra.mxu0 %v3118
    %3120 = vmatprep.subr.mxu0 0.0
    %v3121 = vand.u32 %v147, 4294901760
    %v3122 = vsub.f32 %v147, %v3121
    %v3123 = vand.u32 %v3122, 4294901760
    %v3124 = vsub.f32 %v3122, %v3123
    %v3125 = vand.u32 %v3124, 4294901760
    %3126 = vmatpush1.msra.mxu0 %v3125
    %3127 = vmatprep.subr.mxu0 0.0
    %v3128 = vand.u32 %v146, 4294901760
    %v3129 = vsub.f32 %v146, %v3128
    %v3130 = vand.u32 %v3129, 4294901760
    %v3131 = vsub.f32 %v3129, %v3130
    %v3132 = vand.u32 %v3131, 4294901760
    %3133 = vmatpush1.msra.mxu0 %v3132
    %3134 = vmatprep.subr.mxu0 0.0
    %v3135 = vand.u32 %v145, 4294901760
    %v3136 = vsub.f32 %v145, %v3135
    %v3137 = vand.u32 %v3136, 4294901760
    %v3138 = vsub.f32 %v3136, %v3137
    %v3139 = vand.u32 %v3138, 4294901760
    %3140 = vmatpush1.msra.mxu0 %v3139
    %3141 = vmatprep.subr.mxu0 0.0
    %v3142 = vand.u32 %v144, 4294901760
    %v3143 = vsub.f32 %v144, %v3142
    %v3144 = vand.u32 %v3143, 4294901760
    %v3145 = vsub.f32 %v3143, %v3144
    %v3146 = vand.u32 %v3145, 4294901760
    %3147 = vmatpush1.msra.mxu0 %v3146
    %3148 = vmatprep.subr.mxu0 0.0
    %v3149 = vand.u32 %v143, 4294901760
    %v3150 = vsub.f32 %v143, %v3149
    %v3151 = vand.u32 %v3150, 4294901760
    %v3152 = vsub.f32 %v3150, %v3151
    %v3153 = vand.u32 %v3152, 4294901760
    %3154 = vmatpush1.msra.mxu0 %v3153
    %3155 = vmatprep.subr.mxu0 0.0
    %v3156 = vand.u32 %v142, 4294901760
    %v3157 = vsub.f32 %v142, %v3156
    %v3158 = vand.u32 %v3157, 4294901760
    %v3159 = vsub.f32 %v3157, %v3158
    %v3160 = vand.u32 %v3159, 4294901760
    %3161 = vmatpush1.msra.mxu0 %v3160
    %3162 = vmatprep.subr.mxu0 0.0
    %v3163 = vand.u32 %v141, 4294901760
    %v3164 = vsub.f32 %v141, %v3163
    %v3165 = vand.u32 %v3164, 4294901760
    %v3166 = vsub.f32 %v3164, %v3165
    %v3167 = vand.u32 %v3166, 4294901760
    %3168 = vmatpush1.msra.mxu0 %v3167
    %3169 = vmatprep.subr.mxu0 0.0
    %v3170 = vand.u32 %v140, 4294901760
    %v3171 = vsub.f32 %v140, %v3170
    %v3172 = vand.u32 %v3171, 4294901760
    %v3173 = vsub.f32 %v3171, %v3172
    %v3174 = vand.u32 %v3173, 4294901760
    %3175 = vmatpush1.msra.mxu0 %v3174
    %3176 = vmatprep.subr.mxu0 0.0
    %v3177 = vand.u32 %v139, 4294901760
    %v3178 = vsub.f32 %v139, %v3177
    %v3179 = vand.u32 %v3178, 4294901760
    %v3180 = vsub.f32 %v3178, %v3179
    %v3181 = vand.u32 %v3180, 4294901760
    %3182 = vmatpush1.msra.mxu0 %v3181
    %3183 = vmatprep.subr.mxu0 0.0
    %v3184 = vand.u32 %v138, 4294901760
    %v3185 = vsub.f32 %v138, %v3184
    %v3186 = vand.u32 %v3185, 4294901760
    %v3187 = vsub.f32 %v3185, %v3186
    %v3188 = vand.u32 %v3187, 4294901760
    %3189 = vmatpush1.msra.mxu0 %v3188
    %3190 = vmatprep.subr.mxu0 0.0
    %v3191 = vand.u32 %v169, 4294901760
    %v3192 = vsub.f32 %v169, %v3191
    %v3193 = vand.u32 %v3192, 4294901760
    %v3194 = vsub.f32 %v3192, %v3193
    %v3195 = vand.u32 %v3194, 4294901760
    %3196 = vmatpush2.msra.mxu0 %v3195
    %3197 = vmatprep.subr.mxu0 0.0
    %v3198 = vand.u32 %v168, 4294901760
    %v3199 = vsub.f32 %v168, %v3198
    %v3200 = vand.u32 %v3199, 4294901760
    %v3201 = vsub.f32 %v3199, %v3200
    %v3202 = vand.u32 %v3201, 4294901760
    %3203 = vmatpush2.msra.mxu0 %v3202
    %3204 = vmatprep.subr.mxu0 0.0
    %v3205 = vand.u32 %v167, 4294901760
    %v3206 = vsub.f32 %v167, %v3205
    %v3207 = vand.u32 %v3206, 4294901760
    %v3208 = vsub.f32 %v3206, %v3207
    %v3209 = vand.u32 %v3208, 4294901760
    %3210 = vmatpush2.msra.mxu0 %v3209
    %3211 = vmatprep.subr.mxu0 0.0
    %v3212 = vand.u32 %v166, 4294901760
    %v3213 = vsub.f32 %v166, %v3212
    %v3214 = vand.u32 %v3213, 4294901760
    %v3215 = vsub.f32 %v3213, %v3214
    %v3216 = vand.u32 %v3215, 4294901760
    %3217 = vmatpush2.msra.mxu0 %v3216
    %3218 = vmatprep.subr.mxu0 0.0
    %v3219 = vand.u32 %v165, 4294901760
    %v3220 = vsub.f32 %v165, %v3219
    %v3221 = vand.u32 %v3220, 4294901760
    %v3222 = vsub.f32 %v3220, %v3221
    %v3223 = vand.u32 %v3222, 4294901760
    %3224 = vmatpush2.msra.mxu0 %v3223
    %3225 = vmatprep.subr.mxu0 0.0
    %v3226 = vand.u32 %v164, 4294901760
    %v3227 = vsub.f32 %v164, %v3226
    %v3228 = vand.u32 %v3227, 4294901760
    %v3229 = vsub.f32 %v3227, %v3228
    %v3230 = vand.u32 %v3229, 4294901760
    %3231 = vmatpush2.msra.mxu0 %v3230
    %3232 = vmatprep.subr.mxu0 0.0
    %v3233 = vand.u32 %v163, 4294901760
    %v3234 = vsub.f32 %v163, %v3233
    %v3235 = vand.u32 %v3234, 4294901760
    %v3236 = vsub.f32 %v3234, %v3235
    %v3237 = vand.u32 %v3236, 4294901760
    %3238 = vmatpush2.msra.mxu0 %v3237
    %3239 = vmatprep.subr.mxu0 0.0
    %v3240 = vand.u32 %v162, 4294901760
    %v3241 = vsub.f32 %v162, %v3240
    %v3242 = vand.u32 %v3241, 4294901760
    %v3243 = vsub.f32 %v3241, %v3242
    %v3244 = vand.u32 %v3243, 4294901760
    %3245 = vmatpush2.msra.mxu0 %v3244
    %3246 = vmatprep.subr.mxu0 0.0
    %v3247 = vand.u32 %v161, 4294901760
    %v3248 = vsub.f32 %v161, %v3247
    %v3249 = vand.u32 %v3248, 4294901760
    %v3250 = vsub.f32 %v3248, %v3249
    %v3251 = vand.u32 %v3250, 4294901760
    %3252 = vmatpush2.msra.mxu0 %v3251
    %3253 = vmatprep.subr.mxu0 0.0
    %v3254 = vand.u32 %v160, 4294901760
    %v3255 = vsub.f32 %v160, %v3254
    %v3256 = vand.u32 %v3255, 4294901760
    %v3257 = vsub.f32 %v3255, %v3256
    %v3258 = vand.u32 %v3257, 4294901760
    %3259 = vmatpush2.msra.mxu0 %v3258
    %3260 = vmatprep.subr.mxu0 0.0
    %v3261 = vand.u32 %v159, 4294901760
    %v3262 = vsub.f32 %v159, %v3261
    %v3263 = vand.u32 %v3262, 4294901760
    %v3264 = vsub.f32 %v3262, %v3263
    %v3265 = vand.u32 %v3264, 4294901760
    %3266 = vmatpush2.msra.mxu0 %v3265
    %3267 = vmatprep.subr.mxu0 0.0
    %v3268 = vand.u32 %v158, 4294901760
    %v3269 = vsub.f32 %v158, %v3268
    %v3270 = vand.u32 %v3269, 4294901760
    %v3271 = vsub.f32 %v3269, %v3270
    %v3272 = vand.u32 %v3271, 4294901760
    %3273 = vmatpush2.msra.mxu0 %v3272
    %3274 = vmatprep.subr.mxu0 0.0
    %v3275 = vand.u32 %v157, 4294901760
    %v3276 = vsub.f32 %v157, %v3275
    %v3277 = vand.u32 %v3276, 4294901760
    %v3278 = vsub.f32 %v3276, %v3277
    %v3279 = vand.u32 %v3278, 4294901760
    %3280 = vmatpush2.msra.mxu0 %v3279
    %3281 = vmatprep.subr.mxu0 0.0
    %v3282 = vand.u32 %v156, 4294901760
    %v3283 = vsub.f32 %v156, %v3282
    %v3284 = vand.u32 %v3283, 4294901760
    %v3285 = vsub.f32 %v3283, %v3284
    %v3286 = vand.u32 %v3285, 4294901760
    %3287 = vmatpush2.msra.mxu0 %v3286
    %3288 = vmatprep.subr.mxu0 0.0
    %v3289 = vand.u32 %v155, 4294901760
    %v3290 = vsub.f32 %v155, %v3289
    %v3291 = vand.u32 %v3290, 4294901760
    %v3292 = vsub.f32 %v3290, %v3291
    %v3293 = vand.u32 %v3292, 4294901760
    %3294 = vmatpush2.msra.mxu0 %v3293
    %3295 = vmatprep.subr.mxu0 0.0
    %v3296 = vand.u32 %v154, 4294901760
    %v3297 = vsub.f32 %v154, %v3296
    %v3298 = vand.u32 %v3297, 4294901760
    %v3299 = vsub.f32 %v3297, %v3298
    %v3300 = vand.u32 %v3299, 4294901760
    %3301 = vmatpush2.msra.mxu0 %v3300
    %v3302 = vand.u32 %v331, 4294901760
    %3303 = vmatprep.mubr.f32.mxu0 %v3302
    %v3304 = vand.u32 %v327, 4294901760
    %3305 = vmatmul.mubr.f32.gmra.mxu0 %v3304
    %v3306 = vpop.f32.mrf.mxu0
    %v3307 = vadd.f32 %v3075, %v3306
    %v3308 = vpop.f32.mrf.mxu0
    %3309 = vdwg.mxu0
    %3310 = vmatprep.subr.mxu0 0.0
    %v3311 = vand.u32 %v153, 4294901760
    %v3312 = vsub.f32 %v153, %v3311
    %3313 = vmatpush1.msra.mxu0 %v3312
    %3314 = vmatprep.subr.mxu0 0.0
    %v3315 = vand.u32 %v152, 4294901760
    %v3316 = vsub.f32 %v152, %v3315
    %3317 = vmatpush1.msra.mxu0 %v3316
    %3318 = vmatprep.subr.mxu0 0.0
    %v3319 = vand.u32 %v151, 4294901760
    %v3320 = vsub.f32 %v151, %v3319
    %3321 = vmatpush1.msra.mxu0 %v3320
    %3322 = vmatprep.subr.mxu0 0.0
    %v3323 = vand.u32 %v150, 4294901760
    %v3324 = vsub.f32 %v150, %v3323
    %3325 = vmatpush1.msra.mxu0 %v3324
    %3326 = vmatprep.subr.mxu0 0.0
    %v3327 = vand.u32 %v149, 4294901760
    %v3328 = vsub.f32 %v149, %v3327
    %3329 = vmatpush1.msra.mxu0 %v3328
    %3330 = vmatprep.subr.mxu0 0.0
    %v3331 = vand.u32 %v148, 4294901760
    %v3332 = vsub.f32 %v148, %v3331
    %3333 = vmatpush1.msra.mxu0 %v3332
    %3334 = vmatprep.subr.mxu0 0.0
    %v3335 = vand.u32 %v147, 4294901760
    %v3336 = vsub.f32 %v147, %v3335
    %3337 = vmatpush1.msra.mxu0 %v3336
    %3338 = vmatprep.subr.mxu0 0.0
    %v3339 = vand.u32 %v146, 4294901760
    %v3340 = vsub.f32 %v146, %v3339
    %3341 = vmatpush1.msra.mxu0 %v3340
    %3342 = vmatprep.subr.mxu0 0.0
    %v3343 = vand.u32 %v145, 4294901760
    %v3344 = vsub.f32 %v145, %v3343
    %3345 = vmatpush1.msra.mxu0 %v3344
    %3346 = vmatprep.subr.mxu0 0.0
    %v3347 = vand.u32 %v144, 4294901760
    %v3348 = vsub.f32 %v144, %v3347
    %3349 = vmatpush1.msra.mxu0 %v3348
    %3350 = vmatprep.subr.mxu0 0.0
    %v3351 = vand.u32 %v143, 4294901760
    %v3352 = vsub.f32 %v143, %v3351
    %3353 = vmatpush1.msra.mxu0 %v3352
    %3354 = vmatprep.subr.mxu0 0.0
    %v3355 = vand.u32 %v142, 4294901760
    %v3356 = vsub.f32 %v142, %v3355
    %3357 = vmatpush1.msra.mxu0 %v3356
    %3358 = vmatprep.subr.mxu0 0.0
    %v3359 = vand.u32 %v141, 4294901760
    %v3360 = vsub.f32 %v141, %v3359
    %3361 = vmatpush1.msra.mxu0 %v3360
    %3362 = vmatprep.subr.mxu0 0.0
    %v3363 = vand.u32 %v140, 4294901760
    %v3364 = vsub.f32 %v140, %v3363
    %3365 = vmatpush1.msra.mxu0 %v3364
    %3366 = vmatprep.subr.mxu0 0.0
    %v3367 = vand.u32 %v139, 4294901760
    %v3368 = vsub.f32 %v139, %v3367
    %3369 = vmatpush1.msra.mxu0 %v3368
    %3370 = vmatprep.subr.mxu0 0.0
    %v3371 = vand.u32 %v138, 4294901760
    %v3372 = vsub.f32 %v138, %v3371
    %3373 = vmatpush1.msra.mxu0 %v3372
    %3374 = vmatprep.subr.mxu0 0.0
    %v3375 = vand.u32 %v169, 4294901760
    %v3376 = vsub.f32 %v169, %v3375
    %3377 = vmatpush2.msra.mxu0 %v3376
    %3378 = vmatprep.subr.mxu0 0.0
    %v3379 = vand.u32 %v168, 4294901760
    %v3380 = vsub.f32 %v168, %v3379
    %3381 = vmatpush2.msra.mxu0 %v3380
    %3382 = vmatprep.subr.mxu0 0.0
    %v3383 = vand.u32 %v167, 4294901760
    %v3384 = vsub.f32 %v167, %v3383
    %3385 = vmatpush2.msra.mxu0 %v3384
    %3386 = vmatprep.subr.mxu0 0.0
    %v3387 = vand.u32 %v166, 4294901760
    %v3388 = vsub.f32 %v166, %v3387
    %3389 = vmatpush2.msra.mxu0 %v3388
    %3390 = vmatprep.subr.mxu0 0.0
    %v3391 = vand.u32 %v165, 4294901760
    %v3392 = vsub.f32 %v165, %v3391
    %3393 = vmatpush2.msra.mxu0 %v3392
    %3394 = vmatprep.subr.mxu0 0.0
    %v3395 = vand.u32 %v164, 4294901760
    %v3396 = vsub.f32 %v164, %v3395
    %3397 = vmatpush2.msra.mxu0 %v3396
    %3398 = vmatprep.subr.mxu0 0.0
    %v3399 = vand.u32 %v163, 4294901760
    %v3400 = vsub.f32 %v163, %v3399
    %3401 = vmatpush2.msra.mxu0 %v3400
    %3402 = vmatprep.subr.mxu0 0.0
    %v3403 = vand.u32 %v162, 4294901760
    %v3404 = vsub.f32 %v162, %v3403
    %3405 = vmatpush2.msra.mxu0 %v3404
    %3406 = vmatprep.subr.mxu0 0.0
    %v3407 = vand.u32 %v161, 4294901760
    %v3408 = vsub.f32 %v161, %v3407
    %3409 = vmatpush2.msra.mxu0 %v3408
    %3410 = vmatprep.subr.mxu0 0.0
    %v3411 = vand.u32 %v160, 4294901760
    %v3412 = vsub.f32 %v160, %v3411
    %3413 = vmatpush2.msra.mxu0 %v3412
    %3414 = vmatprep.subr.mxu0 0.0
    %v3415 = vand.u32 %v159, 4294901760
    %v3416 = vsub.f32 %v159, %v3415
    %3417 = vmatpush2.msra.mxu0 %v3416
    %3418 = vmatprep.subr.mxu0 0.0
    %v3419 = vand.u32 %v158, 4294901760
    %v3420 = vsub.f32 %v158, %v3419
    %3421 = vmatpush2.msra.mxu0 %v3420
    %3422 = vmatprep.subr.mxu0 0.0
    %v3423 = vand.u32 %v157, 4294901760
    %v3424 = vsub.f32 %v157, %v3423
    %3425 = vmatpush2.msra.mxu0 %v3424
    %3426 = vmatprep.subr.mxu0 0.0
    %v3427 = vand.u32 %v156, 4294901760
    %v3428 = vsub.f32 %v156, %v3427
    %3429 = vmatpush2.msra.mxu0 %v3428
    %3430 = vmatprep.subr.mxu0 0.0
    %v3431 = vand.u32 %v155, 4294901760
    %v3432 = vsub.f32 %v155, %v3431
    %3433 = vmatpush2.msra.mxu0 %v3432
    %3434 = vmatprep.subr.mxu0 0.0
    %v3435 = vand.u32 %v154, 4294901760
    %v3436 = vsub.f32 %v154, %v3435
    %3437 = vmatpush2.msra.mxu0 %v3436
    %v3438 = vand.u32 %v331, 4294901760
    %v3439 = vsub.f32 %v331, %v3438
    %3440 = vmatprep.mubr.f32.mxu0 %v3439
    %v3441 = vand.u32 %v327, 4294901760
    %v3442 = vsub.f32 %v327, %v3441
    %3443 = vmatmul.mubr.f32.gmra.mxu0 %v3442
    %v3444 = vpop.f32.mrf.mxu0
    %v3445 = vadd.f32 %v3307, %v3444
    %v3446 = vpop.f32.mrf.mxu0
    %3447 = vdwg.mxu0
    %3448 = vmatprep.subr.mxu0 0.0
    %v3449 = vand.u32 %v153, 4294901760
    %3450 = vmatpush1.msra.mxu0 %v3449
    %3451 = vmatprep.subr.mxu0 0.0
    %v3452 = vand.u32 %v152, 4294901760
    %3453 = vmatpush1.msra.mxu0 %v3452
    %3454 = vmatprep.subr.mxu0 0.0
    %v3455 = vand.u32 %v151, 4294901760
    %3456 = vmatpush1.msra.mxu0 %v3455
    %3457 = vmatprep.subr.mxu0 0.0
    %v3458 = vand.u32 %v150, 4294901760
    %3459 = vmatpush1.msra.mxu0 %v3458
    %3460 = vmatprep.subr.mxu0 0.0
    %v3461 = vand.u32 %v149, 4294901760
    %3462 = vmatpush1.msra.mxu0 %v3461
    %3463 = vmatprep.subr.mxu0 0.0
    %v3464 = vand.u32 %v148, 4294901760
    %3465 = vmatpush1.msra.mxu0 %v3464
    %3466 = vmatprep.subr.mxu0 0.0
    %v3467 = vand.u32 %v147, 4294901760
    %3468 = vmatpush1.msra.mxu0 %v3467
    %3469 = vmatprep.subr.mxu0 0.0
    %v3470 = vand.u32 %v146, 4294901760
    %3471 = vmatpush1.msra.mxu0 %v3470
    %3472 = vmatprep.subr.mxu0 0.0
    %v3473 = vand.u32 %v145, 4294901760
    %3474 = vmatpush1.msra.mxu0 %v3473
    %3475 = vmatprep.subr.mxu0 0.0
    %v3476 = vand.u32 %v144, 4294901760
    %3477 = vmatpush1.msra.mxu0 %v3476
    %3478 = vmatprep.subr.mxu0 0.0
    %v3479 = vand.u32 %v143, 4294901760
    %3480 = vmatpush1.msra.mxu0 %v3479
    %3481 = vmatprep.subr.mxu0 0.0
    %v3482 = vand.u32 %v142, 4294901760
    %3483 = vmatpush1.msra.mxu0 %v3482
    %3484 = vmatprep.subr.mxu0 0.0
    %v3485 = vand.u32 %v141, 4294901760
    %3486 = vmatpush1.msra.mxu0 %v3485
    %3487 = vmatprep.subr.mxu0 0.0
    %v3488 = vand.u32 %v140, 4294901760
    %3489 = vmatpush1.msra.mxu0 %v3488
    %3490 = vmatprep.subr.mxu0 0.0
    %v3491 = vand.u32 %v139, 4294901760
    %3492 = vmatpush1.msra.mxu0 %v3491
    %3493 = vmatprep.subr.mxu0 0.0
    %v3494 = vand.u32 %v138, 4294901760
    %3495 = vmatpush1.msra.mxu0 %v3494
    %3496 = vmatprep.subr.mxu0 0.0
    %v3497 = vand.u32 %v169, 4294901760
    %3498 = vmatpush2.msra.mxu0 %v3497
    %3499 = vmatprep.subr.mxu0 0.0
    %v3500 = vand.u32 %v168, 4294901760
    %3501 = vmatpush2.msra.mxu0 %v3500
    %3502 = vmatprep.subr.mxu0 0.0
    %v3503 = vand.u32 %v167, 4294901760
    %3504 = vmatpush2.msra.mxu0 %v3503
    %3505 = vmatprep.subr.mxu0 0.0
    %v3506 = vand.u32 %v166, 4294901760
    %3507 = vmatpush2.msra.mxu0 %v3506
    %3508 = vmatprep.subr.mxu0 0.0
    %v3509 = vand.u32 %v165, 4294901760
    %3510 = vmatpush2.msra.mxu0 %v3509
    %3511 = vmatprep.subr.mxu0 0.0
    %v3512 = vand.u32 %v164, 4294901760
    %3513 = vmatpush2.msra.mxu0 %v3512
    %3514 = vmatprep.subr.mxu0 0.0
    %v3515 = vand.u32 %v163, 4294901760
    %3516 = vmatpush2.msra.mxu0 %v3515
    %3517 = vmatprep.subr.mxu0 0.0
    %v3518 = vand.u32 %v162, 4294901760
    %3519 = vmatpush2.msra.mxu0 %v3518
    %3520 = vmatprep.subr.mxu0 0.0
    %v3521 = vand.u32 %v161, 4294901760
    %3522 = vmatpush2.msra.mxu0 %v3521
    %3523 = vmatprep.subr.mxu0 0.0
    %v3524 = vand.u32 %v160, 4294901760
    %3525 = vmatpush2.msra.mxu0 %v3524
    %3526 = vmatprep.subr.mxu0 0.0
    %v3527 = vand.u32 %v159, 4294901760
    %3528 = vmatpush2.msra.mxu0 %v3527
    %3529 = vmatprep.subr.mxu0 0.0
    %v3530 = vand.u32 %v158, 4294901760
    %3531 = vmatpush2.msra.mxu0 %v3530
    %3532 = vmatprep.subr.mxu0 0.0
    %v3533 = vand.u32 %v157, 4294901760
    %3534 = vmatpush2.msra.mxu0 %v3533
    %3535 = vmatprep.subr.mxu0 0.0
    %v3536 = vand.u32 %v156, 4294901760
    %3537 = vmatpush2.msra.mxu0 %v3536
    %3538 = vmatprep.subr.mxu0 0.0
    %v3539 = vand.u32 %v155, 4294901760
    %3540 = vmatpush2.msra.mxu0 %v3539
    %3541 = vmatprep.subr.mxu0 0.0
    %v3542 = vand.u32 %v154, 4294901760
    %3543 = vmatpush2.msra.mxu0 %v3542
    %v3544 = vand.u32 %v331, 4294901760
    %v3545 = vsub.f32 %v331, %v3544
    %v3546 = vand.u32 %v3545, 4294901760
    %3547 = vmatprep.mubr.f32.mxu0 %v3546
    %v3548 = vand.u32 %v327, 4294901760
    %v3549 = vsub.f32 %v327, %v3548
    %v3550 = vand.u32 %v3549, 4294901760
    %3551 = vmatmul.mubr.f32.gmra.mxu0 %v3550
    %v3552 = vpop.f32.mrf.mxu0
    %v3553 = vadd.f32 %v3445, %v3552
    %v3554 = vpop.f32.mrf.mxu0
    %3555 = vdwg.mxu0
    %3556 = vmatprep.subr.mxu0 0.0
    %v3557 = vand.u32 %v153, 4294901760
    %v3558 = vsub.f32 %v153, %v3557
    %v3559 = vand.u32 %v3558, 4294901760
    %3560 = vmatpush1.msra.mxu0 %v3559
    %3561 = vmatprep.subr.mxu0 0.0
    %v3562 = vand.u32 %v152, 4294901760
    %v3563 = vsub.f32 %v152, %v3562
    %v3564 = vand.u32 %v3563, 4294901760
    %3565 = vmatpush1.msra.mxu0 %v3564
    %3566 = vmatprep.subr.mxu0 0.0
    %v3567 = vand.u32 %v151, 4294901760
    %v3568 = vsub.f32 %v151, %v3567
    %v3569 = vand.u32 %v3568, 4294901760
    %3570 = vmatpush1.msra.mxu0 %v3569
    %3571 = vmatprep.subr.mxu0 0.0
    %v3572 = vand.u32 %v150, 4294901760
    %v3573 = vsub.f32 %v150, %v3572
    %v3574 = vand.u32 %v3573, 4294901760
    %3575 = vmatpush1.msra.mxu0 %v3574
    %3576 = vmatprep.subr.mxu0 0.0
    %v3577 = vand.u32 %v149, 4294901760
    %v3578 = vsub.f32 %v149, %v3577
    %v3579 = vand.u32 %v3578, 4294901760
    %3580 = vmatpush1.msra.mxu0 %v3579
    %3581 = vmatprep.subr.mxu0 0.0
    %v3582 = vand.u32 %v148, 4294901760
    %v3583 = vsub.f32 %v148, %v3582
    %v3584 = vand.u32 %v3583, 4294901760
    %3585 = vmatpush1.msra.mxu0 %v3584
    %3586 = vmatprep.subr.mxu0 0.0
    %v3587 = vand.u32 %v147, 4294901760
    %v3588 = vsub.f32 %v147, %v3587
    %v3589 = vand.u32 %v3588, 4294901760
    %3590 = vmatpush1.msra.mxu0 %v3589
    %3591 = vmatprep.subr.mxu0 0.0
    %v3592 = vand.u32 %v146, 4294901760
    %v3593 = vsub.f32 %v146, %v3592
    %v3594 = vand.u32 %v3593, 4294901760
    %3595 = vmatpush1.msra.mxu0 %v3594
    %3596 = vmatprep.subr.mxu0 0.0
    %v3597 = vand.u32 %v145, 4294901760
    %v3598 = vsub.f32 %v145, %v3597
    %v3599 = vand.u32 %v3598, 4294901760
    %3600 = vmatpush1.msra.mxu0 %v3599
    %3601 = vmatprep.subr.mxu0 0.0
    %v3602 = vand.u32 %v144, 4294901760
    %v3603 = vsub.f32 %v144, %v3602
    %v3604 = vand.u32 %v3603, 4294901760
    %3605 = vmatpush1.msra.mxu0 %v3604
    %3606 = vmatprep.subr.mxu0 0.0
    %v3607 = vand.u32 %v143, 4294901760
    %v3608 = vsub.f32 %v143, %v3607
    %v3609 = vand.u32 %v3608, 4294901760
    %3610 = vmatpush1.msra.mxu0 %v3609
    %3611 = vmatprep.subr.mxu0 0.0
    %v3612 = vand.u32 %v142, 4294901760
    %v3613 = vsub.f32 %v142, %v3612
    %v3614 = vand.u32 %v3613, 4294901760
    %3615 = vmatpush1.msra.mxu0 %v3614
    %3616 = vmatprep.subr.mxu0 0.0
    %v3617 = vand.u32 %v141, 4294901760
    %v3618 = vsub.f32 %v141, %v3617
    %v3619 = vand.u32 %v3618, 4294901760
    %3620 = vmatpush1.msra.mxu0 %v3619
    %3621 = vmatprep.subr.mxu0 0.0
    %v3622 = vand.u32 %v140, 4294901760
    %v3623 = vsub.f32 %v140, %v3622
    %v3624 = vand.u32 %v3623, 4294901760
    %3625 = vmatpush1.msra.mxu0 %v3624
    %3626 = vmatprep.subr.mxu0 0.0
    %v3627 = vand.u32 %v139, 4294901760
    %v3628 = vsub.f32 %v139, %v3627
    %v3629 = vand.u32 %v3628, 4294901760
    %3630 = vmatpush1.msra.mxu0 %v3629
    %3631 = vmatprep.subr.mxu0 0.0
    %v3632 = vand.u32 %v138, 4294901760
    %v3633 = vsub.f32 %v138, %v3632
    %v3634 = vand.u32 %v3633, 4294901760
    %3635 = vmatpush1.msra.mxu0 %v3634
    %3636 = vmatprep.subr.mxu0 0.0
    %v3637 = vand.u32 %v169, 4294901760
    %v3638 = vsub.f32 %v169, %v3637
    %v3639 = vand.u32 %v3638, 4294901760
    %3640 = vmatpush2.msra.mxu0 %v3639
    %3641 = vmatprep.subr.mxu0 0.0
    %v3642 = vand.u32 %v168, 4294901760
    %v3643 = vsub.f32 %v168, %v3642
    %v3644 = vand.u32 %v3643, 4294901760
    %3645 = vmatpush2.msra.mxu0 %v3644
    %3646 = vmatprep.subr.mxu0 0.0
    %v3647 = vand.u32 %v167, 4294901760
    %v3648 = vsub.f32 %v167, %v3647
    %v3649 = vand.u32 %v3648, 4294901760
    %3650 = vmatpush2.msra.mxu0 %v3649
    %3651 = vmatprep.subr.mxu0 0.0
    %v3652 = vand.u32 %v166, 4294901760
    %v3653 = vsub.f32 %v166, %v3652
    %v3654 = vand.u32 %v3653, 4294901760
    %3655 = vmatpush2.msra.mxu0 %v3654
    %3656 = vmatprep.subr.mxu0 0.0
    %v3657 = vand.u32 %v165, 4294901760
    %v3658 = vsub.f32 %v165, %v3657
    %v3659 = vand.u32 %v3658, 4294901760
    %3660 = vmatpush2.msra.mxu0 %v3659
    %3661 = vmatprep.subr.mxu0 0.0
    %v3662 = vand.u32 %v164, 4294901760
    %v3663 = vsub.f32 %v164, %v3662
    %v3664 = vand.u32 %v3663, 4294901760
    %3665 = vmatpush2.msra.mxu0 %v3664
    %3666 = vmatprep.subr.mxu0 0.0
    %v3667 = vand.u32 %v163, 4294901760
    %v3668 = vsub.f32 %v163, %v3667
    %v3669 = vand.u32 %v3668, 4294901760
    %3670 = vmatpush2.msra.mxu0 %v3669
    %3671 = vmatprep.subr.mxu0 0.0
    %v3672 = vand.u32 %v162, 4294901760
    %v3673 = vsub.f32 %v162, %v3672
    %v3674 = vand.u32 %v3673, 4294901760
    %3675 = vmatpush2.msra.mxu0 %v3674
    %3676 = vmatprep.subr.mxu0 0.0
    %v3677 = vand.u32 %v161, 4294901760
    %v3678 = vsub.f32 %v161, %v3677
    %v3679 = vand.u32 %v3678, 4294901760
    %3680 = vmatpush2.msra.mxu0 %v3679
    %3681 = vmatprep.subr.mxu0 0.0
    %v3682 = vand.u32 %v160, 4294901760
    %v3683 = vsub.f32 %v160, %v3682
    %v3684 = vand.u32 %v3683, 4294901760
    %3685 = vmatpush2.msra.mxu0 %v3684
    %3686 = vmatprep.subr.mxu0 0.0
    %v3687 = vand.u32 %v159, 4294901760
    %v3688 = vsub.f32 %v159, %v3687
    %v3689 = vand.u32 %v3688, 4294901760
    %3690 = vmatpush2.msra.mxu0 %v3689
    %3691 = vmatprep.subr.mxu0 0.0
    %v3692 = vand.u32 %v158, 4294901760
    %v3693 = vsub.f32 %v158, %v3692
    %v3694 = vand.u32 %v3693, 4294901760
    %3695 = vmatpush2.msra.mxu0 %v3694
    %3696 = vmatprep.subr.mxu0 0.0
    %v3697 = vand.u32 %v157, 4294901760
    %v3698 = vsub.f32 %v157, %v3697
    %v3699 = vand.u32 %v3698, 4294901760
    %3700 = vmatpush2.msra.mxu0 %v3699
    %3701 = vmatprep.subr.mxu0 0.0
    %v3702 = vand.u32 %v156, 4294901760
    %v3703 = vsub.f32 %v156, %v3702
    %v3704 = vand.u32 %v3703, 4294901760
    %3705 = vmatpush2.msra.mxu0 %v3704
    %3706 = vmatprep.subr.mxu0 0.0
    %v3707 = vand.u32 %v155, 4294901760
    %v3708 = vsub.f32 %v155, %v3707
    %v3709 = vand.u32 %v3708, 4294901760
    %3710 = vmatpush2.msra.mxu0 %v3709
    %3711 = vmatprep.subr.mxu0 0.0
    %v3712 = vand.u32 %v154, 4294901760
    %v3713 = vsub.f32 %v154, %v3712
    %v3714 = vand.u32 %v3713, 4294901760
    %3715 = vmatpush2.msra.mxu0 %v3714
    %v3716 = vand.u32 %v331, 4294901760
    %3717 = vmatprep.mubr.f32.mxu0 %v3716
    %v3718 = vand.u32 %v327, 4294901760
    %3719 = vmatmul.mubr.f32.gmra.mxu0 %v3718
    %v3720 = vpop.f32.mrf.mxu0
    %v3721 = vadd.f32 %v3553, %v3720
    %v3722 = vpop.f32.mrf.mxu0
    %3723 = vdwg.mxu0
    %3724 = vmatprep.subr.mxu0 0.0
    %v3725 = vand.u32 %v153, 4294901760
    %3726 = vmatpush1.msra.mxu0 %v3725
    %3727 = vmatprep.subr.mxu0 0.0
    %v3728 = vand.u32 %v152, 4294901760
    %3729 = vmatpush1.msra.mxu0 %v3728
    %3730 = vmatprep.subr.mxu0 0.0
    %v3731 = vand.u32 %v151, 4294901760
    %3732 = vmatpush1.msra.mxu0 %v3731
    %3733 = vmatprep.subr.mxu0 0.0
    %v3734 = vand.u32 %v150, 4294901760
    %3735 = vmatpush1.msra.mxu0 %v3734
    %3736 = vmatprep.subr.mxu0 0.0
    %v3737 = vand.u32 %v149, 4294901760
    %3738 = vmatpush1.msra.mxu0 %v3737
    %3739 = vmatprep.subr.mxu0 0.0
    %v3740 = vand.u32 %v148, 4294901760
    %3741 = vmatpush1.msra.mxu0 %v3740
    %3742 = vmatprep.subr.mxu0 0.0
    %v3743 = vand.u32 %v147, 4294901760
    %3744 = vmatpush1.msra.mxu0 %v3743
    %3745 = vmatprep.subr.mxu0 0.0
    %v3746 = vand.u32 %v146, 4294901760
    %3747 = vmatpush1.msra.mxu0 %v3746
    %3748 = vmatprep.subr.mxu0 0.0
    %v3749 = vand.u32 %v145, 4294901760
    %3750 = vmatpush1.msra.mxu0 %v3749
    %3751 = vmatprep.subr.mxu0 0.0
    %v3752 = vand.u32 %v144, 4294901760
    %3753 = vmatpush1.msra.mxu0 %v3752
    %3754 = vmatprep.subr.mxu0 0.0
    %v3755 = vand.u32 %v143, 4294901760
    %3756 = vmatpush1.msra.mxu0 %v3755
    %3757 = vmatprep.subr.mxu0 0.0
    %v3758 = vand.u32 %v142, 4294901760
    %3759 = vmatpush1.msra.mxu0 %v3758
    %3760 = vmatprep.subr.mxu0 0.0
    %v3761 = vand.u32 %v141, 4294901760
    %3762 = vmatpush1.msra.mxu0 %v3761
    %3763 = vmatprep.subr.mxu0 0.0
    %v3764 = vand.u32 %v140, 4294901760
    %3765 = vmatpush1.msra.mxu0 %v3764
    %3766 = vmatprep.subr.mxu0 0.0
    %v3767 = vand.u32 %v139, 4294901760
    %3768 = vmatpush1.msra.mxu0 %v3767
    %3769 = vmatprep.subr.mxu0 0.0
    %v3770 = vand.u32 %v138, 4294901760
    %3771 = vmatpush1.msra.mxu0 %v3770
    %3772 = vmatprep.subr.mxu0 0.0
    %v3773 = vand.u32 %v169, 4294901760
    %3774 = vmatpush2.msra.mxu0 %v3773
    %3775 = vmatprep.subr.mxu0 0.0
    %v3776 = vand.u32 %v168, 4294901760
    %3777 = vmatpush2.msra.mxu0 %v3776
    %3778 = vmatprep.subr.mxu0 0.0
    %v3779 = vand.u32 %v167, 4294901760
    %3780 = vmatpush2.msra.mxu0 %v3779
    %3781 = vmatprep.subr.mxu0 0.0
    %v3782 = vand.u32 %v166, 4294901760
    %3783 = vmatpush2.msra.mxu0 %v3782
    %3784 = vmatprep.subr.mxu0 0.0
    %v3785 = vand.u32 %v165, 4294901760
    %3786 = vmatpush2.msra.mxu0 %v3785
    %3787 = vmatprep.subr.mxu0 0.0
    %v3788 = vand.u32 %v164, 4294901760
    %3789 = vmatpush2.msra.mxu0 %v3788
    %3790 = vmatprep.subr.mxu0 0.0
    %v3791 = vand.u32 %v163, 4294901760
    %3792 = vmatpush2.msra.mxu0 %v3791
    %3793 = vmatprep.subr.mxu0 0.0
    %v3794 = vand.u32 %v162, 4294901760
    %3795 = vmatpush2.msra.mxu0 %v3794
    %3796 = vmatprep.subr.mxu0 0.0
    %v3797 = vand.u32 %v161, 4294901760
    %3798 = vmatpush2.msra.mxu0 %v3797
    %3799 = vmatprep.subr.mxu0 0.0
    %v3800 = vand.u32 %v160, 4294901760
    %3801 = vmatpush2.msra.mxu0 %v3800
    %3802 = vmatprep.subr.mxu0 0.0
    %v3803 = vand.u32 %v159, 4294901760
    %3804 = vmatpush2.msra.mxu0 %v3803
    %3805 = vmatprep.subr.mxu0 0.0
    %v3806 = vand.u32 %v158, 4294901760
    %3807 = vmatpush2.msra.mxu0 %v3806
    %3808 = vmatprep.subr.mxu0 0.0
    %v3809 = vand.u32 %v157, 4294901760
    %3810 = vmatpush2.msra.mxu0 %v3809
    %3811 = vmatprep.subr.mxu0 0.0
    %v3812 = vand.u32 %v156, 4294901760
    %3813 = vmatpush2.msra.mxu0 %v3812
    %3814 = vmatprep.subr.mxu0 0.0
    %v3815 = vand.u32 %v155, 4294901760
    %3816 = vmatpush2.msra.mxu0 %v3815
    %3817 = vmatprep.subr.mxu0 0.0
    %v3818 = vand.u32 %v154, 4294901760
    %3819 = vmatpush2.msra.mxu0 %v3818
    %v3820 = vand.u32 %v331, 4294901760
    %3821 = vmatprep.mubr.f32.mxu0 %v3820
    %v3822 = vand.u32 %v327, 4294901760
    %3823 = vmatmul.mubr.f32.gmra.mxu0 %v3822
    %v3824 = vpop.f32.mrf.mxu0
    %v3825 = vadd.f32 %v3721, %v3824
    %v3826 = vpop.f32.mrf.mxu0
    %3827 = vdwg.mxu0
    %3828 = vmatprep.subr.mxu0 0.0
    %v3829 = vand.u32 %v185, 4294901760
    %3830 = vmatpush1.msra.mxu0 %v3829
    %3831 = vmatprep.subr.mxu0 0.0
    %v3832 = vand.u32 %v184, 4294901760
    %3833 = vmatpush1.msra.mxu0 %v3832
    %3834 = vmatprep.subr.mxu0 0.0
    %v3835 = vand.u32 %v183, 4294901760
    %3836 = vmatpush1.msra.mxu0 %v3835
    %3837 = vmatprep.subr.mxu0 0.0
    %v3838 = vand.u32 %v182, 4294901760
    %3839 = vmatpush1.msra.mxu0 %v3838
    %3840 = vmatprep.subr.mxu0 0.0
    %v3841 = vand.u32 %v181, 4294901760
    %3842 = vmatpush1.msra.mxu0 %v3841
    %3843 = vmatprep.subr.mxu0 0.0
    %v3844 = vand.u32 %v180, 4294901760
    %3845 = vmatpush1.msra.mxu0 %v3844
    %3846 = vmatprep.subr.mxu0 0.0
    %v3847 = vand.u32 %v179, 4294901760
    %3848 = vmatpush1.msra.mxu0 %v3847
    %3849 = vmatprep.subr.mxu0 0.0
    %v3850 = vand.u32 %v178, 4294901760
    %3851 = vmatpush1.msra.mxu0 %v3850
    %3852 = vmatprep.subr.mxu0 0.0
    %v3853 = vand.u32 %v177, 4294901760
    %3854 = vmatpush1.msra.mxu0 %v3853
    %3855 = vmatprep.subr.mxu0 0.0
    %v3856 = vand.u32 %v176, 4294901760
    %3857 = vmatpush1.msra.mxu0 %v3856
    %3858 = vmatprep.subr.mxu0 0.0
    %v3859 = vand.u32 %v175, 4294901760
    %3860 = vmatpush1.msra.mxu0 %v3859
    %3861 = vmatprep.subr.mxu0 0.0
    %v3862 = vand.u32 %v174, 4294901760
    %3863 = vmatpush1.msra.mxu0 %v3862
    %3864 = vmatprep.subr.mxu0 0.0
    %v3865 = vand.u32 %v173, 4294901760
    %3866 = vmatpush1.msra.mxu0 %v3865
    %3867 = vmatprep.subr.mxu0 0.0
    %v3868 = vand.u32 %v172, 4294901760
    %3869 = vmatpush1.msra.mxu0 %v3868
    %3870 = vmatprep.subr.mxu0 0.0
    %v3871 = vand.u32 %v171, 4294901760
    %3872 = vmatpush1.msra.mxu0 %v3871
    %3873 = vmatprep.subr.mxu0 0.0
    %v3874 = vand.u32 %v170, 4294901760
    %3875 = vmatpush1.msra.mxu0 %v3874
    %3876 = vmatprep.subr.mxu0 0.0
    %v3877 = vand.u32 %v201, 4294901760
    %3878 = vmatpush2.msra.mxu0 %v3877
    %3879 = vmatprep.subr.mxu0 0.0
    %v3880 = vand.u32 %v200, 4294901760
    %3881 = vmatpush2.msra.mxu0 %v3880
    %3882 = vmatprep.subr.mxu0 0.0
    %v3883 = vand.u32 %v199, 4294901760
    %3884 = vmatpush2.msra.mxu0 %v3883
    %3885 = vmatprep.subr.mxu0 0.0
    %v3886 = vand.u32 %v198, 4294901760
    %3887 = vmatpush2.msra.mxu0 %v3886
    %3888 = vmatprep.subr.mxu0 0.0
    %v3889 = vand.u32 %v197, 4294901760
    %3890 = vmatpush2.msra.mxu0 %v3889
    %3891 = vmatprep.subr.mxu0 0.0
    %v3892 = vand.u32 %v196, 4294901760
    %3893 = vmatpush2.msra.mxu0 %v3892
    %3894 = vmatprep.subr.mxu0 0.0
    %v3895 = vand.u32 %v195, 4294901760
    %3896 = vmatpush2.msra.mxu0 %v3895
    %3897 = vmatprep.subr.mxu0 0.0
    %v3898 = vand.u32 %v194, 4294901760
    %3899 = vmatpush2.msra.mxu0 %v3898
    %3900 = vmatprep.subr.mxu0 0.0
    %v3901 = vand.u32 %v193, 4294901760
    %3902 = vmatpush2.msra.mxu0 %v3901
    %3903 = vmatprep.subr.mxu0 0.0
    %v3904 = vand.u32 %v192, 4294901760
    %3905 = vmatpush2.msra.mxu0 %v3904
    %3906 = vmatprep.subr.mxu0 0.0
    %v3907 = vand.u32 %v191, 4294901760
    %3908 = vmatpush2.msra.mxu0 %v3907
    %3909 = vmatprep.subr.mxu0 0.0
    %v3910 = vand.u32 %v190, 4294901760
    %3911 = vmatpush2.msra.mxu0 %v3910
    %3912 = vmatprep.subr.mxu0 0.0
    %v3913 = vand.u32 %v189, 4294901760
    %3914 = vmatpush2.msra.mxu0 %v3913
    %3915 = vmatprep.subr.mxu0 0.0
    %v3916 = vand.u32 %v188, 4294901760
    %3917 = vmatpush2.msra.mxu0 %v3916
    %3918 = vmatprep.subr.mxu0 0.0
    %v3919 = vand.u32 %v187, 4294901760
    %3920 = vmatpush2.msra.mxu0 %v3919
    %3921 = vmatprep.subr.mxu0 0.0
    %v3922 = vand.u32 %v186, 4294901760
    %3923 = vmatpush2.msra.mxu0 %v3922
    %v3924 = vand.u32 %v339, 4294901760
    %v3925 = vsub.f32 %v339, %v3924
    %v3926 = vand.u32 %v3925, 4294901760
    %v3927 = vsub.f32 %v3925, %v3926
    %v3928 = vand.u32 %v3927, 4294901760
    %3929 = vmatprep.mubr.f32.mxu0 %v3928
    %v3930 = vand.u32 %v335, 4294901760
    %v3931 = vsub.f32 %v335, %v3930
    %v3932 = vand.u32 %v3931, 4294901760
    %v3933 = vsub.f32 %v3931, %v3932
    %v3934 = vand.u32 %v3933, 4294901760
    %3935 = vmatmul.mubr.f32.gmra.mxu0 %v3934
    %v3936 = vpop.f32.mrf.mxu0
    %v3937 = vadd.f32 %v3825, %v3936
    %v3938 = vpop.f32.mrf.mxu0
    %3939 = vdwg.mxu0
    %3940 = vmatprep.subr.mxu0 0.0
    %v3941 = vand.u32 %v185, 4294901760
    %v3942 = vsub.f32 %v185, %v3941
    %v3943 = vand.u32 %v3942, 4294901760
    %v3944 = vsub.f32 %v3942, %v3943
    %v3945 = vand.u32 %v3944, 4294901760
    %3946 = vmatpush1.msra.mxu0 %v3945
    %3947 = vmatprep.subr.mxu0 0.0
    %v3948 = vand.u32 %v184, 4294901760
    %v3949 = vsub.f32 %v184, %v3948
    %v3950 = vand.u32 %v3949, 4294901760
    %v3951 = vsub.f32 %v3949, %v3950
    %v3952 = vand.u32 %v3951, 4294901760
    %3953 = vmatpush1.msra.mxu0 %v3952
    %3954 = vmatprep.subr.mxu0 0.0
    %v3955 = vand.u32 %v183, 4294901760
    %v3956 = vsub.f32 %v183, %v3955
    %v3957 = vand.u32 %v3956, 4294901760
    %v3958 = vsub.f32 %v3956, %v3957
    %v3959 = vand.u32 %v3958, 4294901760
    %3960 = vmatpush1.msra.mxu0 %v3959
    %3961 = vmatprep.subr.mxu0 0.0
    %v3962 = vand.u32 %v182, 4294901760
    %v3963 = vsub.f32 %v182, %v3962
    %v3964 = vand.u32 %v3963, 4294901760
    %v3965 = vsub.f32 %v3963, %v3964
    %v3966 = vand.u32 %v3965, 4294901760
    %3967 = vmatpush1.msra.mxu0 %v3966
    %3968 = vmatprep.subr.mxu0 0.0
    %v3969 = vand.u32 %v181, 4294901760
    %v3970 = vsub.f32 %v181, %v3969
    %v3971 = vand.u32 %v3970, 4294901760
    %v3972 = vsub.f32 %v3970, %v3971
    %v3973 = vand.u32 %v3972, 4294901760
    %3974 = vmatpush1.msra.mxu0 %v3973
    %3975 = vmatprep.subr.mxu0 0.0
    %v3976 = vand.u32 %v180, 4294901760
    %v3977 = vsub.f32 %v180, %v3976
    %v3978 = vand.u32 %v3977, 4294901760
    %v3979 = vsub.f32 %v3977, %v3978
    %v3980 = vand.u32 %v3979, 4294901760
    %3981 = vmatpush1.msra.mxu0 %v3980
    %3982 = vmatprep.subr.mxu0 0.0
    %v3983 = vand.u32 %v179, 4294901760
    %v3984 = vsub.f32 %v179, %v3983
    %v3985 = vand.u32 %v3984, 4294901760
    %v3986 = vsub.f32 %v3984, %v3985
    %v3987 = vand.u32 %v3986, 4294901760
    %3988 = vmatpush1.msra.mxu0 %v3987
    %3989 = vmatprep.subr.mxu0 0.0
    %v3990 = vand.u32 %v178, 4294901760
    %v3991 = vsub.f32 %v178, %v3990
    %v3992 = vand.u32 %v3991, 4294901760
    %v3993 = vsub.f32 %v3991, %v3992
    %v3994 = vand.u32 %v3993, 4294901760
    %3995 = vmatpush1.msra.mxu0 %v3994
    %3996 = vmatprep.subr.mxu0 0.0
    %v3997 = vand.u32 %v177, 4294901760
    %v3998 = vsub.f32 %v177, %v3997
    %v3999 = vand.u32 %v3998, 4294901760
    %v4000 = vsub.f32 %v3998, %v3999
    %v4001 = vand.u32 %v4000, 4294901760
    %4002 = vmatpush1.msra.mxu0 %v4001
    %4003 = vmatprep.subr.mxu0 0.0
    %v4004 = vand.u32 %v176, 4294901760
    %v4005 = vsub.f32 %v176, %v4004
    %v4006 = vand.u32 %v4005, 4294901760
    %v4007 = vsub.f32 %v4005, %v4006
    %v4008 = vand.u32 %v4007, 4294901760
    %4009 = vmatpush1.msra.mxu0 %v4008
    %4010 = vmatprep.subr.mxu0 0.0
    %v4011 = vand.u32 %v175, 4294901760
    %v4012 = vsub.f32 %v175, %v4011
    %v4013 = vand.u32 %v4012, 4294901760
    %v4014 = vsub.f32 %v4012, %v4013
    %v4015 = vand.u32 %v4014, 4294901760
    %4016 = vmatpush1.msra.mxu0 %v4015
    %4017 = vmatprep.subr.mxu0 0.0
    %v4018 = vand.u32 %v174, 4294901760
    %v4019 = vsub.f32 %v174, %v4018
    %v4020 = vand.u32 %v4019, 4294901760
    %v4021 = vsub.f32 %v4019, %v4020
    %v4022 = vand.u32 %v4021, 4294901760
    %4023 = vmatpush1.msra.mxu0 %v4022
    %4024 = vmatprep.subr.mxu0 0.0
    %v4025 = vand.u32 %v173, 4294901760
    %v4026 = vsub.f32 %v173, %v4025
    %v4027 = vand.u32 %v4026, 4294901760
    %v4028 = vsub.f32 %v4026, %v4027
    %v4029 = vand.u32 %v4028, 4294901760
    %4030 = vmatpush1.msra.mxu0 %v4029
    %4031 = vmatprep.subr.mxu0 0.0
    %v4032 = vand.u32 %v172, 4294901760
    %v4033 = vsub.f32 %v172, %v4032
    %v4034 = vand.u32 %v4033, 4294901760
    %v4035 = vsub.f32 %v4033, %v4034
    %v4036 = vand.u32 %v4035, 4294901760
    %4037 = vmatpush1.msra.mxu0 %v4036
    %4038 = vmatprep.subr.mxu0 0.0
    %v4039 = vand.u32 %v171, 4294901760
    %v4040 = vsub.f32 %v171, %v4039
    %v4041 = vand.u32 %v4040, 4294901760
    %v4042 = vsub.f32 %v4040, %v4041
    %v4043 = vand.u32 %v4042, 4294901760
    %4044 = vmatpush1.msra.mxu0 %v4043
    %4045 = vmatprep.subr.mxu0 0.0
    %v4046 = vand.u32 %v170, 4294901760
    %v4047 = vsub.f32 %v170, %v4046
    %v4048 = vand.u32 %v4047, 4294901760
    %v4049 = vsub.f32 %v4047, %v4048
    %v4050 = vand.u32 %v4049, 4294901760
    %4051 = vmatpush1.msra.mxu0 %v4050
    %4052 = vmatprep.subr.mxu0 0.0
    %v4053 = vand.u32 %v201, 4294901760
    %v4054 = vsub.f32 %v201, %v4053
    %v4055 = vand.u32 %v4054, 4294901760
    %v4056 = vsub.f32 %v4054, %v4055
    %v4057 = vand.u32 %v4056, 4294901760
    %4058 = vmatpush2.msra.mxu0 %v4057
    %4059 = vmatprep.subr.mxu0 0.0
    %v4060 = vand.u32 %v200, 4294901760
    %v4061 = vsub.f32 %v200, %v4060
    %v4062 = vand.u32 %v4061, 4294901760
    %v4063 = vsub.f32 %v4061, %v4062
    %v4064 = vand.u32 %v4063, 4294901760
    %4065 = vmatpush2.msra.mxu0 %v4064
    %4066 = vmatprep.subr.mxu0 0.0
    %v4067 = vand.u32 %v199, 4294901760
    %v4068 = vsub.f32 %v199, %v4067
    %v4069 = vand.u32 %v4068, 4294901760
    %v4070 = vsub.f32 %v4068, %v4069
    %v4071 = vand.u32 %v4070, 4294901760
    %4072 = vmatpush2.msra.mxu0 %v4071
    %4073 = vmatprep.subr.mxu0 0.0
    %v4074 = vand.u32 %v198, 4294901760
    %v4075 = vsub.f32 %v198, %v4074
    %v4076 = vand.u32 %v4075, 4294901760
    %v4077 = vsub.f32 %v4075, %v4076
    %v4078 = vand.u32 %v4077, 4294901760
    %4079 = vmatpush2.msra.mxu0 %v4078
    %4080 = vmatprep.subr.mxu0 0.0
    %v4081 = vand.u32 %v197, 4294901760
    %v4082 = vsub.f32 %v197, %v4081
    %v4083 = vand.u32 %v4082, 4294901760
    %v4084 = vsub.f32 %v4082, %v4083
    %v4085 = vand.u32 %v4084, 4294901760
    %4086 = vmatpush2.msra.mxu0 %v4085
    %4087 = vmatprep.subr.mxu0 0.0
    %v4088 = vand.u32 %v196, 4294901760
    %v4089 = vsub.f32 %v196, %v4088
    %v4090 = vand.u32 %v4089, 4294901760
    %v4091 = vsub.f32 %v4089, %v4090
    %v4092 = vand.u32 %v4091, 4294901760
    %4093 = vmatpush2.msra.mxu0 %v4092
    %4094 = vmatprep.subr.mxu0 0.0
    %v4095 = vand.u32 %v195, 4294901760
    %v4096 = vsub.f32 %v195, %v4095
    %v4097 = vand.u32 %v4096, 4294901760
    %v4098 = vsub.f32 %v4096, %v4097
    %v4099 = vand.u32 %v4098, 4294901760
    %4100 = vmatpush2.msra.mxu0 %v4099
    %4101 = vmatprep.subr.mxu0 0.0
    %v4102 = vand.u32 %v194, 4294901760
    %v4103 = vsub.f32 %v194, %v4102
    %v4104 = vand.u32 %v4103, 4294901760
    %v4105 = vsub.f32 %v4103, %v4104
    %v4106 = vand.u32 %v4105, 4294901760
    %4107 = vmatpush2.msra.mxu0 %v4106
    %4108 = vmatprep.subr.mxu0 0.0
    %v4109 = vand.u32 %v193, 4294901760
    %v4110 = vsub.f32 %v193, %v4109
    %v4111 = vand.u32 %v4110, 4294901760
    %v4112 = vsub.f32 %v4110, %v4111
    %v4113 = vand.u32 %v4112, 4294901760
    %4114 = vmatpush2.msra.mxu0 %v4113
    %4115 = vmatprep.subr.mxu0 0.0
    %v4116 = vand.u32 %v192, 4294901760
    %v4117 = vsub.f32 %v192, %v4116
    %v4118 = vand.u32 %v4117, 4294901760
    %v4119 = vsub.f32 %v4117, %v4118
    %v4120 = vand.u32 %v4119, 4294901760
    %4121 = vmatpush2.msra.mxu0 %v4120
    %4122 = vmatprep.subr.mxu0 0.0
    %v4123 = vand.u32 %v191, 4294901760
    %v4124 = vsub.f32 %v191, %v4123
    %v4125 = vand.u32 %v4124, 4294901760
    %v4126 = vsub.f32 %v4124, %v4125
    %v4127 = vand.u32 %v4126, 4294901760
    %4128 = vmatpush2.msra.mxu0 %v4127
    %4129 = vmatprep.subr.mxu0 0.0
    %v4130 = vand.u32 %v190, 4294901760
    %v4131 = vsub.f32 %v190, %v4130
    %v4132 = vand.u32 %v4131, 4294901760
    %v4133 = vsub.f32 %v4131, %v4132
    %v4134 = vand.u32 %v4133, 4294901760
    %4135 = vmatpush2.msra.mxu0 %v4134
    %4136 = vmatprep.subr.mxu0 0.0
    %v4137 = vand.u32 %v189, 4294901760
    %v4138 = vsub.f32 %v189, %v4137
    %v4139 = vand.u32 %v4138, 4294901760
    %v4140 = vsub.f32 %v4138, %v4139
    %v4141 = vand.u32 %v4140, 4294901760
    %4142 = vmatpush2.msra.mxu0 %v4141
    %4143 = vmatprep.subr.mxu0 0.0
    %v4144 = vand.u32 %v188, 4294901760
    %v4145 = vsub.f32 %v188, %v4144
    %v4146 = vand.u32 %v4145, 4294901760
    %v4147 = vsub.f32 %v4145, %v4146
    %v4148 = vand.u32 %v4147, 4294901760
    %4149 = vmatpush2.msra.mxu0 %v4148
    %4150 = vmatprep.subr.mxu0 0.0
    %v4151 = vand.u32 %v187, 4294901760
    %v4152 = vsub.f32 %v187, %v4151
    %v4153 = vand.u32 %v4152, 4294901760
    %v4154 = vsub.f32 %v4152, %v4153
    %v4155 = vand.u32 %v4154, 4294901760
    %4156 = vmatpush2.msra.mxu0 %v4155
    %4157 = vmatprep.subr.mxu0 0.0
    %v4158 = vand.u32 %v186, 4294901760
    %v4159 = vsub.f32 %v186, %v4158
    %v4160 = vand.u32 %v4159, 4294901760
    %v4161 = vsub.f32 %v4159, %v4160
    %v4162 = vand.u32 %v4161, 4294901760
    %4163 = vmatpush2.msra.mxu0 %v4162
    %v4164 = vand.u32 %v339, 4294901760
    %4165 = vmatprep.mubr.f32.mxu0 %v4164
    %v4166 = vand.u32 %v335, 4294901760
    %4167 = vmatmul.mubr.f32.gmra.mxu0 %v4166
    %v4168 = vpop.f32.mrf.mxu0
    %v4169 = vadd.f32 %v3937, %v4168
    %v4170 = vpop.f32.mrf.mxu0
    %4171 = vdwg.mxu0
    %4172 = vmatprep.subr.mxu0 0.0
    %v4173 = vand.u32 %v185, 4294901760
    %v4174 = vsub.f32 %v185, %v4173
    %4175 = vmatpush1.msra.mxu0 %v4174
    %4176 = vmatprep.subr.mxu0 0.0
    %v4177 = vand.u32 %v184, 4294901760
    %v4178 = vsub.f32 %v184, %v4177
    %4179 = vmatpush1.msra.mxu0 %v4178
    %4180 = vmatprep.subr.mxu0 0.0
    %v4181 = vand.u32 %v183, 4294901760
    %v4182 = vsub.f32 %v183, %v4181
    %4183 = vmatpush1.msra.mxu0 %v4182
    %4184 = vmatprep.subr.mxu0 0.0
    %v4185 = vand.u32 %v182, 4294901760
    %v4186 = vsub.f32 %v182, %v4185
    %4187 = vmatpush1.msra.mxu0 %v4186
    %4188 = vmatprep.subr.mxu0 0.0
    %v4189 = vand.u32 %v181, 4294901760
    %v4190 = vsub.f32 %v181, %v4189
    %4191 = vmatpush1.msra.mxu0 %v4190
    %4192 = vmatprep.subr.mxu0 0.0
    %v4193 = vand.u32 %v180, 4294901760
    %v4194 = vsub.f32 %v180, %v4193
    %4195 = vmatpush1.msra.mxu0 %v4194
    %4196 = vmatprep.subr.mxu0 0.0
    %v4197 = vand.u32 %v179, 4294901760
    %v4198 = vsub.f32 %v179, %v4197
    %4199 = vmatpush1.msra.mxu0 %v4198
    %4200 = vmatprep.subr.mxu0 0.0
    %v4201 = vand.u32 %v178, 4294901760
    %v4202 = vsub.f32 %v178, %v4201
    %4203 = vmatpush1.msra.mxu0 %v4202
    %4204 = vmatprep.subr.mxu0 0.0
    %v4205 = vand.u32 %v177, 4294901760
    %v4206 = vsub.f32 %v177, %v4205
    %4207 = vmatpush1.msra.mxu0 %v4206
    %4208 = vmatprep.subr.mxu0 0.0
    %v4209 = vand.u32 %v176, 4294901760
    %v4210 = vsub.f32 %v176, %v4209
    %4211 = vmatpush1.msra.mxu0 %v4210
    %4212 = vmatprep.subr.mxu0 0.0
    %v4213 = vand.u32 %v175, 4294901760
    %v4214 = vsub.f32 %v175, %v4213
    %4215 = vmatpush1.msra.mxu0 %v4214
    %4216 = vmatprep.subr.mxu0 0.0
    %v4217 = vand.u32 %v174, 4294901760
    %v4218 = vsub.f32 %v174, %v4217
    %4219 = vmatpush1.msra.mxu0 %v4218
    %4220 = vmatprep.subr.mxu0 0.0
    %v4221 = vand.u32 %v173, 4294901760
    %v4222 = vsub.f32 %v173, %v4221
    %4223 = vmatpush1.msra.mxu0 %v4222
    %4224 = vmatprep.subr.mxu0 0.0
    %v4225 = vand.u32 %v172, 4294901760
    %v4226 = vsub.f32 %v172, %v4225
    %4227 = vmatpush1.msra.mxu0 %v4226
    %4228 = vmatprep.subr.mxu0 0.0
    %v4229 = vand.u32 %v171, 4294901760
    %v4230 = vsub.f32 %v171, %v4229
    %4231 = vmatpush1.msra.mxu0 %v4230
    %4232 = vmatprep.subr.mxu0 0.0
    %v4233 = vand.u32 %v170, 4294901760
    %v4234 = vsub.f32 %v170, %v4233
    %4235 = vmatpush1.msra.mxu0 %v4234
    %4236 = vmatprep.subr.mxu0 0.0
    %v4237 = vand.u32 %v201, 4294901760
    %v4238 = vsub.f32 %v201, %v4237
    %4239 = vmatpush2.msra.mxu0 %v4238
    %4240 = vmatprep.subr.mxu0 0.0
    %v4241 = vand.u32 %v200, 4294901760
    %v4242 = vsub.f32 %v200, %v4241
    %4243 = vmatpush2.msra.mxu0 %v4242
    %4244 = vmatprep.subr.mxu0 0.0
    %v4245 = vand.u32 %v199, 4294901760
    %v4246 = vsub.f32 %v199, %v4245
    %4247 = vmatpush2.msra.mxu0 %v4246
    %4248 = vmatprep.subr.mxu0 0.0
    %v4249 = vand.u32 %v198, 4294901760
    %v4250 = vsub.f32 %v198, %v4249
    %4251 = vmatpush2.msra.mxu0 %v4250
    %4252 = vmatprep.subr.mxu0 0.0
    %v4253 = vand.u32 %v197, 4294901760
    %v4254 = vsub.f32 %v197, %v4253
    %4255 = vmatpush2.msra.mxu0 %v4254
    %4256 = vmatprep.subr.mxu0 0.0
    %v4257 = vand.u32 %v196, 4294901760
    %v4258 = vsub.f32 %v196, %v4257
    %4259 = vmatpush2.msra.mxu0 %v4258
    %4260 = vmatprep.subr.mxu0 0.0
    %v4261 = vand.u32 %v195, 4294901760
    %v4262 = vsub.f32 %v195, %v4261
    %4263 = vmatpush2.msra.mxu0 %v4262
    %4264 = vmatprep.subr.mxu0 0.0
    %v4265 = vand.u32 %v194, 4294901760
    %v4266 = vsub.f32 %v194, %v4265
    %4267 = vmatpush2.msra.mxu0 %v4266
    %4268 = vmatprep.subr.mxu0 0.0
    %v4269 = vand.u32 %v193, 4294901760
    %v4270 = vsub.f32 %v193, %v4269
    %4271 = vmatpush2.msra.mxu0 %v4270
    %4272 = vmatprep.subr.mxu0 0.0
    %v4273 = vand.u32 %v192, 4294901760
    %v4274 = vsub.f32 %v192, %v4273
    %4275 = vmatpush2.msra.mxu0 %v4274
    %4276 = vmatprep.subr.mxu0 0.0
    %v4277 = vand.u32 %v191, 4294901760
    %v4278 = vsub.f32 %v191, %v4277
    %4279 = vmatpush2.msra.mxu0 %v4278
    %4280 = vmatprep.subr.mxu0 0.0
    %v4281 = vand.u32 %v190, 4294901760
    %v4282 = vsub.f32 %v190, %v4281
    %4283 = vmatpush2.msra.mxu0 %v4282
    %4284 = vmatprep.subr.mxu0 0.0
    %v4285 = vand.u32 %v189, 4294901760
    %v4286 = vsub.f32 %v189, %v4285
    %4287 = vmatpush2.msra.mxu0 %v4286
    %4288 = vmatprep.subr.mxu0 0.0
    %v4289 = vand.u32 %v188, 4294901760
    %v4290 = vsub.f32 %v188, %v4289
    %4291 = vmatpush2.msra.mxu0 %v4290
    %4292 = vmatprep.subr.mxu0 0.0
    %v4293 = vand.u32 %v187, 4294901760
    %v4294 = vsub.f32 %v187, %v4293
    %4295 = vmatpush2.msra.mxu0 %v4294
    %4296 = vmatprep.subr.mxu0 0.0
    %v4297 = vand.u32 %v186, 4294901760
    %v4298 = vsub.f32 %v186, %v4297
    %4299 = vmatpush2.msra.mxu0 %v4298
    %v4300 = vand.u32 %v339, 4294901760
    %v4301 = vsub.f32 %v339, %v4300
    %4302 = vmatprep.mubr.f32.mxu0 %v4301
    %v4303 = vand.u32 %v335, 4294901760
    %v4304 = vsub.f32 %v335, %v4303
    %4305 = vmatmul.mubr.f32.gmra.mxu0 %v4304
    %v4306 = vpop.f32.mrf.mxu0
    %v4307 = vadd.f32 %v4169, %v4306
    %v4308 = vpop.f32.mrf.mxu0
    %4309 = vdwg.mxu0
    %4310 = vmatprep.subr.mxu0 0.0
    %v4311 = vand.u32 %v185, 4294901760
    %4312 = vmatpush1.msra.mxu0 %v4311
    %4313 = vmatprep.subr.mxu0 0.0
    %v4314 = vand.u32 %v184, 4294901760
    %4315 = vmatpush1.msra.mxu0 %v4314
    %4316 = vmatprep.subr.mxu0 0.0
    %v4317 = vand.u32 %v183, 4294901760
    %4318 = vmatpush1.msra.mxu0 %v4317
    %4319 = vmatprep.subr.mxu0 0.0
    %v4320 = vand.u32 %v182, 4294901760
    %4321 = vmatpush1.msra.mxu0 %v4320
    %4322 = vmatprep.subr.mxu0 0.0
    %v4323 = vand.u32 %v181, 4294901760
    %4324 = vmatpush1.msra.mxu0 %v4323
    %4325 = vmatprep.subr.mxu0 0.0
    %v4326 = vand.u32 %v180, 4294901760
    %4327 = vmatpush1.msra.mxu0 %v4326
    %4328 = vmatprep.subr.mxu0 0.0
    %v4329 = vand.u32 %v179, 4294901760
    %4330 = vmatpush1.msra.mxu0 %v4329
    %4331 = vmatprep.subr.mxu0 0.0
    %v4332 = vand.u32 %v178, 4294901760
    %4333 = vmatpush1.msra.mxu0 %v4332
    %4334 = vmatprep.subr.mxu0 0.0
    %v4335 = vand.u32 %v177, 4294901760
    %4336 = vmatpush1.msra.mxu0 %v4335
    %4337 = vmatprep.subr.mxu0 0.0
    %v4338 = vand.u32 %v176, 4294901760
    %4339 = vmatpush1.msra.mxu0 %v4338
    %4340 = vmatprep.subr.mxu0 0.0
    %v4341 = vand.u32 %v175, 4294901760
    %4342 = vmatpush1.msra.mxu0 %v4341
    %4343 = vmatprep.subr.mxu0 0.0
    %v4344 = vand.u32 %v174, 4294901760
    %4345 = vmatpush1.msra.mxu0 %v4344
    %4346 = vmatprep.subr.mxu0 0.0
    %v4347 = vand.u32 %v173, 4294901760
    %4348 = vmatpush1.msra.mxu0 %v4347
    %4349 = vmatprep.subr.mxu0 0.0
    %v4350 = vand.u32 %v172, 4294901760
    %4351 = vmatpush1.msra.mxu0 %v4350
    %4352 = vmatprep.subr.mxu0 0.0
    %v4353 = vand.u32 %v171, 4294901760
    %4354 = vmatpush1.msra.mxu0 %v4353
    %4355 = vmatprep.subr.mxu0 0.0
    %v4356 = vand.u32 %v170, 4294901760
    %4357 = vmatpush1.msra.mxu0 %v4356
    %4358 = vmatprep.subr.mxu0 0.0
    %v4359 = vand.u32 %v201, 4294901760
    %4360 = vmatpush2.msra.mxu0 %v4359
    %4361 = vmatprep.subr.mxu0 0.0
    %v4362 = vand.u32 %v200, 4294901760
    %4363 = vmatpush2.msra.mxu0 %v4362
    %4364 = vmatprep.subr.mxu0 0.0
    %v4365 = vand.u32 %v199, 4294901760
    %4366 = vmatpush2.msra.mxu0 %v4365
    %4367 = vmatprep.subr.mxu0 0.0
    %v4368 = vand.u32 %v198, 4294901760
    %4369 = vmatpush2.msra.mxu0 %v4368
    %4370 = vmatprep.subr.mxu0 0.0
    %v4371 = vand.u32 %v197, 4294901760
    %4372 = vmatpush2.msra.mxu0 %v4371
    %4373 = vmatprep.subr.mxu0 0.0
    %v4374 = vand.u32 %v196, 4294901760
    %4375 = vmatpush2.msra.mxu0 %v4374
    %4376 = vmatprep.subr.mxu0 0.0
    %v4377 = vand.u32 %v195, 4294901760
    %4378 = vmatpush2.msra.mxu0 %v4377
    %4379 = vmatprep.subr.mxu0 0.0
    %v4380 = vand.u32 %v194, 4294901760
    %4381 = vmatpush2.msra.mxu0 %v4380
    %4382 = vmatprep.subr.mxu0 0.0
    %v4383 = vand.u32 %v193, 4294901760
    %4384 = vmatpush2.msra.mxu0 %v4383
    %4385 = vmatprep.subr.mxu0 0.0
    %v4386 = vand.u32 %v192, 4294901760
    %4387 = vmatpush2.msra.mxu0 %v4386
    %4388 = vmatprep.subr.mxu0 0.0
    %v4389 = vand.u32 %v191, 4294901760
    %4390 = vmatpush2.msra.mxu0 %v4389
    %4391 = vmatprep.subr.mxu0 0.0
    %v4392 = vand.u32 %v190, 4294901760
    %4393 = vmatpush2.msra.mxu0 %v4392
    %4394 = vmatprep.subr.mxu0 0.0
    %v4395 = vand.u32 %v189, 4294901760
    %4396 = vmatpush2.msra.mxu0 %v4395
    %4397 = vmatprep.subr.mxu0 0.0
    %v4398 = vand.u32 %v188, 4294901760
    %4399 = vmatpush2.msra.mxu0 %v4398
    %4400 = vmatprep.subr.mxu0 0.0
    %v4401 = vand.u32 %v187, 4294901760
    %4402 = vmatpush2.msra.mxu0 %v4401
    %4403 = vmatprep.subr.mxu0 0.0
    %v4404 = vand.u32 %v186, 4294901760
    %4405 = vmatpush2.msra.mxu0 %v4404
    %v4406 = vand.u32 %v339, 4294901760
    %v4407 = vsub.f32 %v339, %v4406
    %v4408 = vand.u32 %v4407, 4294901760
    %4409 = vmatprep.mubr.f32.mxu0 %v4408
    %v4410 = vand.u32 %v335, 4294901760
    %v4411 = vsub.f32 %v335, %v4410
    %v4412 = vand.u32 %v4411, 4294901760
    %4413 = vmatmul.mubr.f32.gmra.mxu0 %v4412
    %v4414 = vpop.f32.mrf.mxu0
    %v4415 = vadd.f32 %v4307, %v4414
    %v4416 = vpop.f32.mrf.mxu0
    %4417 = vdwg.mxu0
    %4418 = vmatprep.subr.mxu0 0.0
    %v4419 = vand.u32 %v185, 4294901760
    %v4420 = vsub.f32 %v185, %v4419
    %v4421 = vand.u32 %v4420, 4294901760
    %4422 = vmatpush1.msra.mxu0 %v4421
    %4423 = vmatprep.subr.mxu0 0.0
    %v4424 = vand.u32 %v184, 4294901760
    %v4425 = vsub.f32 %v184, %v4424
    %v4426 = vand.u32 %v4425, 4294901760
    %4427 = vmatpush1.msra.mxu0 %v4426
    %4428 = vmatprep.subr.mxu0 0.0
    %v4429 = vand.u32 %v183, 4294901760
    %v4430 = vsub.f32 %v183, %v4429
    %v4431 = vand.u32 %v4430, 4294901760
    %4432 = vmatpush1.msra.mxu0 %v4431
    %4433 = vmatprep.subr.mxu0 0.0
    %v4434 = vand.u32 %v182, 4294901760
    %v4435 = vsub.f32 %v182, %v4434
    %v4436 = vand.u32 %v4435, 4294901760
    %4437 = vmatpush1.msra.mxu0 %v4436
    %4438 = vmatprep.subr.mxu0 0.0
    %v4439 = vand.u32 %v181, 4294901760
    %v4440 = vsub.f32 %v181, %v4439
    %v4441 = vand.u32 %v4440, 4294901760
    %4442 = vmatpush1.msra.mxu0 %v4441
    %4443 = vmatprep.subr.mxu0 0.0
    %v4444 = vand.u32 %v180, 4294901760
    %v4445 = vsub.f32 %v180, %v4444
    %v4446 = vand.u32 %v4445, 4294901760
    %4447 = vmatpush1.msra.mxu0 %v4446
    %4448 = vmatprep.subr.mxu0 0.0
    %v4449 = vand.u32 %v179, 4294901760
    %v4450 = vsub.f32 %v179, %v4449
    %v4451 = vand.u32 %v4450, 4294901760
    %4452 = vmatpush1.msra.mxu0 %v4451
    %4453 = vmatprep.subr.mxu0 0.0
    %v4454 = vand.u32 %v178, 4294901760
    %v4455 = vsub.f32 %v178, %v4454
    %v4456 = vand.u32 %v4455, 4294901760
    %4457 = vmatpush1.msra.mxu0 %v4456
    %4458 = vmatprep.subr.mxu0 0.0
    %v4459 = vand.u32 %v177, 4294901760
    %v4460 = vsub.f32 %v177, %v4459
    %v4461 = vand.u32 %v4460, 4294901760
    %4462 = vmatpush1.msra.mxu0 %v4461
    %4463 = vmatprep.subr.mxu0 0.0
    %v4464 = vand.u32 %v176, 4294901760
    %v4465 = vsub.f32 %v176, %v4464
    %v4466 = vand.u32 %v4465, 4294901760
    %4467 = vmatpush1.msra.mxu0 %v4466
    %4468 = vmatprep.subr.mxu0 0.0
    %v4469 = vand.u32 %v175, 4294901760
    %v4470 = vsub.f32 %v175, %v4469
    %v4471 = vand.u32 %v4470, 4294901760
    %4472 = vmatpush1.msra.mxu0 %v4471
    %4473 = vmatprep.subr.mxu0 0.0
    %v4474 = vand.u32 %v174, 4294901760
    %v4475 = vsub.f32 %v174, %v4474
    %v4476 = vand.u32 %v4475, 4294901760
    %4477 = vmatpush1.msra.mxu0 %v4476
    %4478 = vmatprep.subr.mxu0 0.0
    %v4479 = vand.u32 %v173, 4294901760
    %v4480 = vsub.f32 %v173, %v4479
    %v4481 = vand.u32 %v4480, 4294901760
    %4482 = vmatpush1.msra.mxu0 %v4481
    %4483 = vmatprep.subr.mxu0 0.0
    %v4484 = vand.u32 %v172, 4294901760
    %v4485 = vsub.f32 %v172, %v4484
    %v4486 = vand.u32 %v4485, 4294901760
    %4487 = vmatpush1.msra.mxu0 %v4486
    %4488 = vmatprep.subr.mxu0 0.0
    %v4489 = vand.u32 %v171, 4294901760
    %v4490 = vsub.f32 %v171, %v4489
    %v4491 = vand.u32 %v4490, 4294901760
    %4492 = vmatpush1.msra.mxu0 %v4491
    %4493 = vmatprep.subr.mxu0 0.0
    %v4494 = vand.u32 %v170, 4294901760
    %v4495 = vsub.f32 %v170, %v4494
    %v4496 = vand.u32 %v4495, 4294901760
    %4497 = vmatpush1.msra.mxu0 %v4496
    %4498 = vmatprep.subr.mxu0 0.0
    %v4499 = vand.u32 %v201, 4294901760
    %v4500 = vsub.f32 %v201, %v4499
    %v4501 = vand.u32 %v4500, 4294901760
    %4502 = vmatpush2.msra.mxu0 %v4501
    %4503 = vmatprep.subr.mxu0 0.0
    %v4504 = vand.u32 %v200, 4294901760
    %v4505 = vsub.f32 %v200, %v4504
    %v4506 = vand.u32 %v4505, 4294901760
    %4507 = vmatpush2.msra.mxu0 %v4506
    %4508 = vmatprep.subr.mxu0 0.0
    %v4509 = vand.u32 %v199, 4294901760
    %v4510 = vsub.f32 %v199, %v4509
    %v4511 = vand.u32 %v4510, 4294901760
    %4512 = vmatpush2.msra.mxu0 %v4511
    %4513 = vmatprep.subr.mxu0 0.0
    %v4514 = vand.u32 %v198, 4294901760
    %v4515 = vsub.f32 %v198, %v4514
    %v4516 = vand.u32 %v4515, 4294901760
    %4517 = vmatpush2.msra.mxu0 %v4516
    %4518 = vmatprep.subr.mxu0 0.0
    %v4519 = vand.u32 %v197, 4294901760
    %v4520 = vsub.f32 %v197, %v4519
    %v4521 = vand.u32 %v4520, 4294901760
    %4522 = vmatpush2.msra.mxu0 %v4521
    %4523 = vmatprep.subr.mxu0 0.0
    %v4524 = vand.u32 %v196, 4294901760
    %v4525 = vsub.f32 %v196, %v4524
    %v4526 = vand.u32 %v4525, 4294901760
    %4527 = vmatpush2.msra.mxu0 %v4526
    %4528 = vmatprep.subr.mxu0 0.0
    %v4529 = vand.u32 %v195, 4294901760
    %v4530 = vsub.f32 %v195, %v4529
    %v4531 = vand.u32 %v4530, 4294901760
    %4532 = vmatpush2.msra.mxu0 %v4531
    %4533 = vmatprep.subr.mxu0 0.0
    %v4534 = vand.u32 %v194, 4294901760
    %v4535 = vsub.f32 %v194, %v4534
    %v4536 = vand.u32 %v4535, 4294901760
    %4537 = vmatpush2.msra.mxu0 %v4536
    %4538 = vmatprep.subr.mxu0 0.0
    %v4539 = vand.u32 %v193, 4294901760
    %v4540 = vsub.f32 %v193, %v4539
    %v4541 = vand.u32 %v4540, 4294901760
    %4542 = vmatpush2.msra.mxu0 %v4541
    %4543 = vmatprep.subr.mxu0 0.0
    %v4544 = vand.u32 %v192, 4294901760
    %v4545 = vsub.f32 %v192, %v4544
    %v4546 = vand.u32 %v4545, 4294901760
    %4547 = vmatpush2.msra.mxu0 %v4546
    %4548 = vmatprep.subr.mxu0 0.0
    %v4549 = vand.u32 %v191, 4294901760
    %v4550 = vsub.f32 %v191, %v4549
    %v4551 = vand.u32 %v4550, 4294901760
    %4552 = vmatpush2.msra.mxu0 %v4551
    %4553 = vmatprep.subr.mxu0 0.0
    %v4554 = vand.u32 %v190, 4294901760
    %v4555 = vsub.f32 %v190, %v4554
    %v4556 = vand.u32 %v4555, 4294901760
    %4557 = vmatpush2.msra.mxu0 %v4556
    %4558 = vmatprep.subr.mxu0 0.0
    %v4559 = vand.u32 %v189, 4294901760
    %v4560 = vsub.f32 %v189, %v4559
    %v4561 = vand.u32 %v4560, 4294901760
    %4562 = vmatpush2.msra.mxu0 %v4561
    %4563 = vmatprep.subr.mxu0 0.0
    %v4564 = vand.u32 %v188, 4294901760
    %v4565 = vsub.f32 %v188, %v4564
    %v4566 = vand.u32 %v4565, 4294901760
    %4567 = vmatpush2.msra.mxu0 %v4566
    %4568 = vmatprep.subr.mxu0 0.0
    %v4569 = vand.u32 %v187, 4294901760
    %v4570 = vsub.f32 %v187, %v4569
    %v4571 = vand.u32 %v4570, 4294901760
    %4572 = vmatpush2.msra.mxu0 %v4571
    %4573 = vmatprep.subr.mxu0 0.0
    %v4574 = vand.u32 %v186, 4294901760
    %v4575 = vsub.f32 %v186, %v4574
    %v4576 = vand.u32 %v4575, 4294901760
    %4577 = vmatpush2.msra.mxu0 %v4576
    %v4578 = vand.u32 %v339, 4294901760
    %4579 = vmatprep.mubr.f32.mxu0 %v4578
    %v4580 = vand.u32 %v335, 4294901760
    %4581 = vmatmul.mubr.f32.gmra.mxu0 %v4580
    %v4582 = vpop.f32.mrf.mxu0
    %v4583 = vadd.f32 %v4415, %v4582
    %v4584 = vpop.f32.mrf.mxu0
    %4585 = vdwg.mxu0
    %4586 = vmatprep.subr.mxu0 0.0
    %v4587 = vand.u32 %v185, 4294901760
    %4588 = vmatpush1.msra.mxu0 %v4587
    %4589 = vmatprep.subr.mxu0 0.0
    %v4590 = vand.u32 %v184, 4294901760
    %4591 = vmatpush1.msra.mxu0 %v4590
    %4592 = vmatprep.subr.mxu0 0.0
    %v4593 = vand.u32 %v183, 4294901760
    %4594 = vmatpush1.msra.mxu0 %v4593
    %4595 = vmatprep.subr.mxu0 0.0
    %v4596 = vand.u32 %v182, 4294901760
    %4597 = vmatpush1.msra.mxu0 %v4596
    %4598 = vmatprep.subr.mxu0 0.0
    %v4599 = vand.u32 %v181, 4294901760
    %4600 = vmatpush1.msra.mxu0 %v4599
    %4601 = vmatprep.subr.mxu0 0.0
    %v4602 = vand.u32 %v180, 4294901760
    %4603 = vmatpush1.msra.mxu0 %v4602
    %4604 = vmatprep.subr.mxu0 0.0
    %v4605 = vand.u32 %v179, 4294901760
    %4606 = vmatpush1.msra.mxu0 %v4605
    %4607 = vmatprep.subr.mxu0 0.0
    %v4608 = vand.u32 %v178, 4294901760
    %4609 = vmatpush1.msra.mxu0 %v4608
    %4610 = vmatprep.subr.mxu0 0.0
    %v4611 = vand.u32 %v177, 4294901760
    %4612 = vmatpush1.msra.mxu0 %v4611
    %4613 = vmatprep.subr.mxu0 0.0
    %v4614 = vand.u32 %v176, 4294901760
    %4615 = vmatpush1.msra.mxu0 %v4614
    %4616 = vmatprep.subr.mxu0 0.0
    %v4617 = vand.u32 %v175, 4294901760
    %4618 = vmatpush1.msra.mxu0 %v4617
    %4619 = vmatprep.subr.mxu0 0.0
    %v4620 = vand.u32 %v174, 4294901760
    %4621 = vmatpush1.msra.mxu0 %v4620
    %4622 = vmatprep.subr.mxu0 0.0
    %v4623 = vand.u32 %v173, 4294901760
    %4624 = vmatpush1.msra.mxu0 %v4623
    %4625 = vmatprep.subr.mxu0 0.0
    %v4626 = vand.u32 %v172, 4294901760
    %4627 = vmatpush1.msra.mxu0 %v4626
    %4628 = vmatprep.subr.mxu0 0.0
    %v4629 = vand.u32 %v171, 4294901760
    %4630 = vmatpush1.msra.mxu0 %v4629
    %4631 = vmatprep.subr.mxu0 0.0
    %v4632 = vand.u32 %v170, 4294901760
    %4633 = vmatpush1.msra.mxu0 %v4632
    %4634 = vmatprep.subr.mxu0 0.0
    %v4635 = vand.u32 %v201, 4294901760
    %4636 = vmatpush2.msra.mxu0 %v4635
    %4637 = vmatprep.subr.mxu0 0.0
    %v4638 = vand.u32 %v200, 4294901760
    %4639 = vmatpush2.msra.mxu0 %v4638
    %4640 = vmatprep.subr.mxu0 0.0
    %v4641 = vand.u32 %v199, 4294901760
    %4642 = vmatpush2.msra.mxu0 %v4641
    %4643 = vmatprep.subr.mxu0 0.0
    %v4644 = vand.u32 %v198, 4294901760
    %4645 = vmatpush2.msra.mxu0 %v4644
    %4646 = vmatprep.subr.mxu0 0.0
    %v4647 = vand.u32 %v197, 4294901760
    %4648 = vmatpush2.msra.mxu0 %v4647
    %4649 = vmatprep.subr.mxu0 0.0
    %v4650 = vand.u32 %v196, 4294901760
    %4651 = vmatpush2.msra.mxu0 %v4650
    %4652 = vmatprep.subr.mxu0 0.0
    %v4653 = vand.u32 %v195, 4294901760
    %4654 = vmatpush2.msra.mxu0 %v4653
    %4655 = vmatprep.subr.mxu0 0.0
    %v4656 = vand.u32 %v194, 4294901760
    %4657 = vmatpush2.msra.mxu0 %v4656
    %4658 = vmatprep.subr.mxu0 0.0
    %v4659 = vand.u32 %v193, 4294901760
    %4660 = vmatpush2.msra.mxu0 %v4659
    %4661 = vmatprep.subr.mxu0 0.0
    %v4662 = vand.u32 %v192, 4294901760
    %4663 = vmatpush2.msra.mxu0 %v4662
    %4664 = vmatprep.subr.mxu0 0.0
    %v4665 = vand.u32 %v191, 4294901760
    %4666 = vmatpush2.msra.mxu0 %v4665
    %4667 = vmatprep.subr.mxu0 0.0
    %v4668 = vand.u32 %v190, 4294901760
    %4669 = vmatpush2.msra.mxu0 %v4668
    %4670 = vmatprep.subr.mxu0 0.0
    %v4671 = vand.u32 %v189, 4294901760
    %4672 = vmatpush2.msra.mxu0 %v4671
    %4673 = vmatprep.subr.mxu0 0.0
    %v4674 = vand.u32 %v188, 4294901760
    %4675 = vmatpush2.msra.mxu0 %v4674
    %4676 = vmatprep.subr.mxu0 0.0
    %v4677 = vand.u32 %v187, 4294901760
    %4678 = vmatpush2.msra.mxu0 %v4677
    %4679 = vmatprep.subr.mxu0 0.0
    %v4680 = vand.u32 %v186, 4294901760
    %4681 = vmatpush2.msra.mxu0 %v4680
    %v4682 = vand.u32 %v339, 4294901760
    %4683 = vmatprep.mubr.f32.mxu0 %v4682
    %v4684 = vand.u32 %v335, 4294901760
    %4685 = vmatmul.mubr.f32.gmra.mxu0 %v4684
    %v4686 = vpop.f32.mrf.mxu0
    %v4687 = vadd.f32 %v4583, %v4686
    %v4688 = vpop.f32.mrf.mxu0
    %4689 = vdwg.mxu0
    %4690 = vmatprep.subr.mxu0 0.0
    %v4691 = vand.u32 %v217, 4294901760
    %4692 = vmatpush1.msra.mxu0 %v4691
    %4693 = vmatprep.subr.mxu0 0.0
    %v4694 = vand.u32 %v216, 4294901760
    %4695 = vmatpush1.msra.mxu0 %v4694
    %4696 = vmatprep.subr.mxu0 0.0
    %v4697 = vand.u32 %v215, 4294901760
    %4698 = vmatpush1.msra.mxu0 %v4697
    %4699 = vmatprep.subr.mxu0 0.0
    %v4700 = vand.u32 %v214, 4294901760
    %4701 = vmatpush1.msra.mxu0 %v4700
    %4702 = vmatprep.subr.mxu0 0.0
    %v4703 = vand.u32 %v213, 4294901760
    %4704 = vmatpush1.msra.mxu0 %v4703
    %4705 = vmatprep.subr.mxu0 0.0
    %v4706 = vand.u32 %v212, 4294901760
    %4707 = vmatpush1.msra.mxu0 %v4706
    %4708 = vmatprep.subr.mxu0 0.0
    %v4709 = vand.u32 %v211, 4294901760
    %4710 = vmatpush1.msra.mxu0 %v4709
    %4711 = vmatprep.subr.mxu0 0.0
    %v4712 = vand.u32 %v210, 4294901760
    %4713 = vmatpush1.msra.mxu0 %v4712
    %4714 = vmatprep.subr.mxu0 0.0
    %v4715 = vand.u32 %v209, 4294901760
    %4716 = vmatpush1.msra.mxu0 %v4715
    %4717 = vmatprep.subr.mxu0 0.0
    %v4718 = vand.u32 %v208, 4294901760
    %4719 = vmatpush1.msra.mxu0 %v4718
    %4720 = vmatprep.subr.mxu0 0.0
    %v4721 = vand.u32 %v207, 4294901760
    %4722 = vmatpush1.msra.mxu0 %v4721
    %4723 = vmatprep.subr.mxu0 0.0
    %v4724 = vand.u32 %v206, 4294901760
    %4725 = vmatpush1.msra.mxu0 %v4724
    %4726 = vmatprep.subr.mxu0 0.0
    %v4727 = vand.u32 %v205, 4294901760
    %4728 = vmatpush1.msra.mxu0 %v4727
    %4729 = vmatprep.subr.mxu0 0.0
    %v4730 = vand.u32 %v204, 4294901760
    %4731 = vmatpush1.msra.mxu0 %v4730
    %4732 = vmatprep.subr.mxu0 0.0
    %v4733 = vand.u32 %v203, 4294901760
    %4734 = vmatpush1.msra.mxu0 %v4733
    %4735 = vmatprep.subr.mxu0 0.0
    %v4736 = vand.u32 %v202, 4294901760
    %4737 = vmatpush1.msra.mxu0 %v4736
    %4738 = vmatprep.subr.mxu0 0.0
    %v4739 = vand.u32 %v233, 4294901760
    %4740 = vmatpush2.msra.mxu0 %v4739
    %4741 = vmatprep.subr.mxu0 0.0
    %v4742 = vand.u32 %v232, 4294901760
    %4743 = vmatpush2.msra.mxu0 %v4742
    %4744 = vmatprep.subr.mxu0 0.0
    %v4745 = vand.u32 %v231, 4294901760
    %4746 = vmatpush2.msra.mxu0 %v4745
    %4747 = vmatprep.subr.mxu0 0.0
    %v4748 = vand.u32 %v230, 4294901760
    %4749 = vmatpush2.msra.mxu0 %v4748
    %4750 = vmatprep.subr.mxu0 0.0
    %v4751 = vand.u32 %v229, 4294901760
    %4752 = vmatpush2.msra.mxu0 %v4751
    %4753 = vmatprep.subr.mxu0 0.0
    %v4754 = vand.u32 %v228, 4294901760
    %4755 = vmatpush2.msra.mxu0 %v4754
    %4756 = vmatprep.subr.mxu0 0.0
    %v4757 = vand.u32 %v227, 4294901760
    %4758 = vmatpush2.msra.mxu0 %v4757
    %4759 = vmatprep.subr.mxu0 0.0
    %v4760 = vand.u32 %v226, 4294901760
    %4761 = vmatpush2.msra.mxu0 %v4760
    %4762 = vmatprep.subr.mxu0 0.0
    %v4763 = vand.u32 %v225, 4294901760
    %4764 = vmatpush2.msra.mxu0 %v4763
    %4765 = vmatprep.subr.mxu0 0.0
    %v4766 = vand.u32 %v224, 4294901760
    %4767 = vmatpush2.msra.mxu0 %v4766
    %4768 = vmatprep.subr.mxu0 0.0
    %v4769 = vand.u32 %v223, 4294901760
    %4770 = vmatpush2.msra.mxu0 %v4769
    %4771 = vmatprep.subr.mxu0 0.0
    %v4772 = vand.u32 %v222, 4294901760
    %4773 = vmatpush2.msra.mxu0 %v4772
    %4774 = vmatprep.subr.mxu0 0.0
    %v4775 = vand.u32 %v221, 4294901760
    %4776 = vmatpush2.msra.mxu0 %v4775
    %4777 = vmatprep.subr.mxu0 0.0
    %v4778 = vand.u32 %v220, 4294901760
    %4779 = vmatpush2.msra.mxu0 %v4778
    %4780 = vmatprep.subr.mxu0 0.0
    %v4781 = vand.u32 %v219, 4294901760
    %4782 = vmatpush2.msra.mxu0 %v4781
    %4783 = vmatprep.subr.mxu0 0.0
    %v4784 = vand.u32 %v218, 4294901760
    %4785 = vmatpush2.msra.mxu0 %v4784
    %v4786 = vand.u32 %v347, 4294901760
    %v4787 = vsub.f32 %v347, %v4786
    %v4788 = vand.u32 %v4787, 4294901760
    %v4789 = vsub.f32 %v4787, %v4788
    %v4790 = vand.u32 %v4789, 4294901760
    %4791 = vmatprep.mubr.f32.mxu0 %v4790
    %v4792 = vand.u32 %v343, 4294901760
    %v4793 = vsub.f32 %v343, %v4792
    %v4794 = vand.u32 %v4793, 4294901760
    %v4795 = vsub.f32 %v4793, %v4794
    %v4796 = vand.u32 %v4795, 4294901760
    %4797 = vmatmul.mubr.f32.gmra.mxu0 %v4796
    %v4798 = vpop.f32.mrf.mxu0
    %v4799 = vadd.f32 %v4687, %v4798
    %v4800 = vpop.f32.mrf.mxu0
    %4801 = vdwg.mxu0
    %4802 = vmatprep.subr.mxu0 0.0
    %v4803 = vand.u32 %v217, 4294901760
    %v4804 = vsub.f32 %v217, %v4803
    %v4805 = vand.u32 %v4804, 4294901760
    %v4806 = vsub.f32 %v4804, %v4805
    %v4807 = vand.u32 %v4806, 4294901760
    %4808 = vmatpush1.msra.mxu0 %v4807
    %4809 = vmatprep.subr.mxu0 0.0
    %v4810 = vand.u32 %v216, 4294901760
    %v4811 = vsub.f32 %v216, %v4810
    %v4812 = vand.u32 %v4811, 4294901760
    %v4813 = vsub.f32 %v4811, %v4812
    %v4814 = vand.u32 %v4813, 4294901760
    %4815 = vmatpush1.msra.mxu0 %v4814
    %4816 = vmatprep.subr.mxu0 0.0
    %v4817 = vand.u32 %v215, 4294901760
    %v4818 = vsub.f32 %v215, %v4817
    %v4819 = vand.u32 %v4818, 4294901760
    %v4820 = vsub.f32 %v4818, %v4819
    %v4821 = vand.u32 %v4820, 4294901760
    %4822 = vmatpush1.msra.mxu0 %v4821
    %4823 = vmatprep.subr.mxu0 0.0
    %v4824 = vand.u32 %v214, 4294901760
    %v4825 = vsub.f32 %v214, %v4824
    %v4826 = vand.u32 %v4825, 4294901760
    %v4827 = vsub.f32 %v4825, %v4826
    %v4828 = vand.u32 %v4827, 4294901760
    %4829 = vmatpush1.msra.mxu0 %v4828
    %4830 = vmatprep.subr.mxu0 0.0
    %v4831 = vand.u32 %v213, 4294901760
    %v4832 = vsub.f32 %v213, %v4831
    %v4833 = vand.u32 %v4832, 4294901760
    %v4834 = vsub.f32 %v4832, %v4833
    %v4835 = vand.u32 %v4834, 4294901760
    %4836 = vmatpush1.msra.mxu0 %v4835
    %4837 = vmatprep.subr.mxu0 0.0
    %v4838 = vand.u32 %v212, 4294901760
    %v4839 = vsub.f32 %v212, %v4838
    %v4840 = vand.u32 %v4839, 4294901760
    %v4841 = vsub.f32 %v4839, %v4840
    %v4842 = vand.u32 %v4841, 4294901760
    %4843 = vmatpush1.msra.mxu0 %v4842
    %4844 = vmatprep.subr.mxu0 0.0
    %v4845 = vand.u32 %v211, 4294901760
    %v4846 = vsub.f32 %v211, %v4845
    %v4847 = vand.u32 %v4846, 4294901760
    %v4848 = vsub.f32 %v4846, %v4847
    %v4849 = vand.u32 %v4848, 4294901760
    %4850 = vmatpush1.msra.mxu0 %v4849
    %4851 = vmatprep.subr.mxu0 0.0
    %v4852 = vand.u32 %v210, 4294901760
    %v4853 = vsub.f32 %v210, %v4852
    %v4854 = vand.u32 %v4853, 4294901760
    %v4855 = vsub.f32 %v4853, %v4854
    %v4856 = vand.u32 %v4855, 4294901760
    %4857 = vmatpush1.msra.mxu0 %v4856
    %4858 = vmatprep.subr.mxu0 0.0
    %v4859 = vand.u32 %v209, 4294901760
    %v4860 = vsub.f32 %v209, %v4859
    %v4861 = vand.u32 %v4860, 4294901760
    %v4862 = vsub.f32 %v4860, %v4861
    %v4863 = vand.u32 %v4862, 4294901760
    %4864 = vmatpush1.msra.mxu0 %v4863
    %4865 = vmatprep.subr.mxu0 0.0
    %v4866 = vand.u32 %v208, 4294901760
    %v4867 = vsub.f32 %v208, %v4866
    %v4868 = vand.u32 %v4867, 4294901760
    %v4869 = vsub.f32 %v4867, %v4868
    %v4870 = vand.u32 %v4869, 4294901760
    %4871 = vmatpush1.msra.mxu0 %v4870
    %4872 = vmatprep.subr.mxu0 0.0
    %v4873 = vand.u32 %v207, 4294901760
    %v4874 = vsub.f32 %v207, %v4873
    %v4875 = vand.u32 %v4874, 4294901760
    %v4876 = vsub.f32 %v4874, %v4875
    %v4877 = vand.u32 %v4876, 4294901760
    %4878 = vmatpush1.msra.mxu0 %v4877
    %4879 = vmatprep.subr.mxu0 0.0
    %v4880 = vand.u32 %v206, 4294901760
    %v4881 = vsub.f32 %v206, %v4880
    %v4882 = vand.u32 %v4881, 4294901760
    %v4883 = vsub.f32 %v4881, %v4882
    %v4884 = vand.u32 %v4883, 4294901760
    %4885 = vmatpush1.msra.mxu0 %v4884
    %4886 = vmatprep.subr.mxu0 0.0
    %v4887 = vand.u32 %v205, 4294901760
    %v4888 = vsub.f32 %v205, %v4887
    %v4889 = vand.u32 %v4888, 4294901760
    %v4890 = vsub.f32 %v4888, %v4889
    %v4891 = vand.u32 %v4890, 4294901760
    %4892 = vmatpush1.msra.mxu0 %v4891
    %4893 = vmatprep.subr.mxu0 0.0
    %v4894 = vand.u32 %v204, 4294901760
    %v4895 = vsub.f32 %v204, %v4894
    %v4896 = vand.u32 %v4895, 4294901760
    %v4897 = vsub.f32 %v4895, %v4896
    %v4898 = vand.u32 %v4897, 4294901760
    %4899 = vmatpush1.msra.mxu0 %v4898
    %4900 = vmatprep.subr.mxu0 0.0
    %v4901 = vand.u32 %v203, 4294901760
    %v4902 = vsub.f32 %v203, %v4901
    %v4903 = vand.u32 %v4902, 4294901760
    %v4904 = vsub.f32 %v4902, %v4903
    %v4905 = vand.u32 %v4904, 4294901760
    %4906 = vmatpush1.msra.mxu0 %v4905
    %4907 = vmatprep.subr.mxu0 0.0
    %v4908 = vand.u32 %v202, 4294901760
    %v4909 = vsub.f32 %v202, %v4908
    %v4910 = vand.u32 %v4909, 4294901760
    %v4911 = vsub.f32 %v4909, %v4910
    %v4912 = vand.u32 %v4911, 4294901760
    %4913 = vmatpush1.msra.mxu0 %v4912
    %4914 = vmatprep.subr.mxu0 0.0
    %v4915 = vand.u32 %v233, 4294901760
    %v4916 = vsub.f32 %v233, %v4915
    %v4917 = vand.u32 %v4916, 4294901760
    %v4918 = vsub.f32 %v4916, %v4917
    %v4919 = vand.u32 %v4918, 4294901760
    %4920 = vmatpush2.msra.mxu0 %v4919
    %4921 = vmatprep.subr.mxu0 0.0
    %v4922 = vand.u32 %v232, 4294901760
    %v4923 = vsub.f32 %v232, %v4922
    %v4924 = vand.u32 %v4923, 4294901760
    %v4925 = vsub.f32 %v4923, %v4924
    %v4926 = vand.u32 %v4925, 4294901760
    %4927 = vmatpush2.msra.mxu0 %v4926
    %4928 = vmatprep.subr.mxu0 0.0
    %v4929 = vand.u32 %v231, 4294901760
    %v4930 = vsub.f32 %v231, %v4929
    %v4931 = vand.u32 %v4930, 4294901760
    %v4932 = vsub.f32 %v4930, %v4931
    %v4933 = vand.u32 %v4932, 4294901760
    %4934 = vmatpush2.msra.mxu0 %v4933
    %4935 = vmatprep.subr.mxu0 0.0
    %v4936 = vand.u32 %v230, 4294901760
    %v4937 = vsub.f32 %v230, %v4936
    %v4938 = vand.u32 %v4937, 4294901760
    %v4939 = vsub.f32 %v4937, %v4938
    %v4940 = vand.u32 %v4939, 4294901760
    %4941 = vmatpush2.msra.mxu0 %v4940
    %4942 = vmatprep.subr.mxu0 0.0
    %v4943 = vand.u32 %v229, 4294901760
    %v4944 = vsub.f32 %v229, %v4943
    %v4945 = vand.u32 %v4944, 4294901760
    %v4946 = vsub.f32 %v4944, %v4945
    %v4947 = vand.u32 %v4946, 4294901760
    %4948 = vmatpush2.msra.mxu0 %v4947
    %4949 = vmatprep.subr.mxu0 0.0
    %v4950 = vand.u32 %v228, 4294901760
    %v4951 = vsub.f32 %v228, %v4950
    %v4952 = vand.u32 %v4951, 4294901760
    %v4953 = vsub.f32 %v4951, %v4952
    %v4954 = vand.u32 %v4953, 4294901760
    %4955 = vmatpush2.msra.mxu0 %v4954
    %4956 = vmatprep.subr.mxu0 0.0
    %v4957 = vand.u32 %v227, 4294901760
    %v4958 = vsub.f32 %v227, %v4957
    %v4959 = vand.u32 %v4958, 4294901760
    %v4960 = vsub.f32 %v4958, %v4959
    %v4961 = vand.u32 %v4960, 4294901760
    %4962 = vmatpush2.msra.mxu0 %v4961
    %4963 = vmatprep.subr.mxu0 0.0
    %v4964 = vand.u32 %v226, 4294901760
    %v4965 = vsub.f32 %v226, %v4964
    %v4966 = vand.u32 %v4965, 4294901760
    %v4967 = vsub.f32 %v4965, %v4966
    %v4968 = vand.u32 %v4967, 4294901760
    %4969 = vmatpush2.msra.mxu0 %v4968
    %4970 = vmatprep.subr.mxu0 0.0
    %v4971 = vand.u32 %v225, 4294901760
    %v4972 = vsub.f32 %v225, %v4971
    %v4973 = vand.u32 %v4972, 4294901760
    %v4974 = vsub.f32 %v4972, %v4973
    %v4975 = vand.u32 %v4974, 4294901760
    %4976 = vmatpush2.msra.mxu0 %v4975
    %4977 = vmatprep.subr.mxu0 0.0
    %v4978 = vand.u32 %v224, 4294901760
    %v4979 = vsub.f32 %v224, %v4978
    %v4980 = vand.u32 %v4979, 4294901760
    %v4981 = vsub.f32 %v4979, %v4980
    %v4982 = vand.u32 %v4981, 4294901760
    %4983 = vmatpush2.msra.mxu0 %v4982
    %4984 = vmatprep.subr.mxu0 0.0
    %v4985 = vand.u32 %v223, 4294901760
    %v4986 = vsub.f32 %v223, %v4985
    %v4987 = vand.u32 %v4986, 4294901760
    %v4988 = vsub.f32 %v4986, %v4987
    %v4989 = vand.u32 %v4988, 4294901760
    %4990 = vmatpush2.msra.mxu0 %v4989
    %4991 = vmatprep.subr.mxu0 0.0
    %v4992 = vand.u32 %v222, 4294901760
    %v4993 = vsub.f32 %v222, %v4992
    %v4994 = vand.u32 %v4993, 4294901760
    %v4995 = vsub.f32 %v4993, %v4994
    %v4996 = vand.u32 %v4995, 4294901760
    %4997 = vmatpush2.msra.mxu0 %v4996
    %4998 = vmatprep.subr.mxu0 0.0
    %v4999 = vand.u32 %v221, 4294901760
    %v5000 = vsub.f32 %v221, %v4999
    %v5001 = vand.u32 %v5000, 4294901760
    %v5002 = vsub.f32 %v5000, %v5001
    %v5003 = vand.u32 %v5002, 4294901760
    %5004 = vmatpush2.msra.mxu0 %v5003
    %5005 = vmatprep.subr.mxu0 0.0
    %v5006 = vand.u32 %v220, 4294901760
    %v5007 = vsub.f32 %v220, %v5006
    %v5008 = vand.u32 %v5007, 4294901760
    %v5009 = vsub.f32 %v5007, %v5008
    %v5010 = vand.u32 %v5009, 4294901760
    %5011 = vmatpush2.msra.mxu0 %v5010
    %5012 = vmatprep.subr.mxu0 0.0
    %v5013 = vand.u32 %v219, 4294901760
    %v5014 = vsub.f32 %v219, %v5013
    %v5015 = vand.u32 %v5014, 4294901760
    %v5016 = vsub.f32 %v5014, %v5015
    %v5017 = vand.u32 %v5016, 4294901760
    %5018 = vmatpush2.msra.mxu0 %v5017
    %5019 = vmatprep.subr.mxu0 0.0
    %v5020 = vand.u32 %v218, 4294901760
    %v5021 = vsub.f32 %v218, %v5020
    %v5022 = vand.u32 %v5021, 4294901760
    %v5023 = vsub.f32 %v5021, %v5022
    %v5024 = vand.u32 %v5023, 4294901760
    %5025 = vmatpush2.msra.mxu0 %v5024
    %v5026 = vand.u32 %v347, 4294901760
    %5027 = vmatprep.mubr.f32.mxu0 %v5026
    %v5028 = vand.u32 %v343, 4294901760
    %5029 = vmatmul.mubr.f32.gmra.mxu0 %v5028
    %v5030 = vpop.f32.mrf.mxu0
    %v5031 = vadd.f32 %v4799, %v5030
    %v5032 = vpop.f32.mrf.mxu0
    %5033 = vdwg.mxu0
    %5034 = vmatprep.subr.mxu0 0.0
    %v5035 = vand.u32 %v217, 4294901760
    %v5036 = vsub.f32 %v217, %v5035
    %5037 = vmatpush1.msra.mxu0 %v5036
    %5038 = vmatprep.subr.mxu0 0.0
    %v5039 = vand.u32 %v216, 4294901760
    %v5040 = vsub.f32 %v216, %v5039
    %5041 = vmatpush1.msra.mxu0 %v5040
    %5042 = vmatprep.subr.mxu0 0.0
    %v5043 = vand.u32 %v215, 4294901760
    %v5044 = vsub.f32 %v215, %v5043
    %5045 = vmatpush1.msra.mxu0 %v5044
    %5046 = vmatprep.subr.mxu0 0.0
    %v5047 = vand.u32 %v214, 4294901760
    %v5048 = vsub.f32 %v214, %v5047
    %5049 = vmatpush1.msra.mxu0 %v5048
    %5050 = vmatprep.subr.mxu0 0.0
    %v5051 = vand.u32 %v213, 4294901760
    %v5052 = vsub.f32 %v213, %v5051
    %5053 = vmatpush1.msra.mxu0 %v5052
    %5054 = vmatprep.subr.mxu0 0.0
    %v5055 = vand.u32 %v212, 4294901760
    %v5056 = vsub.f32 %v212, %v5055
    %5057 = vmatpush1.msra.mxu0 %v5056
    %5058 = vmatprep.subr.mxu0 0.0
    %v5059 = vand.u32 %v211, 4294901760
    %v5060 = vsub.f32 %v211, %v5059
    %5061 = vmatpush1.msra.mxu0 %v5060
    %5062 = vmatprep.subr.mxu0 0.0
    %v5063 = vand.u32 %v210, 4294901760
    %v5064 = vsub.f32 %v210, %v5063
    %5065 = vmatpush1.msra.mxu0 %v5064
    %5066 = vmatprep.subr.mxu0 0.0
    %v5067 = vand.u32 %v209, 4294901760
    %v5068 = vsub.f32 %v209, %v5067
    %5069 = vmatpush1.msra.mxu0 %v5068
    %5070 = vmatprep.subr.mxu0 0.0
    %v5071 = vand.u32 %v208, 4294901760
    %v5072 = vsub.f32 %v208, %v5071
    %5073 = vmatpush1.msra.mxu0 %v5072
    %5074 = vmatprep.subr.mxu0 0.0
    %v5075 = vand.u32 %v207, 4294901760
    %v5076 = vsub.f32 %v207, %v5075
    %5077 = vmatpush1.msra.mxu0 %v5076
    %5078 = vmatprep.subr.mxu0 0.0
    %v5079 = vand.u32 %v206, 4294901760
    %v5080 = vsub.f32 %v206, %v5079
    %5081 = vmatpush1.msra.mxu0 %v5080
    %5082 = vmatprep.subr.mxu0 0.0
    %v5083 = vand.u32 %v205, 4294901760
    %v5084 = vsub.f32 %v205, %v5083
    %5085 = vmatpush1.msra.mxu0 %v5084
    %5086 = vmatprep.subr.mxu0 0.0
    %v5087 = vand.u32 %v204, 4294901760
    %v5088 = vsub.f32 %v204, %v5087
    %5089 = vmatpush1.msra.mxu0 %v5088
    %5090 = vmatprep.subr.mxu0 0.0
    %v5091 = vand.u32 %v203, 4294901760
    %v5092 = vsub.f32 %v203, %v5091
    %5093 = vmatpush1.msra.mxu0 %v5092
    %5094 = vmatprep.subr.mxu0 0.0
    %v5095 = vand.u32 %v202, 4294901760
    %v5096 = vsub.f32 %v202, %v5095
    %5097 = vmatpush1.msra.mxu0 %v5096
    %5098 = vmatprep.subr.mxu0 0.0
    %v5099 = vand.u32 %v233, 4294901760
    %v5100 = vsub.f32 %v233, %v5099
    %5101 = vmatpush2.msra.mxu0 %v5100
    %5102 = vmatprep.subr.mxu0 0.0
    %v5103 = vand.u32 %v232, 4294901760
    %v5104 = vsub.f32 %v232, %v5103
    %5105 = vmatpush2.msra.mxu0 %v5104
    %5106 = vmatprep.subr.mxu0 0.0
    %v5107 = vand.u32 %v231, 4294901760
    %v5108 = vsub.f32 %v231, %v5107
    %5109 = vmatpush2.msra.mxu0 %v5108
    %5110 = vmatprep.subr.mxu0 0.0
    %v5111 = vand.u32 %v230, 4294901760
    %v5112 = vsub.f32 %v230, %v5111
    %5113 = vmatpush2.msra.mxu0 %v5112
    %5114 = vmatprep.subr.mxu0 0.0
    %v5115 = vand.u32 %v229, 4294901760
    %v5116 = vsub.f32 %v229, %v5115
    %5117 = vmatpush2.msra.mxu0 %v5116
    %5118 = vmatprep.subr.mxu0 0.0
    %v5119 = vand.u32 %v228, 4294901760
    %v5120 = vsub.f32 %v228, %v5119
    %5121 = vmatpush2.msra.mxu0 %v5120
    %5122 = vmatprep.subr.mxu0 0.0
    %v5123 = vand.u32 %v227, 4294901760
    %v5124 = vsub.f32 %v227, %v5123
    %5125 = vmatpush2.msra.mxu0 %v5124
    %5126 = vmatprep.subr.mxu0 0.0
    %v5127 = vand.u32 %v226, 4294901760
    %v5128 = vsub.f32 %v226, %v5127
    %5129 = vmatpush2.msra.mxu0 %v5128
    %5130 = vmatprep.subr.mxu0 0.0
    %v5131 = vand.u32 %v225, 4294901760
    %v5132 = vsub.f32 %v225, %v5131
    %5133 = vmatpush2.msra.mxu0 %v5132
    %5134 = vmatprep.subr.mxu0 0.0
    %v5135 = vand.u32 %v224, 4294901760
    %v5136 = vsub.f32 %v224, %v5135
    %5137 = vmatpush2.msra.mxu0 %v5136
    %5138 = vmatprep.subr.mxu0 0.0
    %v5139 = vand.u32 %v223, 4294901760
    %v5140 = vsub.f32 %v223, %v5139
    %5141 = vmatpush2.msra.mxu0 %v5140
    %5142 = vmatprep.subr.mxu0 0.0
    %v5143 = vand.u32 %v222, 4294901760
    %v5144 = vsub.f32 %v222, %v5143
    %5145 = vmatpush2.msra.mxu0 %v5144
    %5146 = vmatprep.subr.mxu0 0.0
    %v5147 = vand.u32 %v221, 4294901760
    %v5148 = vsub.f32 %v221, %v5147
    %5149 = vmatpush2.msra.mxu0 %v5148
    %5150 = vmatprep.subr.mxu0 0.0
    %v5151 = vand.u32 %v220, 4294901760
    %v5152 = vsub.f32 %v220, %v5151
    %5153 = vmatpush2.msra.mxu0 %v5152
    %5154 = vmatprep.subr.mxu0 0.0
    %v5155 = vand.u32 %v219, 4294901760
    %v5156 = vsub.f32 %v219, %v5155
    %5157 = vmatpush2.msra.mxu0 %v5156
    %5158 = vmatprep.subr.mxu0 0.0
    %v5159 = vand.u32 %v218, 4294901760
    %v5160 = vsub.f32 %v218, %v5159
    %5161 = vmatpush2.msra.mxu0 %v5160
    %v5162 = vand.u32 %v347, 4294901760
    %v5163 = vsub.f32 %v347, %v5162
    %5164 = vmatprep.mubr.f32.mxu0 %v5163
    %v5165 = vand.u32 %v343, 4294901760
    %v5166 = vsub.f32 %v343, %v5165
    %5167 = vmatmul.mubr.f32.gmra.mxu0 %v5166
    %v5168 = vpop.f32.mrf.mxu0
    %v5169 = vadd.f32 %v5031, %v5168
    %v5170 = vpop.f32.mrf.mxu0
    %5171 = vdwg.mxu0
    %5172 = vmatprep.subr.mxu0 0.0
    %v5173 = vand.u32 %v217, 4294901760
    %5174 = vmatpush1.msra.mxu0 %v5173
    %5175 = vmatprep.subr.mxu0 0.0
    %v5176 = vand.u32 %v216, 4294901760
    %5177 = vmatpush1.msra.mxu0 %v5176
    %5178 = vmatprep.subr.mxu0 0.0
    %v5179 = vand.u32 %v215, 4294901760
    %5180 = vmatpush1.msra.mxu0 %v5179
    %5181 = vmatprep.subr.mxu0 0.0
    %v5182 = vand.u32 %v214, 4294901760
    %5183 = vmatpush1.msra.mxu0 %v5182
    %5184 = vmatprep.subr.mxu0 0.0
    %v5185 = vand.u32 %v213, 4294901760
    %5186 = vmatpush1.msra.mxu0 %v5185
    %5187 = vmatprep.subr.mxu0 0.0
    %v5188 = vand.u32 %v212, 4294901760
    %5189 = vmatpush1.msra.mxu0 %v5188
    %5190 = vmatprep.subr.mxu0 0.0
    %v5191 = vand.u32 %v211, 4294901760
    %5192 = vmatpush1.msra.mxu0 %v5191
    %5193 = vmatprep.subr.mxu0 0.0
    %v5194 = vand.u32 %v210, 4294901760
    %5195 = vmatpush1.msra.mxu0 %v5194
    %5196 = vmatprep.subr.mxu0 0.0
    %v5197 = vand.u32 %v209, 4294901760
    %5198 = vmatpush1.msra.mxu0 %v5197
    %5199 = vmatprep.subr.mxu0 0.0
    %v5200 = vand.u32 %v208, 4294901760
    %5201 = vmatpush1.msra.mxu0 %v5200
    %5202 = vmatprep.subr.mxu0 0.0
    %v5203 = vand.u32 %v207, 4294901760
    %5204 = vmatpush1.msra.mxu0 %v5203
    %5205 = vmatprep.subr.mxu0 0.0
    %v5206 = vand.u32 %v206, 4294901760
    %5207 = vmatpush1.msra.mxu0 %v5206
    %5208 = vmatprep.subr.mxu0 0.0
    %v5209 = vand.u32 %v205, 4294901760
    %5210 = vmatpush1.msra.mxu0 %v5209
    %5211 = vmatprep.subr.mxu0 0.0
    %v5212 = vand.u32 %v204, 4294901760
    %5213 = vmatpush1.msra.mxu0 %v5212
    %5214 = vmatprep.subr.mxu0 0.0
    %v5215 = vand.u32 %v203, 4294901760
    %5216 = vmatpush1.msra.mxu0 %v5215
    %5217 = vmatprep.subr.mxu0 0.0
    %v5218 = vand.u32 %v202, 4294901760
    %5219 = vmatpush1.msra.mxu0 %v5218
    %5220 = vmatprep.subr.mxu0 0.0
    %v5221 = vand.u32 %v233, 4294901760
    %5222 = vmatpush2.msra.mxu0 %v5221
    %5223 = vmatprep.subr.mxu0 0.0
    %v5224 = vand.u32 %v232, 4294901760
    %5225 = vmatpush2.msra.mxu0 %v5224
    %5226 = vmatprep.subr.mxu0 0.0
    %v5227 = vand.u32 %v231, 4294901760
    %5228 = vmatpush2.msra.mxu0 %v5227
    %5229 = vmatprep.subr.mxu0 0.0
    %v5230 = vand.u32 %v230, 4294901760
    %5231 = vmatpush2.msra.mxu0 %v5230
    %5232 = vmatprep.subr.mxu0 0.0
    %v5233 = vand.u32 %v229, 4294901760
    %5234 = vmatpush2.msra.mxu0 %v5233
    %5235 = vmatprep.subr.mxu0 0.0
    %v5236 = vand.u32 %v228, 4294901760
    %5237 = vmatpush2.msra.mxu0 %v5236
    %5238 = vmatprep.subr.mxu0 0.0
    %v5239 = vand.u32 %v227, 4294901760
    %5240 = vmatpush2.msra.mxu0 %v5239
    %5241 = vmatprep.subr.mxu0 0.0
    %v5242 = vand.u32 %v226, 4294901760
    %5243 = vmatpush2.msra.mxu0 %v5242
    %5244 = vmatprep.subr.mxu0 0.0
    %v5245 = vand.u32 %v225, 4294901760
    %5246 = vmatpush2.msra.mxu0 %v5245
    %5247 = vmatprep.subr.mxu0 0.0
    %v5248 = vand.u32 %v224, 4294901760
    %5249 = vmatpush2.msra.mxu0 %v5248
    %5250 = vmatprep.subr.mxu0 0.0
    %v5251 = vand.u32 %v223, 4294901760
    %5252 = vmatpush2.msra.mxu0 %v5251
    %5253 = vmatprep.subr.mxu0 0.0
    %v5254 = vand.u32 %v222, 4294901760
    %5255 = vmatpush2.msra.mxu0 %v5254
    %5256 = vmatprep.subr.mxu0 0.0
    %v5257 = vand.u32 %v221, 4294901760
    %5258 = vmatpush2.msra.mxu0 %v5257
    %5259 = vmatprep.subr.mxu0 0.0
    %v5260 = vand.u32 %v220, 4294901760
    %5261 = vmatpush2.msra.mxu0 %v5260
    %5262 = vmatprep.subr.mxu0 0.0
    %v5263 = vand.u32 %v219, 4294901760
    %5264 = vmatpush2.msra.mxu0 %v5263
    %5265 = vmatprep.subr.mxu0 0.0
    %v5266 = vand.u32 %v218, 4294901760
    %5267 = vmatpush2.msra.mxu0 %v5266
    %v5268 = vand.u32 %v347, 4294901760
    %v5269 = vsub.f32 %v347, %v5268
    %v5270 = vand.u32 %v5269, 4294901760
    %5271 = vmatprep.mubr.f32.mxu0 %v5270
    %v5272 = vand.u32 %v343, 4294901760
    %v5273 = vsub.f32 %v343, %v5272
    %v5274 = vand.u32 %v5273, 4294901760
    %5275 = vmatmul.mubr.f32.gmra.mxu0 %v5274
    %v5276 = vpop.f32.mrf.mxu0
    %v5277 = vadd.f32 %v5169, %v5276
    %v5278 = vpop.f32.mrf.mxu0
    %5279 = vdwg.mxu0
    %5280 = vmatprep.subr.mxu0 0.0
    %v5281 = vand.u32 %v217, 4294901760
    %v5282 = vsub.f32 %v217, %v5281
    %v5283 = vand.u32 %v5282, 4294901760
    %5284 = vmatpush1.msra.mxu0 %v5283
    %5285 = vmatprep.subr.mxu0 0.0
    %v5286 = vand.u32 %v216, 4294901760
    %v5287 = vsub.f32 %v216, %v5286
    %v5288 = vand.u32 %v5287, 4294901760
    %5289 = vmatpush1.msra.mxu0 %v5288
    %5290 = vmatprep.subr.mxu0 0.0
    %v5291 = vand.u32 %v215, 4294901760
    %v5292 = vsub.f32 %v215, %v5291
    %v5293 = vand.u32 %v5292, 4294901760
    %5294 = vmatpush1.msra.mxu0 %v5293
    %5295 = vmatprep.subr.mxu0 0.0
    %v5296 = vand.u32 %v214, 4294901760
    %v5297 = vsub.f32 %v214, %v5296
    %v5298 = vand.u32 %v5297, 4294901760
    %5299 = vmatpush1.msra.mxu0 %v5298
    %5300 = vmatprep.subr.mxu0 0.0
    %v5301 = vand.u32 %v213, 4294901760
    %v5302 = vsub.f32 %v213, %v5301
    %v5303 = vand.u32 %v5302, 4294901760
    %5304 = vmatpush1.msra.mxu0 %v5303
    %5305 = vmatprep.subr.mxu0 0.0
    %v5306 = vand.u32 %v212, 4294901760
    %v5307 = vsub.f32 %v212, %v5306
    %v5308 = vand.u32 %v5307, 4294901760
    %5309 = vmatpush1.msra.mxu0 %v5308
    %5310 = vmatprep.subr.mxu0 0.0
    %v5311 = vand.u32 %v211, 4294901760
    %v5312 = vsub.f32 %v211, %v5311
    %v5313 = vand.u32 %v5312, 4294901760
    %5314 = vmatpush1.msra.mxu0 %v5313
    %5315 = vmatprep.subr.mxu0 0.0
    %v5316 = vand.u32 %v210, 4294901760
    %v5317 = vsub.f32 %v210, %v5316
    %v5318 = vand.u32 %v5317, 4294901760
    %5319 = vmatpush1.msra.mxu0 %v5318
    %5320 = vmatprep.subr.mxu0 0.0
    %v5321 = vand.u32 %v209, 4294901760
    %v5322 = vsub.f32 %v209, %v5321
    %v5323 = vand.u32 %v5322, 4294901760
    %5324 = vmatpush1.msra.mxu0 %v5323
    %5325 = vmatprep.subr.mxu0 0.0
    %v5326 = vand.u32 %v208, 4294901760
    %v5327 = vsub.f32 %v208, %v5326
    %v5328 = vand.u32 %v5327, 4294901760
    %5329 = vmatpush1.msra.mxu0 %v5328
    %5330 = vmatprep.subr.mxu0 0.0
    %v5331 = vand.u32 %v207, 4294901760
    %v5332 = vsub.f32 %v207, %v5331
    %v5333 = vand.u32 %v5332, 4294901760
    %5334 = vmatpush1.msra.mxu0 %v5333
    %5335 = vmatprep.subr.mxu0 0.0
    %v5336 = vand.u32 %v206, 4294901760
    %v5337 = vsub.f32 %v206, %v5336
    %v5338 = vand.u32 %v5337, 4294901760
    %5339 = vmatpush1.msra.mxu0 %v5338
    %5340 = vmatprep.subr.mxu0 0.0
    %v5341 = vand.u32 %v205, 4294901760
    %v5342 = vsub.f32 %v205, %v5341
    %v5343 = vand.u32 %v5342, 4294901760
    %5344 = vmatpush1.msra.mxu0 %v5343
    %5345 = vmatprep.subr.mxu0 0.0
    %v5346 = vand.u32 %v204, 4294901760
    %v5347 = vsub.f32 %v204, %v5346
    %v5348 = vand.u32 %v5347, 4294901760
    %5349 = vmatpush1.msra.mxu0 %v5348
    %5350 = vmatprep.subr.mxu0 0.0
    %v5351 = vand.u32 %v203, 4294901760
    %v5352 = vsub.f32 %v203, %v5351
    %v5353 = vand.u32 %v5352, 4294901760
    %5354 = vmatpush1.msra.mxu0 %v5353
    %5355 = vmatprep.subr.mxu0 0.0
    %v5356 = vand.u32 %v202, 4294901760
    %v5357 = vsub.f32 %v202, %v5356
    %v5358 = vand.u32 %v5357, 4294901760
    %5359 = vmatpush1.msra.mxu0 %v5358
    %5360 = vmatprep.subr.mxu0 0.0
    %v5361 = vand.u32 %v233, 4294901760
    %v5362 = vsub.f32 %v233, %v5361
    %v5363 = vand.u32 %v5362, 4294901760
    %5364 = vmatpush2.msra.mxu0 %v5363
    %5365 = vmatprep.subr.mxu0 0.0
    %v5366 = vand.u32 %v232, 4294901760
    %v5367 = vsub.f32 %v232, %v5366
    %v5368 = vand.u32 %v5367, 4294901760
    %5369 = vmatpush2.msra.mxu0 %v5368
    %5370 = vmatprep.subr.mxu0 0.0
    %v5371 = vand.u32 %v231, 4294901760
    %v5372 = vsub.f32 %v231, %v5371
    %v5373 = vand.u32 %v5372, 4294901760
    %5374 = vmatpush2.msra.mxu0 %v5373
    %5375 = vmatprep.subr.mxu0 0.0
    %v5376 = vand.u32 %v230, 4294901760
    %v5377 = vsub.f32 %v230, %v5376
    %v5378 = vand.u32 %v5377, 4294901760
    %5379 = vmatpush2.msra.mxu0 %v5378
    %5380 = vmatprep.subr.mxu0 0.0
    %v5381 = vand.u32 %v229, 4294901760
    %v5382 = vsub.f32 %v229, %v5381
    %v5383 = vand.u32 %v5382, 4294901760
    %5384 = vmatpush2.msra.mxu0 %v5383
    %5385 = vmatprep.subr.mxu0 0.0
    %v5386 = vand.u32 %v228, 4294901760
    %v5387 = vsub.f32 %v228, %v5386
    %v5388 = vand.u32 %v5387, 4294901760
    %5389 = vmatpush2.msra.mxu0 %v5388
    %5390 = vmatprep.subr.mxu0 0.0
    %v5391 = vand.u32 %v227, 4294901760
    %v5392 = vsub.f32 %v227, %v5391
    %v5393 = vand.u32 %v5392, 4294901760
    %5394 = vmatpush2.msra.mxu0 %v5393
    %5395 = vmatprep.subr.mxu0 0.0
    %v5396 = vand.u32 %v226, 4294901760
    %v5397 = vsub.f32 %v226, %v5396
    %v5398 = vand.u32 %v5397, 4294901760
    %5399 = vmatpush2.msra.mxu0 %v5398
    %5400 = vmatprep.subr.mxu0 0.0
    %v5401 = vand.u32 %v225, 4294901760
    %v5402 = vsub.f32 %v225, %v5401
    %v5403 = vand.u32 %v5402, 4294901760
    %5404 = vmatpush2.msra.mxu0 %v5403
    %5405 = vmatprep.subr.mxu0 0.0
    %v5406 = vand.u32 %v224, 4294901760
    %v5407 = vsub.f32 %v224, %v5406
    %v5408 = vand.u32 %v5407, 4294901760
    %5409 = vmatpush2.msra.mxu0 %v5408
    %5410 = vmatprep.subr.mxu0 0.0
    %v5411 = vand.u32 %v223, 4294901760
    %v5412 = vsub.f32 %v223, %v5411
    %v5413 = vand.u32 %v5412, 4294901760
    %5414 = vmatpush2.msra.mxu0 %v5413
    %5415 = vmatprep.subr.mxu0 0.0
    %v5416 = vand.u32 %v222, 4294901760
    %v5417 = vsub.f32 %v222, %v5416
    %v5418 = vand.u32 %v5417, 4294901760
    %5419 = vmatpush2.msra.mxu0 %v5418
    %5420 = vmatprep.subr.mxu0 0.0
    %v5421 = vand.u32 %v221, 4294901760
    %v5422 = vsub.f32 %v221, %v5421
    %v5423 = vand.u32 %v5422, 4294901760
    %5424 = vmatpush2.msra.mxu0 %v5423
    %5425 = vmatprep.subr.mxu0 0.0
    %v5426 = vand.u32 %v220, 4294901760
    %v5427 = vsub.f32 %v220, %v5426
    %v5428 = vand.u32 %v5427, 4294901760
    %5429 = vmatpush2.msra.mxu0 %v5428
    %5430 = vmatprep.subr.mxu0 0.0
    %v5431 = vand.u32 %v219, 4294901760
    %v5432 = vsub.f32 %v219, %v5431
    %v5433 = vand.u32 %v5432, 4294901760
    %5434 = vmatpush2.msra.mxu0 %v5433
    %5435 = vmatprep.subr.mxu0 0.0
    %v5436 = vand.u32 %v218, 4294901760
    %v5437 = vsub.f32 %v218, %v5436
    %v5438 = vand.u32 %v5437, 4294901760
    %5439 = vmatpush2.msra.mxu0 %v5438
    %v5440 = vand.u32 %v347, 4294901760
    %5441 = vmatprep.mubr.f32.mxu0 %v5440
    %v5442 = vand.u32 %v343, 4294901760
    %5443 = vmatmul.mubr.f32.gmra.mxu0 %v5442
    %v5444 = vpop.f32.mrf.mxu0
    %v5445 = vadd.f32 %v5277, %v5444
    %v5446 = vpop.f32.mrf.mxu0
    %5447 = vdwg.mxu0
    %5448 = vmatprep.subr.mxu0 0.0
    %v5449 = vand.u32 %v217, 4294901760
    %5450 = vmatpush1.msra.mxu0 %v5449
    %5451 = vmatprep.subr.mxu0 0.0
    %v5452 = vand.u32 %v216, 4294901760
    %5453 = vmatpush1.msra.mxu0 %v5452
    %5454 = vmatprep.subr.mxu0 0.0
    %v5455 = vand.u32 %v215, 4294901760
    %5456 = vmatpush1.msra.mxu0 %v5455
    %5457 = vmatprep.subr.mxu0 0.0
    %v5458 = vand.u32 %v214, 4294901760
    %5459 = vmatpush1.msra.mxu0 %v5458
    %5460 = vmatprep.subr.mxu0 0.0
    %v5461 = vand.u32 %v213, 4294901760
    %5462 = vmatpush1.msra.mxu0 %v5461
    %5463 = vmatprep.subr.mxu0 0.0
    %v5464 = vand.u32 %v212, 4294901760
    %5465 = vmatpush1.msra.mxu0 %v5464
    %5466 = vmatprep.subr.mxu0 0.0
    %v5467 = vand.u32 %v211, 4294901760
    %5468 = vmatpush1.msra.mxu0 %v5467
    %5469 = vmatprep.subr.mxu0 0.0
    %v5470 = vand.u32 %v210, 4294901760
    %5471 = vmatpush1.msra.mxu0 %v5470
    %5472 = vmatprep.subr.mxu0 0.0
    %v5473 = vand.u32 %v209, 4294901760
    %5474 = vmatpush1.msra.mxu0 %v5473
    %5475 = vmatprep.subr.mxu0 0.0
    %v5476 = vand.u32 %v208, 4294901760
    %5477 = vmatpush1.msra.mxu0 %v5476
    %5478 = vmatprep.subr.mxu0 0.0
    %v5479 = vand.u32 %v207, 4294901760
    %5480 = vmatpush1.msra.mxu0 %v5479
    %5481 = vmatprep.subr.mxu0 0.0
    %v5482 = vand.u32 %v206, 4294901760
    %5483 = vmatpush1.msra.mxu0 %v5482
    %5484 = vmatprep.subr.mxu0 0.0
    %v5485 = vand.u32 %v205, 4294901760
    %5486 = vmatpush1.msra.mxu0 %v5485
    %5487 = vmatprep.subr.mxu0 0.0
    %v5488 = vand.u32 %v204, 4294901760
    %5489 = vmatpush1.msra.mxu0 %v5488
    %5490 = vmatprep.subr.mxu0 0.0
    %v5491 = vand.u32 %v203, 4294901760
    %5492 = vmatpush1.msra.mxu0 %v5491
    %5493 = vmatprep.subr.mxu0 0.0
    %v5494 = vand.u32 %v202, 4294901760
    %5495 = vmatpush1.msra.mxu0 %v5494
    %5496 = vmatprep.subr.mxu0 0.0
    %v5497 = vand.u32 %v233, 4294901760
    %5498 = vmatpush2.msra.mxu0 %v5497
    %5499 = vmatprep.subr.mxu0 0.0
    %v5500 = vand.u32 %v232, 4294901760
    %5501 = vmatpush2.msra.mxu0 %v5500
    %5502 = vmatprep.subr.mxu0 0.0
    %v5503 = vand.u32 %v231, 4294901760
    %5504 = vmatpush2.msra.mxu0 %v5503
    %5505 = vmatprep.subr.mxu0 0.0
    %v5506 = vand.u32 %v230, 4294901760
    %5507 = vmatpush2.msra.mxu0 %v5506
    %5508 = vmatprep.subr.mxu0 0.0
    %v5509 = vand.u32 %v229, 4294901760
    %5510 = vmatpush2.msra.mxu0 %v5509
    %5511 = vmatprep.subr.mxu0 0.0
    %v5512 = vand.u32 %v228, 4294901760
    %5513 = vmatpush2.msra.mxu0 %v5512
    %5514 = vmatprep.subr.mxu0 0.0
    %v5515 = vand.u32 %v227, 4294901760
    %5516 = vmatpush2.msra.mxu0 %v5515
    %5517 = vmatprep.subr.mxu0 0.0
    %v5518 = vand.u32 %v226, 4294901760
    %5519 = vmatpush2.msra.mxu0 %v5518
    %5520 = vmatprep.subr.mxu0 0.0
    %v5521 = vand.u32 %v225, 4294901760
    %5522 = vmatpush2.msra.mxu0 %v5521
    %5523 = vmatprep.subr.mxu0 0.0
    %v5524 = vand.u32 %v224, 4294901760
    %5525 = vmatpush2.msra.mxu0 %v5524
    %5526 = vmatprep.subr.mxu0 0.0
    %v5527 = vand.u32 %v223, 4294901760
    %5528 = vmatpush2.msra.mxu0 %v5527
    %5529 = vmatprep.subr.mxu0 0.0
    %v5530 = vand.u32 %v222, 4294901760
    %5531 = vmatpush2.msra.mxu0 %v5530
    %5532 = vmatprep.subr.mxu0 0.0
    %v5533 = vand.u32 %v221, 4294901760
    %5534 = vmatpush2.msra.mxu0 %v5533
    %5535 = vmatprep.subr.mxu0 0.0
    %v5536 = vand.u32 %v220, 4294901760
    %5537 = vmatpush2.msra.mxu0 %v5536
    %5538 = vmatprep.subr.mxu0 0.0
    %v5539 = vand.u32 %v219, 4294901760
    %5540 = vmatpush2.msra.mxu0 %v5539
    %5541 = vmatprep.subr.mxu0 0.0
    %v5542 = vand.u32 %v218, 4294901760
    %5543 = vmatpush2.msra.mxu0 %v5542
    %v5544 = vand.u32 %v347, 4294901760
    %5545 = vmatprep.mubr.f32.mxu0 %v5544
    %v5546 = vand.u32 %v343, 4294901760
    %5547 = vmatmul.mubr.f32.gmra.mxu0 %v5546
    %v5548 = vpop.f32.mrf.mxu0
    %v5549 = vadd.f32 %v5445, %v5548
    %v5550 = vpop.f32.mrf.mxu0
    %5551 = vdwg.mxu0
    %5552 = vmatprep.subr.mxu0 0.0
    %v5553 = vand.u32 %v249, 4294901760
    %5554 = vmatpush1.msra.mxu0 %v5553
    %5555 = vmatprep.subr.mxu0 0.0
    %v5556 = vand.u32 %v248, 4294901760
    %5557 = vmatpush1.msra.mxu0 %v5556
    %5558 = vmatprep.subr.mxu0 0.0
    %v5559 = vand.u32 %v247, 4294901760
    %5560 = vmatpush1.msra.mxu0 %v5559
    %5561 = vmatprep.subr.mxu0 0.0
    %v5562 = vand.u32 %v246, 4294901760
    %5563 = vmatpush1.msra.mxu0 %v5562
    %5564 = vmatprep.subr.mxu0 0.0
    %v5565 = vand.u32 %v245, 4294901760
    %5566 = vmatpush1.msra.mxu0 %v5565
    %5567 = vmatprep.subr.mxu0 0.0
    %v5568 = vand.u32 %v244, 4294901760
    %5569 = vmatpush1.msra.mxu0 %v5568
    %5570 = vmatprep.subr.mxu0 0.0
    %v5571 = vand.u32 %v243, 4294901760
    %5572 = vmatpush1.msra.mxu0 %v5571
    %5573 = vmatprep.subr.mxu0 0.0
    %v5574 = vand.u32 %v242, 4294901760
    %5575 = vmatpush1.msra.mxu0 %v5574
    %5576 = vmatprep.subr.mxu0 0.0
    %v5577 = vand.u32 %v241, 4294901760
    %5578 = vmatpush1.msra.mxu0 %v5577
    %5579 = vmatprep.subr.mxu0 0.0
    %v5580 = vand.u32 %v240, 4294901760
    %5581 = vmatpush1.msra.mxu0 %v5580
    %5582 = vmatprep.subr.mxu0 0.0
    %v5583 = vand.u32 %v239, 4294901760
    %5584 = vmatpush1.msra.mxu0 %v5583
    %5585 = vmatprep.subr.mxu0 0.0
    %v5586 = vand.u32 %v238, 4294901760
    %5587 = vmatpush1.msra.mxu0 %v5586
    %5588 = vmatprep.subr.mxu0 0.0
    %v5589 = vand.u32 %v237, 4294901760
    %5590 = vmatpush1.msra.mxu0 %v5589
    %5591 = vmatprep.subr.mxu0 0.0
    %v5592 = vand.u32 %v236, 4294901760
    %5593 = vmatpush1.msra.mxu0 %v5592
    %5594 = vmatprep.subr.mxu0 0.0
    %v5595 = vand.u32 %v235, 4294901760
    %5596 = vmatpush1.msra.mxu0 %v5595
    %5597 = vmatprep.subr.mxu0 0.0
    %v5598 = vand.u32 %v234, 4294901760
    %5599 = vmatpush1.msra.mxu0 %v5598
    %5600 = vmatprep.subr.mxu0 0.0
    %v5601 = vand.u32 %v265, 4294901760
    %5602 = vmatpush2.msra.mxu0 %v5601
    %5603 = vmatprep.subr.mxu0 0.0
    %v5604 = vand.u32 %v264, 4294901760
    %5605 = vmatpush2.msra.mxu0 %v5604
    %5606 = vmatprep.subr.mxu0 0.0
    %v5607 = vand.u32 %v263, 4294901760
    %5608 = vmatpush2.msra.mxu0 %v5607
    %5609 = vmatprep.subr.mxu0 0.0
    %v5610 = vand.u32 %v262, 4294901760
    %5611 = vmatpush2.msra.mxu0 %v5610
    %5612 = vmatprep.subr.mxu0 0.0
    %v5613 = vand.u32 %v261, 4294901760
    %5614 = vmatpush2.msra.mxu0 %v5613
    %5615 = vmatprep.subr.mxu0 0.0
    %v5616 = vand.u32 %v260, 4294901760
    %5617 = vmatpush2.msra.mxu0 %v5616
    %5618 = vmatprep.subr.mxu0 0.0
    %v5619 = vand.u32 %v259, 4294901760
    %5620 = vmatpush2.msra.mxu0 %v5619
    %5621 = vmatprep.subr.mxu0 0.0
    %v5622 = vand.u32 %v258, 4294901760
    %5623 = vmatpush2.msra.mxu0 %v5622
    %5624 = vmatprep.subr.mxu0 0.0
    %v5625 = vand.u32 %v257, 4294901760
    %5626 = vmatpush2.msra.mxu0 %v5625
    %5627 = vmatprep.subr.mxu0 0.0
    %v5628 = vand.u32 %v256, 4294901760
    %5629 = vmatpush2.msra.mxu0 %v5628
    %5630 = vmatprep.subr.mxu0 0.0
    %v5631 = vand.u32 %v255, 4294901760
    %5632 = vmatpush2.msra.mxu0 %v5631
    %5633 = vmatprep.subr.mxu0 0.0
    %v5634 = vand.u32 %v254, 4294901760
    %5635 = vmatpush2.msra.mxu0 %v5634
    %5636 = vmatprep.subr.mxu0 0.0
    %v5637 = vand.u32 %v253, 4294901760
    %5638 = vmatpush2.msra.mxu0 %v5637
    %5639 = vmatprep.subr.mxu0 0.0
    %v5640 = vand.u32 %v252, 4294901760
    %5641 = vmatpush2.msra.mxu0 %v5640
    %5642 = vmatprep.subr.mxu0 0.0
    %v5643 = vand.u32 %v251, 4294901760
    %5644 = vmatpush2.msra.mxu0 %v5643
    %5645 = vmatprep.subr.mxu0 0.0
    %v5646 = vand.u32 %v250, 4294901760
    %5647 = vmatpush2.msra.mxu0 %v5646
    %v5648 = vand.u32 %v355, 4294901760
    %v5649 = vsub.f32 %v355, %v5648
    %v5650 = vand.u32 %v5649, 4294901760
    %v5651 = vsub.f32 %v5649, %v5650
    %v5652 = vand.u32 %v5651, 4294901760
    %5653 = vmatprep.mubr.f32.mxu0 %v5652
    %v5654 = vand.u32 %v351, 4294901760
    %v5655 = vsub.f32 %v351, %v5654
    %v5656 = vand.u32 %v5655, 4294901760
    %v5657 = vsub.f32 %v5655, %v5656
    %v5658 = vand.u32 %v5657, 4294901760
    %5659 = vmatmul.mubr.f32.gmra.mxu0 %v5658
    %v5660 = vpop.f32.mrf.mxu0
    %v5661 = vadd.f32 %v5549, %v5660
    %v5662 = vpop.f32.mrf.mxu0
    %5663 = vdwg.mxu0
    %5664 = vmatprep.subr.mxu0 0.0
    %v5665 = vand.u32 %v249, 4294901760
    %v5666 = vsub.f32 %v249, %v5665
    %v5667 = vand.u32 %v5666, 4294901760
    %v5668 = vsub.f32 %v5666, %v5667
    %v5669 = vand.u32 %v5668, 4294901760
    %5670 = vmatpush1.msra.mxu0 %v5669
    %5671 = vmatprep.subr.mxu0 0.0
    %v5672 = vand.u32 %v248, 4294901760
    %v5673 = vsub.f32 %v248, %v5672
    %v5674 = vand.u32 %v5673, 4294901760
    %v5675 = vsub.f32 %v5673, %v5674
    %v5676 = vand.u32 %v5675, 4294901760
    %5677 = vmatpush1.msra.mxu0 %v5676
    %5678 = vmatprep.subr.mxu0 0.0
    %v5679 = vand.u32 %v247, 4294901760
    %v5680 = vsub.f32 %v247, %v5679
    %v5681 = vand.u32 %v5680, 4294901760
    %v5682 = vsub.f32 %v5680, %v5681
    %v5683 = vand.u32 %v5682, 4294901760
    %5684 = vmatpush1.msra.mxu0 %v5683
    %5685 = vmatprep.subr.mxu0 0.0
    %v5686 = vand.u32 %v246, 4294901760
    %v5687 = vsub.f32 %v246, %v5686
    %v5688 = vand.u32 %v5687, 4294901760
    %v5689 = vsub.f32 %v5687, %v5688
    %v5690 = vand.u32 %v5689, 4294901760
    %5691 = vmatpush1.msra.mxu0 %v5690
    %5692 = vmatprep.subr.mxu0 0.0
    %v5693 = vand.u32 %v245, 4294901760
    %v5694 = vsub.f32 %v245, %v5693
    %v5695 = vand.u32 %v5694, 4294901760
    %v5696 = vsub.f32 %v5694, %v5695
    %v5697 = vand.u32 %v5696, 4294901760
    %5698 = vmatpush1.msra.mxu0 %v5697
    %5699 = vmatprep.subr.mxu0 0.0
    %v5700 = vand.u32 %v244, 4294901760
    %v5701 = vsub.f32 %v244, %v5700
    %v5702 = vand.u32 %v5701, 4294901760
    %v5703 = vsub.f32 %v5701, %v5702
    %v5704 = vand.u32 %v5703, 4294901760
    %5705 = vmatpush1.msra.mxu0 %v5704
    %5706 = vmatprep.subr.mxu0 0.0
    %v5707 = vand.u32 %v243, 4294901760
    %v5708 = vsub.f32 %v243, %v5707
    %v5709 = vand.u32 %v5708, 4294901760
    %v5710 = vsub.f32 %v5708, %v5709
    %v5711 = vand.u32 %v5710, 4294901760
    %5712 = vmatpush1.msra.mxu0 %v5711
    %5713 = vmatprep.subr.mxu0 0.0
    %v5714 = vand.u32 %v242, 4294901760
    %v5715 = vsub.f32 %v242, %v5714
    %v5716 = vand.u32 %v5715, 4294901760
    %v5717 = vsub.f32 %v5715, %v5716
    %v5718 = vand.u32 %v5717, 4294901760
    %5719 = vmatpush1.msra.mxu0 %v5718
    %5720 = vmatprep.subr.mxu0 0.0
    %v5721 = vand.u32 %v241, 4294901760
    %v5722 = vsub.f32 %v241, %v5721
    %v5723 = vand.u32 %v5722, 4294901760
    %v5724 = vsub.f32 %v5722, %v5723
    %v5725 = vand.u32 %v5724, 4294901760
    %5726 = vmatpush1.msra.mxu0 %v5725
    %5727 = vmatprep.subr.mxu0 0.0
    %v5728 = vand.u32 %v240, 4294901760
    %v5729 = vsub.f32 %v240, %v5728
    %v5730 = vand.u32 %v5729, 4294901760
    %v5731 = vsub.f32 %v5729, %v5730
    %v5732 = vand.u32 %v5731, 4294901760
    %5733 = vmatpush1.msra.mxu0 %v5732
    %5734 = vmatprep.subr.mxu0 0.0
    %v5735 = vand.u32 %v239, 4294901760
    %v5736 = vsub.f32 %v239, %v5735
    %v5737 = vand.u32 %v5736, 4294901760
    %v5738 = vsub.f32 %v5736, %v5737
    %v5739 = vand.u32 %v5738, 4294901760
    %5740 = vmatpush1.msra.mxu0 %v5739
    %5741 = vmatprep.subr.mxu0 0.0
    %v5742 = vand.u32 %v238, 4294901760
    %v5743 = vsub.f32 %v238, %v5742
    %v5744 = vand.u32 %v5743, 4294901760
    %v5745 = vsub.f32 %v5743, %v5744
    %v5746 = vand.u32 %v5745, 4294901760
    %5747 = vmatpush1.msra.mxu0 %v5746
    %5748 = vmatprep.subr.mxu0 0.0
    %v5749 = vand.u32 %v237, 4294901760
    %v5750 = vsub.f32 %v237, %v5749
    %v5751 = vand.u32 %v5750, 4294901760
    %v5752 = vsub.f32 %v5750, %v5751
    %v5753 = vand.u32 %v5752, 4294901760
    %5754 = vmatpush1.msra.mxu0 %v5753
    %5755 = vmatprep.subr.mxu0 0.0
    %v5756 = vand.u32 %v236, 4294901760
    %v5757 = vsub.f32 %v236, %v5756
    %v5758 = vand.u32 %v5757, 4294901760
    %v5759 = vsub.f32 %v5757, %v5758
    %v5760 = vand.u32 %v5759, 4294901760
    %5761 = vmatpush1.msra.mxu0 %v5760
    %5762 = vmatprep.subr.mxu0 0.0
    %v5763 = vand.u32 %v235, 4294901760
    %v5764 = vsub.f32 %v235, %v5763
    %v5765 = vand.u32 %v5764, 4294901760
    %v5766 = vsub.f32 %v5764, %v5765
    %v5767 = vand.u32 %v5766, 4294901760
    %5768 = vmatpush1.msra.mxu0 %v5767
    %5769 = vmatprep.subr.mxu0 0.0
    %v5770 = vand.u32 %v234, 4294901760
    %v5771 = vsub.f32 %v234, %v5770
    %v5772 = vand.u32 %v5771, 4294901760
    %v5773 = vsub.f32 %v5771, %v5772
    %v5774 = vand.u32 %v5773, 4294901760
    %5775 = vmatpush1.msra.mxu0 %v5774
    %5776 = vmatprep.subr.mxu0 0.0
    %v5777 = vand.u32 %v265, 4294901760
    %v5778 = vsub.f32 %v265, %v5777
    %v5779 = vand.u32 %v5778, 4294901760
    %v5780 = vsub.f32 %v5778, %v5779
    %v5781 = vand.u32 %v5780, 4294901760
    %5782 = vmatpush2.msra.mxu0 %v5781
    %5783 = vmatprep.subr.mxu0 0.0
    %v5784 = vand.u32 %v264, 4294901760
    %v5785 = vsub.f32 %v264, %v5784
    %v5786 = vand.u32 %v5785, 4294901760
    %v5787 = vsub.f32 %v5785, %v5786
    %v5788 = vand.u32 %v5787, 4294901760
    %5789 = vmatpush2.msra.mxu0 %v5788
    %5790 = vmatprep.subr.mxu0 0.0
    %v5791 = vand.u32 %v263, 4294901760
    %v5792 = vsub.f32 %v263, %v5791
    %v5793 = vand.u32 %v5792, 4294901760
    %v5794 = vsub.f32 %v5792, %v5793
    %v5795 = vand.u32 %v5794, 4294901760
    %5796 = vmatpush2.msra.mxu0 %v5795
    %5797 = vmatprep.subr.mxu0 0.0
    %v5798 = vand.u32 %v262, 4294901760
    %v5799 = vsub.f32 %v262, %v5798
    %v5800 = vand.u32 %v5799, 4294901760
    %v5801 = vsub.f32 %v5799, %v5800
    %v5802 = vand.u32 %v5801, 4294901760
    %5803 = vmatpush2.msra.mxu0 %v5802
    %5804 = vmatprep.subr.mxu0 0.0
    %v5805 = vand.u32 %v261, 4294901760
    %v5806 = vsub.f32 %v261, %v5805
    %v5807 = vand.u32 %v5806, 4294901760
    %v5808 = vsub.f32 %v5806, %v5807
    %v5809 = vand.u32 %v5808, 4294901760
    %5810 = vmatpush2.msra.mxu0 %v5809
    %5811 = vmatprep.subr.mxu0 0.0
    %v5812 = vand.u32 %v260, 4294901760
    %v5813 = vsub.f32 %v260, %v5812
    %v5814 = vand.u32 %v5813, 4294901760
    %v5815 = vsub.f32 %v5813, %v5814
    %v5816 = vand.u32 %v5815, 4294901760
    %5817 = vmatpush2.msra.mxu0 %v5816
    %5818 = vmatprep.subr.mxu0 0.0
    %v5819 = vand.u32 %v259, 4294901760
    %v5820 = vsub.f32 %v259, %v5819
    %v5821 = vand.u32 %v5820, 4294901760
    %v5822 = vsub.f32 %v5820, %v5821
    %v5823 = vand.u32 %v5822, 4294901760
    %5824 = vmatpush2.msra.mxu0 %v5823
    %5825 = vmatprep.subr.mxu0 0.0
    %v5826 = vand.u32 %v258, 4294901760
    %v5827 = vsub.f32 %v258, %v5826
    %v5828 = vand.u32 %v5827, 4294901760
    %v5829 = vsub.f32 %v5827, %v5828
    %v5830 = vand.u32 %v5829, 4294901760
    %5831 = vmatpush2.msra.mxu0 %v5830
    %5832 = vmatprep.subr.mxu0 0.0
    %v5833 = vand.u32 %v257, 4294901760
    %v5834 = vsub.f32 %v257, %v5833
    %v5835 = vand.u32 %v5834, 4294901760
    %v5836 = vsub.f32 %v5834, %v5835
    %v5837 = vand.u32 %v5836, 4294901760
    %5838 = vmatpush2.msra.mxu0 %v5837
    %5839 = vmatprep.subr.mxu0 0.0
    %v5840 = vand.u32 %v256, 4294901760
    %v5841 = vsub.f32 %v256, %v5840
    %v5842 = vand.u32 %v5841, 4294901760
    %v5843 = vsub.f32 %v5841, %v5842
    %v5844 = vand.u32 %v5843, 4294901760
    %5845 = vmatpush2.msra.mxu0 %v5844
    %5846 = vmatprep.subr.mxu0 0.0
    %v5847 = vand.u32 %v255, 4294901760
    %v5848 = vsub.f32 %v255, %v5847
    %v5849 = vand.u32 %v5848, 4294901760
    %v5850 = vsub.f32 %v5848, %v5849
    %v5851 = vand.u32 %v5850, 4294901760
    %5852 = vmatpush2.msra.mxu0 %v5851
    %5853 = vmatprep.subr.mxu0 0.0
    %v5854 = vand.u32 %v254, 4294901760
    %v5855 = vsub.f32 %v254, %v5854
    %v5856 = vand.u32 %v5855, 4294901760
    %v5857 = vsub.f32 %v5855, %v5856
    %v5858 = vand.u32 %v5857, 4294901760
    %5859 = vmatpush2.msra.mxu0 %v5858
    %5860 = vmatprep.subr.mxu0 0.0
    %v5861 = vand.u32 %v253, 4294901760
    %v5862 = vsub.f32 %v253, %v5861
    %v5863 = vand.u32 %v5862, 4294901760
    %v5864 = vsub.f32 %v5862, %v5863
    %v5865 = vand.u32 %v5864, 4294901760
    %5866 = vmatpush2.msra.mxu0 %v5865
    %5867 = vmatprep.subr.mxu0 0.0
    %v5868 = vand.u32 %v252, 4294901760
    %v5869 = vsub.f32 %v252, %v5868
    %v5870 = vand.u32 %v5869, 4294901760
    %v5871 = vsub.f32 %v5869, %v5870
    %v5872 = vand.u32 %v5871, 4294901760
    %5873 = vmatpush2.msra.mxu0 %v5872
    %5874 = vmatprep.subr.mxu0 0.0
    %v5875 = vand.u32 %v251, 4294901760
    %v5876 = vsub.f32 %v251, %v5875
    %v5877 = vand.u32 %v5876, 4294901760
    %v5878 = vsub.f32 %v5876, %v5877
    %v5879 = vand.u32 %v5878, 4294901760
    %5880 = vmatpush2.msra.mxu0 %v5879
    %5881 = vmatprep.subr.mxu0 0.0
    %v5882 = vand.u32 %v250, 4294901760
    %v5883 = vsub.f32 %v250, %v5882
    %v5884 = vand.u32 %v5883, 4294901760
    %v5885 = vsub.f32 %v5883, %v5884
    %v5886 = vand.u32 %v5885, 4294901760
    %5887 = vmatpush2.msra.mxu0 %v5886
    %v5888 = vand.u32 %v355, 4294901760
    %5889 = vmatprep.mubr.f32.mxu0 %v5888
    %v5890 = vand.u32 %v351, 4294901760
    %5891 = vmatmul.mubr.f32.gmra.mxu0 %v5890
    %v5892 = vpop.f32.mrf.mxu0
    %v5893 = vadd.f32 %v5661, %v5892
    %v5894 = vpop.f32.mrf.mxu0
    %5895 = vdwg.mxu0
    %5896 = vmatprep.subr.mxu0 0.0
    %v5897 = vand.u32 %v249, 4294901760
    %v5898 = vsub.f32 %v249, %v5897
    %5899 = vmatpush1.msra.mxu0 %v5898
    %5900 = vmatprep.subr.mxu0 0.0
    %v5901 = vand.u32 %v248, 4294901760
    %v5902 = vsub.f32 %v248, %v5901
    %5903 = vmatpush1.msra.mxu0 %v5902
    %5904 = vmatprep.subr.mxu0 0.0
    %v5905 = vand.u32 %v247, 4294901760
    %v5906 = vsub.f32 %v247, %v5905
    %5907 = vmatpush1.msra.mxu0 %v5906
    %5908 = vmatprep.subr.mxu0 0.0
    %v5909 = vand.u32 %v246, 4294901760
    %v5910 = vsub.f32 %v246, %v5909
    %5911 = vmatpush1.msra.mxu0 %v5910
    %5912 = vmatprep.subr.mxu0 0.0
    %v5913 = vand.u32 %v245, 4294901760
    %v5914 = vsub.f32 %v245, %v5913
    %5915 = vmatpush1.msra.mxu0 %v5914
    %5916 = vmatprep.subr.mxu0 0.0
    %v5917 = vand.u32 %v244, 4294901760
    %v5918 = vsub.f32 %v244, %v5917
    %5919 = vmatpush1.msra.mxu0 %v5918
    %5920 = vmatprep.subr.mxu0 0.0
    %v5921 = vand.u32 %v243, 4294901760
    %v5922 = vsub.f32 %v243, %v5921
    %5923 = vmatpush1.msra.mxu0 %v5922
    %5924 = vmatprep.subr.mxu0 0.0
    %v5925 = vand.u32 %v242, 4294901760
    %v5926 = vsub.f32 %v242, %v5925
    %5927 = vmatpush1.msra.mxu0 %v5926
    %5928 = vmatprep.subr.mxu0 0.0
    %v5929 = vand.u32 %v241, 4294901760
    %v5930 = vsub.f32 %v241, %v5929
    %5931 = vmatpush1.msra.mxu0 %v5930
    %5932 = vmatprep.subr.mxu0 0.0
    %v5933 = vand.u32 %v240, 4294901760
    %v5934 = vsub.f32 %v240, %v5933
    %5935 = vmatpush1.msra.mxu0 %v5934
    %5936 = vmatprep.subr.mxu0 0.0
    %v5937 = vand.u32 %v239, 4294901760
    %v5938 = vsub.f32 %v239, %v5937
    %5939 = vmatpush1.msra.mxu0 %v5938
    %5940 = vmatprep.subr.mxu0 0.0
    %v5941 = vand.u32 %v238, 4294901760
    %v5942 = vsub.f32 %v238, %v5941
    %5943 = vmatpush1.msra.mxu0 %v5942
    %5944 = vmatprep.subr.mxu0 0.0
    %v5945 = vand.u32 %v237, 4294901760
    %v5946 = vsub.f32 %v237, %v5945
    %5947 = vmatpush1.msra.mxu0 %v5946
    %5948 = vmatprep.subr.mxu0 0.0
    %v5949 = vand.u32 %v236, 4294901760
    %v5950 = vsub.f32 %v236, %v5949
    %5951 = vmatpush1.msra.mxu0 %v5950
    %5952 = vmatprep.subr.mxu0 0.0
    %v5953 = vand.u32 %v235, 4294901760
    %v5954 = vsub.f32 %v235, %v5953
    %5955 = vmatpush1.msra.mxu0 %v5954
    %5956 = vmatprep.subr.mxu0 0.0
    %v5957 = vand.u32 %v234, 4294901760
    %v5958 = vsub.f32 %v234, %v5957
    %5959 = vmatpush1.msra.mxu0 %v5958
    %5960 = vmatprep.subr.mxu0 0.0
    %v5961 = vand.u32 %v265, 4294901760
    %v5962 = vsub.f32 %v265, %v5961
    %5963 = vmatpush2.msra.mxu0 %v5962
    %5964 = vmatprep.subr.mxu0 0.0
    %v5965 = vand.u32 %v264, 4294901760
    %v5966 = vsub.f32 %v264, %v5965
    %5967 = vmatpush2.msra.mxu0 %v5966
    %5968 = vmatprep.subr.mxu0 0.0
    %v5969 = vand.u32 %v263, 4294901760
    %v5970 = vsub.f32 %v263, %v5969
    %5971 = vmatpush2.msra.mxu0 %v5970
    %5972 = vmatprep.subr.mxu0 0.0
    %v5973 = vand.u32 %v262, 4294901760
    %v5974 = vsub.f32 %v262, %v5973
    %5975 = vmatpush2.msra.mxu0 %v5974
    %5976 = vmatprep.subr.mxu0 0.0
    %v5977 = vand.u32 %v261, 4294901760
    %v5978 = vsub.f32 %v261, %v5977
    %5979 = vmatpush2.msra.mxu0 %v5978
    %5980 = vmatprep.subr.mxu0 0.0
    %v5981 = vand.u32 %v260, 4294901760
    %v5982 = vsub.f32 %v260, %v5981
    %5983 = vmatpush2.msra.mxu0 %v5982
    %5984 = vmatprep.subr.mxu0 0.0
    %v5985 = vand.u32 %v259, 4294901760
    %v5986 = vsub.f32 %v259, %v5985
    %5987 = vmatpush2.msra.mxu0 %v5986
    %5988 = vmatprep.subr.mxu0 0.0
    %v5989 = vand.u32 %v258, 4294901760
    %v5990 = vsub.f32 %v258, %v5989
    %5991 = vmatpush2.msra.mxu0 %v5990
    %5992 = vmatprep.subr.mxu0 0.0
    %v5993 = vand.u32 %v257, 4294901760
    %v5994 = vsub.f32 %v257, %v5993
    %5995 = vmatpush2.msra.mxu0 %v5994
    %5996 = vmatprep.subr.mxu0 0.0
    %v5997 = vand.u32 %v256, 4294901760
    %v5998 = vsub.f32 %v256, %v5997
    %5999 = vmatpush2.msra.mxu0 %v5998
    %6000 = vmatprep.subr.mxu0 0.0
    %v6001 = vand.u32 %v255, 4294901760
    %v6002 = vsub.f32 %v255, %v6001
    %6003 = vmatpush2.msra.mxu0 %v6002
    %6004 = vmatprep.subr.mxu0 0.0
    %v6005 = vand.u32 %v254, 4294901760
    %v6006 = vsub.f32 %v254, %v6005
    %6007 = vmatpush2.msra.mxu0 %v6006
    %6008 = vmatprep.subr.mxu0 0.0
    %v6009 = vand.u32 %v253, 4294901760
    %v6010 = vsub.f32 %v253, %v6009
    %6011 = vmatpush2.msra.mxu0 %v6010
    %6012 = vmatprep.subr.mxu0 0.0
    %v6013 = vand.u32 %v252, 4294901760
    %v6014 = vsub.f32 %v252, %v6013
    %6015 = vmatpush2.msra.mxu0 %v6014
    %6016 = vmatprep.subr.mxu0 0.0
    %v6017 = vand.u32 %v251, 4294901760
    %v6018 = vsub.f32 %v251, %v6017
    %6019 = vmatpush2.msra.mxu0 %v6018
    %6020 = vmatprep.subr.mxu0 0.0
    %v6021 = vand.u32 %v250, 4294901760
    %v6022 = vsub.f32 %v250, %v6021
    %6023 = vmatpush2.msra.mxu0 %v6022
    %v6024 = vand.u32 %v355, 4294901760
    %v6025 = vsub.f32 %v355, %v6024
    %6026 = vmatprep.mubr.f32.mxu0 %v6025
    %v6027 = vand.u32 %v351, 4294901760
    %v6028 = vsub.f32 %v351, %v6027
    %6029 = vmatmul.mubr.f32.gmra.mxu0 %v6028
    %v6030 = vpop.f32.mrf.mxu0
    %v6031 = vadd.f32 %v5893, %v6030
    %v6032 = vpop.f32.mrf.mxu0
    %6033 = vdwg.mxu0
    %6034 = vmatprep.subr.mxu0 0.0
    %v6035 = vand.u32 %v249, 4294901760
    %6036 = vmatpush1.msra.mxu0 %v6035
    %6037 = vmatprep.subr.mxu0 0.0
    %v6038 = vand.u32 %v248, 4294901760
    %6039 = vmatpush1.msra.mxu0 %v6038
    %6040 = vmatprep.subr.mxu0 0.0
    %v6041 = vand.u32 %v247, 4294901760
    %6042 = vmatpush1.msra.mxu0 %v6041
    %6043 = vmatprep.subr.mxu0 0.0
    %v6044 = vand.u32 %v246, 4294901760
    %6045 = vmatpush1.msra.mxu0 %v6044
    %6046 = vmatprep.subr.mxu0 0.0
    %v6047 = vand.u32 %v245, 4294901760
    %6048 = vmatpush1.msra.mxu0 %v6047
    %6049 = vmatprep.subr.mxu0 0.0
    %v6050 = vand.u32 %v244, 4294901760
    %6051 = vmatpush1.msra.mxu0 %v6050
    %6052 = vmatprep.subr.mxu0 0.0
    %v6053 = vand.u32 %v243, 4294901760
    %6054 = vmatpush1.msra.mxu0 %v6053
    %6055 = vmatprep.subr.mxu0 0.0
    %v6056 = vand.u32 %v242, 4294901760
    %6057 = vmatpush1.msra.mxu0 %v6056
    %6058 = vmatprep.subr.mxu0 0.0
    %v6059 = vand.u32 %v241, 4294901760
    %6060 = vmatpush1.msra.mxu0 %v6059
    %6061 = vmatprep.subr.mxu0 0.0
    %v6062 = vand.u32 %v240, 4294901760
    %6063 = vmatpush1.msra.mxu0 %v6062
    %6064 = vmatprep.subr.mxu0 0.0
    %v6065 = vand.u32 %v239, 4294901760
    %6066 = vmatpush1.msra.mxu0 %v6065
    %6067 = vmatprep.subr.mxu0 0.0
    %v6068 = vand.u32 %v238, 4294901760
    %6069 = vmatpush1.msra.mxu0 %v6068
    %6070 = vmatprep.subr.mxu0 0.0
    %v6071 = vand.u32 %v237, 4294901760
    %6072 = vmatpush1.msra.mxu0 %v6071
    %6073 = vmatprep.subr.mxu0 0.0
    %v6074 = vand.u32 %v236, 4294901760
    %6075 = vmatpush1.msra.mxu0 %v6074
    %6076 = vmatprep.subr.mxu0 0.0
    %v6077 = vand.u32 %v235, 4294901760
    %6078 = vmatpush1.msra.mxu0 %v6077
    %6079 = vmatprep.subr.mxu0 0.0
    %v6080 = vand.u32 %v234, 4294901760
    %6081 = vmatpush1.msra.mxu0 %v6080
    %6082 = vmatprep.subr.mxu0 0.0
    %v6083 = vand.u32 %v265, 4294901760
    %6084 = vmatpush2.msra.mxu0 %v6083
    %6085 = vmatprep.subr.mxu0 0.0
    %v6086 = vand.u32 %v264, 4294901760
    %6087 = vmatpush2.msra.mxu0 %v6086
    %6088 = vmatprep.subr.mxu0 0.0
    %v6089 = vand.u32 %v263, 4294901760
    %6090 = vmatpush2.msra.mxu0 %v6089
    %6091 = vmatprep.subr.mxu0 0.0
    %v6092 = vand.u32 %v262, 4294901760
    %6093 = vmatpush2.msra.mxu0 %v6092
    %6094 = vmatprep.subr.mxu0 0.0
    %v6095 = vand.u32 %v261, 4294901760
    %6096 = vmatpush2.msra.mxu0 %v6095
    %6097 = vmatprep.subr.mxu0 0.0
    %v6098 = vand.u32 %v260, 4294901760
    %6099 = vmatpush2.msra.mxu0 %v6098
    %6100 = vmatprep.subr.mxu0 0.0
    %v6101 = vand.u32 %v259, 4294901760
    %6102 = vmatpush2.msra.mxu0 %v6101
    %6103 = vmatprep.subr.mxu0 0.0
    %v6104 = vand.u32 %v258, 4294901760
    %6105 = vmatpush2.msra.mxu0 %v6104
    %6106 = vmatprep.subr.mxu0 0.0
    %v6107 = vand.u32 %v257, 4294901760
    %6108 = vmatpush2.msra.mxu0 %v6107
    %6109 = vmatprep.subr.mxu0 0.0
    %v6110 = vand.u32 %v256, 4294901760
    %6111 = vmatpush2.msra.mxu0 %v6110
    %6112 = vmatprep.subr.mxu0 0.0
    %v6113 = vand.u32 %v255, 4294901760
    %6114 = vmatpush2.msra.mxu0 %v6113
    %6115 = vmatprep.subr.mxu0 0.0
    %v6116 = vand.u32 %v254, 4294901760
    %6117 = vmatpush2.msra.mxu0 %v6116
    %6118 = vmatprep.subr.mxu0 0.0
    %v6119 = vand.u32 %v253, 4294901760
    %6120 = vmatpush2.msra.mxu0 %v6119
    %6121 = vmatprep.subr.mxu0 0.0
    %v6122 = vand.u32 %v252, 4294901760
    %6123 = vmatpush2.msra.mxu0 %v6122
    %6124 = vmatprep.subr.mxu0 0.0
    %v6125 = vand.u32 %v251, 4294901760
    %6126 = vmatpush2.msra.mxu0 %v6125
    %6127 = vmatprep.subr.mxu0 0.0
    %v6128 = vand.u32 %v250, 4294901760
    %6129 = vmatpush2.msra.mxu0 %v6128
    %v6130 = vand.u32 %v355, 4294901760
    %v6131 = vsub.f32 %v355, %v6130
    %v6132 = vand.u32 %v6131, 4294901760
    %6133 = vmatprep.mubr.f32.mxu0 %v6132
    %v6134 = vand.u32 %v351, 4294901760
    %v6135 = vsub.f32 %v351, %v6134
    %v6136 = vand.u32 %v6135, 4294901760
    %6137 = vmatmul.mubr.f32.gmra.mxu0 %v6136
    %v6138 = vpop.f32.mrf.mxu0
    %v6139 = vadd.f32 %v6031, %v6138
    %v6140 = vpop.f32.mrf.mxu0
    %6141 = vdwg.mxu0
    %6142 = vmatprep.subr.mxu0 0.0
    %v6143 = vand.u32 %v249, 4294901760
    %v6144 = vsub.f32 %v249, %v6143
    %v6145 = vand.u32 %v6144, 4294901760
    %6146 = vmatpush1.msra.mxu0 %v6145
    %6147 = vmatprep.subr.mxu0 0.0
    %v6148 = vand.u32 %v248, 4294901760
    %v6149 = vsub.f32 %v248, %v6148
    %v6150 = vand.u32 %v6149, 4294901760
    %6151 = vmatpush1.msra.mxu0 %v6150
    %6152 = vmatprep.subr.mxu0 0.0
    %v6153 = vand.u32 %v247, 4294901760
    %v6154 = vsub.f32 %v247, %v6153
    %v6155 = vand.u32 %v6154, 4294901760
    %6156 = vmatpush1.msra.mxu0 %v6155
    %6157 = vmatprep.subr.mxu0 0.0
    %v6158 = vand.u32 %v246, 4294901760
    %v6159 = vsub.f32 %v246, %v6158
    %v6160 = vand.u32 %v6159, 4294901760
    %6161 = vmatpush1.msra.mxu0 %v6160
    %6162 = vmatprep.subr.mxu0 0.0
    %v6163 = vand.u32 %v245, 4294901760
    %v6164 = vsub.f32 %v245, %v6163
    %v6165 = vand.u32 %v6164, 4294901760
    %6166 = vmatpush1.msra.mxu0 %v6165
    %6167 = vmatprep.subr.mxu0 0.0
    %v6168 = vand.u32 %v244, 4294901760
    %v6169 = vsub.f32 %v244, %v6168
    %v6170 = vand.u32 %v6169, 4294901760
    %6171 = vmatpush1.msra.mxu0 %v6170
    %6172 = vmatprep.subr.mxu0 0.0
    %v6173 = vand.u32 %v243, 4294901760
    %v6174 = vsub.f32 %v243, %v6173
    %v6175 = vand.u32 %v6174, 4294901760
    %6176 = vmatpush1.msra.mxu0 %v6175
    %6177 = vmatprep.subr.mxu0 0.0
    %v6178 = vand.u32 %v242, 4294901760
    %v6179 = vsub.f32 %v242, %v6178
    %v6180 = vand.u32 %v6179, 4294901760
    %6181 = vmatpush1.msra.mxu0 %v6180
    %6182 = vmatprep.subr.mxu0 0.0
    %v6183 = vand.u32 %v241, 4294901760
    %v6184 = vsub.f32 %v241, %v6183
    %v6185 = vand.u32 %v6184, 4294901760
    %6186 = vmatpush1.msra.mxu0 %v6185
    %6187 = vmatprep.subr.mxu0 0.0
    %v6188 = vand.u32 %v240, 4294901760
    %v6189 = vsub.f32 %v240, %v6188
    %v6190 = vand.u32 %v6189, 4294901760
    %6191 = vmatpush1.msra.mxu0 %v6190
    %6192 = vmatprep.subr.mxu0 0.0
    %v6193 = vand.u32 %v239, 4294901760
    %v6194 = vsub.f32 %v239, %v6193
    %v6195 = vand.u32 %v6194, 4294901760
    %6196 = vmatpush1.msra.mxu0 %v6195
    %6197 = vmatprep.subr.mxu0 0.0
    %v6198 = vand.u32 %v238, 4294901760
    %v6199 = vsub.f32 %v238, %v6198
    %v6200 = vand.u32 %v6199, 4294901760
    %6201 = vmatpush1.msra.mxu0 %v6200
    %6202 = vmatprep.subr.mxu0 0.0
    %v6203 = vand.u32 %v237, 4294901760
    %v6204 = vsub.f32 %v237, %v6203
    %v6205 = vand.u32 %v6204, 4294901760
    %6206 = vmatpush1.msra.mxu0 %v6205
    %6207 = vmatprep.subr.mxu0 0.0
    %v6208 = vand.u32 %v236, 4294901760
    %v6209 = vsub.f32 %v236, %v6208
    %v6210 = vand.u32 %v6209, 4294901760
    %6211 = vmatpush1.msra.mxu0 %v6210
    %6212 = vmatprep.subr.mxu0 0.0
    %v6213 = vand.u32 %v235, 4294901760
    %v6214 = vsub.f32 %v235, %v6213
    %v6215 = vand.u32 %v6214, 4294901760
    %6216 = vmatpush1.msra.mxu0 %v6215
    %6217 = vmatprep.subr.mxu0 0.0
    %v6218 = vand.u32 %v234, 4294901760
    %v6219 = vsub.f32 %v234, %v6218
    %v6220 = vand.u32 %v6219, 4294901760
    %6221 = vmatpush1.msra.mxu0 %v6220
    %6222 = vmatprep.subr.mxu0 0.0
    %v6223 = vand.u32 %v265, 4294901760
    %v6224 = vsub.f32 %v265, %v6223
    %v6225 = vand.u32 %v6224, 4294901760
    %6226 = vmatpush2.msra.mxu0 %v6225
    %6227 = vmatprep.subr.mxu0 0.0
    %v6228 = vand.u32 %v264, 4294901760
    %v6229 = vsub.f32 %v264, %v6228
    %v6230 = vand.u32 %v6229, 4294901760
    %6231 = vmatpush2.msra.mxu0 %v6230
    %6232 = vmatprep.subr.mxu0 0.0
    %v6233 = vand.u32 %v263, 4294901760
    %v6234 = vsub.f32 %v263, %v6233
    %v6235 = vand.u32 %v6234, 4294901760
    %6236 = vmatpush2.msra.mxu0 %v6235
    %6237 = vmatprep.subr.mxu0 0.0
    %v6238 = vand.u32 %v262, 4294901760
    %v6239 = vsub.f32 %v262, %v6238
    %v6240 = vand.u32 %v6239, 4294901760
    %6241 = vmatpush2.msra.mxu0 %v6240
    %6242 = vmatprep.subr.mxu0 0.0
    %v6243 = vand.u32 %v261, 4294901760
    %v6244 = vsub.f32 %v261, %v6243
    %v6245 = vand.u32 %v6244, 4294901760
    %6246 = vmatpush2.msra.mxu0 %v6245
    %6247 = vmatprep.subr.mxu0 0.0
    %v6248 = vand.u32 %v260, 4294901760
    %v6249 = vsub.f32 %v260, %v6248
    %v6250 = vand.u32 %v6249, 4294901760
    %6251 = vmatpush2.msra.mxu0 %v6250
    %6252 = vmatprep.subr.mxu0 0.0
    %v6253 = vand.u32 %v259, 4294901760
    %v6254 = vsub.f32 %v259, %v6253
    %v6255 = vand.u32 %v6254, 4294901760
    %6256 = vmatpush2.msra.mxu0 %v6255
    %6257 = vmatprep.subr.mxu0 0.0
    %v6258 = vand.u32 %v258, 4294901760
    %v6259 = vsub.f32 %v258, %v6258
    %v6260 = vand.u32 %v6259, 4294901760
    %6261 = vmatpush2.msra.mxu0 %v6260
    %6262 = vmatprep.subr.mxu0 0.0
    %v6263 = vand.u32 %v257, 4294901760
    %v6264 = vsub.f32 %v257, %v6263
    %v6265 = vand.u32 %v6264, 4294901760
    %6266 = vmatpush2.msra.mxu0 %v6265
    %6267 = vmatprep.subr.mxu0 0.0
    %v6268 = vand.u32 %v256, 4294901760
    %v6269 = vsub.f32 %v256, %v6268
    %v6270 = vand.u32 %v6269, 4294901760
    %6271 = vmatpush2.msra.mxu0 %v6270
    %6272 = vmatprep.subr.mxu0 0.0
    %v6273 = vand.u32 %v255, 4294901760
    %v6274 = vsub.f32 %v255, %v6273
    %v6275 = vand.u32 %v6274, 4294901760
    %6276 = vmatpush2.msra.mxu0 %v6275
    %6277 = vmatprep.subr.mxu0 0.0
    %v6278 = vand.u32 %v254, 4294901760
    %v6279 = vsub.f32 %v254, %v6278
    %v6280 = vand.u32 %v6279, 4294901760
    %6281 = vmatpush2.msra.mxu0 %v6280
    %6282 = vmatprep.subr.mxu0 0.0
    %v6283 = vand.u32 %v253, 4294901760
    %v6284 = vsub.f32 %v253, %v6283
    %v6285 = vand.u32 %v6284, 4294901760
    %6286 = vmatpush2.msra.mxu0 %v6285
    %6287 = vmatprep.subr.mxu0 0.0
    %v6288 = vand.u32 %v252, 4294901760
    %v6289 = vsub.f32 %v252, %v6288
    %v6290 = vand.u32 %v6289, 4294901760
    %6291 = vmatpush2.msra.mxu0 %v6290
    %6292 = vmatprep.subr.mxu0 0.0
    %v6293 = vand.u32 %v251, 4294901760
    %v6294 = vsub.f32 %v251, %v6293
    %v6295 = vand.u32 %v6294, 4294901760
    %6296 = vmatpush2.msra.mxu0 %v6295
    %6297 = vmatprep.subr.mxu0 0.0
    %v6298 = vand.u32 %v250, 4294901760
    %v6299 = vsub.f32 %v250, %v6298
    %v6300 = vand.u32 %v6299, 4294901760
    %6301 = vmatpush2.msra.mxu0 %v6300
    %v6302 = vand.u32 %v355, 4294901760
    %6303 = vmatprep.mubr.f32.mxu0 %v6302
    %v6304 = vand.u32 %v351, 4294901760
    %6305 = vmatmul.mubr.f32.gmra.mxu0 %v6304
    %v6306 = vpop.f32.mrf.mxu0
    %v6307 = vadd.f32 %v6139, %v6306
    %v6308 = vpop.f32.mrf.mxu0
    %6309 = vdwg.mxu0
    %6310 = vmatprep.subr.mxu0 0.0
    %v6311 = vand.u32 %v249, 4294901760
    %6312 = vmatpush1.msra.mxu0 %v6311
    %6313 = vmatprep.subr.mxu0 0.0
    %v6314 = vand.u32 %v248, 4294901760
    %6315 = vmatpush1.msra.mxu0 %v6314
    %6316 = vmatprep.subr.mxu0 0.0
    %v6317 = vand.u32 %v247, 4294901760
    %6318 = vmatpush1.msra.mxu0 %v6317
    %6319 = vmatprep.subr.mxu0 0.0
    %v6320 = vand.u32 %v246, 4294901760
    %6321 = vmatpush1.msra.mxu0 %v6320
    %6322 = vmatprep.subr.mxu0 0.0
    %v6323 = vand.u32 %v245, 4294901760
    %6324 = vmatpush1.msra.mxu0 %v6323
    %6325 = vmatprep.subr.mxu0 0.0
    %v6326 = vand.u32 %v244, 4294901760
    %6327 = vmatpush1.msra.mxu0 %v6326
    %6328 = vmatprep.subr.mxu0 0.0
    %v6329 = vand.u32 %v243, 4294901760
    %6330 = vmatpush1.msra.mxu0 %v6329
    %6331 = vmatprep.subr.mxu0 0.0
    %v6332 = vand.u32 %v242, 4294901760
    %6333 = vmatpush1.msra.mxu0 %v6332
    %6334 = vmatprep.subr.mxu0 0.0
    %v6335 = vand.u32 %v241, 4294901760
    %6336 = vmatpush1.msra.mxu0 %v6335
    %6337 = vmatprep.subr.mxu0 0.0
    %v6338 = vand.u32 %v240, 4294901760
    %6339 = vmatpush1.msra.mxu0 %v6338
    %6340 = vmatprep.subr.mxu0 0.0
    %v6341 = vand.u32 %v239, 4294901760
    %6342 = vmatpush1.msra.mxu0 %v6341
    %6343 = vmatprep.subr.mxu0 0.0
    %v6344 = vand.u32 %v238, 4294901760
    %6345 = vmatpush1.msra.mxu0 %v6344
    %6346 = vmatprep.subr.mxu0 0.0
    %v6347 = vand.u32 %v237, 4294901760
    %6348 = vmatpush1.msra.mxu0 %v6347
    %6349 = vmatprep.subr.mxu0 0.0
    %v6350 = vand.u32 %v236, 4294901760
    %6351 = vmatpush1.msra.mxu0 %v6350
    %6352 = vmatprep.subr.mxu0 0.0
    %v6353 = vand.u32 %v235, 4294901760
    %6354 = vmatpush1.msra.mxu0 %v6353
    %6355 = vmatprep.subr.mxu0 0.0
    %v6356 = vand.u32 %v234, 4294901760
    %6357 = vmatpush1.msra.mxu0 %v6356
    %6358 = vmatprep.subr.mxu0 0.0
    %v6359 = vand.u32 %v265, 4294901760
    %6360 = vmatpush2.msra.mxu0 %v6359
    %6361 = vmatprep.subr.mxu0 0.0
    %v6362 = vand.u32 %v264, 4294901760
    %6363 = vmatpush2.msra.mxu0 %v6362
    %6364 = vmatprep.subr.mxu0 0.0
    %v6365 = vand.u32 %v263, 4294901760
    %6366 = vmatpush2.msra.mxu0 %v6365
    %6367 = vmatprep.subr.mxu0 0.0
    %v6368 = vand.u32 %v262, 4294901760
    %6369 = vmatpush2.msra.mxu0 %v6368
    %6370 = vmatprep.subr.mxu0 0.0
    %v6371 = vand.u32 %v261, 4294901760
    %6372 = vmatpush2.msra.mxu0 %v6371
    %6373 = vmatprep.subr.mxu0 0.0
    %v6374 = vand.u32 %v260, 4294901760
    %6375 = vmatpush2.msra.mxu0 %v6374
    %6376 = vmatprep.subr.mxu0 0.0
    %v6377 = vand.u32 %v259, 4294901760
    %6378 = vmatpush2.msra.mxu0 %v6377
    %6379 = vmatprep.subr.mxu0 0.0
    %v6380 = vand.u32 %v258, 4294901760
    %6381 = vmatpush2.msra.mxu0 %v6380
    %6382 = vmatprep.subr.mxu0 0.0
    %v6383 = vand.u32 %v257, 4294901760
    %6384 = vmatpush2.msra.mxu0 %v6383
    %6385 = vmatprep.subr.mxu0 0.0
    %v6386 = vand.u32 %v256, 4294901760
    %6387 = vmatpush2.msra.mxu0 %v6386
    %6388 = vmatprep.subr.mxu0 0.0
    %v6389 = vand.u32 %v255, 4294901760
    %6390 = vmatpush2.msra.mxu0 %v6389
    %6391 = vmatprep.subr.mxu0 0.0
    %v6392 = vand.u32 %v254, 4294901760
    %6393 = vmatpush2.msra.mxu0 %v6392
    %6394 = vmatprep.subr.mxu0 0.0
    %v6395 = vand.u32 %v253, 4294901760
    %6396 = vmatpush2.msra.mxu0 %v6395
    %6397 = vmatprep.subr.mxu0 0.0
    %v6398 = vand.u32 %v252, 4294901760
    %6399 = vmatpush2.msra.mxu0 %v6398
    %6400 = vmatprep.subr.mxu0 0.0
    %v6401 = vand.u32 %v251, 4294901760
    %6402 = vmatpush2.msra.mxu0 %v6401
    %6403 = vmatprep.subr.mxu0 0.0
    %v6404 = vand.u32 %v250, 4294901760
    %6405 = vmatpush2.msra.mxu0 %v6404
    %v6406 = vand.u32 %v355, 4294901760
    %6407 = vmatprep.mubr.f32.mxu0 %v6406
    %v6408 = vand.u32 %v351, 4294901760
    %6409 = vmatmul.mubr.f32.gmra.mxu0 %v6408
    %v6410 = vpop.f32.mrf.mxu0
    %v6411 = vadd.f32 %v6307, %v6410
    %v6412 = vpop.f32.mrf.mxu0
    %6413 = vdwg.mxu0
    %6414 = vmatprep.subr.mxu0 0.0
    %v6415 = vand.u32 %v281, 4294901760
    %6416 = vmatpush1.msra.mxu0 %v6415
    %6417 = vmatprep.subr.mxu0 0.0
    %v6418 = vand.u32 %v280, 4294901760
    %6419 = vmatpush1.msra.mxu0 %v6418
    %6420 = vmatprep.subr.mxu0 0.0
    %v6421 = vand.u32 %v279, 4294901760
    %6422 = vmatpush1.msra.mxu0 %v6421
    %6423 = vmatprep.subr.mxu0 0.0
    %v6424 = vand.u32 %v278, 4294901760
    %6425 = vmatpush1.msra.mxu0 %v6424
    %6426 = vmatprep.subr.mxu0 0.0
    %v6427 = vand.u32 %v277, 4294901760
    %6428 = vmatpush1.msra.mxu0 %v6427
    %6429 = vmatprep.subr.mxu0 0.0
    %v6430 = vand.u32 %v276, 4294901760
    %6431 = vmatpush1.msra.mxu0 %v6430
    %6432 = vmatprep.subr.mxu0 0.0
    %v6433 = vand.u32 %v275, 4294901760
    %6434 = vmatpush1.msra.mxu0 %v6433
    %6435 = vmatprep.subr.mxu0 0.0
    %v6436 = vand.u32 %v274, 4294901760
    %6437 = vmatpush1.msra.mxu0 %v6436
    %6438 = vmatprep.subr.mxu0 0.0
    %v6439 = vand.u32 %v273, 4294901760
    %6440 = vmatpush1.msra.mxu0 %v6439
    %6441 = vmatprep.subr.mxu0 0.0
    %v6442 = vand.u32 %v272, 4294901760
    %6443 = vmatpush1.msra.mxu0 %v6442
    %6444 = vmatprep.subr.mxu0 0.0
    %v6445 = vand.u32 %v271, 4294901760
    %6446 = vmatpush1.msra.mxu0 %v6445
    %6447 = vmatprep.subr.mxu0 0.0
    %v6448 = vand.u32 %v270, 4294901760
    %6449 = vmatpush1.msra.mxu0 %v6448
    %6450 = vmatprep.subr.mxu0 0.0
    %v6451 = vand.u32 %v269, 4294901760
    %6452 = vmatpush1.msra.mxu0 %v6451
    %6453 = vmatprep.subr.mxu0 0.0
    %v6454 = vand.u32 %v268, 4294901760
    %6455 = vmatpush1.msra.mxu0 %v6454
    %6456 = vmatprep.subr.mxu0 0.0
    %v6457 = vand.u32 %v267, 4294901760
    %6458 = vmatpush1.msra.mxu0 %v6457
    %6459 = vmatprep.subr.mxu0 0.0
    %v6460 = vand.u32 %v266, 4294901760
    %6461 = vmatpush1.msra.mxu0 %v6460
    %6462 = vmatprep.subr.mxu0 0.0
    %v6463 = vand.u32 %v297, 4294901760
    %6464 = vmatpush2.msra.mxu0 %v6463
    %6465 = vmatprep.subr.mxu0 0.0
    %v6466 = vand.u32 %v296, 4294901760
    %6467 = vmatpush2.msra.mxu0 %v6466
    %6468 = vmatprep.subr.mxu0 0.0
    %v6469 = vand.u32 %v295, 4294901760
    %6470 = vmatpush2.msra.mxu0 %v6469
    %6471 = vmatprep.subr.mxu0 0.0
    %v6472 = vand.u32 %v294, 4294901760
    %6473 = vmatpush2.msra.mxu0 %v6472
    %6474 = vmatprep.subr.mxu0 0.0
    %v6475 = vand.u32 %v293, 4294901760
    %6476 = vmatpush2.msra.mxu0 %v6475
    %6477 = vmatprep.subr.mxu0 0.0
    %v6478 = vand.u32 %v292, 4294901760
    %6479 = vmatpush2.msra.mxu0 %v6478
    %6480 = vmatprep.subr.mxu0 0.0
    %v6481 = vand.u32 %v291, 4294901760
    %6482 = vmatpush2.msra.mxu0 %v6481
    %6483 = vmatprep.subr.mxu0 0.0
    %v6484 = vand.u32 %v290, 4294901760
    %6485 = vmatpush2.msra.mxu0 %v6484
    %6486 = vmatprep.subr.mxu0 0.0
    %v6487 = vand.u32 %v289, 4294901760
    %6488 = vmatpush2.msra.mxu0 %v6487
    %6489 = vmatprep.subr.mxu0 0.0
    %v6490 = vand.u32 %v288, 4294901760
    %6491 = vmatpush2.msra.mxu0 %v6490
    %6492 = vmatprep.subr.mxu0 0.0
    %v6493 = vand.u32 %v287, 4294901760
    %6494 = vmatpush2.msra.mxu0 %v6493
    %6495 = vmatprep.subr.mxu0 0.0
    %v6496 = vand.u32 %v286, 4294901760
    %6497 = vmatpush2.msra.mxu0 %v6496
    %6498 = vmatprep.subr.mxu0 0.0
    %v6499 = vand.u32 %v285, 4294901760
    %6500 = vmatpush2.msra.mxu0 %v6499
    %6501 = vmatprep.subr.mxu0 0.0
    %v6502 = vand.u32 %v284, 4294901760
    %6503 = vmatpush2.msra.mxu0 %v6502
    %6504 = vmatprep.subr.mxu0 0.0
    %v6505 = vand.u32 %v283, 4294901760
    %6506 = vmatpush2.msra.mxu0 %v6505
    %6507 = vmatprep.subr.mxu0 0.0
    %v6508 = vand.u32 %v282, 4294901760
    %6509 = vmatpush2.msra.mxu0 %v6508
    %v6510 = vand.u32 %v363, 4294901760
    %v6511 = vsub.f32 %v363, %v6510
    %v6512 = vand.u32 %v6511, 4294901760
    %v6513 = vsub.f32 %v6511, %v6512
    %v6514 = vand.u32 %v6513, 4294901760
    %6515 = vmatprep.mubr.f32.mxu0 %v6514
    %v6516 = vand.u32 %v359, 4294901760
    %v6517 = vsub.f32 %v359, %v6516
    %v6518 = vand.u32 %v6517, 4294901760
    %v6519 = vsub.f32 %v6517, %v6518
    %v6520 = vand.u32 %v6519, 4294901760
    %6521 = vmatmul.mubr.f32.gmra.mxu0 %v6520
    %v6522 = vpop.f32.mrf.mxu0
    %v6523 = vadd.f32 %v6411, %v6522
    %v6524 = vpop.f32.mrf.mxu0
    %6525 = vdwg.mxu0
    %6526 = vmatprep.subr.mxu0 0.0
    %v6527 = vand.u32 %v281, 4294901760
    %v6528 = vsub.f32 %v281, %v6527
    %v6529 = vand.u32 %v6528, 4294901760
    %v6530 = vsub.f32 %v6528, %v6529
    %v6531 = vand.u32 %v6530, 4294901760
    %6532 = vmatpush1.msra.mxu0 %v6531
    %6533 = vmatprep.subr.mxu0 0.0
    %v6534 = vand.u32 %v280, 4294901760
    %v6535 = vsub.f32 %v280, %v6534
    %v6536 = vand.u32 %v6535, 4294901760
    %v6537 = vsub.f32 %v6535, %v6536
    %v6538 = vand.u32 %v6537, 4294901760
    %6539 = vmatpush1.msra.mxu0 %v6538
    %6540 = vmatprep.subr.mxu0 0.0
    %v6541 = vand.u32 %v279, 4294901760
    %v6542 = vsub.f32 %v279, %v6541
    %v6543 = vand.u32 %v6542, 4294901760
    %v6544 = vsub.f32 %v6542, %v6543
    %v6545 = vand.u32 %v6544, 4294901760
    %6546 = vmatpush1.msra.mxu0 %v6545
    %6547 = vmatprep.subr.mxu0 0.0
    %v6548 = vand.u32 %v278, 4294901760
    %v6549 = vsub.f32 %v278, %v6548
    %v6550 = vand.u32 %v6549, 4294901760
    %v6551 = vsub.f32 %v6549, %v6550
    %v6552 = vand.u32 %v6551, 4294901760
    %6553 = vmatpush1.msra.mxu0 %v6552
    %6554 = vmatprep.subr.mxu0 0.0
    %v6555 = vand.u32 %v277, 4294901760
    %v6556 = vsub.f32 %v277, %v6555
    %v6557 = vand.u32 %v6556, 4294901760
    %v6558 = vsub.f32 %v6556, %v6557
    %v6559 = vand.u32 %v6558, 4294901760
    %6560 = vmatpush1.msra.mxu0 %v6559
    %6561 = vmatprep.subr.mxu0 0.0
    %v6562 = vand.u32 %v276, 4294901760
    %v6563 = vsub.f32 %v276, %v6562
    %v6564 = vand.u32 %v6563, 4294901760
    %v6565 = vsub.f32 %v6563, %v6564
    %v6566 = vand.u32 %v6565, 4294901760
    %6567 = vmatpush1.msra.mxu0 %v6566
    %6568 = vmatprep.subr.mxu0 0.0
    %v6569 = vand.u32 %v275, 4294901760
    %v6570 = vsub.f32 %v275, %v6569
    %v6571 = vand.u32 %v6570, 4294901760
    %v6572 = vsub.f32 %v6570, %v6571
    %v6573 = vand.u32 %v6572, 4294901760
    %6574 = vmatpush1.msra.mxu0 %v6573
    %6575 = vmatprep.subr.mxu0 0.0
    %v6576 = vand.u32 %v274, 4294901760
    %v6577 = vsub.f32 %v274, %v6576
    %v6578 = vand.u32 %v6577, 4294901760
    %v6579 = vsub.f32 %v6577, %v6578
    %v6580 = vand.u32 %v6579, 4294901760
    %6581 = vmatpush1.msra.mxu0 %v6580
    %6582 = vmatprep.subr.mxu0 0.0
    %v6583 = vand.u32 %v273, 4294901760
    %v6584 = vsub.f32 %v273, %v6583
    %v6585 = vand.u32 %v6584, 4294901760
    %v6586 = vsub.f32 %v6584, %v6585
    %v6587 = vand.u32 %v6586, 4294901760
    %6588 = vmatpush1.msra.mxu0 %v6587
    %6589 = vmatprep.subr.mxu0 0.0
    %v6590 = vand.u32 %v272, 4294901760
    %v6591 = vsub.f32 %v272, %v6590
    %v6592 = vand.u32 %v6591, 4294901760
    %v6593 = vsub.f32 %v6591, %v6592
    %v6594 = vand.u32 %v6593, 4294901760
    %6595 = vmatpush1.msra.mxu0 %v6594
    %6596 = vmatprep.subr.mxu0 0.0
    %v6597 = vand.u32 %v271, 4294901760
    %v6598 = vsub.f32 %v271, %v6597
    %v6599 = vand.u32 %v6598, 4294901760
    %v6600 = vsub.f32 %v6598, %v6599
    %v6601 = vand.u32 %v6600, 4294901760
    %6602 = vmatpush1.msra.mxu0 %v6601
    %6603 = vmatprep.subr.mxu0 0.0
    %v6604 = vand.u32 %v270, 4294901760
    %v6605 = vsub.f32 %v270, %v6604
    %v6606 = vand.u32 %v6605, 4294901760
    %v6607 = vsub.f32 %v6605, %v6606
    %v6608 = vand.u32 %v6607, 4294901760
    %6609 = vmatpush1.msra.mxu0 %v6608
    %6610 = vmatprep.subr.mxu0 0.0
    %v6611 = vand.u32 %v269, 4294901760
    %v6612 = vsub.f32 %v269, %v6611
    %v6613 = vand.u32 %v6612, 4294901760
    %v6614 = vsub.f32 %v6612, %v6613
    %v6615 = vand.u32 %v6614, 4294901760
    %6616 = vmatpush1.msra.mxu0 %v6615
    %6617 = vmatprep.subr.mxu0 0.0
    %v6618 = vand.u32 %v268, 4294901760
    %v6619 = vsub.f32 %v268, %v6618
    %v6620 = vand.u32 %v6619, 4294901760
    %v6621 = vsub.f32 %v6619, %v6620
    %v6622 = vand.u32 %v6621, 4294901760
    %6623 = vmatpush1.msra.mxu0 %v6622
    %6624 = vmatprep.subr.mxu0 0.0
    %v6625 = vand.u32 %v267, 4294901760
    %v6626 = vsub.f32 %v267, %v6625
    %v6627 = vand.u32 %v6626, 4294901760
    %v6628 = vsub.f32 %v6626, %v6627
    %v6629 = vand.u32 %v6628, 4294901760
    %6630 = vmatpush1.msra.mxu0 %v6629
    %6631 = vmatprep.subr.mxu0 0.0
    %v6632 = vand.u32 %v266, 4294901760
    %v6633 = vsub.f32 %v266, %v6632
    %v6634 = vand.u32 %v6633, 4294901760
    %v6635 = vsub.f32 %v6633, %v6634
    %v6636 = vand.u32 %v6635, 4294901760
    %6637 = vmatpush1.msra.mxu0 %v6636
    %6638 = vmatprep.subr.mxu0 0.0
    %v6639 = vand.u32 %v297, 4294901760
    %v6640 = vsub.f32 %v297, %v6639
    %v6641 = vand.u32 %v6640, 4294901760
    %v6642 = vsub.f32 %v6640, %v6641
    %v6643 = vand.u32 %v6642, 4294901760
    %6644 = vmatpush2.msra.mxu0 %v6643
    %6645 = vmatprep.subr.mxu0 0.0
    %v6646 = vand.u32 %v296, 4294901760
    %v6647 = vsub.f32 %v296, %v6646
    %v6648 = vand.u32 %v6647, 4294901760
    %v6649 = vsub.f32 %v6647, %v6648
    %v6650 = vand.u32 %v6649, 4294901760
    %6651 = vmatpush2.msra.mxu0 %v6650
    %6652 = vmatprep.subr.mxu0 0.0
    %v6653 = vand.u32 %v295, 4294901760
    %v6654 = vsub.f32 %v295, %v6653
    %v6655 = vand.u32 %v6654, 4294901760
    %v6656 = vsub.f32 %v6654, %v6655
    %v6657 = vand.u32 %v6656, 4294901760
    %6658 = vmatpush2.msra.mxu0 %v6657
    %6659 = vmatprep.subr.mxu0 0.0
    %v6660 = vand.u32 %v294, 4294901760
    %v6661 = vsub.f32 %v294, %v6660
    %v6662 = vand.u32 %v6661, 4294901760
    %v6663 = vsub.f32 %v6661, %v6662
    %v6664 = vand.u32 %v6663, 4294901760
    %6665 = vmatpush2.msra.mxu0 %v6664
    %6666 = vmatprep.subr.mxu0 0.0
    %v6667 = vand.u32 %v293, 4294901760
    %v6668 = vsub.f32 %v293, %v6667
    %v6669 = vand.u32 %v6668, 4294901760
    %v6670 = vsub.f32 %v6668, %v6669
    %v6671 = vand.u32 %v6670, 4294901760
    %6672 = vmatpush2.msra.mxu0 %v6671
    %6673 = vmatprep.subr.mxu0 0.0
    %v6674 = vand.u32 %v292, 4294901760
    %v6675 = vsub.f32 %v292, %v6674
    %v6676 = vand.u32 %v6675, 4294901760
    %v6677 = vsub.f32 %v6675, %v6676
    %v6678 = vand.u32 %v6677, 4294901760
    %6679 = vmatpush2.msra.mxu0 %v6678
    %6680 = vmatprep.subr.mxu0 0.0
    %v6681 = vand.u32 %v291, 4294901760
    %v6682 = vsub.f32 %v291, %v6681
    %v6683 = vand.u32 %v6682, 4294901760
    %v6684 = vsub.f32 %v6682, %v6683
    %v6685 = vand.u32 %v6684, 4294901760
    %6686 = vmatpush2.msra.mxu0 %v6685
    %6687 = vmatprep.subr.mxu0 0.0
    %v6688 = vand.u32 %v290, 4294901760
    %v6689 = vsub.f32 %v290, %v6688
    %v6690 = vand.u32 %v6689, 4294901760
    %v6691 = vsub.f32 %v6689, %v6690
    %v6692 = vand.u32 %v6691, 4294901760
    %6693 = vmatpush2.msra.mxu0 %v6692
    %6694 = vmatprep.subr.mxu0 0.0
    %v6695 = vand.u32 %v289, 4294901760
    %v6696 = vsub.f32 %v289, %v6695
    %v6697 = vand.u32 %v6696, 4294901760
    %v6698 = vsub.f32 %v6696, %v6697
    %v6699 = vand.u32 %v6698, 4294901760
    %6700 = vmatpush2.msra.mxu0 %v6699
    %6701 = vmatprep.subr.mxu0 0.0
    %v6702 = vand.u32 %v288, 4294901760
    %v6703 = vsub.f32 %v288, %v6702
    %v6704 = vand.u32 %v6703, 4294901760
    %v6705 = vsub.f32 %v6703, %v6704
    %v6706 = vand.u32 %v6705, 4294901760
    %6707 = vmatpush2.msra.mxu0 %v6706
    %6708 = vmatprep.subr.mxu0 0.0
    %v6709 = vand.u32 %v287, 4294901760
    %v6710 = vsub.f32 %v287, %v6709
    %v6711 = vand.u32 %v6710, 4294901760
    %v6712 = vsub.f32 %v6710, %v6711
    %v6713 = vand.u32 %v6712, 4294901760
    %6714 = vmatpush2.msra.mxu0 %v6713
    %6715 = vmatprep.subr.mxu0 0.0
    %v6716 = vand.u32 %v286, 4294901760
    %v6717 = vsub.f32 %v286, %v6716
    %v6718 = vand.u32 %v6717, 4294901760
    %v6719 = vsub.f32 %v6717, %v6718
    %v6720 = vand.u32 %v6719, 4294901760
    %6721 = vmatpush2.msra.mxu0 %v6720
    %6722 = vmatprep.subr.mxu0 0.0
    %v6723 = vand.u32 %v285, 4294901760
    %v6724 = vsub.f32 %v285, %v6723
    %v6725 = vand.u32 %v6724, 4294901760
    %v6726 = vsub.f32 %v6724, %v6725
    %v6727 = vand.u32 %v6726, 4294901760
    %6728 = vmatpush2.msra.mxu0 %v6727
    %6729 = vmatprep.subr.mxu0 0.0
    %v6730 = vand.u32 %v284, 4294901760
    %v6731 = vsub.f32 %v284, %v6730
    %v6732 = vand.u32 %v6731, 4294901760
    %v6733 = vsub.f32 %v6731, %v6732
    %v6734 = vand.u32 %v6733, 4294901760
    %6735 = vmatpush2.msra.mxu0 %v6734
    %6736 = vmatprep.subr.mxu0 0.0
    %v6737 = vand.u32 %v283, 4294901760
    %v6738 = vsub.f32 %v283, %v6737
    %v6739 = vand.u32 %v6738, 4294901760
    %v6740 = vsub.f32 %v6738, %v6739
    %v6741 = vand.u32 %v6740, 4294901760
    %6742 = vmatpush2.msra.mxu0 %v6741
    %6743 = vmatprep.subr.mxu0 0.0
    %v6744 = vand.u32 %v282, 4294901760
    %v6745 = vsub.f32 %v282, %v6744
    %v6746 = vand.u32 %v6745, 4294901760
    %v6747 = vsub.f32 %v6745, %v6746
    %v6748 = vand.u32 %v6747, 4294901760
    %6749 = vmatpush2.msra.mxu0 %v6748
    %v6750 = vand.u32 %v363, 4294901760
    %6751 = vmatprep.mubr.f32.mxu0 %v6750
    %v6752 = vand.u32 %v359, 4294901760
    %6753 = vmatmul.mubr.f32.gmra.mxu0 %v6752
    %v6754 = vpop.f32.mrf.mxu0
    %v6755 = vadd.f32 %v6523, %v6754
    %v6756 = vpop.f32.mrf.mxu0
    %6757 = vdwg.mxu0
    %6758 = vmatprep.subr.mxu0 0.0
    %v6759 = vand.u32 %v281, 4294901760
    %v6760 = vsub.f32 %v281, %v6759
    %6761 = vmatpush1.msra.mxu0 %v6760
    %6762 = vmatprep.subr.mxu0 0.0
    %v6763 = vand.u32 %v280, 4294901760
    %v6764 = vsub.f32 %v280, %v6763
    %6765 = vmatpush1.msra.mxu0 %v6764
    %6766 = vmatprep.subr.mxu0 0.0
    %v6767 = vand.u32 %v279, 4294901760
    %v6768 = vsub.f32 %v279, %v6767
    %6769 = vmatpush1.msra.mxu0 %v6768
    %6770 = vmatprep.subr.mxu0 0.0
    %v6771 = vand.u32 %v278, 4294901760
    %v6772 = vsub.f32 %v278, %v6771
    %6773 = vmatpush1.msra.mxu0 %v6772
    %6774 = vmatprep.subr.mxu0 0.0
    %v6775 = vand.u32 %v277, 4294901760
    %v6776 = vsub.f32 %v277, %v6775
    %6777 = vmatpush1.msra.mxu0 %v6776
    %6778 = vmatprep.subr.mxu0 0.0
    %v6779 = vand.u32 %v276, 4294901760
    %v6780 = vsub.f32 %v276, %v6779
    %6781 = vmatpush1.msra.mxu0 %v6780
    %6782 = vmatprep.subr.mxu0 0.0
    %v6783 = vand.u32 %v275, 4294901760
    %v6784 = vsub.f32 %v275, %v6783
    %6785 = vmatpush1.msra.mxu0 %v6784
    %6786 = vmatprep.subr.mxu0 0.0
    %v6787 = vand.u32 %v274, 4294901760
    %v6788 = vsub.f32 %v274, %v6787
    %6789 = vmatpush1.msra.mxu0 %v6788
    %6790 = vmatprep.subr.mxu0 0.0
    %v6791 = vand.u32 %v273, 4294901760
    %v6792 = vsub.f32 %v273, %v6791
    %6793 = vmatpush1.msra.mxu0 %v6792
    %6794 = vmatprep.subr.mxu0 0.0
    %v6795 = vand.u32 %v272, 4294901760
    %v6796 = vsub.f32 %v272, %v6795
    %6797 = vmatpush1.msra.mxu0 %v6796
    %6798 = vmatprep.subr.mxu0 0.0
    %v6799 = vand.u32 %v271, 4294901760
    %v6800 = vsub.f32 %v271, %v6799
    %6801 = vmatpush1.msra.mxu0 %v6800
    %6802 = vmatprep.subr.mxu0 0.0
    %v6803 = vand.u32 %v270, 4294901760
    %v6804 = vsub.f32 %v270, %v6803
    %6805 = vmatpush1.msra.mxu0 %v6804
    %6806 = vmatprep.subr.mxu0 0.0
    %v6807 = vand.u32 %v269, 4294901760
    %v6808 = vsub.f32 %v269, %v6807
    %6809 = vmatpush1.msra.mxu0 %v6808
    %6810 = vmatprep.subr.mxu0 0.0
    %v6811 = vand.u32 %v268, 4294901760
    %v6812 = vsub.f32 %v268, %v6811
    %6813 = vmatpush1.msra.mxu0 %v6812
    %6814 = vmatprep.subr.mxu0 0.0
    %v6815 = vand.u32 %v267, 4294901760
    %v6816 = vsub.f32 %v267, %v6815
    %6817 = vmatpush1.msra.mxu0 %v6816
    %6818 = vmatprep.subr.mxu0 0.0
    %v6819 = vand.u32 %v266, 4294901760
    %v6820 = vsub.f32 %v266, %v6819
    %6821 = vmatpush1.msra.mxu0 %v6820
    %6822 = vmatprep.subr.mxu0 0.0
    %v6823 = vand.u32 %v297, 4294901760
    %v6824 = vsub.f32 %v297, %v6823
    %6825 = vmatpush2.msra.mxu0 %v6824
    %6826 = vmatprep.subr.mxu0 0.0
    %v6827 = vand.u32 %v296, 4294901760
    %v6828 = vsub.f32 %v296, %v6827
    %6829 = vmatpush2.msra.mxu0 %v6828
    %6830 = vmatprep.subr.mxu0 0.0
    %v6831 = vand.u32 %v295, 4294901760
    %v6832 = vsub.f32 %v295, %v6831
    %6833 = vmatpush2.msra.mxu0 %v6832
    %6834 = vmatprep.subr.mxu0 0.0
    %v6835 = vand.u32 %v294, 4294901760
    %v6836 = vsub.f32 %v294, %v6835
    %6837 = vmatpush2.msra.mxu0 %v6836
    %6838 = vmatprep.subr.mxu0 0.0
    %v6839 = vand.u32 %v293, 4294901760
    %v6840 = vsub.f32 %v293, %v6839
    %6841 = vmatpush2.msra.mxu0 %v6840
    %6842 = vmatprep.subr.mxu0 0.0
    %v6843 = vand.u32 %v292, 4294901760
    %v6844 = vsub.f32 %v292, %v6843
    %6845 = vmatpush2.msra.mxu0 %v6844
    %6846 = vmatprep.subr.mxu0 0.0
    %v6847 = vand.u32 %v291, 4294901760
    %v6848 = vsub.f32 %v291, %v6847
    %6849 = vmatpush2.msra.mxu0 %v6848
    %6850 = vmatprep.subr.mxu0 0.0
    %v6851 = vand.u32 %v290, 4294901760
    %v6852 = vsub.f32 %v290, %v6851
    %6853 = vmatpush2.msra.mxu0 %v6852
    %6854 = vmatprep.subr.mxu0 0.0
    %v6855 = vand.u32 %v289, 4294901760
    %v6856 = vsub.f32 %v289, %v6855
    %6857 = vmatpush2.msra.mxu0 %v6856
    %6858 = vmatprep.subr.mxu0 0.0
    %v6859 = vand.u32 %v288, 4294901760
    %v6860 = vsub.f32 %v288, %v6859
    %6861 = vmatpush2.msra.mxu0 %v6860
    %6862 = vmatprep.subr.mxu0 0.0
    %v6863 = vand.u32 %v287, 4294901760
    %v6864 = vsub.f32 %v287, %v6863
    %6865 = vmatpush2.msra.mxu0 %v6864
    %6866 = vmatprep.subr.mxu0 0.0
    %v6867 = vand.u32 %v286, 4294901760
    %v6868 = vsub.f32 %v286, %v6867
    %6869 = vmatpush2.msra.mxu0 %v6868
    %6870 = vmatprep.subr.mxu0 0.0
    %v6871 = vand.u32 %v285, 4294901760
    %v6872 = vsub.f32 %v285, %v6871
    %6873 = vmatpush2.msra.mxu0 %v6872
    %6874 = vmatprep.subr.mxu0 0.0
    %v6875 = vand.u32 %v284, 4294901760
    %v6876 = vsub.f32 %v284, %v6875
    %6877 = vmatpush2.msra.mxu0 %v6876
    %6878 = vmatprep.subr.mxu0 0.0
    %v6879 = vand.u32 %v283, 4294901760
    %v6880 = vsub.f32 %v283, %v6879
    %6881 = vmatpush2.msra.mxu0 %v6880
    %6882 = vmatprep.subr.mxu0 0.0
    %v6883 = vand.u32 %v282, 4294901760
    %v6884 = vsub.f32 %v282, %v6883
    %6885 = vmatpush2.msra.mxu0 %v6884
    %v6886 = vand.u32 %v363, 4294901760
    %v6887 = vsub.f32 %v363, %v6886
    %6888 = vmatprep.mubr.f32.mxu0 %v6887
    %v6889 = vand.u32 %v359, 4294901760
    %v6890 = vsub.f32 %v359, %v6889
    %6891 = vmatmul.mubr.f32.gmra.mxu0 %v6890
    %v6892 = vpop.f32.mrf.mxu0
    %v6893 = vadd.f32 %v6755, %v6892
    %v6894 = vpop.f32.mrf.mxu0
    %6895 = vdwg.mxu0
    %6896 = vmatprep.subr.mxu0 0.0
    %v6897 = vand.u32 %v281, 4294901760
    %6898 = vmatpush1.msra.mxu0 %v6897
    %6899 = vmatprep.subr.mxu0 0.0
    %v6900 = vand.u32 %v280, 4294901760
    %6901 = vmatpush1.msra.mxu0 %v6900
    %6902 = vmatprep.subr.mxu0 0.0
    %v6903 = vand.u32 %v279, 4294901760
    %6904 = vmatpush1.msra.mxu0 %v6903
    %6905 = vmatprep.subr.mxu0 0.0
    %v6906 = vand.u32 %v278, 4294901760
    %6907 = vmatpush1.msra.mxu0 %v6906
    %6908 = vmatprep.subr.mxu0 0.0
    %v6909 = vand.u32 %v277, 4294901760
    %6910 = vmatpush1.msra.mxu0 %v6909
    %6911 = vmatprep.subr.mxu0 0.0
    %v6912 = vand.u32 %v276, 4294901760
    %6913 = vmatpush1.msra.mxu0 %v6912
    %6914 = vmatprep.subr.mxu0 0.0
    %v6915 = vand.u32 %v275, 4294901760
    %6916 = vmatpush1.msra.mxu0 %v6915
    %6917 = vmatprep.subr.mxu0 0.0
    %v6918 = vand.u32 %v274, 4294901760
    %6919 = vmatpush1.msra.mxu0 %v6918
    %6920 = vmatprep.subr.mxu0 0.0
    %v6921 = vand.u32 %v273, 4294901760
    %6922 = vmatpush1.msra.mxu0 %v6921
    %6923 = vmatprep.subr.mxu0 0.0
    %v6924 = vand.u32 %v272, 4294901760
    %6925 = vmatpush1.msra.mxu0 %v6924
    %6926 = vmatprep.subr.mxu0 0.0
    %v6927 = vand.u32 %v271, 4294901760
    %6928 = vmatpush1.msra.mxu0 %v6927
    %6929 = vmatprep.subr.mxu0 0.0
    %v6930 = vand.u32 %v270, 4294901760
    %6931 = vmatpush1.msra.mxu0 %v6930
    %6932 = vmatprep.subr.mxu0 0.0
    %v6933 = vand.u32 %v269, 4294901760
    %6934 = vmatpush1.msra.mxu0 %v6933
    %6935 = vmatprep.subr.mxu0 0.0
    %v6936 = vand.u32 %v268, 4294901760
    %6937 = vmatpush1.msra.mxu0 %v6936
    %6938 = vmatprep.subr.mxu0 0.0
    %v6939 = vand.u32 %v267, 4294901760
    %6940 = vmatpush1.msra.mxu0 %v6939
    %6941 = vmatprep.subr.mxu0 0.0
    %v6942 = vand.u32 %v266, 4294901760
    %6943 = vmatpush1.msra.mxu0 %v6942
    %6944 = vmatprep.subr.mxu0 0.0
    %v6945 = vand.u32 %v297, 4294901760
    %6946 = vmatpush2.msra.mxu0 %v6945
    %6947 = vmatprep.subr.mxu0 0.0
    %v6948 = vand.u32 %v296, 4294901760
    %6949 = vmatpush2.msra.mxu0 %v6948
    %6950 = vmatprep.subr.mxu0 0.0
    %v6951 = vand.u32 %v295, 4294901760
    %6952 = vmatpush2.msra.mxu0 %v6951
    %6953 = vmatprep.subr.mxu0 0.0
    %v6954 = vand.u32 %v294, 4294901760
    %6955 = vmatpush2.msra.mxu0 %v6954
    %6956 = vmatprep.subr.mxu0 0.0
    %v6957 = vand.u32 %v293, 4294901760
    %6958 = vmatpush2.msra.mxu0 %v6957
    %6959 = vmatprep.subr.mxu0 0.0
    %v6960 = vand.u32 %v292, 4294901760
    %6961 = vmatpush2.msra.mxu0 %v6960
    %6962 = vmatprep.subr.mxu0 0.0
    %v6963 = vand.u32 %v291, 4294901760
    %6964 = vmatpush2.msra.mxu0 %v6963
    %6965 = vmatprep.subr.mxu0 0.0
    %v6966 = vand.u32 %v290, 4294901760
    %6967 = vmatpush2.msra.mxu0 %v6966
    %6968 = vmatprep.subr.mxu0 0.0
    %v6969 = vand.u32 %v289, 4294901760
    %6970 = vmatpush2.msra.mxu0 %v6969
    %6971 = vmatprep.subr.mxu0 0.0
    %v6972 = vand.u32 %v288, 4294901760
    %6973 = vmatpush2.msra.mxu0 %v6972
    %6974 = vmatprep.subr.mxu0 0.0
    %v6975 = vand.u32 %v287, 4294901760
    %6976 = vmatpush2.msra.mxu0 %v6975
    %6977 = vmatprep.subr.mxu0 0.0
    %v6978 = vand.u32 %v286, 4294901760
    %6979 = vmatpush2.msra.mxu0 %v6978
    %6980 = vmatprep.subr.mxu0 0.0
    %v6981 = vand.u32 %v285, 4294901760
    %6982 = vmatpush2.msra.mxu0 %v6981
    %6983 = vmatprep.subr.mxu0 0.0
    %v6984 = vand.u32 %v284, 4294901760
    %6985 = vmatpush2.msra.mxu0 %v6984
    %6986 = vmatprep.subr.mxu0 0.0
    %v6987 = vand.u32 %v283, 4294901760
    %6988 = vmatpush2.msra.mxu0 %v6987
    %6989 = vmatprep.subr.mxu0 0.0
    %v6990 = vand.u32 %v282, 4294901760
    %6991 = vmatpush2.msra.mxu0 %v6990
    %v6992 = vand.u32 %v363, 4294901760
    %v6993 = vsub.f32 %v363, %v6992
    %v6994 = vand.u32 %v6993, 4294901760
    %6995 = vmatprep.mubr.f32.mxu0 %v6994
    %v6996 = vand.u32 %v359, 4294901760
    %v6997 = vsub.f32 %v359, %v6996
    %v6998 = vand.u32 %v6997, 4294901760
    %6999 = vmatmul.mubr.f32.gmra.mxu0 %v6998
    %v7000 = vpop.f32.mrf.mxu0
    %v7001 = vadd.f32 %v6893, %v7000
    %v7002 = vpop.f32.mrf.mxu0
    %7003 = vdwg.mxu0
    %7004 = vmatprep.subr.mxu0 0.0
    %v7005 = vand.u32 %v281, 4294901760
    %v7006 = vsub.f32 %v281, %v7005
    %v7007 = vand.u32 %v7006, 4294901760
    %7008 = vmatpush1.msra.mxu0 %v7007
    %7009 = vmatprep.subr.mxu0 0.0
    %v7010 = vand.u32 %v280, 4294901760
    %v7011 = vsub.f32 %v280, %v7010
    %v7012 = vand.u32 %v7011, 4294901760
    %7013 = vmatpush1.msra.mxu0 %v7012
    %7014 = vmatprep.subr.mxu0 0.0
    %v7015 = vand.u32 %v279, 4294901760
    %v7016 = vsub.f32 %v279, %v7015
    %v7017 = vand.u32 %v7016, 4294901760
    %7018 = vmatpush1.msra.mxu0 %v7017
    %7019 = vmatprep.subr.mxu0 0.0
    %v7020 = vand.u32 %v278, 4294901760
    %v7021 = vsub.f32 %v278, %v7020
    %v7022 = vand.u32 %v7021, 4294901760
    %7023 = vmatpush1.msra.mxu0 %v7022
    %7024 = vmatprep.subr.mxu0 0.0
    %v7025 = vand.u32 %v277, 4294901760
    %v7026 = vsub.f32 %v277, %v7025
    %v7027 = vand.u32 %v7026, 4294901760
    %7028 = vmatpush1.msra.mxu0 %v7027
    %7029 = vmatprep.subr.mxu0 0.0
    %v7030 = vand.u32 %v276, 4294901760
    %v7031 = vsub.f32 %v276, %v7030
    %v7032 = vand.u32 %v7031, 4294901760
    %7033 = vmatpush1.msra.mxu0 %v7032
    %7034 = vmatprep.subr.mxu0 0.0
    %v7035 = vand.u32 %v275, 4294901760
    %v7036 = vsub.f32 %v275, %v7035
    %v7037 = vand.u32 %v7036, 4294901760
    %7038 = vmatpush1.msra.mxu0 %v7037
    %7039 = vmatprep.subr.mxu0 0.0
    %v7040 = vand.u32 %v274, 4294901760
    %v7041 = vsub.f32 %v274, %v7040
    %v7042 = vand.u32 %v7041, 4294901760
    %7043 = vmatpush1.msra.mxu0 %v7042
    %7044 = vmatprep.subr.mxu0 0.0
    %v7045 = vand.u32 %v273, 4294901760
    %v7046 = vsub.f32 %v273, %v7045
    %v7047 = vand.u32 %v7046, 4294901760
    %7048 = vmatpush1.msra.mxu0 %v7047
    %7049 = vmatprep.subr.mxu0 0.0
    %v7050 = vand.u32 %v272, 4294901760
    %v7051 = vsub.f32 %v272, %v7050
    %v7052 = vand.u32 %v7051, 4294901760
    %7053 = vmatpush1.msra.mxu0 %v7052
    %7054 = vmatprep.subr.mxu0 0.0
    %v7055 = vand.u32 %v271, 4294901760
    %v7056 = vsub.f32 %v271, %v7055
    %v7057 = vand.u32 %v7056, 4294901760
    %7058 = vmatpush1.msra.mxu0 %v7057
    %7059 = vmatprep.subr.mxu0 0.0
    %v7060 = vand.u32 %v270, 4294901760
    %v7061 = vsub.f32 %v270, %v7060
    %v7062 = vand.u32 %v7061, 4294901760
    %7063 = vmatpush1.msra.mxu0 %v7062
    %7064 = vmatprep.subr.mxu0 0.0
    %v7065 = vand.u32 %v269, 4294901760
    %v7066 = vsub.f32 %v269, %v7065
    %v7067 = vand.u32 %v7066, 4294901760
    %7068 = vmatpush1.msra.mxu0 %v7067
    %7069 = vmatprep.subr.mxu0 0.0
    %v7070 = vand.u32 %v268, 4294901760
    %v7071 = vsub.f32 %v268, %v7070
    %v7072 = vand.u32 %v7071, 4294901760
    %7073 = vmatpush1.msra.mxu0 %v7072
    %7074 = vmatprep.subr.mxu0 0.0
    %v7075 = vand.u32 %v267, 4294901760
    %v7076 = vsub.f32 %v267, %v7075
    %v7077 = vand.u32 %v7076, 4294901760
    %7078 = vmatpush1.msra.mxu0 %v7077
    %7079 = vmatprep.subr.mxu0 0.0
    %v7080 = vand.u32 %v266, 4294901760
    %v7081 = vsub.f32 %v266, %v7080
    %v7082 = vand.u32 %v7081, 4294901760
    %7083 = vmatpush1.msra.mxu0 %v7082
    %7084 = vmatprep.subr.mxu0 0.0
    %v7085 = vand.u32 %v297, 4294901760
    %v7086 = vsub.f32 %v297, %v7085
    %v7087 = vand.u32 %v7086, 4294901760
    %7088 = vmatpush2.msra.mxu0 %v7087
    %7089 = vmatprep.subr.mxu0 0.0
    %v7090 = vand.u32 %v296, 4294901760
    %v7091 = vsub.f32 %v296, %v7090
    %v7092 = vand.u32 %v7091, 4294901760
    %7093 = vmatpush2.msra.mxu0 %v7092
    %7094 = vmatprep.subr.mxu0 0.0
    %v7095 = vand.u32 %v295, 4294901760
    %v7096 = vsub.f32 %v295, %v7095
    %v7097 = vand.u32 %v7096, 4294901760
    %7098 = vmatpush2.msra.mxu0 %v7097
    %7099 = vmatprep.subr.mxu0 0.0
    %v7100 = vand.u32 %v294, 4294901760
    %v7101 = vsub.f32 %v294, %v7100
    %v7102 = vand.u32 %v7101, 4294901760
    %7103 = vmatpush2.msra.mxu0 %v7102
    %7104 = vmatprep.subr.mxu0 0.0
    %v7105 = vand.u32 %v293, 4294901760
    %v7106 = vsub.f32 %v293, %v7105
    %v7107 = vand.u32 %v7106, 4294901760
    %7108 = vmatpush2.msra.mxu0 %v7107
    %7109 = vmatprep.subr.mxu0 0.0
    %v7110 = vand.u32 %v292, 4294901760
    %v7111 = vsub.f32 %v292, %v7110
    %v7112 = vand.u32 %v7111, 4294901760
    %7113 = vmatpush2.msra.mxu0 %v7112
    %7114 = vmatprep.subr.mxu0 0.0
    %v7115 = vand.u32 %v291, 4294901760
    %v7116 = vsub.f32 %v291, %v7115
    %v7117 = vand.u32 %v7116, 4294901760
    %7118 = vmatpush2.msra.mxu0 %v7117
    %7119 = vmatprep.subr.mxu0 0.0
    %v7120 = vand.u32 %v290, 4294901760
    %v7121 = vsub.f32 %v290, %v7120
    %v7122 = vand.u32 %v7121, 4294901760
    %7123 = vmatpush2.msra.mxu0 %v7122
    %7124 = vmatprep.subr.mxu0 0.0
    %v7125 = vand.u32 %v289, 4294901760
    %v7126 = vsub.f32 %v289, %v7125
    %v7127 = vand.u32 %v7126, 4294901760
    %7128 = vmatpush2.msra.mxu0 %v7127
    %7129 = vmatprep.subr.mxu0 0.0
    %v7130 = vand.u32 %v288, 4294901760
    %v7131 = vsub.f32 %v288, %v7130
    %v7132 = vand.u32 %v7131, 4294901760
    %7133 = vmatpush2.msra.mxu0 %v7132
    %7134 = vmatprep.subr.mxu0 0.0
    %v7135 = vand.u32 %v287, 4294901760
    %v7136 = vsub.f32 %v287, %v7135
    %v7137 = vand.u32 %v7136, 4294901760
    %7138 = vmatpush2.msra.mxu0 %v7137
    %7139 = vmatprep.subr.mxu0 0.0
    %v7140 = vand.u32 %v286, 4294901760
    %v7141 = vsub.f32 %v286, %v7140
    %v7142 = vand.u32 %v7141, 4294901760
    %7143 = vmatpush2.msra.mxu0 %v7142
    %7144 = vmatprep.subr.mxu0 0.0
    %v7145 = vand.u32 %v285, 4294901760
    %v7146 = vsub.f32 %v285, %v7145
    %v7147 = vand.u32 %v7146, 4294901760
    %7148 = vmatpush2.msra.mxu0 %v7147
    %7149 = vmatprep.subr.mxu0 0.0
    %v7150 = vand.u32 %v284, 4294901760
    %v7151 = vsub.f32 %v284, %v7150
    %v7152 = vand.u32 %v7151, 4294901760
    %7153 = vmatpush2.msra.mxu0 %v7152
    %7154 = vmatprep.subr.mxu0 0.0
    %v7155 = vand.u32 %v283, 4294901760
    %v7156 = vsub.f32 %v283, %v7155
    %v7157 = vand.u32 %v7156, 4294901760
    %7158 = vmatpush2.msra.mxu0 %v7157
    %7159 = vmatprep.subr.mxu0 0.0
    %v7160 = vand.u32 %v282, 4294901760
    %v7161 = vsub.f32 %v282, %v7160
    %v7162 = vand.u32 %v7161, 4294901760
    %7163 = vmatpush2.msra.mxu0 %v7162
    %v7164 = vand.u32 %v363, 4294901760
    %7165 = vmatprep.mubr.f32.mxu0 %v7164
    %v7166 = vand.u32 %v359, 4294901760
    %7167 = vmatmul.mubr.f32.gmra.mxu0 %v7166
    %v7168 = vpop.f32.mrf.mxu0
    %v7169 = vadd.f32 %v7001, %v7168
    %v7170 = vpop.f32.mrf.mxu0
    %7171 = vdwg.mxu0
    %7172 = vmatprep.subr.mxu0 0.0
    %v7173 = vand.u32 %v281, 4294901760
    %7174 = vmatpush1.msra.mxu0 %v7173
    %7175 = vmatprep.subr.mxu0 0.0
    %v7176 = vand.u32 %v280, 4294901760
    %7177 = vmatpush1.msra.mxu0 %v7176
    %7178 = vmatprep.subr.mxu0 0.0
    %v7179 = vand.u32 %v279, 4294901760
    %7180 = vmatpush1.msra.mxu0 %v7179
    %7181 = vmatprep.subr.mxu0 0.0
    %v7182 = vand.u32 %v278, 4294901760
    %7183 = vmatpush1.msra.mxu0 %v7182
    %7184 = vmatprep.subr.mxu0 0.0
    %v7185 = vand.u32 %v277, 4294901760
    %7186 = vmatpush1.msra.mxu0 %v7185
    %7187 = vmatprep.subr.mxu0 0.0
    %v7188 = vand.u32 %v276, 4294901760
    %7189 = vmatpush1.msra.mxu0 %v7188
    %7190 = vmatprep.subr.mxu0 0.0
    %v7191 = vand.u32 %v275, 4294901760
    %7192 = vmatpush1.msra.mxu0 %v7191
    %7193 = vmatprep.subr.mxu0 0.0
    %v7194 = vand.u32 %v274, 4294901760
    %7195 = vmatpush1.msra.mxu0 %v7194
    %7196 = vmatprep.subr.mxu0 0.0
    %v7197 = vand.u32 %v273, 4294901760
    %7198 = vmatpush1.msra.mxu0 %v7197
    %7199 = vmatprep.subr.mxu0 0.0
    %v7200 = vand.u32 %v272, 4294901760
    %7201 = vmatpush1.msra.mxu0 %v7200
    %7202 = vmatprep.subr.mxu0 0.0
    %v7203 = vand.u32 %v271, 4294901760
    %7204 = vmatpush1.msra.mxu0 %v7203
    %7205 = vmatprep.subr.mxu0 0.0
    %v7206 = vand.u32 %v270, 4294901760
    %7207 = vmatpush1.msra.mxu0 %v7206
    %7208 = vmatprep.subr.mxu0 0.0
    %v7209 = vand.u32 %v269, 4294901760
    %7210 = vmatpush1.msra.mxu0 %v7209
    %7211 = vmatprep.subr.mxu0 0.0
    %v7212 = vand.u32 %v268, 4294901760
    %7213 = vmatpush1.msra.mxu0 %v7212
    %7214 = vmatprep.subr.mxu0 0.0
    %v7215 = vand.u32 %v267, 4294901760
    %7216 = vmatpush1.msra.mxu0 %v7215
    %7217 = vmatprep.subr.mxu0 0.0
    %v7218 = vand.u32 %v266, 4294901760
    %7219 = vmatpush1.msra.mxu0 %v7218
    %7220 = vmatprep.subr.mxu0 0.0
    %v7221 = vand.u32 %v297, 4294901760
    %7222 = vmatpush2.msra.mxu0 %v7221
    %7223 = vmatprep.subr.mxu0 0.0
    %v7224 = vand.u32 %v296, 4294901760
    %7225 = vmatpush2.msra.mxu0 %v7224
    %7226 = vmatprep.subr.mxu0 0.0
    %v7227 = vand.u32 %v295, 4294901760
    %7228 = vmatpush2.msra.mxu0 %v7227
    %7229 = vmatprep.subr.mxu0 0.0
    %v7230 = vand.u32 %v294, 4294901760
    %7231 = vmatpush2.msra.mxu0 %v7230
    %7232 = vmatprep.subr.mxu0 0.0
    %v7233 = vand.u32 %v293, 4294901760
    %7234 = vmatpush2.msra.mxu0 %v7233
    %7235 = vmatprep.subr.mxu0 0.0
    %v7236 = vand.u32 %v292, 4294901760
    %7237 = vmatpush2.msra.mxu0 %v7236
    %7238 = vmatprep.subr.mxu0 0.0
    %v7239 = vand.u32 %v291, 4294901760
    %7240 = vmatpush2.msra.mxu0 %v7239
    %7241 = vmatprep.subr.mxu0 0.0
    %v7242 = vand.u32 %v290, 4294901760
    %7243 = vmatpush2.msra.mxu0 %v7242
    %7244 = vmatprep.subr.mxu0 0.0
    %v7245 = vand.u32 %v289, 4294901760
    %7246 = vmatpush2.msra.mxu0 %v7245
    %7247 = vmatprep.subr.mxu0 0.0
    %v7248 = vand.u32 %v288, 4294901760
    %7249 = vmatpush2.msra.mxu0 %v7248
    %7250 = vmatprep.subr.mxu0 0.0
    %v7251 = vand.u32 %v287, 4294901760
    %7252 = vmatpush2.msra.mxu0 %v7251
    %7253 = vmatprep.subr.mxu0 0.0
    %v7254 = vand.u32 %v286, 4294901760
    %7255 = vmatpush2.msra.mxu0 %v7254
    %7256 = vmatprep.subr.mxu0 0.0
    %v7257 = vand.u32 %v285, 4294901760
    %7258 = vmatpush2.msra.mxu0 %v7257
    %7259 = vmatprep.subr.mxu0 0.0
    %v7260 = vand.u32 %v284, 4294901760
    %7261 = vmatpush2.msra.mxu0 %v7260
    %7262 = vmatprep.subr.mxu0 0.0
    %v7263 = vand.u32 %v283, 4294901760
    %7264 = vmatpush2.msra.mxu0 %v7263
    %7265 = vmatprep.subr.mxu0 0.0
    %v7266 = vand.u32 %v282, 4294901760
    %7267 = vmatpush2.msra.mxu0 %v7266
    %v7268 = vand.u32 %v363, 4294901760
    %7269 = vmatprep.mubr.f32.mxu0 %v7268
    %v7270 = vand.u32 %v359, 4294901760
    %7271 = vmatmul.mubr.f32.gmra.mxu0 %v7270
    %v7272 = vpop.f32.mrf.mxu0
    %v7273 = vadd.f32 %v7169, %v7272
    %v7274 = vpop.f32.mrf.mxu0
    %7275 = vdwg.mxu0
    %7276 = vst [vmem:[#allocation7] sm:$0x1] %v7273
    // Predicated region
    $region18: #{tpu_custom_call.1} parent=1 // pred_check
      _
    $region19: #{tpu_custom_call.1} parent=1 // pred_check_branch
      %7278 = sbr.rel (0) target = $region21
    $region20: #{tpu_custom_call.1} parent=1 // pred_region
      %s7280 = ssub.s32 16, 16
      %7281 = vsyncadd [#allocation4], %s7280
      %s7283 = sshll.u32 [#allocation7], 4
      %s7284 = int_to_ptr.vmem [resolvable:$true] %s7283
      %7286 = dma.vmem_to_hbm [thread:$0]  %s7284, 16, %s2, [#allocation4]
    $region21: #{tpu_custom_call.1} parent=1 // pred_fallthru
      _
    // Predicated region
    $region22: #{tpu_custom_call.1} parent=1 // pred_check
      _
    $region23: #{tpu_custom_call.1} parent=1 // pred_check_branch
      %7288 = sbr.rel (0) target = $region25
    $region24: #{tpu_custom_call.1} parent=1 // pred_region
      %7289 = dma.done [#allocation4], 16
    $region25: #{tpu_custom_call.1} parent=1 // pred_fallthru
      _
    %7290 = vsyncpa [#allocation3], 1
    %7291 = vsyncpa [#allocation6], 1
    %7292 = vsyncpa [#allocation4], 1

</llo_original>
